<compile_context>
chip_gen: v7x
topology: tpu7x:2x2x1
jax: 0.10.0
libtpu: 0.0.40
codegen_flags: <defaults>
</compile_context>

<pallas_src>
import numpy as np

import jax
import jax.numpy as jnp
from jax.experimental import pallas as pl
from jax.experimental.pallas import tpu as pltpu

ACTIONS = 2


# ---------------------------------------------------------------------------
# The fused Pallas kernel (one grid step == one batch element)
# ---------------------------------------------------------------------------
def _dqn_fused_kernel(xs_ref, w1_ref, b1_ref, g2_ref, w2_ref, b2_ref,
                      g3_ref, w3_ref, b3_ref, wf1_ref, bf1_ref,
                      wf2_ref, bf2_ref, out_ref):
    f32, bf16 = jnp.float32, jnp.bfloat16

    # ---- conv1 (8x8 s4 p2) + ReLU + 2x2 max-pool, fused --------------------
    # The four (dy,dx) pool taps are packed along N (4 x 32 = 128 lanes), one
    # matmul per depth-8 space-to-depth "super tap" (ty,tx); the lhs is sliced
    # straight from the bf16 input ref (flat-index trick on an 11-wide grid).
    acc1 = jnp.zeros((112, 128), f32)
    for t, off in enumerate((0, 1, 11, 12)):            # off = ty*11 + tx
        acc1 = acc1 + jnp.dot(xs_ref[0, off:off + 112, :], w1_ref[t],
                              preferred_element_type=f32)
    pooled_pre = jnp.maximum(jnp.maximum(acc1[:, 0:32], acc1[:, 32:64]),
                             jnp.maximum(acc1[:, 64:96], acc1[:, 96:128]))
    # relu(max(acc)+b) == max(relu(acc+b)) because the bias is shared.
    pooled = jnp.maximum(pooled_pre + b1_ref[...], 0.0).astype(bf16)   # (112,32)

    # ---- regrid pooled map onto conv2's depth-2 s2d grid, lane-concatenated
    # (conv2's zero padding is folded into the constant 0/1 gather matrices).
    p2cat = jnp.concatenate(
        [jnp.dot(g2_ref[blk], pooled, preferred_element_type=f32)
         for blk in range(4)], axis=1)                                 # (40,128)

    # ---- conv2 (4x4 s2 p1) + ReLU: 4 matmuls with K = 128 ------------------
    acc2 = jnp.zeros((32, 64), f32)
    for dy in range(2):
        for dx in range(2):
            off = dy * 6 + dx
            acc2 = acc2 + jnp.dot(p2cat[off:off + 32, :].astype(bf16),
                                  w2_ref[dy * 2 + dx],
                                  preferred_element_type=f32)
    a2 = jnp.maximum(acc2 + b2_ref[...], 0.0)                          # (32,64)

    # ---- regrid onto conv3's zero-padded 7x7 grid (64 rows) ----------------
    p3 = jnp.dot(g3_ref[...], a2.astype(bf16),
                 preferred_element_type=f32)                           # (64,64)

    # ---- conv3 (3x3 s1 p1) + ReLU ------------------------------------------
    acc3 = jnp.zeros((48, 64), f32)
    for ky in range(3):
        for kx in range(3):
            off = ky * 7 + kx
            acc3 = acc3 + jnp.dot(p3[off:off + 48, :].astype(bf16),
                                  w3_ref[ky * 3 + kx],
                                  preferred_element_type=f32)
    a3 = jnp.maximum(acc3 + b3_ref[...], 0.0)                          # (48,64)

    # ---- fc1 + ReLU as ONE matmul ------------------------------------------
    # Flatten a3 into one lane-dense row: six 8-aligned row blocks are lane-
    # concatenated to (8, 384), then the 8 sublanes to (1, 3072).  The
    # matching column permutation (incl. PyTorch's (C,H,W) flatten) is folded
    # into wf1 host-side; garbage grid rows hit zero weight rows.
    rows8 = jnp.concatenate([a3[8 * b:8 * b + 8, :] for b in range(6)], axis=1)
    flat = jnp.concatenate([rows8[q:q + 1, :] for q in range(8)], axis=1)
    fc1 = jnp.maximum(
        jnp.dot(flat.astype(bf16), wf1_ref[...],
                preferred_element_type=f32) + bf1_ref[...], 0.0)       # (1,256)

    # ---- fc2 epilogue (padded to 128 lanes) + single lane-dense store ------
    ro = jnp.dot(fc1.astype(bf16), wf2_ref[...],
                 preferred_element_type=f32) + bf2_ref[...]            # (1,128)
    out_ref[0] = jnp.concatenate([fc1, ro], axis=1)                    # (1,384)


# ---------------------------------------------------------------------------
# Parameters: raw (PyTorch-layout) init + one-time host-side layout rewrite
# ---------------------------------------------------------------------------
def init_raw_params(key):
    k1, k2, k3, k4, k5 = jax.random.split(key, 5)
    return dict(
        w1=jnp.abs(0.01 * jax.random.normal(k1, (32, 4, 8, 8), jnp.float32)),
        b1=jnp.full((32,), 0.01, jnp.float32),
        w2=jnp.abs(0.01 * jax.random.normal(k2, (64, 32, 4, 4), jnp.float32)),
        b2=jnp.full((64,), 0.01, jnp.float32),
        w3=jnp.abs(0.01 * jax.random.normal(k3, (64, 64, 3, 3), jnp.float32)),
        b3=jnp.full((64,), 0.01, jnp.float32),
        f1=jnp.abs(0.01 * jax.random.normal(k4, (256, 1600), jnp.float32)),
        bf1=jnp.full((256,), 0.01, jnp.float32),
        f2=jnp.abs(0.01 * jax.random.normal(k5, (ACTIONS, 256), jnp.float32)),
        bf2=jnp.full((ACTIONS,), 0.01, jnp.float32),
    )


def prepare_params(raw):
    """Host-side, one-time rewrite of the PyTorch-layout weights into the
    packed layouts consumed by the fused kernel (runs outside jit)."""
    w1 = np.asarray(raw["w1"], np.float32)        # (32, 4, 8, 8)
    w2 = np.asarray(raw["w2"], np.float32)        # (64, 32, 4, 4)
    w3 = np.asarray(raw["w3"], np.float32)        # (64, 64, 3, 3)
    f1 = np.asarray(raw["f1"], np.float32)        # (256, 1600)
    f2 = np.asarray(raw["f2"], np.float32)        # (ACTIONS, 256)

    # conv1: one (256,128) weight per depth-8 s2d super-tap (ty,tx); the 128
    # output lanes are the four 32-channel (dy,dx) pool-tap groups.
    w1p = np.zeros((2, 2, 256, 128), np.float32)
    for dy in range(2):
        for dx in range(2):
            for kh in range(8):
                ty, u = divmod(4 * dy + kh, 8)
                for kw in range(8):
                    tx, v = divmod(4 * dx + kw, 8)
                    feats = np.arange(4) * 64 + u * 8 + v
                    cols = 32 * (dy * 2 + dx) + np.arange(32)
                    w1p[ty, tx][np.ix_(feats, cols)] = w1[:, :, kh, kw].T
    w1p = w1p.reshape(4, 256, 128)

    # pooled 10x10 map (flat on an 11-wide, 112-row grid) -> conv2 s2d blocks
    # (sh, sw) on a 6-wide grid, conv2's zero padding folded in.
    g2 = np.zeros((2, 2, 40, 112), np.float32)
    for sh in range(2):
        for sw in range(2):
            for i in range(6):
                for j in range(6):
                    P, Q = 2 * i + sh - 1, 2 * j + sw - 1
                    if 0 <= P <= 9 and 0 <= Q <= 9:
                        g2[sh, sw, i * 6 + j, P * 11 + Q] = 1.0
    g2 = g2.reshape(4, 40, 112)

    # conv2: one (128,64) weight per (dy,dx) tap; the 128 K rows are the four
    # 32-channel s2d blocks (sh,sw) in lane-concat order.
    w2p = np.zeros((2, 2, 128, 64), np.float32)
    for dy in range(2):
        for dx in range(2):
            for sh in range(2):
                for sw in range(2):
                    blk = sh * 2 + sw
                    w2p[dy, dx, 32 * blk:32 * blk + 32, :] = \
                        w2[:, :, 2 * dy + sh, 2 * dx + sw].T
    w2p = w2p.reshape(4, 128, 64)

    # conv2 output (5x5, flat on a 6-wide grid) -> zero-padded 7x7 conv3 grid,
    # extended to 64 rows so every conv3 tap reads an 8-aligned 48-row window.
    g3 = np.zeros((64, 32), np.float32)
    for y in range(1, 6):
        for x_ in range(1, 6):
            g3[y * 7 + x_, (y - 1) * 6 + (x_ - 1)] = 1.0

    w3e = w3.transpose(2, 3, 1, 0).reshape(9, 64, 64)

    # fc1: fold both the in-kernel flatten layout (sublane q, row-block b,
    # channel c) and PyTorch's (C,H,W) flatten into one (3072,256) matrix;
    # garbage rows of the 7-wide conv3 grid get zero weight rows.
    wf1 = np.zeros((8, 6, 64, 256), np.float32)
    for b in range(6):
        for q in range(8):
            r = 8 * b + q
            y, x_ = divmod(r, 7)
            if y <= 4 and x_ <= 4:
                wf1[q, b] = f1[:, np.arange(64) * 25 + y * 5 + x_].T
    wf1 = wf1.reshape(3072, 256)

    # fc2 weight/bias padded to 128 output lanes (lane-dense store).
    wf2 = np.zeros((256, 128), np.float32)
    wf2[:, :ACTIONS] = f2.T
    bf2 = np.zeros((1, 128), np.float32)
    bf2[0, :ACTIONS] = np.asarray(raw["bf2"], np.float32)

    bf16 = jnp.bfloat16
    return dict(
        w1p=jnp.asarray(w1p, bf16), g2=jnp.asarray(g2, bf16),
        w2p=jnp.asarray(w2p, bf16), g3=jnp.asarray(g3, bf16),
        w3e=jnp.asarray(w3e, bf16), wf1=jnp.asarray(wf1, bf16),
        wf2=jnp.asarray(wf2, bf16),
        b1=jnp.asarray(np.asarray(raw["b1"]).reshape(1, 32), jnp.float32),
        b2=jnp.asarray(np.asarray(raw["b2"]).reshape(1, 64), jnp.float32),
        b3=jnp.asarray(np.asarray(raw["b3"]).reshape(1, 64), jnp.float32),
        bf1=jnp.asarray(np.asarray(raw["bf1"]).reshape(1, 256), jnp.float32),
        bf2=jnp.asarray(bf2, jnp.float32),
    )


# ---------------------------------------------------------------------------
# Forward pass: one small bf16 input space-to-depth, then ONE fused pallas_call
# ---------------------------------------------------------------------------
def net_forward(x, p):
    B = x.shape[0]
    # conv1 padding (2) + zeros to a multiple of 8, depth-8 space-to-depth in
    # bf16, plus 7 extra zero rows so every conv1 super-tap reads an 8-aligned
    # 112-row window: (B, 4, 80, 80) -> (B, 128, 256) bf16.
    xb = x.astype(jnp.bfloat16)
    xp = jnp.pad(xb, ((0, 0), (0, 0), (2, 6), (2, 6)))
    xs = (xp.reshape(B, 4, 11, 8, 11, 8)
            .transpose(0, 2, 4, 1, 3, 5)
            .reshape(B, 121, 256))
    xs = jnp.pad(xs, ((0, 0), (0, 7), (0, 0)))

    def full(a):
        return pl.BlockSpec(tuple(a.shape), lambda b, n=a.ndim: (0,) * n)

    weight_keys = ("w1p", "b1", "g2", "w2p", "b2", "g3", "w3e", "b3",
                   "wf1", "bf1", "wf2", "bf2")
    in_specs = [pl.BlockSpec((1, 128, 256), lambda b: (b, 0, 0))] + \
               [full(p[k]) for k in weight_keys]

    out = pl.pallas_call(
        _dqn_fused_kernel,
        out_shape=jax.ShapeDtypeStruct((B, 1, 384), jnp.float32),
        grid=(B,),
        in_specs=in_specs,
        out_specs=pl.BlockSpec((1, 1, 384), lambda b: (b, 0, 0)),
        compiler_params=pltpu.CompilerParams(
            dimension_semantics=("parallel",)),
    )(xs, *[p[k] for k in weight_keys])

    fc1 = out[:, 0, :256]
    readout = out[:, 0, 256:256 + ACTIONS]
    return readout, fc1


# ---------------------------------------------------------------------------
# Plain-JAX f32 reference (mirrors the PyTorch module exactly), for checking
# ---------------------------------------------------------------------------
def reference_forward(x, raw):
    def conv(h, w, b, stride, pad):
        out = jax.lax.conv_general_dilated(
            h, w, window_strides=(stride, stride),
            padding=((pad, pad), (pad, pad)),
            dimension_numbers=("NCHW", "OIHW", "NCHW"))
        return out + b.reshape(1, -1, 1, 1)

    h = jax.nn.relu(conv(x, raw["w1"], raw["b1"], 4, 2))
    h = jax.lax.reduce_window(h, -jnp.inf, jax.lax.max,
                              (1, 1, 2, 2), (1, 1, 2, 2), "VALID")
    h = jax.nn.relu(conv(h, raw["w2"], raw["b2"], 2, 1))
    h = jax.nn.relu(conv(h, raw["w3"], raw["b3"], 1, 1))
    flat = h.reshape(h.shape[0], -1)
    fc1 = jax.nn.relu(flat @ raw["f1"].T + raw["bf1"])
    readout = fc1 @ raw["f2"].T + raw["bf2"]
    return readout, fc1


if __name__ == "__main__":
    key = jax.random.PRNGKey(0)
    k_params, k_input = jax.random.split(key)
    raw = init_raw_params(k_params)
    params = prepare_params(raw)

    # Input shape implied by fc_sz = 1600: (B, 4, 80, 80); small batch B = 2.
    x = jax.random.normal(k_input, (2, 4, 80, 80), jnp.float32)

    readout, fc1_act = jax.jit(net_forward)(x, params)
    jax.block_until_ready((readout, fc1_act))

    assert readout.shape == (2, ACTIONS)
    assert fc1_act.shape == (2, 256)
    assert bool(jnp.all(jnp.isfinite(readout)))
    assert bool(jnp.all(jnp.isfinite(fc1_act)))

    # Numerical cross-check against the f32 plain-JAX reference (bf16 matmuls
    # with f32 accumulation -> expect <1% error; use a generous 5% bound).
    ref_readout, ref_fc1 = jax.jit(reference_forward)(x, raw)

    def close(a, b, tol=5e-2):
        scale = float(jnp.max(jnp.abs(b))) + 1e-6
        return float(jnp.max(jnp.abs(a - b))) <= tol * scale + 1e-3

    assert close(fc1_act, ref_fc1), "fc1 activation mismatch vs reference"
    assert close(readout, ref_readout), "readout mismatch vs reference"

    print("KERNEL_OK")
</pallas_src>

<mosaic_0001>
module attributes {stable_mosaic.version = 11 : i64} {
  func.func @_dqn_fused_kernel(%arg0: i32, %arg1: memref<1x128x256xbf16, #tpu.memory_space<vmem>>, %arg2: memref<4x256x128xbf16, #tpu.memory_space<vmem>>, %arg3: memref<1x32xf32, #tpu.memory_space<vmem>>, %arg4: memref<4x40x112xbf16, #tpu.memory_space<vmem>>, %arg5: memref<4x128x64xbf16, #tpu.memory_space<vmem>>, %arg6: memref<1x64xf32, #tpu.memory_space<vmem>>, %arg7: memref<64x32xbf16, #tpu.memory_space<vmem>>, %arg8: memref<9x64x64xbf16, #tpu.memory_space<vmem>>, %arg9: memref<1x64xf32, #tpu.memory_space<vmem>>, %arg10: memref<3072x256xbf16, #tpu.memory_space<vmem>>, %arg11: memref<1x256xf32, #tpu.memory_space<vmem>>, %arg12: memref<256x128xbf16, #tpu.memory_space<vmem>>, %arg13: memref<1x128xf32, #tpu.memory_space<vmem>>, %arg14: memref<1x1x384xf32, #tpu.memory_space<vmem>>) attributes {dimension_semantics = [#tpu.dimension_semantics<parallel>], iteration_bounds = array<i64: 2>, scalar_prefetch = 0 : i64, scratch_operands = 0 : i64, tpu.core_type = #tpu.core_type<tc>, window_params = [{transform_indices = @transform_0, window_bounds = array<i64: 1, 128, 256>}, {pipeline_mode = #tpu.pipeline_mode<synchronous>, transform_indices = @transform_1, window_bounds = array<i64: 4, 256, 128>}, {pipeline_mode = #tpu.pipeline_mode<synchronous>, transform_indices = @transform_2, window_bounds = array<i64: 1, 32>}, {pipeline_mode = #tpu.pipeline_mode<synchronous>, transform_indices = @transform_3, window_bounds = array<i64: 4, 40, 112>}, {pipeline_mode = #tpu.pipeline_mode<synchronous>, transform_indices = @transform_4, window_bounds = array<i64: 4, 128, 64>}, {pipeline_mode = #tpu.pipeline_mode<synchronous>, transform_indices = @transform_5, window_bounds = array<i64: 1, 64>}, {pipeline_mode = #tpu.pipeline_mode<synchronous>, transform_indices = @transform_6, window_bounds = array<i64: 64, 32>}, {pipeline_mode = #tpu.pipeline_mode<synchronous>, transform_indices = @transform_7, window_bounds = array<i64: 9, 64, 64>}, {pipeline_mode = #tpu.pipeline_mode<synchronous>, transform_indices = @transform_8, window_bounds = array<i64: 1, 64>}, {pipeline_mode = #tpu.pipeline_mode<synchronous>, transform_indices = @transform_9, window_bounds = array<i64: 3072, 256>}, {pipeline_mode = #tpu.pipeline_mode<synchronous>, transform_indices = @transform_10, window_bounds = array<i64: 1, 256>}, {pipeline_mode = #tpu.pipeline_mode<synchronous>, transform_indices = @transform_11, window_bounds = array<i64: 256, 128>}, {pipeline_mode = #tpu.pipeline_mode<synchronous>, transform_indices = @transform_12, window_bounds = array<i64: 1, 128>}, {transform_indices = @transform_13, window_bounds = array<i64: 1, 1, 384>}]} {
    %cst = arith.constant 0.000000e+00 : f32
    %0 = vector.broadcast %cst : f32 to vector<112x128xf32>
    %c0 = arith.constant 0 : index
    %c0_0 = arith.constant 0 : index
    %c0_1 = arith.constant 0 : index
    %1 = vector.load %arg1[%c0, %c0_0, %c0_1] : memref<1x128x256xbf16, #tpu.memory_space<vmem>>, vector<1x112x256xbf16>
    %2 = vector.shape_cast %1 : vector<1x112x256xbf16> to vector<112x256xbf16>
    %c0_2 = arith.constant 0 : index
    %c0_3 = arith.constant 0 : index
    %c0_4 = arith.constant 0 : index
    %3 = vector.load %arg2[%c0_2, %c0_3, %c0_4] : memref<4x256x128xbf16, #tpu.memory_space<vmem>>, vector<1x256x128xbf16>
    %4 = vector.shape_cast %3 : vector<1x256x128xbf16> to vector<256x128xbf16>
    %cst_5 = arith.constant dense<0.000000e+00> : vector<112x128xf32>
    %5 = tpu.matmul %2, %4, %cst_5 {dimension_numbers = #tpu.dot_dimension_numbers<[1], [0], [0], [1], [0, 0, 1, 1], [], []>} : vector<112x256xbf16>, vector<256x128xbf16>, vector<112x128xf32> -> vector<112x128xf32>
    %6 = arith.addf %0, %5 : vector<112x128xf32>
    %c0_6 = arith.constant 0 : index
    %c1 = arith.constant 1 : index
    %c0_7 = arith.constant 0 : index
    %7 = vector.load %arg1[%c0_6, %c1, %c0_7] : memref<1x128x256xbf16, #tpu.memory_space<vmem>>, vector<1x112x256xbf16>
    %8 = vector.shape_cast %7 : vector<1x112x256xbf16> to vector<112x256xbf16>
    %c1_8 = arith.constant 1 : index
    %c0_9 = arith.constant 0 : index
    %c0_10 = arith.constant 0 : index
    %9 = vector.load %arg2[%c1_8, %c0_9, %c0_10] : memref<4x256x128xbf16, #tpu.memory_space<vmem>>, vector<1x256x128xbf16>
    %10 = vector.shape_cast %9 : vector<1x256x128xbf16> to vector<256x128xbf16>
    %cst_11 = arith.constant dense<0.000000e+00> : vector<112x128xf32>
    %11 = tpu.matmul %8, %10, %cst_11 {dimension_numbers = #tpu.dot_dimension_numbers<[1], [0], [0], [1], [0, 0, 1, 1], [], []>} : vector<112x256xbf16>, vector<256x128xbf16>, vector<112x128xf32> -> vector<112x128xf32>
    %12 = arith.addf %6, %11 : vector<112x128xf32>
    %c0_12 = arith.constant 0 : index
    %c11 = arith.constant 11 : index
    %c0_13 = arith.constant 0 : index
    %13 = vector.load %arg1[%c0_12, %c11, %c0_13] : memref<1x128x256xbf16, #tpu.memory_space<vmem>>, vector<1x112x256xbf16>
    %14 = vector.shape_cast %13 : vector<1x112x256xbf16> to vector<112x256xbf16>
    %c2 = arith.constant 2 : index
    %c0_14 = arith.constant 0 : index
    %c0_15 = arith.constant 0 : index
    %15 = vector.load %arg2[%c2, %c0_14, %c0_15] : memref<4x256x128xbf16, #tpu.memory_space<vmem>>, vector<1x256x128xbf16>
    %16 = vector.shape_cast %15 : vector<1x256x128xbf16> to vector<256x128xbf16>
    %cst_16 = arith.constant dense<0.000000e+00> : vector<112x128xf32>
    %17 = tpu.matmul %14, %16, %cst_16 {dimension_numbers = #tpu.dot_dimension_numbers<[1], [0], [0], [1], [0, 0, 1, 1], [], []>} : vector<112x256xbf16>, vector<256x128xbf16>, vector<112x128xf32> -> vector<112x128xf32>
    %18 = arith.addf %12, %17 : vector<112x128xf32>
    %c0_17 = arith.constant 0 : index
    %c12 = arith.constant 12 : index
    %c0_18 = arith.constant 0 : index
    %19 = vector.load %arg1[%c0_17, %c12, %c0_18] : memref<1x128x256xbf16, #tpu.memory_space<vmem>>, vector<1x112x256xbf16>
    %20 = vector.shape_cast %19 : vector<1x112x256xbf16> to vector<112x256xbf16>
    %c3 = arith.constant 3 : index
    %c0_19 = arith.constant 0 : index
    %c0_20 = arith.constant 0 : index
    %21 = vector.load %arg2[%c3, %c0_19, %c0_20] : memref<4x256x128xbf16, #tpu.memory_space<vmem>>, vector<1x256x128xbf16>
    %22 = vector.shape_cast %21 : vector<1x256x128xbf16> to vector<256x128xbf16>
    %cst_21 = arith.constant dense<0.000000e+00> : vector<112x128xf32>
    %23 = tpu.matmul %20, %22, %cst_21 {dimension_numbers = #tpu.dot_dimension_numbers<[1], [0], [0], [1], [0, 0, 1, 1], [], []>} : vector<112x256xbf16>, vector<256x128xbf16>, vector<112x128xf32> -> vector<112x128xf32>
    %24 = arith.addf %18, %23 : vector<112x128xf32>
    %25 = vector.extract_strided_slice %24 {offsets = [0, 0], sizes = [112, 32], strides = [1, 1]} : vector<112x128xf32> to vector<112x32xf32>
    %26 = vector.extract_strided_slice %24 {offsets = [0, 32], sizes = [112, 32], strides = [1, 1]} : vector<112x128xf32> to vector<112x32xf32>
    %27 = arith.maximumf %25, %26 : vector<112x32xf32>
    %28 = vector.extract_strided_slice %24 {offsets = [0, 64], sizes = [112, 32], strides = [1, 1]} : vector<112x128xf32> to vector<112x32xf32>
    %29 = vector.extract_strided_slice %24 {offsets = [0, 96], sizes = [112, 32], strides = [1, 1]} : vector<112x128xf32> to vector<112x32xf32>
    %30 = arith.maximumf %28, %29 : vector<112x32xf32>
    %31 = arith.maximumf %27, %30 : vector<112x32xf32>
    %c0_22 = arith.constant 0 : index
    %c0_23 = arith.constant 0 : index
    %32 = vector.load %arg3[%c0_22, %c0_23] : memref<1x32xf32, #tpu.memory_space<vmem>>, vector<1x32xf32>
    %33 = vector.broadcast %32 : vector<1x32xf32> to vector<112x32xf32>
    %34 = arith.addf %31, %33 : vector<112x32xf32>
    %cst_24 = arith.constant 0.000000e+00 : f32
    %35 = vector.broadcast %cst_24 : f32 to vector<112x32xf32>
    %36 = arith.maximumf %34, %35 : vector<112x32xf32>
    %37 = arith.truncf %36 : vector<112x32xf32> to vector<112x32xbf16>
    %c0_25 = arith.constant 0 : index
    %c0_26 = arith.constant 0 : index
    %c0_27 = arith.constant 0 : index
    %38 = vector.load %arg4[%c0_25, %c0_26, %c0_27] : memref<4x40x112xbf16, #tpu.memory_space<vmem>>, vector<1x40x112xbf16>
    %39 = vector.shape_cast %38 : vector<1x40x112xbf16> to vector<40x112xbf16>
    %cst_28 = arith.constant dense<0.000000e+00> : vector<40x32xf32>
    %40 = tpu.matmul %39, %37, %cst_28 {dimension_numbers = #tpu.dot_dimension_numbers<[1], [0], [0], [1], [0, 0, 1, 1], [], []>} : vector<40x112xbf16>, vector<112x32xbf16>, vector<40x32xf32> -> vector<40x32xf32>
    %c1_29 = arith.constant 1 : index
    %c0_30 = arith.constant 0 : index
    %c0_31 = arith.constant 0 : index
    %41 = vector.load %arg4[%c1_29, %c0_30, %c0_31] : memref<4x40x112xbf16, #tpu.memory_space<vmem>>, vector<1x40x112xbf16>
    %42 = vector.shape_cast %41 : vector<1x40x112xbf16> to vector<40x112xbf16>
    %cst_32 = arith.constant dense<0.000000e+00> : vector<40x32xf32>
    %43 = tpu.matmul %42, %37, %cst_32 {dimension_numbers = #tpu.dot_dimension_numbers<[1], [0], [0], [1], [0, 0, 1, 1], [], []>} : vector<40x112xbf16>, vector<112x32xbf16>, vector<40x32xf32> -> vector<40x32xf32>
    %c2_33 = arith.constant 2 : index
    %c0_34 = arith.constant 0 : index
    %c0_35 = arith.constant 0 : index
    %44 = vector.load %arg4[%c2_33, %c0_34, %c0_35] : memref<4x40x112xbf16, #tpu.memory_space<vmem>>, vector<1x40x112xbf16>
    %45 = vector.shape_cast %44 : vector<1x40x112xbf16> to vector<40x112xbf16>
    %cst_36 = arith.constant dense<0.000000e+00> : vector<40x32xf32>
    %46 = tpu.matmul %45, %37, %cst_36 {dimension_numbers = #tpu.dot_dimension_numbers<[1], [0], [0], [1], [0, 0, 1, 1], [], []>} : vector<40x112xbf16>, vector<112x32xbf16>, vector<40x32xf32> -> vector<40x32xf32>
    %c3_37 = arith.constant 3 : index
    %c0_38 = arith.constant 0 : index
    %c0_39 = arith.constant 0 : index
    %47 = vector.load %arg4[%c3_37, %c0_38, %c0_39] : memref<4x40x112xbf16, #tpu.memory_space<vmem>>, vector<1x40x112xbf16>
    %48 = vector.shape_cast %47 : vector<1x40x112xbf16> to vector<40x112xbf16>
    %cst_40 = arith.constant dense<0.000000e+00> : vector<40x32xf32>
    %49 = tpu.matmul %48, %37, %cst_40 {dimension_numbers = #tpu.dot_dimension_numbers<[1], [0], [0], [1], [0, 0, 1, 1], [], []>} : vector<40x112xbf16>, vector<112x32xbf16>, vector<40x32xf32> -> vector<40x32xf32>
    %50 = tpu.concatenate %40, %43, %46, %49 in 1 : vector<40x32xf32>, vector<40x32xf32>, vector<40x32xf32>, vector<40x32xf32> -> vector<40x128xf32>
    %cst_41 = arith.constant 0.000000e+00 : f32
    %51 = vector.broadcast %cst_41 : f32 to vector<32x64xf32>
    %52 = vector.extract_strided_slice %50 {offsets = [0, 0], sizes = [32, 128], strides = [1, 1]} : vector<40x128xf32> to vector<32x128xf32>
    %53 = arith.truncf %52 : vector<32x128xf32> to vector<32x128xbf16>
    %c0_42 = arith.constant 0 : index
    %c0_43 = arith.constant 0 : index
    %c0_44 = arith.constant 0 : index
    %54 = vector.load %arg5[%c0_42, %c0_43, %c0_44] : memref<4x128x64xbf16, #tpu.memory_space<vmem>>, vector<1x128x64xbf16>
    %55 = vector.shape_cast %54 : vector<1x128x64xbf16> to vector<128x64xbf16>
    %cst_45 = arith.constant dense<0.000000e+00> : vector<32x64xf32>
    %56 = tpu.matmul %53, %55, %cst_45 {dimension_numbers = #tpu.dot_dimension_numbers<[1], [0], [0], [1], [0, 0, 1, 1], [], []>} : vector<32x128xbf16>, vector<128x64xbf16>, vector<32x64xf32> -> vector<32x64xf32>
    %57 = arith.addf %51, %56 : vector<32x64xf32>
    %58 = vector.extract_strided_slice %50 {offsets = [1, 0], sizes = [32, 128], strides = [1, 1]} : vector<40x128xf32> to vector<32x128xf32>
    %59 = arith.truncf %58 : vector<32x128xf32> to vector<32x128xbf16>
    %c1_46 = arith.constant 1 : index
    %c0_47 = arith.constant 0 : index
    %c0_48 = arith.constant 0 : index
    %60 = vector.load %arg5[%c1_46, %c0_47, %c0_48] : memref<4x128x64xbf16, #tpu.memory_space<vmem>>, vector<1x128x64xbf16>
    %61 = vector.shape_cast %60 : vector<1x128x64xbf16> to vector<128x64xbf16>
    %cst_49 = arith.constant dense<0.000000e+00> : vector<32x64xf32>
    %62 = tpu.matmul %59, %61, %cst_49 {dimension_numbers = #tpu.dot_dimension_numbers<[1], [0], [0], [1], [0, 0, 1, 1], [], []>} : vector<32x128xbf16>, vector<128x64xbf16>, vector<32x64xf32> -> vector<32x64xf32>
    %63 = arith.addf %57, %62 : vector<32x64xf32>
    %64 = vector.extract_strided_slice %50 {offsets = [6, 0], sizes = [32, 128], strides = [1, 1]} : vector<40x128xf32> to vector<32x128xf32>
    %65 = arith.truncf %64 : vector<32x128xf32> to vector<32x128xbf16>
    %c2_50 = arith.constant 2 : index
    %c0_51 = arith.constant 0 : index
    %c0_52 = arith.constant 0 : index
    %66 = vector.load %arg5[%c2_50, %c0_51, %c0_52] : memref<4x128x64xbf16, #tpu.memory_space<vmem>>, vector<1x128x64xbf16>
    %67 = vector.shape_cast %66 : vector<1x128x64xbf16> to vector<128x64xbf16>
    %cst_53 = arith.constant dense<0.000000e+00> : vector<32x64xf32>
    %68 = tpu.matmul %65, %67, %cst_53 {dimension_numbers = #tpu.dot_dimension_numbers<[1], [0], [0], [1], [0, 0, 1, 1], [], []>} : vector<32x128xbf16>, vector<128x64xbf16>, vector<32x64xf32> -> vector<32x64xf32>
    %69 = arith.addf %63, %68 : vector<32x64xf32>
    %70 = vector.extract_strided_slice %50 {offsets = [7, 0], sizes = [32, 128], strides = [1, 1]} : vector<40x128xf32> to vector<32x128xf32>
    %71 = arith.truncf %70 : vector<32x128xf32> to vector<32x128xbf16>
    %c3_54 = arith.constant 3 : index
    %c0_55 = arith.constant 0 : index
    %c0_56 = arith.constant 0 : index
    %72 = vector.load %arg5[%c3_54, %c0_55, %c0_56] : memref<4x128x64xbf16, #tpu.memory_space<vmem>>, vector<1x128x64xbf16>
    %73 = vector.shape_cast %72 : vector<1x128x64xbf16> to vector<128x64xbf16>
    %cst_57 = arith.constant dense<0.000000e+00> : vector<32x64xf32>
    %74 = tpu.matmul %71, %73, %cst_57 {dimension_numbers = #tpu.dot_dimension_numbers<[1], [0], [0], [1], [0, 0, 1, 1], [], []>} : vector<32x128xbf16>, vector<128x64xbf16>, vector<32x64xf32> -> vector<32x64xf32>
    %75 = arith.addf %69, %74 : vector<32x64xf32>
    %c0_58 = arith.constant 0 : index
    %c0_59 = arith.constant 0 : index
    %76 = vector.load %arg6[%c0_58, %c0_59] : memref<1x64xf32, #tpu.memory_space<vmem>>, vector<1x64xf32>
    %77 = vector.broadcast %76 : vector<1x64xf32> to vector<32x64xf32>
    %78 = arith.addf %75, %77 : vector<32x64xf32>
    %cst_60 = arith.constant 0.000000e+00 : f32
    %79 = vector.broadcast %cst_60 : f32 to vector<32x64xf32>
    %80 = arith.maximumf %78, %79 : vector<32x64xf32>
    %c0_61 = arith.constant 0 : index
    %c0_62 = arith.constant 0 : index
    %81 = vector.load %arg7[%c0_61, %c0_62] : memref<64x32xbf16, #tpu.memory_space<vmem>>, vector<64x32xbf16>
    %82 = arith.truncf %80 : vector<32x64xf32> to vector<32x64xbf16>
    %cst_63 = arith.constant dense<0.000000e+00> : vector<64x64xf32>
    %83 = tpu.matmul %81, %82, %cst_63 {dimension_numbers = #tpu.dot_dimension_numbers<[1], [0], [0], [1], [0, 0, 1, 1], [], []>} : vector<64x32xbf16>, vector<32x64xbf16>, vector<64x64xf32> -> vector<64x64xf32>
    %cst_64 = arith.constant 0.000000e+00 : f32
    %84 = vector.broadcast %cst_64 : f32 to vector<48x64xf32>
    %85 = vector.extract_strided_slice %83 {offsets = [0, 0], sizes = [48, 64], strides = [1, 1]} : vector<64x64xf32> to vector<48x64xf32>
    %86 = arith.truncf %85 : vector<48x64xf32> to vector<48x64xbf16>
    %c0_65 = arith.constant 0 : index
    %c0_66 = arith.constant 0 : index
    %c0_67 = arith.constant 0 : index
    %87 = vector.load %arg8[%c0_65, %c0_66, %c0_67] : memref<9x64x64xbf16, #tpu.memory_space<vmem>>, vector<1x64x64xbf16>
    %88 = vector.shape_cast %87 : vector<1x64x64xbf16> to vector<64x64xbf16>
    %cst_68 = arith.constant dense<0.000000e+00> : vector<48x64xf32>
    %89 = tpu.matmul %86, %88, %cst_68 {dimension_numbers = #tpu.dot_dimension_numbers<[1], [0], [0], [1], [0, 0, 1, 1], [], []>} : vector<48x64xbf16>, vector<64x64xbf16>, vector<48x64xf32> -> vector<48x64xf32>
    %90 = arith.addf %84, %89 : vector<48x64xf32>
    %91 = vector.extract_strided_slice %83 {offsets = [1, 0], sizes = [48, 64], strides = [1, 1]} : vector<64x64xf32> to vector<48x64xf32>
    %92 = arith.truncf %91 : vector<48x64xf32> to vector<48x64xbf16>
    %c1_69 = arith.constant 1 : index
    %c0_70 = arith.constant 0 : index
    %c0_71 = arith.constant 0 : index
    %93 = vector.load %arg8[%c1_69, %c0_70, %c0_71] : memref<9x64x64xbf16, #tpu.memory_space<vmem>>, vector<1x64x64xbf16>
    %94 = vector.shape_cast %93 : vector<1x64x64xbf16> to vector<64x64xbf16>
    %cst_72 = arith.constant dense<0.000000e+00> : vector<48x64xf32>
    %95 = tpu.matmul %92, %94, %cst_72 {dimension_numbers = #tpu.dot_dimension_numbers<[1], [0], [0], [1], [0, 0, 1, 1], [], []>} : vector<48x64xbf16>, vector<64x64xbf16>, vector<48x64xf32> -> vector<48x64xf32>
    %96 = arith.addf %90, %95 : vector<48x64xf32>
    %97 = vector.extract_strided_slice %83 {offsets = [2, 0], sizes = [48, 64], strides = [1, 1]} : vector<64x64xf32> to vector<48x64xf32>
    %98 = arith.truncf %97 : vector<48x64xf32> to vector<48x64xbf16>
    %c2_73 = arith.constant 2 : index
    %c0_74 = arith.constant 0 : index
    %c0_75 = arith.constant 0 : index
    %99 = vector.load %arg8[%c2_73, %c0_74, %c0_75] : memref<9x64x64xbf16, #tpu.memory_space<vmem>>, vector<1x64x64xbf16>
    %100 = vector.shape_cast %99 : vector<1x64x64xbf16> to vector<64x64xbf16>
    %cst_76 = arith.constant dense<0.000000e+00> : vector<48x64xf32>
    %101 = tpu.matmul %98, %100, %cst_76 {dimension_numbers = #tpu.dot_dimension_numbers<[1], [0], [0], [1], [0, 0, 1, 1], [], []>} : vector<48x64xbf16>, vector<64x64xbf16>, vector<48x64xf32> -> vector<48x64xf32>
    %102 = arith.addf %96, %101 : vector<48x64xf32>
    %103 = vector.extract_strided_slice %83 {offsets = [7, 0], sizes = [48, 64], strides = [1, 1]} : vector<64x64xf32> to vector<48x64xf32>
    %104 = arith.truncf %103 : vector<48x64xf32> to vector<48x64xbf16>
    %c3_77 = arith.constant 3 : index
    %c0_78 = arith.constant 0 : index
    %c0_79 = arith.constant 0 : index
    %105 = vector.load %arg8[%c3_77, %c0_78, %c0_79] : memref<9x64x64xbf16, #tpu.memory_space<vmem>>, vector<1x64x64xbf16>
    %106 = vector.shape_cast %105 : vector<1x64x64xbf16> to vector<64x64xbf16>
    %cst_80 = arith.constant dense<0.000000e+00> : vector<48x64xf32>
    %107 = tpu.matmul %104, %106, %cst_80 {dimension_numbers = #tpu.dot_dimension_numbers<[1], [0], [0], [1], [0, 0, 1, 1], [], []>} : vector<48x64xbf16>, vector<64x64xbf16>, vector<48x64xf32> -> vector<48x64xf32>
    %108 = arith.addf %102, %107 : vector<48x64xf32>
    %109 = vector.extract_strided_slice %83 {offsets = [8, 0], sizes = [48, 64], strides = [1, 1]} : vector<64x64xf32> to vector<48x64xf32>
    %110 = arith.truncf %109 : vector<48x64xf32> to vector<48x64xbf16>
    %c4 = arith.constant 4 : index
    %c0_81 = arith.constant 0 : index
    %c0_82 = arith.constant 0 : index
    %111 = vector.load %arg8[%c4, %c0_81, %c0_82] : memref<9x64x64xbf16, #tpu.memory_space<vmem>>, vector<1x64x64xbf16>
    %112 = vector.shape_cast %111 : vector<1x64x64xbf16> to vector<64x64xbf16>
    %cst_83 = arith.constant dense<0.000000e+00> : vector<48x64xf32>
    %113 = tpu.matmul %110, %112, %cst_83 {dimension_numbers = #tpu.dot_dimension_numbers<[1], [0], [0], [1], [0, 0, 1, 1], [], []>} : vector<48x64xbf16>, vector<64x64xbf16>, vector<48x64xf32> -> vector<48x64xf32>
    %114 = arith.addf %108, %113 : vector<48x64xf32>
    %115 = vector.extract_strided_slice %83 {offsets = [9, 0], sizes = [48, 64], strides = [1, 1]} : vector<64x64xf32> to vector<48x64xf32>
    %116 = arith.truncf %115 : vector<48x64xf32> to vector<48x64xbf16>
    %c5 = arith.constant 5 : index
    %c0_84 = arith.constant 0 : index
    %c0_85 = arith.constant 0 : index
    %117 = vector.load %arg8[%c5, %c0_84, %c0_85] : memref<9x64x64xbf16, #tpu.memory_space<vmem>>, vector<1x64x64xbf16>
    %118 = vector.shape_cast %117 : vector<1x64x64xbf16> to vector<64x64xbf16>
    %cst_86 = arith.constant dense<0.000000e+00> : vector<48x64xf32>
    %119 = tpu.matmul %116, %118, %cst_86 {dimension_numbers = #tpu.dot_dimension_numbers<[1], [0], [0], [1], [0, 0, 1, 1], [], []>} : vector<48x64xbf16>, vector<64x64xbf16>, vector<48x64xf32> -> vector<48x64xf32>
    %120 = arith.addf %114, %119 : vector<48x64xf32>
    %121 = vector.extract_strided_slice %83 {offsets = [14, 0], sizes = [48, 64], strides = [1, 1]} : vector<64x64xf32> to vector<48x64xf32>
    %122 = arith.truncf %121 : vector<48x64xf32> to vector<48x64xbf16>
    %c6 = arith.constant 6 : index
    %c0_87 = arith.constant 0 : index
    %c0_88 = arith.constant 0 : index
    %123 = vector.load %arg8[%c6, %c0_87, %c0_88] : memref<9x64x64xbf16, #tpu.memory_space<vmem>>, vector<1x64x64xbf16>
    %124 = vector.shape_cast %123 : vector<1x64x64xbf16> to vector<64x64xbf16>
    %cst_89 = arith.constant dense<0.000000e+00> : vector<48x64xf32>
    %125 = tpu.matmul %122, %124, %cst_89 {dimension_numbers = #tpu.dot_dimension_numbers<[1], [0], [0], [1], [0, 0, 1, 1], [], []>} : vector<48x64xbf16>, vector<64x64xbf16>, vector<48x64xf32> -> vector<48x64xf32>
    %126 = arith.addf %120, %125 : vector<48x64xf32>
    %127 = vector.extract_strided_slice %83 {offsets = [15, 0], sizes = [48, 64], strides = [1, 1]} : vector<64x64xf32> to vector<48x64xf32>
    %128 = arith.truncf %127 : vector<48x64xf32> to vector<48x64xbf16>
    %c7 = arith.constant 7 : index
    %c0_90 = arith.constant 0 : index
    %c0_91 = arith.constant 0 : index
    %129 = vector.load %arg8[%c7, %c0_90, %c0_91] : memref<9x64x64xbf16, #tpu.memory_space<vmem>>, vector<1x64x64xbf16>
    %130 = vector.shape_cast %129 : vector<1x64x64xbf16> to vector<64x64xbf16>
    %cst_92 = arith.constant dense<0.000000e+00> : vector<48x64xf32>
    %131 = tpu.matmul %128, %130, %cst_92 {dimension_numbers = #tpu.dot_dimension_numbers<[1], [0], [0], [1], [0, 0, 1, 1], [], []>} : vector<48x64xbf16>, vector<64x64xbf16>, vector<48x64xf32> -> vector<48x64xf32>
    %132 = arith.addf %126, %131 : vector<48x64xf32>
    %133 = vector.extract_strided_slice %83 {offsets = [16, 0], sizes = [48, 64], strides = [1, 1]} : vector<64x64xf32> to vector<48x64xf32>
    %134 = arith.truncf %133 : vector<48x64xf32> to vector<48x64xbf16>
    %c8 = arith.constant 8 : index
    %c0_93 = arith.constant 0 : index
    %c0_94 = arith.constant 0 : index
    %135 = vector.load %arg8[%c8, %c0_93, %c0_94] : memref<9x64x64xbf16, #tpu.memory_space<vmem>>, vector<1x64x64xbf16>
    %136 = vector.shape_cast %135 : vector<1x64x64xbf16> to vector<64x64xbf16>
    %cst_95 = arith.constant dense<0.000000e+00> : vector<48x64xf32>
    %137 = tpu.matmul %134, %136, %cst_95 {dimension_numbers = #tpu.dot_dimension_numbers<[1], [0], [0], [1], [0, 0, 1, 1], [], []>} : vector<48x64xbf16>, vector<64x64xbf16>, vector<48x64xf32> -> vector<48x64xf32>
    %138 = arith.addf %132, %137 : vector<48x64xf32>
    %c0_96 = arith.constant 0 : index
    %c0_97 = arith.constant 0 : index
    %139 = vector.load %arg9[%c0_96, %c0_97] : memref<1x64xf32, #tpu.memory_space<vmem>>, vector<1x64xf32>
    %140 = vector.broadcast %139 : vector<1x64xf32> to vector<48x64xf32>
    %141 = arith.addf %138, %140 : vector<48x64xf32>
    %cst_98 = arith.constant 0.000000e+00 : f32
    %142 = vector.broadcast %cst_98 : f32 to vector<48x64xf32>
    %143 = arith.maximumf %141, %142 : vector<48x64xf32>
    %144 = vector.extract_strided_slice %143 {offsets = [0, 0], sizes = [8, 64], strides = [1, 1]} : vector<48x64xf32> to vector<8x64xf32>
    %145 = vector.extract_strided_slice %143 {offsets = [8, 0], sizes = [8, 64], strides = [1, 1]} : vector<48x64xf32> to vector<8x64xf32>
    %146 = vector.extract_strided_slice %143 {offsets = [16, 0], sizes = [8, 64], strides = [1, 1]} : vector<48x64xf32> to vector<8x64xf32>
    %147 = vector.extract_strided_slice %143 {offsets = [24, 0], sizes = [8, 64], strides = [1, 1]} : vector<48x64xf32> to vector<8x64xf32>
    %148 = vector.extract_strided_slice %143 {offsets = [32, 0], sizes = [8, 64], strides = [1, 1]} : vector<48x64xf32> to vector<8x64xf32>
    %149 = vector.extract_strided_slice %143 {offsets = [40, 0], sizes = [8, 64], strides = [1, 1]} : vector<48x64xf32> to vector<8x64xf32>
    %150 = tpu.concatenate %144, %145, %146, %147, %148, %149 in 1 : vector<8x64xf32>, vector<8x64xf32>, vector<8x64xf32>, vector<8x64xf32>, vector<8x64xf32>, vector<8x64xf32> -> vector<8x384xf32>
    %151 = vector.extract_strided_slice %150 {offsets = [0, 0], sizes = [1, 384], strides = [1, 1]} : vector<8x384xf32> to vector<1x384xf32>
    %152 = vector.extract_strided_slice %150 {offsets = [1, 0], sizes = [1, 384], strides = [1, 1]} : vector<8x384xf32> to vector<1x384xf32>
    %153 = vector.extract_strided_slice %150 {offsets = [2, 0], sizes = [1, 384], strides = [1, 1]} : vector<8x384xf32> to vector<1x384xf32>
    %154 = vector.extract_strided_slice %150 {offsets = [3, 0], sizes = [1, 384], strides = [1, 1]} : vector<8x384xf32> to vector<1x384xf32>
    %155 = vector.extract_strided_slice %150 {offsets = [4, 0], sizes = [1, 384], strides = [1, 1]} : vector<8x384xf32> to vector<1x384xf32>
    %156 = vector.extract_strided_slice %150 {offsets = [5, 0], sizes = [1, 384], strides = [1, 1]} : vector<8x384xf32> to vector<1x384xf32>
    %157 = vector.extract_strided_slice %150 {offsets = [6, 0], sizes = [1, 384], strides = [1, 1]} : vector<8x384xf32> to vector<1x384xf32>
    %158 = vector.extract_strided_slice %150 {offsets = [7, 0], sizes = [1, 384], strides = [1, 1]} : vector<8x384xf32> to vector<1x384xf32>
    %159 = tpu.concatenate %151, %152, %153, %154, %155, %156, %157, %158 in 1 : vector<1x384xf32>, vector<1x384xf32>, vector<1x384xf32>, vector<1x384xf32>, vector<1x384xf32>, vector<1x384xf32>, vector<1x384xf32>, vector<1x384xf32> -> vector<1x3072xf32>
    %160 = arith.truncf %159 : vector<1x3072xf32> to vector<1x3072xbf16>
    %c0_99 = arith.constant 0 : index
    %c0_100 = arith.constant 0 : index
    %161 = vector.load %arg10[%c0_99, %c0_100] : memref<3072x256xbf16, #tpu.memory_space<vmem>>, vector<3072x256xbf16>
    %cst_101 = arith.constant dense<0.000000e+00> : vector<1x256xf32>
    %162 = tpu.matmul %160, %161, %cst_101 {dimension_numbers = #tpu.dot_dimension_numbers<[1], [0], [0], [1], [0, 0, 1, 1], [], []>} : vector<1x3072xbf16>, vector<3072x256xbf16>, vector<1x256xf32> -> vector<1x256xf32>
    %c0_102 = arith.constant 0 : index
    %c0_103 = arith.constant 0 : index
    %163 = vector.load %arg11[%c0_102, %c0_103] : memref<1x256xf32, #tpu.memory_space<vmem>>, vector<1x256xf32>
    %164 = arith.addf %162, %163 : vector<1x256xf32>
    %cst_104 = arith.constant 0.000000e+00 : f32
    %165 = vector.broadcast %cst_104 : f32 to vector<1x256xf32>
    %166 = arith.maximumf %164, %165 : vector<1x256xf32>
    %167 = arith.truncf %166 : vector<1x256xf32> to vector<1x256xbf16>
    %c0_105 = arith.constant 0 : index
    %c0_106 = arith.constant 0 : index
    %168 = vector.load %arg12[%c0_105, %c0_106] : memref<256x128xbf16, #tpu.memory_space<vmem>>, vector<256x128xbf16>
    %cst_107 = arith.constant dense<0.000000e+00> : vector<1x128xf32>
    %169 = tpu.matmul %167, %168, %cst_107 {dimension_numbers = #tpu.dot_dimension_numbers<[1], [0], [0], [1], [0, 0, 1, 1], [], []>} : vector<1x256xbf16>, vector<256x128xbf16>, vector<1x128xf32> -> vector<1x128xf32>
    %c0_108 = arith.constant 0 : index
    %c0_109 = arith.constant 0 : index
    %170 = vector.load %arg13[%c0_108, %c0_109] : memref<1x128xf32, #tpu.memory_space<vmem>>, vector<1x128xf32>
    %171 = arith.addf %169, %170 : vector<1x128xf32>
    %172 = tpu.concatenate %166, %171 in 1 : vector<1x256xf32>, vector<1x128xf32> -> vector<1x384xf32>
    %c0_110 = arith.constant 0 : index
    %c0_111 = arith.constant 0 : index
    %c0_112 = arith.constant 0 : index
    %173 = vector.load %arg14[%c0_110, %c0_111, %c0_112] : memref<1x1x384xf32, #tpu.memory_space<vmem>>, vector<1x1x384xf32>
    %174 = vector.shape_cast %173 : vector<1x1x384xf32> to vector<1x384xf32>
    %175 = vector.shape_cast %172 : vector<1x384xf32> to vector<1x1x384xf32>
    tpu.vector_store %arg14[%c0_110, %c0_111, %c0_112], %175 {strides = array<i32>} : memref<1x1x384xf32, #tpu.memory_space<vmem>>, vector<1x1x384xf32>,
    return
  }
  func.func @transform_0(%arg0: i32) -> (i32, i32, i32) {
    %c0_i32 = arith.constant 0 : i32
    %c0_i32_0 = arith.constant 0 : i32
    %c0_i32_1 = arith.constant 0 : i32
    return %arg0, %c0_i32, %c0_i32_0 : i32, i32, i32
  }
  func.func @transform_1(%arg0: i32) -> (i32, i32, i32) {
    %c0_i32 = arith.constant 0 : i32
    %c0_i32_0 = arith.constant 0 : i32
    %c0_i32_1 = arith.constant 0 : i32
    %c0_i32_2 = arith.constant 0 : i32
    return %c0_i32, %c0_i32_0, %c0_i32_1 : i32, i32, i32
  }
  func.func @transform_2(%arg0: i32) -> (i32, i32) {
    %c0_i32 = arith.constant 0 : i32
    %c0_i32_0 = arith.constant 0 : i32
    %c0_i32_1 = arith.constant 0 : i32
    return %c0_i32, %c0_i32_0 : i32, i32
  }
  func.func @transform_3(%arg0: i32) -> (i32, i32, i32) {
    %c0_i32 = arith.constant 0 : i32
    %c0_i32_0 = arith.constant 0 : i32
    %c0_i32_1 = arith.constant 0 : i32
    %c0_i32_2 = arith.constant 0 : i32
    return %c0_i32, %c0_i32_0, %c0_i32_1 : i32, i32, i32
  }
  func.func @transform_4(%arg0: i32) -> (i32, i32, i32) {
    %c0_i32 = arith.constant 0 : i32
    %c0_i32_0 = arith.constant 0 : i32
    %c0_i32_1 = arith.constant 0 : i32
    %c0_i32_2 = arith.constant 0 : i32
    return %c0_i32, %c0_i32_0, %c0_i32_1 : i32, i32, i32
  }
  func.func @transform_5(%arg0: i32) -> (i32, i32) {
    %c0_i32 = arith.constant 0 : i32
    %c0_i32_0 = arith.constant 0 : i32
    %c0_i32_1 = arith.constant 0 : i32
    return %c0_i32, %c0_i32_0 : i32, i32
  }
  func.func @transform_6(%arg0: i32) -> (i32, i32) {
    %c0_i32 = arith.constant 0 : i32
    %c0_i32_0 = arith.constant 0 : i32
    %c0_i32_1 = arith.constant 0 : i32
    return %c0_i32, %c0_i32_0 : i32, i32
  }
  func.func @transform_7(%arg0: i32) -> (i32, i32, i32) {
    %c0_i32 = arith.constant 0 : i32
    %c0_i32_0 = arith.constant 0 : i32
    %c0_i32_1 = arith.constant 0 : i32
    %c0_i32_2 = arith.constant 0 : i32
    return %c0_i32, %c0_i32_0, %c0_i32_1 : i32, i32, i32
  }
  func.func @transform_8(%arg0: i32) -> (i32, i32) {
    %c0_i32 = arith.constant 0 : i32
    %c0_i32_0 = arith.constant 0 : i32
    %c0_i32_1 = arith.constant 0 : i32
    return %c0_i32, %c0_i32_0 : i32, i32
  }
  func.func @transform_9(%arg0: i32) -> (i32, i32) {
    %c0_i32 = arith.constant 0 : i32
    %c0_i32_0 = arith.constant 0 : i32
    %c0_i32_1 = arith.constant 0 : i32
    return %c0_i32, %c0_i32_0 : i32, i32
  }
  func.func @transform_10(%arg0: i32) -> (i32, i32) {
    %c0_i32 = arith.constant 0 : i32
    %c0_i32_0 = arith.constant 0 : i32
    %c0_i32_1 = arith.constant 0 : i32
    return %c0_i32, %c0_i32_0 : i32, i32
  }
  func.func @transform_11(%arg0: i32) -> (i32, i32) {
    %c0_i32 = arith.constant 0 : i32
    %c0_i32_0 = arith.constant 0 : i32
    %c0_i32_1 = arith.constant 0 : i32
    return %c0_i32, %c0_i32_0 : i32, i32
  }
  func.func @transform_12(%arg0: i32) -> (i32, i32) {
    %c0_i32 = arith.constant 0 : i32
    %c0_i32_0 = arith.constant 0 : i32
    %c0_i32_1 = arith.constant 0 : i32
    return %c0_i32, %c0_i32_0 : i32, i32
  }
  func.func @transform_13(%arg0: i32) -> (i32, i32, i32) {
    %c0_i32 = arith.constant 0 : i32
    %c0_i32_0 = arith.constant 0 : i32
    %c0_i32_1 = arith.constant 0 : i32
    return %arg0, %c0_i32, %c0_i32_0 : i32, i32, i32
  }
}

</mosaic_0001>

<llo_original>
// kernel: net_forward.1
$region0: #{net_forward.1}
  #allocation0 [shape = 'u32[]', space=smem, size = 0x4, offset = 0x4, fixed_abs, tag = 'smem constant byte address 0x4 - core index']
  #allocation1 [shape = 'u32[144,128]{1,0:T(1,128)}', space=vmem, size = 0x12000, scoped, tag = 'internal scratch']
  %s0 = inlined_call_operand.vmem [shape: bf16[2,128,256], index: 0, kind: input, shape index: {}]
  %s1 = inlined_call_operand.vmem [shape: bf16[4,256,128], index: 1, kind: input, shape index: {}]
  %s2 = inlined_call_operand.vmem [shape: f32[1,32], index: 2, kind: input, shape index: {}]
  %s3 = inlined_call_operand.vmem [shape: bf16[4,40,112], index: 3, kind: input, shape index: {}]
  %s4 = inlined_call_operand.vmem [shape: bf16[4,128,64], index: 4, kind: input, shape index: {}]
  %s5 = inlined_call_operand.vmem [shape: f32[1,64], index: 5, kind: input, shape index: {}]
  %s6 = inlined_call_operand.vmem [shape: bf16[64,32], index: 6, kind: input, shape index: {}]
  %s7 = inlined_call_operand.vmem [shape: bf16[9,64,64], index: 7, kind: input, shape index: {}]
  %s8 = inlined_call_operand.vmem [shape: f32[1,64], index: 8, kind: input, shape index: {}]
  %s9 = inlined_call_operand.vmem [shape: bf16[3072,256], index: 9, kind: input, shape index: {}]
  %s10 = inlined_call_operand.vmem [shape: f32[1,256], index: 10, kind: input, shape index: {}]
  %s11 = inlined_call_operand.vmem [shape: bf16[256,128], index: 11, kind: input, shape index: {}]
  %s12 = inlined_call_operand.vmem [shape: f32[1,128], index: 12, kind: input, shape index: {}]
  %s13 = inlined_call_operand.vmem [shape: f32[2,1,384], index: 13, kind: output, shape index: {}]
  %s14 = sld [smem:[#allocation0]]
  $region85: #{net_forward.1} parent=0
    _
  %s16 = ssub.s32 1, %s14
  %s17 = scalar_select 0, %s16, %s14
  loop: start=0, step=1, limit=4
  $region2: #{net_forward.1} parent=0 // loop_pre_header
    _
  $region3: #{net_forward.1} parent=0 // loop_header
    %s19 = sphi 0, %s23
    %p20 = scmp.ge.s32.totalorder %s19, 4
    %s29 = sphi 0, %s31
    %s32 = sphi 0, %s29
    %s33 = sphi 0, %s32
    %s49 = sphi 0, %s33
    %s53 = sphi 0, %s53
    %s55 = sphi 0, %s53
    %s56 = sphi 0, %s55
    %s70 = sphi 0, %s56
    %s74 = sphi 0, %s74
    %s76 = sphi 0, %s74
    %s77 = sphi 0, %s76
    %s91 = sphi 0, %s77
    %s95 = sphi 0, %s95
    %s97 = sphi 0, %s95
    %s98 = sphi 0, %s97
    %s112 = sphi 0, %s98
    %s116 = sphi 0, %s116
    %s118 = sphi 0, %s116
    %s119 = sphi 0, %s118
    %s133 = sphi 0, %s119
    %s137 = sphi 0, %s137
    %s139 = sphi 0, %s137
    %s140 = sphi 0, %s139
    %s154 = sphi 0, %s140
    %s158 = sphi 0, %s158
    %s160 = sphi 0, %s158
    %s161 = sphi 0, %s160
    %s175 = sphi 0, %s161
    %s179 = sphi 0, %s179
    %s181 = sphi 0, %s179
    %s182 = sphi 0, %s181
    %s196 = sphi 0, %s182
    %s200 = sphi 0, %s200
    %s202 = sphi 0, %s200
    %s203 = sphi 0, %s202
    %s217 = sphi 0, %s203
    %s221 = sphi 0, %s221
    %s223 = sphi 0, %s221
    %s224 = sphi 0, %s223
    %s238 = sphi 0, %s224
    %s242 = sphi 0, %s242
    %s244 = sphi 0, %s242
    %s245 = sphi 0, %s244
    %s259 = sphi 0, %s245
    %s263 = sphi 0, %s263
    %s265 = sphi 0, %s263
    %s266 = sphi 0, %s265
    %s280 = sphi 0, %s266
    %s284 = sphi 0, %s284
    %s286 = sphi 0, %s284
    %s287 = sphi 0, %s286
    %s301 = sphi 0, %s287
    %s307 = sphi 0, %s309
    %s310 = sphi 0, %s307
    %s311 = sphi 0, %s310
    %s327 = sphi 0, %s311
  $region4: #{net_forward.1} parent=0 // loop_header_branch
    %22 = sbr.rel (%p20) target = $region8
  $region5: #{net_forward.1} parent=0 // loop_body
    %s24 = ssub.s32 %s19, 1
    %s25 = ssub.s32 %s19, 2
    %s26 = sadd.s32 %s19, 1
    %s27 = ssub.s32 %s19, %s26
    %p28 = scmp.eq.s32.totalorder %s27, 0
    %s30 = sadd.s32 %s29, 1
    %s31 = scalar_select %p28, %s29, %s30
    %p34 = pneg %p28
    %p35 = scmp.eq.s32.totalorder %s19, 1
    %p36 = por %p34, %p35
    %p37 = scmp.ne.s32.totalorder %s29, %s32
    %p38 = scmp.eq.s32.totalorder %s19, 0
    %p39 = por %p37, %p38
    %p40 = scmp.ne.s32.totalorder %s29, %s32
    %p41 = scmp.eq.s32.totalorder %s24, 1
    %p42 = por %p40, %p41
    %p43 = scmp.ne.s32.totalorder %s32, %s33
    %p44 = scmp.eq.s32.totalorder %s24, 0
    %p45 = por %p43, %p44
    %p46 = scmp.ne.s32.totalorder %s32, %s33
    %p47 = scmp.eq.s32.totalorder %s25, 1
    %p48 = por %p46, %p47
    %p50 = scmp.ne.s32.totalorder %s33, %s49
    %p51 = scmp.eq.s32.totalorder %s25, 0
    %p52 = por %p50, %p51
    %s54 = sadd.s32 %s53, 1
    %p57 = scmp.eq.s32.totalorder %s19, 1
    %p58 = scmp.ne.s32.totalorder %s53, %s55
    %p59 = scmp.eq.s32.totalorder %s19, 0
    %p60 = por %p58, %p59
    %p61 = scmp.ne.s32.totalorder %s53, %s55
    %p62 = scmp.eq.s32.totalorder %s24, 1
    %p63 = por %p61, %p62
    %p64 = scmp.ne.s32.totalorder %s55, %s56
    %p65 = scmp.eq.s32.totalorder %s24, 0
    %p66 = por %p64, %p65
    %p67 = scmp.ne.s32.totalorder %s55, %s56
    %p68 = scmp.eq.s32.totalorder %s25, 1
    %p69 = por %p67, %p68
    %p71 = scmp.ne.s32.totalorder %s56, %s70
    %p72 = scmp.eq.s32.totalorder %s25, 0
    %p73 = por %p71, %p72
    %s75 = sadd.s32 %s74, 1
    %p78 = scmp.eq.s32.totalorder %s19, 1
    %p79 = scmp.ne.s32.totalorder %s74, %s76
    %p80 = scmp.eq.s32.totalorder %s19, 0
    %p81 = por %p79, %p80
    %p82 = scmp.ne.s32.totalorder %s74, %s76
    %p83 = scmp.eq.s32.totalorder %s24, 1
    %p84 = por %p82, %p83
    %p85 = scmp.ne.s32.totalorder %s76, %s77
    %p86 = scmp.eq.s32.totalorder %s24, 0
    %p87 = por %p85, %p86
    %p88 = scmp.ne.s32.totalorder %s76, %s77
    %p89 = scmp.eq.s32.totalorder %s25, 1
    %p90 = por %p88, %p89
    %p92 = scmp.ne.s32.totalorder %s77, %s91
    %p93 = scmp.eq.s32.totalorder %s25, 0
    %p94 = por %p92, %p93
    %s96 = sadd.s32 %s95, 1
    %p99 = scmp.eq.s32.totalorder %s19, 1
    %p100 = scmp.ne.s32.totalorder %s95, %s97
    %p101 = scmp.eq.s32.totalorder %s19, 0
    %p102 = por %p100, %p101
    %p103 = scmp.ne.s32.totalorder %s95, %s97
    %p104 = scmp.eq.s32.totalorder %s24, 1
    %p105 = por %p103, %p104
    %p106 = scmp.ne.s32.totalorder %s97, %s98
    %p107 = scmp.eq.s32.totalorder %s24, 0
    %p108 = por %p106, %p107
    %p109 = scmp.ne.s32.totalorder %s97, %s98
    %p110 = scmp.eq.s32.totalorder %s25, 1
    %p111 = por %p109, %p110
    %p113 = scmp.ne.s32.totalorder %s98, %s112
    %p114 = scmp.eq.s32.totalorder %s25, 0
    %p115 = por %p113, %p114
    %s117 = sadd.s32 %s116, 1
    %p120 = scmp.eq.s32.totalorder %s19, 1
    %p121 = scmp.ne.s32.totalorder %s116, %s118
    %p122 = scmp.eq.s32.totalorder %s19, 0
    %p123 = por %p121, %p122
    %p124 = scmp.ne.s32.totalorder %s116, %s118
    %p125 = scmp.eq.s32.totalorder %s24, 1
    %p126 = por %p124, %p125
    %p127 = scmp.ne.s32.totalorder %s118, %s119
    %p128 = scmp.eq.s32.totalorder %s24, 0
    %p129 = por %p127, %p128
    %p130 = scmp.ne.s32.totalorder %s118, %s119
    %p131 = scmp.eq.s32.totalorder %s25, 1
    %p132 = por %p130, %p131
    %p134 = scmp.ne.s32.totalorder %s119, %s133
    %p135 = scmp.eq.s32.totalorder %s25, 0
    %p136 = por %p134, %p135
    %s138 = sadd.s32 %s137, 1
    %p141 = scmp.eq.s32.totalorder %s19, 1
    %p142 = scmp.ne.s32.totalorder %s137, %s139
    %p143 = scmp.eq.s32.totalorder %s19, 0
    %p144 = por %p142, %p143
    %p145 = scmp.ne.s32.totalorder %s137, %s139
    %p146 = scmp.eq.s32.totalorder %s24, 1
    %p147 = por %p145, %p146
    %p148 = scmp.ne.s32.totalorder %s139, %s140
    %p149 = scmp.eq.s32.totalorder %s24, 0
    %p150 = por %p148, %p149
    %p151 = scmp.ne.s32.totalorder %s139, %s140
    %p152 = scmp.eq.s32.totalorder %s25, 1
    %p153 = por %p151, %p152
    %p155 = scmp.ne.s32.totalorder %s140, %s154
    %p156 = scmp.eq.s32.totalorder %s25, 0
    %p157 = por %p155, %p156
    %s159 = sadd.s32 %s158, 1
    %p162 = scmp.eq.s32.totalorder %s19, 1
    %p163 = scmp.ne.s32.totalorder %s158, %s160
    %p164 = scmp.eq.s32.totalorder %s19, 0
    %p165 = por %p163, %p164
    %p166 = scmp.ne.s32.totalorder %s158, %s160
    %p167 = scmp.eq.s32.totalorder %s24, 1
    %p168 = por %p166, %p167
    %p169 = scmp.ne.s32.totalorder %s160, %s161
    %p170 = scmp.eq.s32.totalorder %s24, 0
    %p171 = por %p169, %p170
    %p172 = scmp.ne.s32.totalorder %s160, %s161
    %p173 = scmp.eq.s32.totalorder %s25, 1
    %p174 = por %p172, %p173
    %p176 = scmp.ne.s32.totalorder %s161, %s175
    %p177 = scmp.eq.s32.totalorder %s25, 0
    %p178 = por %p176, %p177
    %s180 = sadd.s32 %s179, 1
    %p183 = scmp.eq.s32.totalorder %s19, 1
    %p184 = scmp.ne.s32.totalorder %s179, %s181
    %p185 = scmp.eq.s32.totalorder %s19, 0
    %p186 = por %p184, %p185
    %p187 = scmp.ne.s32.totalorder %s179, %s181
    %p188 = scmp.eq.s32.totalorder %s24, 1
    %p189 = por %p187, %p188
    %p190 = scmp.ne.s32.totalorder %s181, %s182
    %p191 = scmp.eq.s32.totalorder %s24, 0
    %p192 = por %p190, %p191
    %p193 = scmp.ne.s32.totalorder %s181, %s182
    %p194 = scmp.eq.s32.totalorder %s25, 1
    %p195 = por %p193, %p194
    %p197 = scmp.ne.s32.totalorder %s182, %s196
    %p198 = scmp.eq.s32.totalorder %s25, 0
    %p199 = por %p197, %p198
    %s201 = sadd.s32 %s200, 1
    %p204 = scmp.eq.s32.totalorder %s19, 1
    %p205 = scmp.ne.s32.totalorder %s200, %s202
    %p206 = scmp.eq.s32.totalorder %s19, 0
    %p207 = por %p205, %p206
    %p208 = scmp.ne.s32.totalorder %s200, %s202
    %p209 = scmp.eq.s32.totalorder %s24, 1
    %p210 = por %p208, %p209
    %p211 = scmp.ne.s32.totalorder %s202, %s203
    %p212 = scmp.eq.s32.totalorder %s24, 0
    %p213 = por %p211, %p212
    %p214 = scmp.ne.s32.totalorder %s202, %s203
    %p215 = scmp.eq.s32.totalorder %s25, 1
    %p216 = por %p214, %p215
    %p218 = scmp.ne.s32.totalorder %s203, %s217
    %p219 = scmp.eq.s32.totalorder %s25, 0
    %p220 = por %p218, %p219
    %s222 = sadd.s32 %s221, 1
    %p225 = scmp.eq.s32.totalorder %s19, 1
    %p226 = scmp.ne.s32.totalorder %s221, %s223
    %p227 = scmp.eq.s32.totalorder %s19, 0
    %p228 = por %p226, %p227
    %p229 = scmp.ne.s32.totalorder %s221, %s223
    %p230 = scmp.eq.s32.totalorder %s24, 1
    %p231 = por %p229, %p230
    %p232 = scmp.ne.s32.totalorder %s223, %s224
    %p233 = scmp.eq.s32.totalorder %s24, 0
    %p234 = por %p232, %p233
    %p235 = scmp.ne.s32.totalorder %s223, %s224
    %p236 = scmp.eq.s32.totalorder %s25, 1
    %p237 = por %p235, %p236
    %p239 = scmp.ne.s32.totalorder %s224, %s238
    %p240 = scmp.eq.s32.totalorder %s25, 0
    %p241 = por %p239, %p240
    %s243 = sadd.s32 %s242, 1
    %p246 = scmp.eq.s32.totalorder %s19, 1
    %p247 = scmp.ne.s32.totalorder %s242, %s244
    %p248 = scmp.eq.s32.totalorder %s19, 0
    %p249 = por %p247, %p248
    %p250 = scmp.ne.s32.totalorder %s242, %s244
    %p251 = scmp.eq.s32.totalorder %s24, 1
    %p252 = por %p250, %p251
    %p253 = scmp.ne.s32.totalorder %s244, %s245
    %p254 = scmp.eq.s32.totalorder %s24, 0
    %p255 = por %p253, %p254
    %p256 = scmp.ne.s32.totalorder %s244, %s245
    %p257 = scmp.eq.s32.totalorder %s25, 1
    %p258 = por %p256, %p257
    %p260 = scmp.ne.s32.totalorder %s245, %s259
    %p261 = scmp.eq.s32.totalorder %s25, 0
    %p262 = por %p260, %p261
    %s264 = sadd.s32 %s263, 1
    %p267 = scmp.eq.s32.totalorder %s19, 1
    %p268 = scmp.ne.s32.totalorder %s263, %s265
    %p269 = scmp.eq.s32.totalorder %s19, 0
    %p270 = por %p268, %p269
    %p271 = scmp.ne.s32.totalorder %s263, %s265
    %p272 = scmp.eq.s32.totalorder %s24, 1
    %p273 = por %p271, %p272
    %p274 = scmp.ne.s32.totalorder %s265, %s266
    %p275 = scmp.eq.s32.totalorder %s24, 0
    %p276 = por %p274, %p275
    %p277 = scmp.ne.s32.totalorder %s265, %s266
    %p278 = scmp.eq.s32.totalorder %s25, 1
    %p279 = por %p277, %p278
    %p281 = scmp.ne.s32.totalorder %s266, %s280
    %p282 = scmp.eq.s32.totalorder %s25, 0
    %p283 = por %p281, %p282
    %s285 = sadd.s32 %s284, 1
    %p288 = scmp.eq.s32.totalorder %s19, 1
    %p289 = scmp.ne.s32.totalorder %s284, %s286
    %p290 = scmp.eq.s32.totalorder %s19, 0
    %p291 = por %p289, %p290
    %p292 = scmp.ne.s32.totalorder %s284, %s286
    %p293 = scmp.eq.s32.totalorder %s24, 1
    %p294 = por %p292, %p293
    %p295 = scmp.ne.s32.totalorder %s286, %s287
    %p296 = scmp.eq.s32.totalorder %s24, 0
    %p297 = por %p295, %p296
    %p298 = scmp.ne.s32.totalorder %s286, %s287
    %p299 = scmp.eq.s32.totalorder %s25, 1
    %p300 = por %p298, %p299
    %p302 = scmp.ne.s32.totalorder %s287, %s301
    %p303 = scmp.eq.s32.totalorder %s25, 0
    %p304 = por %p302, %p303
    %s305 = ssub.s32 %s19, %s26
    %p306 = scmp.eq.s32.totalorder %s305, 0
    %s308 = sadd.s32 %s307, 1
    %s309 = scalar_select %p306, %s307, %s308
    %p312 = pneg %p306
    %p313 = scmp.eq.s32.totalorder %s19, 1
    %p314 = por %p312, %p313
    %p315 = scmp.ne.s32.totalorder %s307, %s310
    %p316 = scmp.eq.s32.totalorder %s19, 0
    %p317 = por %p315, %p316
    %p318 = scmp.ne.s32.totalorder %s307, %s310
    %p319 = scmp.eq.s32.totalorder %s24, 1
    %p320 = por %p318, %p319
    %p321 = scmp.ne.s32.totalorder %s310, %s311
    %p322 = scmp.eq.s32.totalorder %s24, 0
    %p323 = por %p321, %p322
    %p324 = scmp.ne.s32.totalorder %s310, %s311
    %p325 = scmp.eq.s32.totalorder %s25, 1
    %p326 = por %p324, %p325
    %p328 = scmp.ne.s32.totalorder %s311, %s327
    %p329 = scmp.eq.s32.totalorder %s25, 0
    %p330 = por %p328, %p329
    %p331 = scmp.le.s32.totalorder 1, %s19
    %p332 = scmp.lt.s32.totalorder %s19, 3
    %p333 = pnand %p331, %p332
    %p334 = pneg %p333
    // Predicated region
    $region9: #{net_forward.1} parent=5 // pred_check
      _
    $region10: #{net_forward.1} parent=5 // pred_check_branch
      %336 = sbr.rel (%p333) target = $region12
    $region11: #{net_forward.1} parent=5 // pred_region
      %s337 = ssub.s32 %s19, 1
      // Predicated region
      $region13: #{net_forward.1} parent=11 // pred_check
        %p338 = pneg %p66
      $region14: #{net_forward.1} parent=11 // pred_check_branch
        %340 = sbr.rel (%p338) target = $region16
      $region15: #{net_forward.1} parent=11 // pred_region
        _
      $region16: #{net_forward.1} parent=11 // pred_fallthru
        _
      // Predicated region
      $region17: #{net_forward.1} parent=11 // pred_check
        %p341 = pneg %p87
      $region18: #{net_forward.1} parent=11 // pred_check_branch
        %343 = sbr.rel (%p341) target = $region20
      $region19: #{net_forward.1} parent=11 // pred_region
        _
      $region20: #{net_forward.1} parent=11 // pred_fallthru
        _
      // Predicated region
      $region21: #{net_forward.1} parent=11 // pred_check
        %p344 = pneg %p108
      $region22: #{net_forward.1} parent=11 // pred_check_branch
        %346 = sbr.rel (%p344) target = $region24
      $region23: #{net_forward.1} parent=11 // pred_region
        _
      $region24: #{net_forward.1} parent=11 // pred_fallthru
        _
      // Predicated region
      $region25: #{net_forward.1} parent=11 // pred_check
        %p347 = pneg %p129
      $region26: #{net_forward.1} parent=11 // pred_check_branch
        %349 = sbr.rel (%p347) target = $region28
      $region27: #{net_forward.1} parent=11 // pred_region
        _
      $region28: #{net_forward.1} parent=11 // pred_fallthru
        _
      // Predicated region
      $region29: #{net_forward.1} parent=11 // pred_check
        %p350 = pneg %p150
      $region30: #{net_forward.1} parent=11 // pred_check_branch
        %352 = sbr.rel (%p350) target = $region32
      $region31: #{net_forward.1} parent=11 // pred_region
        _
      $region32: #{net_forward.1} parent=11 // pred_fallthru
        _
      // Predicated region
      $region33: #{net_forward.1} parent=11 // pred_check
        %p353 = pneg %p171
      $region34: #{net_forward.1} parent=11 // pred_check_branch
        %355 = sbr.rel (%p353) target = $region36
      $region35: #{net_forward.1} parent=11 // pred_region
        _
      $region36: #{net_forward.1} parent=11 // pred_fallthru
        _
      // Predicated region
      $region37: #{net_forward.1} parent=11 // pred_check
        %p356 = pneg %p192
      $region38: #{net_forward.1} parent=11 // pred_check_branch
        %358 = sbr.rel (%p356) target = $region40
      $region39: #{net_forward.1} parent=11 // pred_region
        _
      $region40: #{net_forward.1} parent=11 // pred_fallthru
        _
      // Predicated region
      $region41: #{net_forward.1} parent=11 // pred_check
        %p359 = pneg %p213
      $region42: #{net_forward.1} parent=11 // pred_check_branch
        %361 = sbr.rel (%p359) target = $region44
      $region43: #{net_forward.1} parent=11 // pred_region
        _
      $region44: #{net_forward.1} parent=11 // pred_fallthru
        _
      // Predicated region
      $region45: #{net_forward.1} parent=11 // pred_check
        %p362 = pneg %p234
      $region46: #{net_forward.1} parent=11 // pred_check_branch
        %364 = sbr.rel (%p362) target = $region48
      $region47: #{net_forward.1} parent=11 // pred_region
        _
      $region48: #{net_forward.1} parent=11 // pred_fallthru
        _
      // Predicated region
      $region49: #{net_forward.1} parent=11 // pred_check
        %p365 = pneg %p255
      $region50: #{net_forward.1} parent=11 // pred_check_branch
        %367 = sbr.rel (%p365) target = $region52
      $region51: #{net_forward.1} parent=11 // pred_region
        _
      $region52: #{net_forward.1} parent=11 // pred_fallthru
        _
      // Predicated region
      $region53: #{net_forward.1} parent=11 // pred_check
        %p368 = pneg %p276
      $region54: #{net_forward.1} parent=11 // pred_check_branch
        %370 = sbr.rel (%p368) target = $region56
      $region55: #{net_forward.1} parent=11 // pred_region
        _
      $region56: #{net_forward.1} parent=11 // pred_fallthru
        _
      // Predicated region
      $region57: #{net_forward.1} parent=11 // pred_check
        %p371 = pneg %p297
      $region58: #{net_forward.1} parent=11 // pred_check_branch
        %373 = sbr.rel (%p371) target = $region60
      $region59: #{net_forward.1} parent=11 // pred_region
        _
      $region60: #{net_forward.1} parent=11 // pred_fallthru
        _
    $region12: #{net_forward.1} parent=5 // pred_fallthru
      _
    %p374 = scmp.lt.s32.totalorder %s19, 2
    // Predicated region
    $region61: #{net_forward.1} parent=5 // pred_check
      %p375 = pneg %p374
    $region62: #{net_forward.1} parent=5 // pred_check_branch
      %377 = sbr.rel (%p375) target = $region64
    $region63: #{net_forward.1} parent=5 // pred_region
      // Predicated region
      $region65: #{net_forward.1} parent=63 // pred_check
        %p378 = pneg %p39
      $region66: #{net_forward.1} parent=63 // pred_check_branch
        %380 = sbr.rel (%p378) target = $region68
      $region67: #{net_forward.1} parent=63 // pred_region
        %p381 = scmp.lt.s32.totalorder %s19, 1
        %s382 = scalar_select %p381, %s19, 1
        %s383 = smul.addr %s382, 32
        %s384 = smul.addr %s383, 4
        %s385 = scalar_lea.vmem %s0, %s384
      $region68: #{net_forward.1} parent=63 // pred_fallthru
        _
    $region64: #{net_forward.1} parent=5 // pred_fallthru
      _
    %p386 = scmp.le.s32.totalorder 1, %s19
    %p387 = scmp.lt.s32.totalorder %s19, 3
    %p388 = pnand %p386, %p387
    %p389 = pneg %p388
    // Predicated region
    $region69: #{net_forward.1} parent=5 // pred_check
      _
    $region70: #{net_forward.1} parent=5 // pred_check_branch
      %391 = sbr.rel (%p388) target = $region72
    $region71: #{net_forward.1} parent=5 // pred_region
      %s392 = ssub.s32 %s19, 1
      %p393 = scmp.lt.s32.totalorder %s24, 1
      %s394 = scalar_select %p393, %s24, 1
      %s395 = smul.addr %s394, 32
      %s396 = smul.addr %s395, 4
      %s397 = scalar_lea.vmem %s0, %s396
      %p398 = pneg %p45
      %p399 = pneg %p42
      %p400 = pneg %p66
      %p401 = pneg %p63
      %p402 = pneg %p87
      %p403 = pneg %p84
      %p404 = pneg %p108
      %p405 = pneg %p105
      %p406 = pneg %p129
      %p407 = pneg %p126
      %p408 = pneg %p150
      %p409 = pneg %p147
      %p410 = pneg %p171
      %p411 = pneg %p168
      %p412 = pneg %p192
      %p413 = pneg %p189
      %p414 = pneg %p213
      %p415 = pneg %p210
      %p416 = pneg %p234
      %p417 = pneg %p231
      %p418 = pneg %p255
      %p419 = pneg %p252
      %p420 = pneg %p276
      %p421 = pneg %p273
      %p422 = pneg %p297
      %p423 = pneg %p294
      %p424 = pneg %p323
      %p425 = pneg %p320
      %p426 = scmp.lt.s32.totalorder %s24, 1
      %s427 = scalar_select %p426, %s24, 1
      %s428 = smul.addr %s427, 3
      %s429 = scalar_lea.vmem %s13, %s428
      %p430 = scmp.lt.s32.totalorder %s24, 1
      %s431 = scalar_select %p430, %s24, 1
      %s432 = smul.addr %s431, 32
      %s433 = smul.addr %s432, 4
      %s434 = scalar_lea.vmem %s0, %s433
      %p435 = scmp.lt.s32.totalorder %s24, 1
      %s436 = scalar_select %p435, %s24, 1
      %s437 = smul.addr %s436, 3
      %s438 = scalar_lea.vmem %s13, %s437
      %v440 = vld [vmem:[%s434] sm:$0xff]
      %v441 = vld [vmem:[%s434 + $0x8] sm:$0xff]
      %v442 = vld [vmem:[%s434 + $0x10] sm:$0xff]
      %v443 = vld [vmem:[%s434 + $0x18] sm:$0xff]
      %v444 = vld [vmem:[%s434 + $0x20] sm:$0xff]
      %v445 = vld [vmem:[%s434 + $0x28] sm:$0xff]
      %v446 = vld [vmem:[%s434 + $0x30] sm:$0xff]
      %v447 = vld [vmem:[%s434 + $0x38] sm:$0xff]
      %v448 = vld [vmem:[%s434 + $0x40] sm:$0xff]
      %v449 = vld [vmem:[%s434 + $0x48] sm:$0xff]
      %v450 = vld [vmem:[%s434 + $0x50] sm:$0xff]
      %v451 = vld [vmem:[%s434 + $0x58] sm:$0xff]
      %v452 = vld [vmem:[%s434 + $0x60] sm:$0xff]
      %v453 = vld [vmem:[%s434 + $0x68] sm:$0xff]
      %v454 = vld [vmem:[%s1] sm:$0xf]
      %v455 = vld [vmem:[%s1 + $0x4] sm:$0xf]
      %v456 = vld [vmem:[%s1 + $0x8] sm:$0xf]
      %v457 = vld [vmem:[%s1 + $0xc] sm:$0xf]
      %v458 = vld [vmem:[%s1 + $0x10] sm:$0xf]
      %v459 = vld [vmem:[%s1 + $0x14] sm:$0xf]
      %v460 = vld [vmem:[%s1 + $0x18] sm:$0xf]
      %v461 = vld [vmem:[%s1 + $0x1c] sm:$0xf]
      %v462 = vld [vmem:[%s1 + $0x20] sm:$0xf]
      %v463 = vld [vmem:[%s1 + $0x24] sm:$0xf]
      %v464 = vld [vmem:[%s1 + $0x28] sm:$0xf]
      %v465 = vld [vmem:[%s1 + $0x2c] sm:$0xf]
      %v466 = vld [vmem:[%s1 + $0x30] sm:$0xf]
      %v467 = vld [vmem:[%s1 + $0x34] sm:$0xf]
      %v468 = vld [vmem:[%s1 + $0x38] sm:$0xf]
      %v469 = vld [vmem:[%s1 + $0x3c] sm:$0xf]
      %v470 = vld [vmem:[%s1 + $0x40] sm:$0xf]
      %v471 = vld [vmem:[%s1 + $0x44] sm:$0xf]
      %v472 = vld [vmem:[%s1 + $0x48] sm:$0xf]
      %v473 = vld [vmem:[%s1 + $0x4c] sm:$0xf]
      %v474 = vld [vmem:[%s1 + $0x50] sm:$0xf]
      %v475 = vld [vmem:[%s1 + $0x54] sm:$0xf]
      %v476 = vld [vmem:[%s1 + $0x58] sm:$0xf]
      %v477 = vld [vmem:[%s1 + $0x5c] sm:$0xf]
      %v478 = vld [vmem:[%s1 + $0x60] sm:$0xf]
      %v479 = vld [vmem:[%s1 + $0x64] sm:$0xf]
      %v480 = vld [vmem:[%s1 + $0x68] sm:$0xf]
      %v481 = vld [vmem:[%s1 + $0x6c] sm:$0xf]
      %v482 = vld [vmem:[%s1 + $0x70] sm:$0xf]
      %v483 = vld [vmem:[%s1 + $0x74] sm:$0xf]
      %v484 = vld [vmem:[%s1 + $0x78] sm:$0xf]
      %v485 = vld [vmem:[%s1 + $0x7c] sm:$0xf]
      %v486 = vld [vmem:[%s434 + $0x70] sm:$0x11]
      %s487 = scalar_lea.vmem %s1, 128
      %v488 = vld [vmem:[%s487] sm:$0xf]
      %v489 = vld [vmem:[%s487 + $0x4] sm:$0xf]
      %v490 = vld [vmem:[%s487 + $0x8] sm:$0xf]
      %v491 = vld [vmem:[%s487 + $0xc] sm:$0xf]
      %v492 = vld [vmem:[%s487 + $0x10] sm:$0xf]
      %v493 = vld [vmem:[%s487 + $0x14] sm:$0xf]
      %v494 = vld [vmem:[%s487 + $0x18] sm:$0xf]
      %v495 = vld [vmem:[%s487 + $0x1c] sm:$0xf]
      %v496 = vld [vmem:[%s487 + $0x20] sm:$0xf]
      %v497 = vld [vmem:[%s487 + $0x24] sm:$0xf]
      %v498 = vld [vmem:[%s487 + $0x28] sm:$0xf]
      %v499 = vld [vmem:[%s487 + $0x2c] sm:$0xf]
      %v500 = vld [vmem:[%s487 + $0x30] sm:$0xf]
      %v501 = vld [vmem:[%s487 + $0x34] sm:$0xf]
      %v502 = vld [vmem:[%s487 + $0x38] sm:$0xf]
      %v503 = vld [vmem:[%s487 + $0x3c] sm:$0xf]
      %v504 = vld [vmem:[%s487 + $0x40] sm:$0xf]
      %v505 = vld [vmem:[%s487 + $0x44] sm:$0xf]
      %v506 = vld [vmem:[%s487 + $0x48] sm:$0xf]
      %v507 = vld [vmem:[%s487 + $0x4c] sm:$0xf]
      %v508 = vld [vmem:[%s487 + $0x50] sm:$0xf]
      %v509 = vld [vmem:[%s487 + $0x54] sm:$0xf]
      %v510 = vld [vmem:[%s487 + $0x58] sm:$0xf]
      %v511 = vld [vmem:[%s487 + $0x5c] sm:$0xf]
      %v512 = vld [vmem:[%s487 + $0x60] sm:$0xf]
      %v513 = vld [vmem:[%s487 + $0x64] sm:$0xf]
      %v514 = vld [vmem:[%s487 + $0x68] sm:$0xf]
      %v515 = vld [vmem:[%s487 + $0x6c] sm:$0xf]
      %v516 = vld [vmem:[%s487 + $0x70] sm:$0xf]
      %v517 = vld [vmem:[%s487 + $0x74] sm:$0xf]
      %v518 = vld [vmem:[%s487 + $0x78] sm:$0xf]
      %v519 = vld [vmem:[%s487 + $0x7c] sm:$0xf]
      %v535 = vunpack.c.l.b16 %v440
      %v536 = vunpack.c.h.b16 %v440
      %v537 = vunpack.c.l.b16 %v441
      %v538 = vunpack.c.h.b16 %v441
      %v539 = vunpack.c.l.b16 %v442
      %v540 = vunpack.c.h.b16 %v442
      %v541 = vunpack.c.l.b16 %v443
      %v542 = vunpack.c.h.b16 %v443
      %v543 = vunpack.c.l.b16 %v444
      %v544 = vunpack.c.h.b16 %v444
      %v545 = vunpack.c.l.b16 %v445
      %v546 = vunpack.c.h.b16 %v445
      %v547 = vunpack.c.l.b16 %v446
      %v548 = vunpack.c.h.b16 %v446
      %v549 = vunpack.c.l.b16 %v447
      %v550 = vunpack.c.h.b16 %v447
      %v551 = vunpack.c.l.b16 %v448
      %v552 = vunpack.c.h.b16 %v448
      %v553 = vunpack.c.l.b16 %v449
      %v554 = vunpack.c.h.b16 %v449
      %v555 = vunpack.c.l.b16 %v450
      %v556 = vunpack.c.h.b16 %v450
      %v557 = vunpack.c.l.b16 %v451
      %v558 = vunpack.c.h.b16 %v451
      %v559 = vunpack.c.l.b16 %v452
      %v560 = vunpack.c.h.b16 %v452
      %v561 = vunpack.c.l.b16 %v453
      %v562 = vunpack.c.h.b16 %v453
      %v563 = vunpack.c.l.b16 %v486
      %v564 = vunpack.c.h.b16 %v486
      %v565 = vpack.c.b16 %v537, %v535
      %v566 = vpack.c.b16 %v538, %v536
      %v567 = vpack.c.b16 %v541, %v539
      %v568 = vpack.c.b16 %v542, %v540
      %v569 = vpack.c.b16 %v545, %v543
      %v570 = vpack.c.b16 %v546, %v544
      %v571 = vpack.c.b16 %v549, %v547
      %v572 = vpack.c.b16 %v550, %v548
      %v573 = vpack.c.b16 %v553, %v551
      %v574 = vpack.c.b16 %v554, %v552
      %v575 = vpack.c.b16 %v557, %v555
      %v576 = vpack.c.b16 %v558, %v556
      %v577 = vpack.c.b16 %v561, %v559
      %v578 = vpack.c.b16 %v562, %v560
      %v579 = vpack.c.b16 %v563, %v563
      %v580 = vpack.c.b16 %v564, %v564
      %vm581 = vsmask.f32 7424
      %v583 = vshrl.u32 %v565, 16
      %v585 = vshll.u32 %v565, 16
      %v587 = vrot.slane %v585, 1
      %v588 = vor.u32 %v583, %v587
      %v590 = vshll.u32 %v567, 16
      %v592 = vrot.slane %v590, 1
      %v593 = vsel %vm581, %v588, %v592
      %v595 = vshrl.u32 %v566, 16
      %v597 = vshll.u32 %v566, 16
      %v599 = vrot.slane %v597, 1
      %v600 = vor.u32 %v595, %v599
      %v602 = vshll.u32 %v568, 16
      %v604 = vrot.slane %v602, 1
      %v605 = vsel %vm581, %v600, %v604
      %v606 = vshrl.u32 %v567, 16
      %v608 = vor.u32 %v606, %v592
      %v610 = vshll.u32 %v569, 16
      %v612 = vrot.slane %v610, 1
      %v613 = vsel %vm581, %v608, %v612
      %v614 = vshrl.u32 %v568, 16
      %v616 = vor.u32 %v614, %v604
      %v618 = vshll.u32 %v570, 16
      %v620 = vrot.slane %v618, 1
      %v621 = vsel %vm581, %v616, %v620
      %v622 = vshrl.u32 %v569, 16
      %v624 = vor.u32 %v622, %v612
      %v626 = vshll.u32 %v571, 16
      %v628 = vrot.slane %v626, 1
      %v629 = vsel %vm581, %v624, %v628
      %v630 = vshrl.u32 %v570, 16
      %v632 = vor.u32 %v630, %v620
      %v634 = vshll.u32 %v572, 16
      %v636 = vrot.slane %v634, 1
      %v637 = vsel %vm581, %v632, %v636
      %v638 = vshrl.u32 %v571, 16
      %v640 = vor.u32 %v638, %v628
      %v642 = vshll.u32 %v573, 16
      %v644 = vrot.slane %v642, 1
      %v645 = vsel %vm581, %v640, %v644
      %v646 = vshrl.u32 %v572, 16
      %v648 = vor.u32 %v646, %v636
      %v650 = vshll.u32 %v574, 16
      %v652 = vrot.slane %v650, 1
      %v653 = vsel %vm581, %v648, %v652
      %v654 = vshrl.u32 %v573, 16
      %v656 = vor.u32 %v654, %v644
      %v658 = vshll.u32 %v575, 16
      %v660 = vrot.slane %v658, 1
      %v661 = vsel %vm581, %v656, %v660
      %v662 = vshrl.u32 %v574, 16
      %v664 = vor.u32 %v662, %v652
      %v666 = vshll.u32 %v576, 16
      %v668 = vrot.slane %v666, 1
      %v669 = vsel %vm581, %v664, %v668
      %v670 = vshrl.u32 %v575, 16
      %v672 = vor.u32 %v670, %v660
      %v674 = vshll.u32 %v577, 16
      %v676 = vrot.slane %v674, 1
      %v677 = vsel %vm581, %v672, %v676
      %v678 = vshrl.u32 %v576, 16
      %v680 = vor.u32 %v678, %v668
      %v682 = vshll.u32 %v578, 16
      %v684 = vrot.slane %v682, 1
      %v685 = vsel %vm581, %v680, %v684
      %v686 = vshrl.u32 %v577, 16
      %v688 = vor.u32 %v686, %v676
      %v690 = vshll.u32 %v579, 16
      %v692 = vrot.slane %v690, 1
      %v693 = vsel %vm581, %v688, %v692
      %v694 = vshrl.u32 %v578, 16
      %v696 = vor.u32 %v694, %v684
      %v698 = vshll.u32 %v580, 16
      %v700 = vrot.slane %v698, 1
      %v701 = vsel %vm581, %v696, %v700
      %v748 = vunpack.c.l.b16 %v488
      %v749 = vunpack.c.l.b16 %v489
      %v750 = vunpack.c.l.b16 %v490
      %v751 = vunpack.c.l.b16 %v491
      %v752 = vunpack.c.l.b16 %v492
      %v753 = vunpack.c.l.b16 %v493
      %v754 = vunpack.c.l.b16 %v494
      %v755 = vunpack.c.l.b16 %v495
      %v756 = vunpack.c.l.b16 %v496
      %v757 = vunpack.c.l.b16 %v497
      %v758 = vunpack.c.l.b16 %v498
      %v759 = vunpack.c.l.b16 %v499
      %v760 = vunpack.c.l.b16 %v500
      %v761 = vunpack.c.l.b16 %v501
      %v762 = vunpack.c.l.b16 %v502
      %v763 = vunpack.c.l.b16 %v503
      %v764 = vunpack.c.l.b16 %v504
      %v765 = vunpack.c.l.b16 %v505
      %v766 = vunpack.c.l.b16 %v506
      %v767 = vunpack.c.l.b16 %v507
      %v768 = vunpack.c.l.b16 %v508
      %v769 = vunpack.c.l.b16 %v509
      %v770 = vunpack.c.l.b16 %v510
      %v771 = vunpack.c.l.b16 %v511
      %v772 = vunpack.c.l.b16 %v512
      %v773 = vunpack.c.l.b16 %v513
      %v774 = vunpack.c.l.b16 %v514
      %v775 = vunpack.c.l.b16 %v515
      %v776 = vunpack.c.l.b16 %v516
      %v777 = vunpack.c.l.b16 %v517
      %v778 = vunpack.c.l.b16 %v518
      %v779 = vunpack.c.l.b16 %v519
      %v780 = vpack.c.b16 %v749, %v748
      %v781 = vpack.c.b16 %v751, %v750
      %v782 = vpack.c.b16 %v753, %v752
      %v783 = vpack.c.b16 %v755, %v754
      %v784 = vpack.c.b16 %v757, %v756
      %v785 = vpack.c.b16 %v759, %v758
      %v786 = vpack.c.b16 %v761, %v760
      %v787 = vpack.c.b16 %v763, %v762
      %v788 = vpack.c.b16 %v765, %v764
      %v789 = vpack.c.b16 %v767, %v766
      %v790 = vpack.c.b16 %v769, %v768
      %v791 = vpack.c.b16 %v771, %v770
      %v792 = vpack.c.b16 %v773, %v772
      %v793 = vpack.c.b16 %v775, %v774
      %v794 = vpack.c.b16 %v777, %v776
      %v795 = vpack.c.b16 %v779, %v778
      %812 = vmatprep.subr.bf16.mxu0 0
      %813 = vmatpush1.bf16.msra.mxu0 %v780
      %814 = vmatprep.subr.bf16.mxu0 0
      %815 = vmatpush1.bf16.msra.mxu0 %v781
      %816 = vmatprep.subr.bf16.mxu0 0
      %817 = vmatpush1.bf16.msra.mxu0 %v782
      %818 = vmatprep.subr.bf16.mxu0 0
      %819 = vmatpush1.bf16.msra.mxu0 %v783
      %820 = vmatprep.subr.bf16.mxu0 0
      %821 = vmatpush1.bf16.msra.mxu0 %v784
      %822 = vmatprep.subr.bf16.mxu0 0
      %823 = vmatpush1.bf16.msra.mxu0 %v785
      %824 = vmatprep.subr.bf16.mxu0 0
      %825 = vmatpush1.bf16.msra.mxu0 %v786
      %826 = vmatprep.subr.bf16.mxu0 0
      %827 = vmatpush1.bf16.msra.mxu0 %v787
      %828 = vmatprep.subr.bf16.mxu0 0
      %829 = vmatpush1.bf16.msra.mxu0 %v788
      %830 = vmatprep.subr.bf16.mxu0 0
      %831 = vmatpush1.bf16.msra.mxu0 %v789
      %832 = vmatprep.subr.bf16.mxu0 0
      %833 = vmatpush1.bf16.msra.mxu0 %v790
      %834 = vmatprep.subr.bf16.mxu0 0
      %835 = vmatpush1.bf16.msra.mxu0 %v791
      %836 = vmatprep.subr.bf16.mxu0 0
      %837 = vmatpush1.bf16.msra.mxu0 %v792
      %838 = vmatprep.subr.bf16.mxu0 0
      %839 = vmatpush1.bf16.msra.mxu0 %v793
      %840 = vmatprep.subr.bf16.mxu0 0
      %841 = vmatpush1.bf16.msra.mxu0 %v794
      %842 = vmatprep.subr.bf16.mxu0 0
      %843 = vmatpush1.bf16.msra.mxu0 %v795
      %844 = vmatprep.mubr.bf16.mxu0 %v605
      %845 = vmatmul.mubr.bf16.gmra.mrb[0].mxu0 %v593
      %v846 = vpop.f32.mrb[0].mxu0
      %v847 = vadd.f32 0.0, %v846
      %v848 = vpop.f32.mrb[0].mxu0
      %v849 = vpop.f32.mrb[0].mxu0
      %v850 = vadd.f32 0.0, %v849
      %v851 = vpop.f32.mrb[0].mxu0
      %852 = vmatprep.mubr.bf16.mxu0 %v621
      %853 = vmatmul.mubr.bf16.gmra.mrb[0].mxu0 %v613
      %v854 = vpop.f32.mrb[0].mxu0
      %v855 = vadd.f32 0.0, %v854
      %v856 = vpop.f32.mrb[0].mxu0
      %v857 = vpop.f32.mrb[0].mxu0
      %v858 = vadd.f32 0.0, %v857
      %v859 = vpop.f32.mrb[0].mxu0
      %860 = vmatprep.mubr.bf16.mxu0 %v637
      %861 = vmatmul.mubr.bf16.gmra.mrb[0].mxu0 %v629
      %v862 = vpop.f32.mrb[0].mxu0
      %v863 = vadd.f32 0.0, %v862
      %v864 = vpop.f32.mrb[0].mxu0
      %v865 = vpop.f32.mrb[0].mxu0
      %v866 = vadd.f32 0.0, %v865
      %v867 = vpop.f32.mrb[0].mxu0
      %868 = vmatprep.mubr.bf16.mxu0 %v653
      %869 = vmatmul.mubr.bf16.gmra.mrb[0].mxu0 %v645
      %v870 = vpop.f32.mrb[0].mxu0
      %v871 = vadd.f32 0.0, %v870
      %v872 = vpop.f32.mrb[0].mxu0
      %v873 = vpop.f32.mrb[0].mxu0
      %v874 = vadd.f32 0.0, %v873
      %v875 = vpop.f32.mrb[0].mxu0
      %876 = vmatprep.mubr.bf16.mxu0 %v669
      %877 = vmatmul.mubr.bf16.gmra.mrb[0].mxu0 %v661
      %v878 = vpop.f32.mrb[0].mxu0
      %v879 = vadd.f32 0.0, %v878
      %v880 = vpop.f32.mrb[0].mxu0
      %v881 = vpop.f32.mrb[0].mxu0
      %v882 = vadd.f32 0.0, %v881
      %v883 = vpop.f32.mrb[0].mxu0
      %884 = vmatprep.mubr.bf16.mxu0 %v685
      %885 = vmatmul.mubr.bf16.gmra.mrb[0].mxu0 %v677
      %v886 = vpop.f32.mrb[0].mxu0
      %v887 = vadd.f32 0.0, %v886
      %v888 = vpop.f32.mrb[0].mxu0
      %v889 = vpop.f32.mrb[0].mxu0
      %v890 = vadd.f32 0.0, %v889
      %v891 = vpop.f32.mrb[0].mxu0
      %892 = vmatprep.mubr.bf16.mxu0 %v701
      %893 = vmatmul.mubr.bf16.gmra.mrb[0].mxu0 %v693
      %v894 = vpop.f32.mrb[0].mxu0
      %v895 = vadd.f32 0.0, %v894
      %v896 = vpop.f32.mrb[0].mxu0
      %v897 = vpop.f32.mrb[0].mxu0
      %v898 = vadd.f32 0.0, %v897
      %v899 = vpop.f32.mrb[0].mxu0
      %900 = vdwg.mxu0
      %v947 = vunpack.c.l.b16 %v454
      %v948 = vunpack.c.l.b16 %v455
      %v949 = vunpack.c.l.b16 %v456
      %v950 = vunpack.c.l.b16 %v457
      %v951 = vunpack.c.l.b16 %v458
      %v952 = vunpack.c.l.b16 %v459
      %v953 = vunpack.c.l.b16 %v460
      %v954 = vunpack.c.l.b16 %v461
      %v955 = vunpack.c.l.b16 %v462
      %v956 = vunpack.c.l.b16 %v463
      %v957 = vunpack.c.l.b16 %v464
      %v958 = vunpack.c.l.b16 %v465
      %v959 = vunpack.c.l.b16 %v466
      %v960 = vunpack.c.l.b16 %v467
      %v961 = vunpack.c.l.b16 %v468
      %v962 = vunpack.c.l.b16 %v469
      %v963 = vunpack.c.l.b16 %v470
      %v964 = vunpack.c.l.b16 %v471
      %v965 = vunpack.c.l.b16 %v472
      %v966 = vunpack.c.l.b16 %v473
      %v967 = vunpack.c.l.b16 %v474
      %v968 = vunpack.c.l.b16 %v475
      %v969 = vunpack.c.l.b16 %v476
      %v970 = vunpack.c.l.b16 %v477
      %v971 = vunpack.c.l.b16 %v478
      %v972 = vunpack.c.l.b16 %v479
      %v973 = vunpack.c.l.b16 %v480
      %v974 = vunpack.c.l.b16 %v481
      %v975 = vunpack.c.l.b16 %v482
      %v976 = vunpack.c.l.b16 %v483
      %v977 = vunpack.c.l.b16 %v484
      %v978 = vunpack.c.l.b16 %v485
      %v979 = vpack.c.b16 %v948, %v947
      %v980 = vpack.c.b16 %v950, %v949
      %v981 = vpack.c.b16 %v952, %v951
      %v982 = vpack.c.b16 %v954, %v953
      %v983 = vpack.c.b16 %v956, %v955
      %v984 = vpack.c.b16 %v958, %v957
      %v985 = vpack.c.b16 %v960, %v959
      %v986 = vpack.c.b16 %v962, %v961
      %v987 = vpack.c.b16 %v964, %v963
      %v988 = vpack.c.b16 %v966, %v965
      %v989 = vpack.c.b16 %v968, %v967
      %v990 = vpack.c.b16 %v970, %v969
      %v991 = vpack.c.b16 %v972, %v971
      %v992 = vpack.c.b16 %v974, %v973
      %v993 = vpack.c.b16 %v976, %v975
      %v994 = vpack.c.b16 %v978, %v977
      %1011 = vmatprep.subr.bf16.mxu0 0
      %1012 = vmatpush1.bf16.msra.mxu0 %v979
      %1013 = vmatprep.subr.bf16.mxu0 0
      %1014 = vmatpush1.bf16.msra.mxu0 %v980
      %1015 = vmatprep.subr.bf16.mxu0 0
      %1016 = vmatpush1.bf16.msra.mxu0 %v981
      %1017 = vmatprep.subr.bf16.mxu0 0
      %1018 = vmatpush1.bf16.msra.mxu0 %v982
      %1019 = vmatprep.subr.bf16.mxu0 0
      %1020 = vmatpush1.bf16.msra.mxu0 %v983
      %1021 = vmatprep.subr.bf16.mxu0 0
      %1022 = vmatpush1.bf16.msra.mxu0 %v984
      %1023 = vmatprep.subr.bf16.mxu0 0
      %1024 = vmatpush1.bf16.msra.mxu0 %v985
      %1025 = vmatprep.subr.bf16.mxu0 0
      %1026 = vmatpush1.bf16.msra.mxu0 %v986
      %1027 = vmatprep.subr.bf16.mxu0 0
      %1028 = vmatpush1.bf16.msra.mxu0 %v987
      %1029 = vmatprep.subr.bf16.mxu0 0
      %1030 = vmatpush1.bf16.msra.mxu0 %v988
      %1031 = vmatprep.subr.bf16.mxu0 0
      %1032 = vmatpush1.bf16.msra.mxu0 %v989
      %1033 = vmatprep.subr.bf16.mxu0 0
      %1034 = vmatpush1.bf16.msra.mxu0 %v990
      %1035 = vmatprep.subr.bf16.mxu0 0
      %1036 = vmatpush1.bf16.msra.mxu0 %v991
      %1037 = vmatprep.subr.bf16.mxu0 0
      %1038 = vmatpush1.bf16.msra.mxu0 %v992
      %1039 = vmatprep.subr.bf16.mxu0 0
      %1040 = vmatpush1.bf16.msra.mxu0 %v993
      %1041 = vmatprep.subr.bf16.mxu0 0
      %1042 = vmatpush1.bf16.msra.mxu0 %v994
      %1043 = vmatprep.mubr.bf16.mxu0 %v566
      %1044 = vmatmul.mubr.bf16.gmra.mrb[0].mxu0 %v565
      %v1045 = vpop.f32.mrb[0].mxu0
      %v1046 = vadd.f32 %v847, %v1045
      %v1047 = vpop.f32.mrb[0].mxu0
      %v1048 = vpop.f32.mrb[0].mxu0
      %v1049 = vadd.f32 %v850, %v1048
      %v1050 = vpop.f32.mrb[0].mxu0
      %1051 = vmatprep.mubr.bf16.mxu0 %v568
      %1052 = vmatmul.mubr.bf16.gmra.mrb[0].mxu0 %v567
      %v1053 = vpop.f32.mrb[0].mxu0
      %v1054 = vadd.f32 %v855, %v1053
      %v1055 = vpop.f32.mrb[0].mxu0
      %v1056 = vpop.f32.mrb[0].mxu0
      %v1057 = vadd.f32 %v858, %v1056
      %v1058 = vpop.f32.mrb[0].mxu0
      %1059 = vmatprep.mubr.bf16.mxu0 %v570
      %1060 = vmatmul.mubr.bf16.gmra.mrb[0].mxu0 %v569
      %v1061 = vpop.f32.mrb[0].mxu0
      %v1062 = vadd.f32 %v863, %v1061
      %v1063 = vpop.f32.mrb[0].mxu0
      %v1064 = vpop.f32.mrb[0].mxu0
      %v1065 = vadd.f32 %v866, %v1064
      %v1066 = vpop.f32.mrb[0].mxu0
      %1067 = vmatprep.mubr.bf16.mxu0 %v572
      %1068 = vmatmul.mubr.bf16.gmra.mrb[0].mxu0 %v571
      %v1069 = vpop.f32.mrb[0].mxu0
      %v1070 = vadd.f32 %v871, %v1069
      %v1071 = vpop.f32.mrb[0].mxu0
      %v1072 = vpop.f32.mrb[0].mxu0
      %v1073 = vadd.f32 %v874, %v1072
      %v1074 = vpop.f32.mrb[0].mxu0
      %1075 = vmatprep.mubr.bf16.mxu0 %v574
      %1076 = vmatmul.mubr.bf16.gmra.mrb[0].mxu0 %v573
      %v1077 = vpop.f32.mrb[0].mxu0
      %v1078 = vadd.f32 %v879, %v1077
      %v1079 = vpop.f32.mrb[0].mxu0
      %v1080 = vpop.f32.mrb[0].mxu0
      %v1081 = vadd.f32 %v882, %v1080
      %v1082 = vpop.f32.mrb[0].mxu0
      %1083 = vmatprep.mubr.bf16.mxu0 %v576
      %1084 = vmatmul.mubr.bf16.gmra.mrb[0].mxu0 %v575
      %v1085 = vpop.f32.mrb[0].mxu0
      %v1086 = vadd.f32 %v887, %v1085
      %v1087 = vpop.f32.mrb[0].mxu0
      %v1088 = vpop.f32.mrb[0].mxu0
      %v1089 = vadd.f32 %v890, %v1088
      %v1090 = vpop.f32.mrb[0].mxu0
      %1091 = vmatprep.mubr.bf16.mxu0 %v578
      %1092 = vmatmul.mubr.bf16.gmra.mrb[0].mxu0 %v577
      %v1093 = vpop.f32.mrb[0].mxu0
      %v1094 = vadd.f32 %v895, %v1093
      %v1095 = vpop.f32.mrb[0].mxu0
      %v1096 = vpop.f32.mrb[0].mxu0
      %v1097 = vadd.f32 %v898, %v1096
      %v1098 = vpop.f32.mrb[0].mxu0
      %1099 = vdwg.mxu0
      %v1100 = vld [vmem:[%s434 + $0x8] sm:$0xee]
      %v1101 = vld [vmem:[%s434 + $0x10] sm:$0xff]
      %v1102 = vld [vmem:[%s434 + $0x18] sm:$0xff]
      %v1103 = vld [vmem:[%s434 + $0x20] sm:$0xff]
      %v1104 = vld [vmem:[%s434 + $0x28] sm:$0xff]
      %v1105 = vld [vmem:[%s434 + $0x30] sm:$0xff]
      %v1106 = vld [vmem:[%s434 + $0x38] sm:$0xff]
      %v1107 = vld [vmem:[%s434 + $0x40] sm:$0xff]
      %v1108 = vld [vmem:[%s434 + $0x48] sm:$0xff]
      %v1109 = vld [vmem:[%s434 + $0x50] sm:$0xff]
      %v1110 = vld [vmem:[%s434 + $0x58] sm:$0xff]
      %v1111 = vld [vmem:[%s434 + $0x60] sm:$0xff]
      %v1112 = vld [vmem:[%s434 + $0x68] sm:$0xff]
      %v1113 = vld [vmem:[%s434 + $0x70] sm:$0xff]
      %v1114 = vld [vmem:[%s434 + $0x78] sm:$0x33]
      %s1115 = scalar_lea.vmem %s1, 256
      %v1116 = vld [vmem:[%s1115] sm:$0xf]
      %v1117 = vld [vmem:[%s1115 + $0x4] sm:$0xf]
      %v1118 = vld [vmem:[%s1115 + $0x8] sm:$0xf]
      %v1119 = vld [vmem:[%s1115 + $0xc] sm:$0xf]
      %v1120 = vld [vmem:[%s1115 + $0x10] sm:$0xf]
      %v1121 = vld [vmem:[%s1115 + $0x14] sm:$0xf]
      %v1122 = vld [vmem:[%s1115 + $0x18] sm:$0xf]
      %v1123 = vld [vmem:[%s1115 + $0x1c] sm:$0xf]
      %v1124 = vld [vmem:[%s1115 + $0x20] sm:$0xf]
      %v1125 = vld [vmem:[%s1115 + $0x24] sm:$0xf]
      %v1126 = vld [vmem:[%s1115 + $0x28] sm:$0xf]
      %v1127 = vld [vmem:[%s1115 + $0x2c] sm:$0xf]
      %v1128 = vld [vmem:[%s1115 + $0x30] sm:$0xf]
      %v1129 = vld [vmem:[%s1115 + $0x34] sm:$0xf]
      %v1130 = vld [vmem:[%s1115 + $0x38] sm:$0xf]
      %v1131 = vld [vmem:[%s1115 + $0x3c] sm:$0xf]
      %v1132 = vld [vmem:[%s1115 + $0x40] sm:$0xf]
      %v1133 = vld [vmem:[%s1115 + $0x44] sm:$0xf]
      %v1134 = vld [vmem:[%s1115 + $0x48] sm:$0xf]
      %v1135 = vld [vmem:[%s1115 + $0x4c] sm:$0xf]
      %v1136 = vld [vmem:[%s1115 + $0x50] sm:$0xf]
      %v1137 = vld [vmem:[%s1115 + $0x54] sm:$0xf]
      %v1138 = vld [vmem:[%s1115 + $0x58] sm:$0xf]
      %v1139 = vld [vmem:[%s1115 + $0x5c] sm:$0xf]
      %v1140 = vld [vmem:[%s1115 + $0x60] sm:$0xf]
      %v1141 = vld [vmem:[%s1115 + $0x64] sm:$0xf]
      %v1142 = vld [vmem:[%s1115 + $0x68] sm:$0xf]
      %v1143 = vld [vmem:[%s1115 + $0x6c] sm:$0xf]
      %v1144 = vld [vmem:[%s1115 + $0x70] sm:$0xf]
      %v1145 = vld [vmem:[%s1115 + $0x74] sm:$0xf]
      %v1146 = vld [vmem:[%s1115 + $0x78] sm:$0xf]
      %v1147 = vld [vmem:[%s1115 + $0x7c] sm:$0xf]
      %v1163 = vunpack.c.l.b16 %v1100
      %v1164 = vunpack.c.h.b16 %v1100
      %v1165 = vunpack.c.l.b16 %v1101
      %v1166 = vunpack.c.h.b16 %v1101
      %v1167 = vunpack.c.l.b16 %v1102
      %v1168 = vunpack.c.h.b16 %v1102
      %v1169 = vunpack.c.l.b16 %v1103
      %v1170 = vunpack.c.h.b16 %v1103
      %v1171 = vunpack.c.l.b16 %v1104
      %v1172 = vunpack.c.h.b16 %v1104
      %v1173 = vunpack.c.l.b16 %v1105
      %v1174 = vunpack.c.h.b16 %v1105
      %v1175 = vunpack.c.l.b16 %v1106
      %v1176 = vunpack.c.h.b16 %v1106
      %v1177 = vunpack.c.l.b16 %v1107
      %v1178 = vunpack.c.h.b16 %v1107
      %v1179 = vunpack.c.l.b16 %v1108
      %v1180 = vunpack.c.h.b16 %v1108
      %v1181 = vunpack.c.l.b16 %v1109
      %v1182 = vunpack.c.h.b16 %v1109
      %v1183 = vunpack.c.l.b16 %v1110
      %v1184 = vunpack.c.h.b16 %v1110
      %v1185 = vunpack.c.l.b16 %v1111
      %v1186 = vunpack.c.h.b16 %v1111
      %v1187 = vunpack.c.l.b16 %v1112
      %v1188 = vunpack.c.h.b16 %v1112
      %v1189 = vunpack.c.l.b16 %v1113
      %v1190 = vunpack.c.h.b16 %v1113
      %v1191 = vunpack.c.l.b16 %v1114
      %v1192 = vunpack.c.h.b16 %v1114
      %v1193 = vpack.c.b16 %v1165, %v1163
      %v1194 = vpack.c.b16 %v1166, %v1164
      %v1195 = vpack.c.b16 %v1169, %v1167
      %v1196 = vpack.c.b16 %v1170, %v1168
      %v1197 = vpack.c.b16 %v1173, %v1171
      %v1198 = vpack.c.b16 %v1174, %v1172
      %v1199 = vpack.c.b16 %v1177, %v1175
      %v1200 = vpack.c.b16 %v1178, %v1176
      %v1201 = vpack.c.b16 %v1181, %v1179
      %v1202 = vpack.c.b16 %v1182, %v1180
      %v1203 = vpack.c.b16 %v1185, %v1183
      %v1204 = vpack.c.b16 %v1186, %v1184
      %v1205 = vpack.c.b16 %v1189, %v1187
      %v1206 = vpack.c.b16 %v1190, %v1188
      %v1207 = vpack.c.b16 %v1191, %v1191
      %v1208 = vpack.c.b16 %v1192, %v1192
      %vm1209 = vsmask.f32 6400
      %v1211 = vshrl.u32 %v1193, 16
      %v1213 = vrot.slane %v1211, 1
      %v1214 = vshll.u32 %v1193, 16
      %v1216 = vrot.slane %v1214, 2
      %v1217 = vor.u32 %v1213, %v1216
      %v1219 = vshrl.u32 %v1195, 16
      %v1221 = vrot.slane %v1219, 1
      %v1222 = vshll.u32 %v1195, 16
      %v1224 = vrot.slane %v1222, 2
      %v1225 = vor.u32 %v1221, %v1224
      %v1226 = vsel %vm1209, %v1217, %v1225
      %v1228 = vshrl.u32 %v1194, 16
      %v1230 = vrot.slane %v1228, 1
      %v1231 = vshll.u32 %v1194, 16
      %v1233 = vrot.slane %v1231, 2
      %v1234 = vor.u32 %v1230, %v1233
      %v1236 = vshrl.u32 %v1196, 16
      %v1238 = vrot.slane %v1236, 1
      %v1239 = vshll.u32 %v1196, 16
      %v1241 = vrot.slane %v1239, 2
      %v1242 = vor.u32 %v1238, %v1241
      %v1243 = vsel %vm1209, %v1234, %v1242
      %v1245 = vshrl.u32 %v1197, 16
      %v1247 = vrot.slane %v1245, 1
      %v1248 = vshll.u32 %v1197, 16
      %v1250 = vrot.slane %v1248, 2
      %v1251 = vor.u32 %v1247, %v1250
      %v1252 = vsel %vm1209, %v1225, %v1251
      %v1254 = vshrl.u32 %v1198, 16
      %v1256 = vrot.slane %v1254, 1
      %v1257 = vshll.u32 %v1198, 16
      %v1259 = vrot.slane %v1257, 2
      %v1260 = vor.u32 %v1256, %v1259
      %v1261 = vsel %vm1209, %v1242, %v1260
      %v1263 = vshrl.u32 %v1199, 16
      %v1265 = vrot.slane %v1263, 1
      %v1266 = vshll.u32 %v1199, 16
      %v1268 = vrot.slane %v1266, 2
      %v1269 = vor.u32 %v1265, %v1268
      %v1270 = vsel %vm1209, %v1251, %v1269
      %v1272 = vshrl.u32 %v1200, 16
      %v1274 = vrot.slane %v1272, 1
      %v1275 = vshll.u32 %v1200, 16
      %v1277 = vrot.slane %v1275, 2
      %v1278 = vor.u32 %v1274, %v1277
      %v1279 = vsel %vm1209, %v1260, %v1278
      %v1281 = vshrl.u32 %v1201, 16
      %v1283 = vrot.slane %v1281, 1
      %v1284 = vshll.u32 %v1201, 16
      %v1286 = vrot.slane %v1284, 2
      %v1287 = vor.u32 %v1283, %v1286
      %v1288 = vsel %vm1209, %v1269, %v1287
      %v1290 = vshrl.u32 %v1202, 16
      %v1292 = vrot.slane %v1290, 1
      %v1293 = vshll.u32 %v1202, 16
      %v1295 = vrot.slane %v1293, 2
      %v1296 = vor.u32 %v1292, %v1295
      %v1297 = vsel %vm1209, %v1278, %v1296
      %v1299 = vshrl.u32 %v1203, 16
      %v1301 = vrot.slane %v1299, 1
      %v1302 = vshll.u32 %v1203, 16
      %v1304 = vrot.slane %v1302, 2
      %v1305 = vor.u32 %v1301, %v1304
      %v1306 = vsel %vm1209, %v1287, %v1305
      %v1308 = vshrl.u32 %v1204, 16
      %v1310 = vrot.slane %v1308, 1
      %v1311 = vshll.u32 %v1204, 16
      %v1313 = vrot.slane %v1311, 2
      %v1314 = vor.u32 %v1310, %v1313
      %v1315 = vsel %vm1209, %v1296, %v1314
      %v1317 = vshrl.u32 %v1205, 16
      %v1319 = vrot.slane %v1317, 1
      %v1320 = vshll.u32 %v1205, 16
      %v1322 = vrot.slane %v1320, 2
      %v1323 = vor.u32 %v1319, %v1322
      %v1324 = vsel %vm1209, %v1305, %v1323
      %v1326 = vshrl.u32 %v1206, 16
      %v1328 = vrot.slane %v1326, 1
      %v1329 = vshll.u32 %v1206, 16
      %v1331 = vrot.slane %v1329, 2
      %v1332 = vor.u32 %v1328, %v1331
      %v1333 = vsel %vm1209, %v1314, %v1332
      %v1335 = vshrl.u32 %v1207, 16
      %v1337 = vrot.slane %v1335, 1
      %v1338 = vshll.u32 %v1207, 16
      %v1340 = vrot.slane %v1338, 2
      %v1341 = vor.u32 %v1337, %v1340
      %v1342 = vsel %vm1209, %v1323, %v1341
      %v1344 = vshrl.u32 %v1208, 16
      %v1346 = vrot.slane %v1344, 1
      %v1347 = vshll.u32 %v1208, 16
      %v1349 = vrot.slane %v1347, 2
      %v1350 = vor.u32 %v1346, %v1349
      %v1351 = vsel %vm1209, %v1332, %v1350
      %v1398 = vunpack.c.l.b16 %v1116
      %v1399 = vunpack.c.l.b16 %v1117
      %v1400 = vunpack.c.l.b16 %v1118
      %v1401 = vunpack.c.l.b16 %v1119
      %v1402 = vunpack.c.l.b16 %v1120
      %v1403 = vunpack.c.l.b16 %v1121
      %v1404 = vunpack.c.l.b16 %v1122
      %v1405 = vunpack.c.l.b16 %v1123
      %v1406 = vunpack.c.l.b16 %v1124
      %v1407 = vunpack.c.l.b16 %v1125
      %v1408 = vunpack.c.l.b16 %v1126
      %v1409 = vunpack.c.l.b16 %v1127
      %v1410 = vunpack.c.l.b16 %v1128
      %v1411 = vunpack.c.l.b16 %v1129
      %v1412 = vunpack.c.l.b16 %v1130
      %v1413 = vunpack.c.l.b16 %v1131
      %v1414 = vunpack.c.l.b16 %v1132
      %v1415 = vunpack.c.l.b16 %v1133
      %v1416 = vunpack.c.l.b16 %v1134
      %v1417 = vunpack.c.l.b16 %v1135
      %v1418 = vunpack.c.l.b16 %v1136
      %v1419 = vunpack.c.l.b16 %v1137
      %v1420 = vunpack.c.l.b16 %v1138
      %v1421 = vunpack.c.l.b16 %v1139
      %v1422 = vunpack.c.l.b16 %v1140
      %v1423 = vunpack.c.l.b16 %v1141
      %v1424 = vunpack.c.l.b16 %v1142
      %v1425 = vunpack.c.l.b16 %v1143
      %v1426 = vunpack.c.l.b16 %v1144
      %v1427 = vunpack.c.l.b16 %v1145
      %v1428 = vunpack.c.l.b16 %v1146
      %v1429 = vunpack.c.l.b16 %v1147
      %v1430 = vpack.c.b16 %v1399, %v1398
      %v1431 = vpack.c.b16 %v1401, %v1400
      %v1432 = vpack.c.b16 %v1403, %v1402
      %v1433 = vpack.c.b16 %v1405, %v1404
      %v1434 = vpack.c.b16 %v1407, %v1406
      %v1435 = vpack.c.b16 %v1409, %v1408
      %v1436 = vpack.c.b16 %v1411, %v1410
      %v1437 = vpack.c.b16 %v1413, %v1412
      %v1438 = vpack.c.b16 %v1415, %v1414
      %v1439 = vpack.c.b16 %v1417, %v1416
      %v1440 = vpack.c.b16 %v1419, %v1418
      %v1441 = vpack.c.b16 %v1421, %v1420
      %v1442 = vpack.c.b16 %v1423, %v1422
      %v1443 = vpack.c.b16 %v1425, %v1424
      %v1444 = vpack.c.b16 %v1427, %v1426
      %v1445 = vpack.c.b16 %v1429, %v1428
      %1462 = vmatprep.subr.bf16.mxu0 0
      %1463 = vmatpush1.bf16.msra.mxu0 %v1430
      %1464 = vmatprep.subr.bf16.mxu0 0
      %1465 = vmatpush1.bf16.msra.mxu0 %v1431
      %1466 = vmatprep.subr.bf16.mxu0 0
      %1467 = vmatpush1.bf16.msra.mxu0 %v1432
      %1468 = vmatprep.subr.bf16.mxu0 0
      %1469 = vmatpush1.bf16.msra.mxu0 %v1433
      %1470 = vmatprep.subr.bf16.mxu0 0
      %1471 = vmatpush1.bf16.msra.mxu0 %v1434
      %1472 = vmatprep.subr.bf16.mxu0 0
      %1473 = vmatpush1.bf16.msra.mxu0 %v1435
      %1474 = vmatprep.subr.bf16.mxu0 0
      %1475 = vmatpush1.bf16.msra.mxu0 %v1436
      %1476 = vmatprep.subr.bf16.mxu0 0
      %1477 = vmatpush1.bf16.msra.mxu0 %v1437
      %1478 = vmatprep.subr.bf16.mxu0 0
      %1479 = vmatpush1.bf16.msra.mxu0 %v1438
      %1480 = vmatprep.subr.bf16.mxu0 0
      %1481 = vmatpush1.bf16.msra.mxu0 %v1439
      %1482 = vmatprep.subr.bf16.mxu0 0
      %1483 = vmatpush1.bf16.msra.mxu0 %v1440
      %1484 = vmatprep.subr.bf16.mxu0 0
      %1485 = vmatpush1.bf16.msra.mxu0 %v1441
      %1486 = vmatprep.subr.bf16.mxu0 0
      %1487 = vmatpush1.bf16.msra.mxu0 %v1442
      %1488 = vmatprep.subr.bf16.mxu0 0
      %1489 = vmatpush1.bf16.msra.mxu0 %v1443
      %1490 = vmatprep.subr.bf16.mxu0 0
      %1491 = vmatpush1.bf16.msra.mxu0 %v1444
      %1492 = vmatprep.subr.bf16.mxu0 0
      %1493 = vmatpush1.bf16.msra.mxu0 %v1445
      %1494 = vmatprep.mubr.bf16.mxu0 %v1243
      %1495 = vmatmul.mubr.bf16.gmra.mrb[0].mxu0 %v1226
      %v1496 = vpop.f32.mrb[0].mxu0
      %v1497 = vadd.f32 0.0, %v1496
      %v1498 = vpop.f32.mrb[0].mxu0
      %v1499 = vpop.f32.mrb[0].mxu0
      %v1500 = vadd.f32 0.0, %v1499
      %v1501 = vpop.f32.mrb[0].mxu0
      %1502 = vmatprep.mubr.bf16.mxu0 %v1261
      %1503 = vmatmul.mubr.bf16.gmra.mrb[0].mxu0 %v1252
      %v1504 = vpop.f32.mrb[0].mxu0
      %v1505 = vadd.f32 0.0, %v1504
      %v1506 = vpop.f32.mrb[0].mxu0
      %v1507 = vpop.f32.mrb[0].mxu0
      %v1508 = vadd.f32 0.0, %v1507
      %v1509 = vpop.f32.mrb[0].mxu0
      %1510 = vmatprep.mubr.bf16.mxu0 %v1279
      %1511 = vmatmul.mubr.bf16.gmra.mrb[0].mxu0 %v1270
      %v1512 = vpop.f32.mrb[0].mxu0
      %v1513 = vadd.f32 0.0, %v1512
      %v1514 = vpop.f32.mrb[0].mxu0
      %v1515 = vpop.f32.mrb[0].mxu0
      %v1516 = vadd.f32 0.0, %v1515
      %v1517 = vpop.f32.mrb[0].mxu0
      %1518 = vmatprep.mubr.bf16.mxu0 %v1297
      %1519 = vmatmul.mubr.bf16.gmra.mrb[0].mxu0 %v1288
      %v1520 = vpop.f32.mrb[0].mxu0
      %v1521 = vadd.f32 0.0, %v1520
      %v1522 = vpop.f32.mrb[0].mxu0
      %v1523 = vpop.f32.mrb[0].mxu0
      %v1524 = vadd.f32 0.0, %v1523
      %v1525 = vpop.f32.mrb[0].mxu0
      %1526 = vmatprep.mubr.bf16.mxu0 %v1315
      %1527 = vmatmul.mubr.bf16.gmra.mrb[0].mxu0 %v1306
      %v1528 = vpop.f32.mrb[0].mxu0
      %v1529 = vadd.f32 0.0, %v1528
      %v1530 = vpop.f32.mrb[0].mxu0
      %v1531 = vpop.f32.mrb[0].mxu0
      %v1532 = vadd.f32 0.0, %v1531
      %v1533 = vpop.f32.mrb[0].mxu0
      %1534 = vmatprep.mubr.bf16.mxu0 %v1333
      %1535 = vmatmul.mubr.bf16.gmra.mrb[0].mxu0 %v1324
      %v1536 = vpop.f32.mrb[0].mxu0
      %v1537 = vadd.f32 0.0, %v1536
      %v1538 = vpop.f32.mrb[0].mxu0
      %v1539 = vpop.f32.mrb[0].mxu0
      %v1540 = vadd.f32 0.0, %v1539
      %v1541 = vpop.f32.mrb[0].mxu0
      %1542 = vmatprep.mubr.bf16.mxu0 %v1351
      %1543 = vmatmul.mubr.bf16.gmra.mrb[0].mxu0 %v1342
      %v1544 = vpop.f32.mrb[0].mxu0
      %v1545 = vadd.f32 0.0, %v1544
      %v1546 = vpop.f32.mrb[0].mxu0
      %v1547 = vpop.f32.mrb[0].mxu0
      %v1548 = vadd.f32 0.0, %v1547
      %v1549 = vpop.f32.mrb[0].mxu0
      %1550 = vdwg.mxu0
      %v1551 = vadd.f32 %v1046, %v1497
      %v1552 = vadd.f32 %v1049, %v1500
      %v1553 = vadd.f32 %v1054, %v1505
      %v1554 = vadd.f32 %v1057, %v1508
      %v1555 = vadd.f32 %v1062, %v1513
      %v1556 = vadd.f32 %v1065, %v1516
      %v1557 = vadd.f32 %v1070, %v1521
      %v1558 = vadd.f32 %v1073, %v1524
      %v1559 = vadd.f32 %v1078, %v1529
      %v1560 = vadd.f32 %v1081, %v1532
      %v1561 = vadd.f32 %v1086, %v1537
      %v1562 = vadd.f32 %v1089, %v1540
      %v1563 = vadd.f32 %v1094, %v1545
      %v1564 = vadd.f32 %v1097, %v1548
      %v1565 = vld [vmem:[%s434 + $0x8] sm:$0xcc]
      %s1566 = scalar_lea.vmem %s1, 384
      %v1567 = vld [vmem:[%s1566] sm:$0xf]
      %v1568 = vld [vmem:[%s1566 + $0x4] sm:$0xf]
      %v1569 = vld [vmem:[%s1566 + $0x8] sm:$0xf]
      %v1570 = vld [vmem:[%s1566 + $0xc] sm:$0xf]
      %v1571 = vld [vmem:[%s1566 + $0x10] sm:$0xf]
      %v1572 = vld [vmem:[%s1566 + $0x14] sm:$0xf]
      %v1573 = vld [vmem:[%s1566 + $0x18] sm:$0xf]
      %v1574 = vld [vmem:[%s1566 + $0x1c] sm:$0xf]
      %v1575 = vld [vmem:[%s1566 + $0x20] sm:$0xf]
      %v1576 = vld [vmem:[%s1566 + $0x24] sm:$0xf]
      %v1577 = vld [vmem:[%s1566 + $0x28] sm:$0xf]
      %v1578 = vld [vmem:[%s1566 + $0x2c] sm:$0xf]
      %v1579 = vld [vmem:[%s1566 + $0x30] sm:$0xf]
      %v1580 = vld [vmem:[%s1566 + $0x34] sm:$0xf]
      %v1581 = vld [vmem:[%s1566 + $0x38] sm:$0xf]
      %v1582 = vld [vmem:[%s1566 + $0x3c] sm:$0xf]
      %v1583 = vld [vmem:[%s1566 + $0x40] sm:$0xf]
      %v1584 = vld [vmem:[%s1566 + $0x44] sm:$0xf]
      %v1585 = vld [vmem:[%s1566 + $0x48] sm:$0xf]
      %v1586 = vld [vmem:[%s1566 + $0x4c] sm:$0xf]
      %v1587 = vld [vmem:[%s1566 + $0x50] sm:$0xf]
      %v1588 = vld [vmem:[%s1566 + $0x54] sm:$0xf]
      %v1589 = vld [vmem:[%s1566 + $0x58] sm:$0xf]
      %v1590 = vld [vmem:[%s1566 + $0x5c] sm:$0xf]
      %v1591 = vld [vmem:[%s1566 + $0x60] sm:$0xf]
      %v1592 = vld [vmem:[%s1566 + $0x64] sm:$0xf]
      %v1593 = vld [vmem:[%s1566 + $0x68] sm:$0xf]
      %v1594 = vld [vmem:[%s1566 + $0x6c] sm:$0xf]
      %v1595 = vld [vmem:[%s1566 + $0x70] sm:$0xf]
      %v1596 = vld [vmem:[%s1566 + $0x74] sm:$0xf]
      %v1597 = vld [vmem:[%s1566 + $0x78] sm:$0xf]
      %v1598 = vld [vmem:[%s1566 + $0x7c] sm:$0xf]
      %v1600 = vunpack.c.l.b16 %v1565
      %v1601 = vunpack.c.h.b16 %v1565
      %v1602 = vpack.c.b16 %v1165, %v1600
      %v1603 = vpack.c.b16 %v1166, %v1601
      %vm1604 = vcmask 1045504
      %v1605 = vrot.slane %v1602, 2
      %v1606 = vrot.slane %v1195, 2
      %v1607 = vsel %vm1604, %v1605, %v1606
      %v1608 = vrot.slane %v1603, 2
      %v1609 = vrot.slane %v1196, 2
      %v1610 = vsel %vm1604, %v1608, %v1609
      %v1611 = vrot.slane %v1197, 2
      %v1612 = vsel %vm1604, %v1606, %v1611
      %v1613 = vrot.slane %v1198, 2
      %v1614 = vsel %vm1604, %v1609, %v1613
      %v1615 = vrot.slane %v1199, 2
      %v1616 = vsel %vm1604, %v1611, %v1615
      %v1617 = vrot.slane %v1200, 2
      %v1618 = vsel %vm1604, %v1613, %v1617
      %v1619 = vrot.slane %v1201, 2
      %v1620 = vsel %vm1604, %v1615, %v1619
      %v1621 = vrot.slane %v1202, 2
      %v1622 = vsel %vm1604, %v1617, %v1621
      %v1623 = vrot.slane %v1203, 2
      %v1624 = vsel %vm1604, %v1619, %v1623
      %v1625 = vrot.slane %v1204, 2
      %v1626 = vsel %vm1604, %v1621, %v1625
      %v1627 = vrot.slane %v1205, 2
      %v1628 = vsel %vm1604, %v1623, %v1627
      %v1629 = vrot.slane %v1206, 2
      %v1630 = vsel %vm1604, %v1625, %v1629
      %v1631 = vrot.slane %v1207, 2
      %v1632 = vsel %vm1604, %v1627, %v1631
      %v1633 = vrot.slane %v1208, 2
      %v1634 = vsel %vm1604, %v1629, %v1633
      %v1681 = vunpack.c.l.b16 %v1567
      %v1682 = vunpack.c.l.b16 %v1568
      %v1683 = vunpack.c.l.b16 %v1569
      %v1684 = vunpack.c.l.b16 %v1570
      %v1685 = vunpack.c.l.b16 %v1571
      %v1686 = vunpack.c.l.b16 %v1572
      %v1687 = vunpack.c.l.b16 %v1573
      %v1688 = vunpack.c.l.b16 %v1574
      %v1689 = vunpack.c.l.b16 %v1575
      %v1690 = vunpack.c.l.b16 %v1576
      %v1691 = vunpack.c.l.b16 %v1577
      %v1692 = vunpack.c.l.b16 %v1578
      %v1693 = vunpack.c.l.b16 %v1579
      %v1694 = vunpack.c.l.b16 %v1580
      %v1695 = vunpack.c.l.b16 %v1581
      %v1696 = vunpack.c.l.b16 %v1582
      %v1697 = vunpack.c.l.b16 %v1583
      %v1698 = vunpack.c.l.b16 %v1584
      %v1699 = vunpack.c.l.b16 %v1585
      %v1700 = vunpack.c.l.b16 %v1586
      %v1701 = vunpack.c.l.b16 %v1587
      %v1702 = vunpack.c.l.b16 %v1588
      %v1703 = vunpack.c.l.b16 %v1589
      %v1704 = vunpack.c.l.b16 %v1590
      %v1705 = vunpack.c.l.b16 %v1591
      %v1706 = vunpack.c.l.b16 %v1592
      %v1707 = vunpack.c.l.b16 %v1593
      %v1708 = vunpack.c.l.b16 %v1594
      %v1709 = vunpack.c.l.b16 %v1595
      %v1710 = vunpack.c.l.b16 %v1596
      %v1711 = vunpack.c.l.b16 %v1597
      %v1712 = vunpack.c.l.b16 %v1598
      %v1713 = vpack.c.b16 %v1682, %v1681
      %v1714 = vpack.c.b16 %v1684, %v1683
      %v1715 = vpack.c.b16 %v1686, %v1685
      %v1716 = vpack.c.b16 %v1688, %v1687
      %v1717 = vpack.c.b16 %v1690, %v1689
      %v1718 = vpack.c.b16 %v1692, %v1691
      %v1719 = vpack.c.b16 %v1694, %v1693
      %v1720 = vpack.c.b16 %v1696, %v1695
      %v1721 = vpack.c.b16 %v1698, %v1697
      %v1722 = vpack.c.b16 %v1700, %v1699
      %v1723 = vpack.c.b16 %v1702, %v1701
      %v1724 = vpack.c.b16 %v1704, %v1703
      %v1725 = vpack.c.b16 %v1706, %v1705
      %v1726 = vpack.c.b16 %v1708, %v1707
      %v1727 = vpack.c.b16 %v1710, %v1709
      %v1728 = vpack.c.b16 %v1712, %v1711
      %1745 = vmatprep.subr.bf16.mxu0 0
      %1746 = vmatpush1.bf16.msra.mxu0 %v1713
      %1747 = vmatprep.subr.bf16.mxu0 0
      %1748 = vmatpush1.bf16.msra.mxu0 %v1714
      %1749 = vmatprep.subr.bf16.mxu0 0
      %1750 = vmatpush1.bf16.msra.mxu0 %v1715
      %1751 = vmatprep.subr.bf16.mxu0 0
      %1752 = vmatpush1.bf16.msra.mxu0 %v1716
      %1753 = vmatprep.subr.bf16.mxu0 0
      %1754 = vmatpush1.bf16.msra.mxu0 %v1717
      %1755 = vmatprep.subr.bf16.mxu0 0
      %1756 = vmatpush1.bf16.msra.mxu0 %v1718
      %1757 = vmatprep.subr.bf16.mxu0 0
      %1758 = vmatpush1.bf16.msra.mxu0 %v1719
      %1759 = vmatprep.subr.bf16.mxu0 0
      %1760 = vmatpush1.bf16.msra.mxu0 %v1720
      %1761 = vmatprep.subr.bf16.mxu0 0
      %1762 = vmatpush1.bf16.msra.mxu0 %v1721
      %1763 = vmatprep.subr.bf16.mxu0 0
      %1764 = vmatpush1.bf16.msra.mxu0 %v1722
      %1765 = vmatprep.subr.bf16.mxu0 0
      %1766 = vmatpush1.bf16.msra.mxu0 %v1723
      %1767 = vmatprep.subr.bf16.mxu0 0
      %1768 = vmatpush1.bf16.msra.mxu0 %v1724
      %1769 = vmatprep.subr.bf16.mxu0 0
      %1770 = vmatpush1.bf16.msra.mxu0 %v1725
      %1771 = vmatprep.subr.bf16.mxu0 0
      %1772 = vmatpush1.bf16.msra.mxu0 %v1726
      %1773 = vmatprep.subr.bf16.mxu0 0
      %1774 = vmatpush1.bf16.msra.mxu0 %v1727
      %1775 = vmatprep.subr.bf16.mxu0 0
      %1776 = vmatpush1.bf16.msra.mxu0 %v1728
      %1777 = vmatprep.mubr.bf16.mxu0 %v1610
      %1778 = vmatmul.mubr.bf16.gmra.mrb[0].mxu0 %v1607
      %v1779 = vpop.f32.mrb[0].mxu0
      %v1780 = vadd.f32 0.0, %v1779
      %v1781 = vpop.f32.mrb[0].mxu0
      %v1782 = vpop.f32.mrb[0].mxu0
      %v1783 = vadd.f32 0.0, %v1782
      %v1784 = vpop.f32.mrb[0].mxu0
      %1785 = vmatprep.mubr.bf16.mxu0 %v1614
      %1786 = vmatmul.mubr.bf16.gmra.mrb[0].mxu0 %v1612
      %v1787 = vpop.f32.mrb[0].mxu0
      %v1788 = vadd.f32 0.0, %v1787
      %v1789 = vpop.f32.mrb[0].mxu0
      %v1790 = vpop.f32.mrb[0].mxu0
      %v1791 = vadd.f32 0.0, %v1790
      %v1792 = vpop.f32.mrb[0].mxu0
      %1793 = vmatprep.mubr.bf16.mxu0 %v1618
      %1794 = vmatmul.mubr.bf16.gmra.mrb[0].mxu0 %v1616
      %v1795 = vpop.f32.mrb[0].mxu0
      %v1796 = vadd.f32 0.0, %v1795
      %v1797 = vpop.f32.mrb[0].mxu0
      %v1798 = vpop.f32.mrb[0].mxu0
      %v1799 = vadd.f32 0.0, %v1798
      %v1800 = vpop.f32.mrb[0].mxu0
      %1801 = vmatprep.mubr.bf16.mxu0 %v1622
      %1802 = vmatmul.mubr.bf16.gmra.mrb[0].mxu0 %v1620
      %v1803 = vpop.f32.mrb[0].mxu0
      %v1804 = vadd.f32 0.0, %v1803
      %v1805 = vpop.f32.mrb[0].mxu0
      %v1806 = vpop.f32.mrb[0].mxu0
      %v1807 = vadd.f32 0.0, %v1806
      %v1808 = vpop.f32.mrb[0].mxu0
      %1809 = vmatprep.mubr.bf16.mxu0 %v1626
      %1810 = vmatmul.mubr.bf16.gmra.mrb[0].mxu0 %v1624
      %v1811 = vpop.f32.mrb[0].mxu0
      %v1812 = vadd.f32 0.0, %v1811
      %v1813 = vpop.f32.mrb[0].mxu0
      %v1814 = vpop.f32.mrb[0].mxu0
      %v1815 = vadd.f32 0.0, %v1814
      %v1816 = vpop.f32.mrb[0].mxu0
      %1817 = vmatprep.mubr.bf16.mxu0 %v1630
      %1818 = vmatmul.mubr.bf16.gmra.mrb[0].mxu0 %v1628
      %v1819 = vpop.f32.mrb[0].mxu0
      %v1820 = vadd.f32 0.0, %v1819
      %v1821 = vpop.f32.mrb[0].mxu0
      %v1822 = vpop.f32.mrb[0].mxu0
      %v1823 = vadd.f32 0.0, %v1822
      %v1824 = vpop.f32.mrb[0].mxu0
      %1825 = vmatprep.mubr.bf16.mxu0 %v1634
      %1826 = vmatmul.mubr.bf16.gmra.mrb[0].mxu0 %v1632
      %v1827 = vpop.f32.mrb[0].mxu0
      %v1828 = vadd.f32 0.0, %v1827
      %v1829 = vpop.f32.mrb[0].mxu0
      %v1830 = vpop.f32.mrb[0].mxu0
      %v1831 = vadd.f32 0.0, %v1830
      %v1832 = vpop.f32.mrb[0].mxu0
      %1833 = vdwg.mxu0
      %v1834 = vadd.f32 %v1551, %v1780
      %v1835 = vadd.f32 %v1552, %v1783
      %v1836 = vadd.f32 %v1553, %v1788
      %v1837 = vadd.f32 %v1554, %v1791
      %v1838 = vadd.f32 %v1555, %v1796
      %v1839 = vadd.f32 %v1556, %v1799
      %v1840 = vadd.f32 %v1557, %v1804
      %v1841 = vadd.f32 %v1558, %v1807
      %v1842 = vadd.f32 %v1559, %v1812
      %v1843 = vadd.f32 %v1560, %v1815
      %v1844 = vadd.f32 %v1561, %v1820
      %v1845 = vadd.f32 %v1562, %v1823
      %v1846 = vadd.f32 %v1563, %v1828
      %v1847 = vadd.f32 %v1564, %v1831
      %1862 = vrot.lane.b32.xlu0 %v1834, 96
      %v1863 = vpop.permute.xlu0 %1862
      %1864 = vrot.lane.b32.xlu0 %v1835, 96
      %v1865 = vpop.permute.xlu0 %1864
      %1866 = vrot.lane.b32.xlu0 %v1836, 96
      %v1867 = vpop.permute.xlu0 %1866
      %1868 = vrot.lane.b32.xlu0 %v1837, 96
      %v1869 = vpop.permute.xlu0 %1868
      %1870 = vrot.lane.b32.xlu0 %v1838, 96
      %v1871 = vpop.permute.xlu0 %1870
      %1872 = vrot.lane.b32.xlu0 %v1839, 96
      %v1873 = vpop.permute.xlu0 %1872
      %1874 = vrot.lane.b32.xlu0 %v1840, 96
      %v1875 = vpop.permute.xlu0 %1874
      %1876 = vrot.lane.b32.xlu0 %v1841, 96
      %v1877 = vpop.permute.xlu0 %1876
      %1878 = vrot.lane.b32.xlu0 %v1842, 96
      %v1879 = vpop.permute.xlu0 %1878
      %1880 = vrot.lane.b32.xlu0 %v1843, 96
      %v1881 = vpop.permute.xlu0 %1880
      %1882 = vrot.lane.b32.xlu0 %v1844, 96
      %v1883 = vpop.permute.xlu0 %1882
      %1884 = vrot.lane.b32.xlu0 %v1845, 96
      %v1885 = vpop.permute.xlu0 %1884
      %1886 = vrot.lane.b32.xlu0 %v1846, 96
      %v1887 = vpop.permute.xlu0 %1886
      %1888 = vrot.lane.b32.xlu0 %v1847, 96
      %v1889 = vpop.permute.xlu0 %1888
      %v1904 = vmax.f32 %v1834, %v1863
      %v1905 = vmax.f32 %v1835, %v1865
      %v1906 = vmax.f32 %v1836, %v1867
      %v1907 = vmax.f32 %v1837, %v1869
      %v1908 = vmax.f32 %v1838, %v1871
      %v1909 = vmax.f32 %v1839, %v1873
      %v1910 = vmax.f32 %v1840, %v1875
      %v1911 = vmax.f32 %v1841, %v1877
      %v1912 = vmax.f32 %v1842, %v1879
      %v1913 = vmax.f32 %v1843, %v1881
      %v1914 = vmax.f32 %v1844, %v1883
      %v1915 = vmax.f32 %v1845, %v1885
      %v1916 = vmax.f32 %v1846, %v1887
      %v1917 = vmax.f32 %v1847, %v1889
      %1932 = vrot.lane.b32.xlu0 %v1904, 64
      %v1933 = vpop.permute.xlu0 %1932
      %1934 = vrot.lane.b32.xlu0 %v1905, 64
      %v1935 = vpop.permute.xlu0 %1934
      %1936 = vrot.lane.b32.xlu0 %v1906, 64
      %v1937 = vpop.permute.xlu0 %1936
      %1938 = vrot.lane.b32.xlu0 %v1907, 64
      %v1939 = vpop.permute.xlu0 %1938
      %1940 = vrot.lane.b32.xlu0 %v1908, 64
      %v1941 = vpop.permute.xlu0 %1940
      %1942 = vrot.lane.b32.xlu0 %v1909, 64
      %v1943 = vpop.permute.xlu0 %1942
      %1944 = vrot.lane.b32.xlu0 %v1910, 64
      %v1945 = vpop.permute.xlu0 %1944
      %1946 = vrot.lane.b32.xlu0 %v1911, 64
      %v1947 = vpop.permute.xlu0 %1946
      %1948 = vrot.lane.b32.xlu0 %v1912, 64
      %v1949 = vpop.permute.xlu0 %1948
      %1950 = vrot.lane.b32.xlu0 %v1913, 64
      %v1951 = vpop.permute.xlu0 %1950
      %1952 = vrot.lane.b32.xlu0 %v1914, 64
      %v1953 = vpop.permute.xlu0 %1952
      %1954 = vrot.lane.b32.xlu0 %v1915, 64
      %v1955 = vpop.permute.xlu0 %1954
      %1956 = vrot.lane.b32.xlu0 %v1916, 64
      %v1957 = vpop.permute.xlu0 %1956
      %1958 = vrot.lane.b32.xlu0 %v1917, 64
      %v1959 = vpop.permute.xlu0 %1958
      %v1974 = vmax.f32 %v1904, %v1933
      %v1975 = vmax.f32 %v1905, %v1935
      %v1976 = vmax.f32 %v1906, %v1937
      %v1977 = vmax.f32 %v1907, %v1939
      %v1978 = vmax.f32 %v1908, %v1941
      %v1979 = vmax.f32 %v1909, %v1943
      %v1980 = vmax.f32 %v1910, %v1945
      %v1981 = vmax.f32 %v1911, %v1947
      %v1982 = vmax.f32 %v1912, %v1949
      %v1983 = vmax.f32 %v1913, %v1951
      %v1984 = vmax.f32 %v1914, %v1953
      %v1985 = vmax.f32 %v1915, %v1955
      %v1986 = vmax.f32 %v1916, %v1957
      %v1987 = vmax.f32 %v1917, %v1959
      %v1988 = vld [vmem:[%s2] sm:$0x1]
      %v1990 = vlaneseq
      %v1991 = vshrl.u32 %v1990, 7
      %v1992 = vsub.s32 0, %v1991
      %v1993 = vrot.slane %v1988, %v1992
      %v1995 = vadd.f32 %v1974, %v1993
      %v1996 = vadd.f32 %v1975, %v1993
      %v1997 = vadd.f32 %v1976, %v1993
      %v1998 = vadd.f32 %v1977, %v1993
      %v1999 = vadd.f32 %v1978, %v1993
      %v2000 = vadd.f32 %v1979, %v1993
      %v2001 = vadd.f32 %v1980, %v1993
      %v2002 = vadd.f32 %v1981, %v1993
      %v2003 = vadd.f32 %v1982, %v1993
      %v2004 = vadd.f32 %v1983, %v1993
      %v2005 = vadd.f32 %v1984, %v1993
      %v2006 = vadd.f32 %v1985, %v1993
      %v2007 = vadd.f32 %v1986, %v1993
      %v2008 = vadd.f32 %v1987, %v1993
      %v2009 = vmax.f32 %v1995, 0.0
      %v2010 = vmax.f32 %v1996, 0.0
      %v2011 = vmax.f32 %v1997, 0.0
      %v2012 = vmax.f32 %v1998, 0.0
      %v2013 = vmax.f32 %v1999, 0.0
      %v2014 = vmax.f32 %v2000, 0.0
      %v2015 = vmax.f32 %v2001, 0.0
      %v2016 = vmax.f32 %v2002, 0.0
      %v2017 = vmax.f32 %v2003, 0.0
      %v2018 = vmax.f32 %v2004, 0.0
      %v2019 = vmax.f32 %v2005, 0.0
      %v2020 = vmax.f32 %v2006, 0.0
      %v2021 = vmax.f32 %v2007, 0.0
      %v2022 = vmax.f32 %v2008, 0.0
      %v2023 = vpack.c.bf16 %v2010, %v2009
      %v2024 = vpack.c.bf16 %v2012, %v2011
      %v2025 = vpack.c.bf16 %v2014, %v2013
      %v2026 = vpack.c.bf16 %v2016, %v2015
      %v2027 = vpack.c.bf16 %v2018, %v2017
      %v2028 = vpack.c.bf16 %v2020, %v2019
      %v2029 = vpack.c.bf16 %v2022, %v2021
      %v2030 = vld [vmem:[%s3] sm:$0xf]
      %v2031 = vld [vmem:[%s3 + $0x4] sm:$0xf]
      %v2032 = vld [vmem:[%s3 + $0x8] sm:$0xf]
      %v2033 = vld [vmem:[%s3 + $0xc] sm:$0xf]
      %v2034 = vld [vmem:[%s3 + $0x10] sm:$0xf]
      %v2040 = vunpack.c.l.b16 %v2030
      %v2041 = vunpack.c.l.b16 %v2031
      %v2042 = vunpack.c.l.b16 %v2032
      %v2043 = vunpack.c.l.b16 %v2033
      %v2044 = vunpack.c.l.b16 %v2034
      %v2045 = vpack.c.b16 %v2041, %v2040
      %v2046 = vpack.c.b16 %v2043, %v2042
      %v2047 = vpack.c.b16 %v2044, %v2044
      %vm2048 = vcmask 916480
      %v2050 = vsel %vm2048, %v2045, 0
      %v2053 = vsel %vm2048, %v2046, 0
      %v2056 = vsel %vm2048, %v2047, 0
      %2058 = vmatprep.subr.bf16.mxu0 0
      %2059 = vmatpush1.bf16.msra.mxu0 %v2023
      %2060 = vmatprep.subr.bf16.mxu0 0
      %2061 = vmatpush1.bf16.msra.mxu0 %v2024
      %2062 = vmatprep.subr.bf16.mxu0 0
      %2063 = vmatpush1.bf16.msra.mxu0 %v2025
      %2064 = vmatprep.subr.bf16.mxu0 0
      %2065 = vmatpush1.bf16.msra.mxu0 %v2026
      %2066 = vmatprep.subr.bf16.mxu0 0
      %2067 = vmatpush1.bf16.msra.mxu0 %v2027
      %2068 = vmatprep.subr.bf16.mxu0 0
      %2069 = vmatpush1.bf16.msra.mxu0 %v2028
      %2070 = vmatprep.subr.bf16.mxu0 0
      %2071 = vmatpush1.bf16.msra.mxu0 %v2029
      %2072 = vmatprep.subr.bf16.mxu0 0
      %2073 = vmatpush1.bf16.msra.mxu0 0
      %2074 = vmatprep.subr.bf16.mxu0 0
      %2075 = vmatpush1.bf16.msra.mxu0 0
      %2076 = vmatprep.subr.bf16.mxu0 0
      %2077 = vmatpush1.bf16.msra.mxu0 0
      %2078 = vmatprep.subr.bf16.mxu0 0
      %2079 = vmatpush1.bf16.msra.mxu0 0
      %2080 = vmatprep.subr.bf16.mxu0 0
      %2081 = vmatpush1.bf16.msra.mxu0 0
      %2082 = vmatprep.subr.bf16.mxu0 0
      %2083 = vmatpush1.bf16.msra.mxu0 0
      %2084 = vmatprep.subr.bf16.mxu0 0
      %2085 = vmatpush1.bf16.msra.mxu0 0
      %2086 = vmatprep.subr.bf16.mxu0 0
      %2087 = vmatpush1.bf16.msra.mxu0 0
      %2088 = vmatprep.subr.bf16.mxu0 0
      %2089 = vmatpush1.bf16.msra.mxu0 0
      %2090 = vmatprep.mubr.bf16.mxu0 0
      %2091 = vmatmul.mubr.bf16.gmra.mrb[0].mxu0 %v2050
      %v2092 = vpop.f32.mrb[0].mxu0
      %v2093 = vadd.f32 0.0, %v2092
      %v2094 = vpop.f32.mrb[0].mxu0
      %v2095 = vpop.f32.mrb[0].mxu0
      %v2096 = vadd.f32 0.0, %v2095
      %v2097 = vpop.f32.mrb[0].mxu0
      %2098 = vmatprep.mubr.bf16.mxu0 0
      %2099 = vmatmul.mubr.bf16.gmra.mrb[0].mxu0 %v2053
      %v2100 = vpop.f32.mrb[0].mxu0
      %v2101 = vadd.f32 0.0, %v2100
      %v2102 = vpop.f32.mrb[0].mxu0
      %v2103 = vpop.f32.mrb[0].mxu0
      %v2104 = vadd.f32 0.0, %v2103
      %v2105 = vpop.f32.mrb[0].mxu0
      %2106 = vmatprep.mubr.bf16.mxu0 0
      %2107 = vmatmul.mubr.bf16.gmra.mrb[0].mxu0 %v2056
      %v2108 = vpop.f32.mrb[0].mxu0
      %v2109 = vadd.f32 0.0, %v2108
      %v2110 = vpop.f32.mrb[0].mxu0
      %v2111 = vpop.f32.mrb[0].mxu0
      %v2112 = vpop.f32.mrb[0].mxu0
      %2113 = vdwg.mxu0
      %s2114 = scalar_lea.vmem %s3, 20
      %v2115 = vld [vmem:[%s2114] sm:$0xf]
      %v2116 = vld [vmem:[%s2114 + $0x4] sm:$0xf]
      %v2117 = vld [vmem:[%s2114 + $0x8] sm:$0xf]
      %v2118 = vld [vmem:[%s2114 + $0xc] sm:$0xf]
      %v2119 = vld [vmem:[%s2114 + $0x10] sm:$0xf]
      %v2125 = vunpack.c.l.b16 %v2115
      %v2126 = vunpack.c.l.b16 %v2116
      %v2127 = vunpack.c.l.b16 %v2117
      %v2128 = vunpack.c.l.b16 %v2118
      %v2129 = vunpack.c.l.b16 %v2119
      %v2130 = vpack.c.b16 %v2126, %v2125
      %v2131 = vpack.c.b16 %v2128, %v2127
      %v2132 = vpack.c.b16 %v2129, %v2129
      %v2134 = vsel %vm2048, %v2130, 0
      %v2137 = vsel %vm2048, %v2131, 0
      %v2140 = vsel %vm2048, %v2132, 0
      %2142 = vmatprep.subr.bf16.mxu0 0
      %2143 = vmatpush1.bf16.msra.mxu0 %v2023
      %2144 = vmatprep.subr.bf16.mxu0 0
      %2145 = vmatpush1.bf16.msra.mxu0 %v2024
      %2146 = vmatprep.subr.bf16.mxu0 0
      %2147 = vmatpush1.bf16.msra.mxu0 %v2025
      %2148 = vmatprep.subr.bf16.mxu0 0
      %2149 = vmatpush1.bf16.msra.mxu0 %v2026
      %2150 = vmatprep.subr.bf16.mxu0 0
      %2151 = vmatpush1.bf16.msra.mxu0 %v2027
      %2152 = vmatprep.subr.bf16.mxu0 0
      %2153 = vmatpush1.bf16.msra.mxu0 %v2028
      %2154 = vmatprep.subr.bf16.mxu0 0
      %2155 = vmatpush1.bf16.msra.mxu0 %v2029
      %2156 = vmatprep.subr.bf16.mxu0 0
      %2157 = vmatpush1.bf16.msra.mxu0 0
      %2158 = vmatprep.subr.bf16.mxu0 0
      %2159 = vmatpush1.bf16.msra.mxu0 0
      %2160 = vmatprep.subr.bf16.mxu0 0
      %2161 = vmatpush1.bf16.msra.mxu0 0
      %2162 = vmatprep.subr.bf16.mxu0 0
      %2163 = vmatpush1.bf16.msra.mxu0 0
      %2164 = vmatprep.subr.bf16.mxu0 0
      %2165 = vmatpush1.bf16.msra.mxu0 0
      %2166 = vmatprep.subr.bf16.mxu0 0
      %2167 = vmatpush1.bf16.msra.mxu0 0
      %2168 = vmatprep.subr.bf16.mxu0 0
      %2169 = vmatpush1.bf16.msra.mxu0 0
      %2170 = vmatprep.subr.bf16.mxu0 0
      %2171 = vmatpush1.bf16.msra.mxu0 0
      %2172 = vmatprep.subr.bf16.mxu0 0
      %2173 = vmatpush1.bf16.msra.mxu0 0
      %2174 = vmatprep.mubr.bf16.mxu0 0
      %2175 = vmatmul.mubr.bf16.gmra.mrb[0].mxu0 %v2134
      %v2176 = vpop.f32.mrb[0].mxu0
      %v2177 = vadd.f32 0.0, %v2176
      %v2178 = vpop.f32.mrb[0].mxu0
      %v2179 = vpop.f32.mrb[0].mxu0
      %v2180 = vadd.f32 0.0, %v2179
      %v2181 = vpop.f32.mrb[0].mxu0
      %2182 = vmatprep.mubr.bf16.mxu0 0
      %2183 = vmatmul.mubr.bf16.gmra.mrb[0].mxu0 %v2137
      %v2184 = vpop.f32.mrb[0].mxu0
      %v2185 = vadd.f32 0.0, %v2184
      %v2186 = vpop.f32.mrb[0].mxu0
      %v2187 = vpop.f32.mrb[0].mxu0
      %v2188 = vadd.f32 0.0, %v2187
      %v2189 = vpop.f32.mrb[0].mxu0
      %2190 = vmatprep.mubr.bf16.mxu0 0
      %2191 = vmatmul.mubr.bf16.gmra.mrb[0].mxu0 %v2140
      %v2192 = vpop.f32.mrb[0].mxu0
      %v2193 = vadd.f32 0.0, %v2192
      %v2194 = vpop.f32.mrb[0].mxu0
      %v2195 = vpop.f32.mrb[0].mxu0
      %v2196 = vpop.f32.mrb[0].mxu0
      %2197 = vdwg.mxu0
      %s2198 = scalar_lea.vmem %s3, 40
      %v2199 = vld [vmem:[%s2198] sm:$0xf]
      %v2200 = vld [vmem:[%s2198 + $0x4] sm:$0xf]
      %v2201 = vld [vmem:[%s2198 + $0x8] sm:$0xf]
      %v2202 = vld [vmem:[%s2198 + $0xc] sm:$0xf]
      %v2203 = vld [vmem:[%s2198 + $0x10] sm:$0xf]
      %v2209 = vunpack.c.l.b16 %v2199
      %v2210 = vunpack.c.l.b16 %v2200
      %v2211 = vunpack.c.l.b16 %v2201
      %v2212 = vunpack.c.l.b16 %v2202
      %v2213 = vunpack.c.l.b16 %v2203
      %v2214 = vpack.c.b16 %v2210, %v2209
      %v2215 = vpack.c.b16 %v2212, %v2211
      %v2216 = vpack.c.b16 %v2213, %v2213
      %v2218 = vsel %vm2048, %v2214, 0
      %v2221 = vsel %vm2048, %v2215, 0
      %v2224 = vsel %vm2048, %v2216, 0
      %2226 = vmatprep.subr.bf16.mxu0 0
      %2227 = vmatpush1.bf16.msra.mxu0 %v2023
      %2228 = vmatprep.subr.bf16.mxu0 0
      %2229 = vmatpush1.bf16.msra.mxu0 %v2024
      %2230 = vmatprep.subr.bf16.mxu0 0
      %2231 = vmatpush1.bf16.msra.mxu0 %v2025
      %2232 = vmatprep.subr.bf16.mxu0 0
      %2233 = vmatpush1.bf16.msra.mxu0 %v2026
      %2234 = vmatprep.subr.bf16.mxu0 0
      %2235 = vmatpush1.bf16.msra.mxu0 %v2027
      %2236 = vmatprep.subr.bf16.mxu0 0
      %2237 = vmatpush1.bf16.msra.mxu0 %v2028
      %2238 = vmatprep.subr.bf16.mxu0 0
      %2239 = vmatpush1.bf16.msra.mxu0 %v2029
      %2240 = vmatprep.subr.bf16.mxu0 0
      %2241 = vmatpush1.bf16.msra.mxu0 0
      %2242 = vmatprep.subr.bf16.mxu0 0
      %2243 = vmatpush1.bf16.msra.mxu0 0
      %2244 = vmatprep.subr.bf16.mxu0 0
      %2245 = vmatpush1.bf16.msra.mxu0 0
      %2246 = vmatprep.subr.bf16.mxu0 0
      %2247 = vmatpush1.bf16.msra.mxu0 0
      %2248 = vmatprep.subr.bf16.mxu0 0
      %2249 = vmatpush1.bf16.msra.mxu0 0
      %2250 = vmatprep.subr.bf16.mxu0 0
      %2251 = vmatpush1.bf16.msra.mxu0 0
      %2252 = vmatprep.subr.bf16.mxu0 0
      %2253 = vmatpush1.bf16.msra.mxu0 0
      %2254 = vmatprep.subr.bf16.mxu0 0
      %2255 = vmatpush1.bf16.msra.mxu0 0
      %2256 = vmatprep.subr.bf16.mxu0 0
      %2257 = vmatpush1.bf16.msra.mxu0 0
      %2258 = vmatprep.mubr.bf16.mxu0 0
      %2259 = vmatmul.mubr.bf16.gmra.mrb[0].mxu0 %v2218
      %v2260 = vpop.f32.mrb[0].mxu0
      %v2261 = vadd.f32 0.0, %v2260
      %v2262 = vpop.f32.mrb[0].mxu0
      %v2263 = vpop.f32.mrb[0].mxu0
      %v2264 = vadd.f32 0.0, %v2263
      %v2265 = vpop.f32.mrb[0].mxu0
      %2266 = vmatprep.mubr.bf16.mxu0 0
      %2267 = vmatmul.mubr.bf16.gmra.mrb[0].mxu0 %v2221
      %v2268 = vpop.f32.mrb[0].mxu0
      %v2269 = vadd.f32 0.0, %v2268
      %v2270 = vpop.f32.mrb[0].mxu0
      %v2271 = vpop.f32.mrb[0].mxu0
      %v2272 = vadd.f32 0.0, %v2271
      %v2273 = vpop.f32.mrb[0].mxu0
      %2274 = vmatprep.mubr.bf16.mxu0 0
      %2275 = vmatmul.mubr.bf16.gmra.mrb[0].mxu0 %v2224
      %v2276 = vpop.f32.mrb[0].mxu0
      %v2277 = vadd.f32 0.0, %v2276
      %v2278 = vpop.f32.mrb[0].mxu0
      %v2279 = vpop.f32.mrb[0].mxu0
      %v2280 = vpop.f32.mrb[0].mxu0
      %2281 = vdwg.mxu0
      %s2282 = scalar_lea.vmem %s3, 60
      %v2283 = vld [vmem:[%s2282] sm:$0xf]
      %v2284 = vld [vmem:[%s2282 + $0x4] sm:$0xf]
      %v2285 = vld [vmem:[%s2282 + $0x8] sm:$0xf]
      %v2286 = vld [vmem:[%s2282 + $0xc] sm:$0xf]
      %v2287 = vld [vmem:[%s2282 + $0x10] sm:$0xf]
      %v2293 = vunpack.c.l.b16 %v2283
      %v2294 = vunpack.c.l.b16 %v2284
      %v2295 = vunpack.c.l.b16 %v2285
      %v2296 = vunpack.c.l.b16 %v2286
      %v2297 = vunpack.c.l.b16 %v2287
      %v2298 = vpack.c.b16 %v2294, %v2293
      %v2299 = vpack.c.b16 %v2296, %v2295
      %v2300 = vpack.c.b16 %v2297, %v2297
      %v2302 = vsel %vm2048, %v2298, 0
      %v2305 = vsel %vm2048, %v2299, 0
      %v2308 = vsel %vm2048, %v2300, 0
      %2310 = vmatprep.subr.bf16.mxu0 0
      %2311 = vmatpush1.bf16.msra.mxu0 %v2023
      %2312 = vmatprep.subr.bf16.mxu0 0
      %2313 = vmatpush1.bf16.msra.mxu0 %v2024
      %2314 = vmatprep.subr.bf16.mxu0 0
      %2315 = vmatpush1.bf16.msra.mxu0 %v2025
      %2316 = vmatprep.subr.bf16.mxu0 0
      %2317 = vmatpush1.bf16.msra.mxu0 %v2026
      %2318 = vmatprep.subr.bf16.mxu0 0
      %2319 = vmatpush1.bf16.msra.mxu0 %v2027
      %2320 = vmatprep.subr.bf16.mxu0 0
      %2321 = vmatpush1.bf16.msra.mxu0 %v2028
      %2322 = vmatprep.subr.bf16.mxu0 0
      %2323 = vmatpush1.bf16.msra.mxu0 %v2029
      %2324 = vmatprep.subr.bf16.mxu0 0
      %2325 = vmatpush1.bf16.msra.mxu0 0
      %2326 = vmatprep.subr.bf16.mxu0 0
      %2327 = vmatpush1.bf16.msra.mxu0 0
      %2328 = vmatprep.subr.bf16.mxu0 0
      %2329 = vmatpush1.bf16.msra.mxu0 0
      %2330 = vmatprep.subr.bf16.mxu0 0
      %2331 = vmatpush1.bf16.msra.mxu0 0
      %2332 = vmatprep.subr.bf16.mxu0 0
      %2333 = vmatpush1.bf16.msra.mxu0 0
      %2334 = vmatprep.subr.bf16.mxu0 0
      %2335 = vmatpush1.bf16.msra.mxu0 0
      %2336 = vmatprep.subr.bf16.mxu0 0
      %2337 = vmatpush1.bf16.msra.mxu0 0
      %2338 = vmatprep.subr.bf16.mxu0 0
      %2339 = vmatpush1.bf16.msra.mxu0 0
      %2340 = vmatprep.subr.bf16.mxu0 0
      %2341 = vmatpush1.bf16.msra.mxu0 0
      %2342 = vmatprep.mubr.bf16.mxu0 0
      %2343 = vmatmul.mubr.bf16.gmra.mrb[0].mxu0 %v2302
      %v2344 = vpop.f32.mrb[0].mxu0
      %v2345 = vadd.f32 0.0, %v2344
      %v2346 = vpop.f32.mrb[0].mxu0
      %v2347 = vpop.f32.mrb[0].mxu0
      %v2348 = vadd.f32 0.0, %v2347
      %v2349 = vpop.f32.mrb[0].mxu0
      %2350 = vmatprep.mubr.bf16.mxu0 0
      %2351 = vmatmul.mubr.bf16.gmra.mrb[0].mxu0 %v2305
      %v2352 = vpop.f32.mrb[0].mxu0
      %v2353 = vadd.f32 0.0, %v2352
      %v2354 = vpop.f32.mrb[0].mxu0
      %v2355 = vpop.f32.mrb[0].mxu0
      %v2356 = vadd.f32 0.0, %v2355
      %v2357 = vpop.f32.mrb[0].mxu0
      %2358 = vmatprep.mubr.bf16.mxu0 0
      %2359 = vmatmul.mubr.bf16.gmra.mrb[0].mxu0 %v2308
      %v2360 = vpop.f32.mrb[0].mxu0
      %v2361 = vadd.f32 0.0, %v2360
      %v2362 = vpop.f32.mrb[0].mxu0
      %v2363 = vpop.f32.mrb[0].mxu0
      %v2364 = vpop.f32.mrb[0].mxu0
      %2365 = vdwg.mxu0
      %2371 = vrot.lane.b32.xlu0 %v2177, 32
      %v2372 = vpop.permute.xlu0 %2371
      %2373 = vrot.lane.b32.xlu0 %v2180, 32
      %v2374 = vpop.permute.xlu0 %2373
      %2375 = vrot.lane.b32.xlu0 %v2185, 32
      %v2376 = vpop.permute.xlu0 %2375
      %2377 = vrot.lane.b32.xlu0 %v2188, 32
      %v2378 = vpop.permute.xlu0 %2377
      %2379 = vrot.lane.b32.xlu0 %v2193, 32
      %v2380 = vpop.permute.xlu0 %2379
      %2391 = vrot.lane.b32.xlu0 %v2261, 64
      %v2392 = vpop.permute.xlu0 %2391
      %2393 = vrot.lane.b32.xlu0 %v2264, 64
      %v2394 = vpop.permute.xlu0 %2393
      %2395 = vrot.lane.b32.xlu0 %v2269, 64
      %v2396 = vpop.permute.xlu0 %2395
      %2397 = vrot.lane.b32.xlu0 %v2272, 64
      %v2398 = vpop.permute.xlu0 %2397
      %2399 = vrot.lane.b32.xlu0 %v2277, 64
      %v2400 = vpop.permute.xlu0 %2399
      %2411 = vrot.lane.b32.xlu0 %v2345, 96
      %v2412 = vpop.permute.xlu0 %2411
      %2413 = vrot.lane.b32.xlu0 %v2348, 96
      %v2414 = vpop.permute.xlu0 %2413
      %2415 = vrot.lane.b32.xlu0 %v2353, 96
      %v2416 = vpop.permute.xlu0 %2415
      %2417 = vrot.lane.b32.xlu0 %v2356, 96
      %v2418 = vpop.permute.xlu0 %2417
      %2419 = vrot.lane.b32.xlu0 %v2361, 96
      %v2420 = vpop.permute.xlu0 %2419
      %vm2426 = vcmask 261120
      %v2427 = vsel %vm2426, %v2093, %v2372
      %v2428 = vsel %vm2426, %v2096, %v2374
      %v2429 = vsel %vm2426, %v2101, %v2376
      %v2430 = vsel %vm2426, %v2104, %v2378
      %v2431 = vsel %vm2426, %v2109, %v2380
      %vm2432 = vcmask 523264
      %v2433 = vsel %vm2432, %v2427, %v2392
      %v2434 = vsel %vm2432, %v2428, %v2394
      %v2435 = vsel %vm2432, %v2429, %v2396
      %v2436 = vsel %vm2432, %v2430, %v2398
      %v2437 = vsel %vm2432, %v2431, %v2400
      %vm2438 = vcmask 785408
      %v2439 = vsel %vm2438, %v2433, %v2412
      %v2440 = vsel %vm2438, %v2434, %v2414
      %v2441 = vsel %vm2438, %v2435, %v2416
      %v2442 = vsel %vm2438, %v2436, %v2418
      %v2443 = vsel %vm2438, %v2437, %v2420
      %v2444 = vpack.c.bf16 %v2440, %v2439
      %v2445 = vpack.c.bf16 %v2442, %v2441
      %v2446 = vld [vmem:[%s4] sm:$0xf]
      %v2447 = vld [vmem:[%s4 + $0x4] sm:$0xf]
      %v2448 = vld [vmem:[%s4 + $0x8] sm:$0xf]
      %v2449 = vld [vmem:[%s4 + $0xc] sm:$0xf]
      %v2450 = vld [vmem:[%s4 + $0x10] sm:$0xf]
      %v2451 = vld [vmem:[%s4 + $0x14] sm:$0xf]
      %v2452 = vld [vmem:[%s4 + $0x18] sm:$0xf]
      %v2453 = vld [vmem:[%s4 + $0x1c] sm:$0xf]
      %v2454 = vld [vmem:[%s4 + $0x20] sm:$0xf]
      %v2455 = vld [vmem:[%s4 + $0x24] sm:$0xf]
      %v2456 = vld [vmem:[%s4 + $0x28] sm:$0xf]
      %v2457 = vld [vmem:[%s4 + $0x2c] sm:$0xf]
      %v2458 = vld [vmem:[%s4 + $0x30] sm:$0xf]
      %v2459 = vld [vmem:[%s4 + $0x34] sm:$0xf]
      %v2460 = vld [vmem:[%s4 + $0x38] sm:$0xf]
      %v2461 = vld [vmem:[%s4 + $0x3c] sm:$0xf]
      %v2462 = vpack.c.bf16 %v2443, %v2443
      %s2463 = scalar_lea.vmem %s4, 64
      %v2464 = vld [vmem:[%s2463] sm:$0xf]
      %v2465 = vld [vmem:[%s2463 + $0x4] sm:$0xf]
      %v2466 = vld [vmem:[%s2463 + $0x8] sm:$0xf]
      %v2467 = vld [vmem:[%s2463 + $0xc] sm:$0xf]
      %v2468 = vld [vmem:[%s2463 + $0x10] sm:$0xf]
      %v2469 = vld [vmem:[%s2463 + $0x14] sm:$0xf]
      %v2470 = vld [vmem:[%s2463 + $0x18] sm:$0xf]
      %v2471 = vld [vmem:[%s2463 + $0x1c] sm:$0xf]
      %v2472 = vld [vmem:[%s2463 + $0x20] sm:$0xf]
      %v2473 = vld [vmem:[%s2463 + $0x24] sm:$0xf]
      %v2474 = vld [vmem:[%s2463 + $0x28] sm:$0xf]
      %v2475 = vld [vmem:[%s2463 + $0x2c] sm:$0xf]
      %v2476 = vld [vmem:[%s2463 + $0x30] sm:$0xf]
      %v2477 = vld [vmem:[%s2463 + $0x34] sm:$0xf]
      %v2478 = vld [vmem:[%s2463 + $0x38] sm:$0xf]
      %v2479 = vld [vmem:[%s2463 + $0x3c] sm:$0xf]
      %v2481 = vshrl.u32 %v2444, 16
      %v2483 = vshll.u32 %v2444, 16
      %v2485 = vrot.slane %v2483, 1
      %v2486 = vor.u32 %v2481, %v2485
      %v2488 = vshll.u32 %v2445, 16
      %v2490 = vrot.slane %v2488, 1
      %v2491 = vsel %vm581, %v2486, %v2490
      %v2492 = vshrl.u32 %v2445, 16
      %v2494 = vor.u32 %v2492, %v2490
      %v2496 = vshll.u32 %v2462, 16
      %v2498 = vrot.slane %v2496, 1
      %v2499 = vsel %vm581, %v2494, %v2498
      %v2518 = vunpack.c.l.b16 %v2464
      %v2519 = vunpack.c.l.b16 %v2465
      %v2520 = vunpack.c.l.b16 %v2466
      %v2521 = vunpack.c.l.b16 %v2467
      %v2522 = vunpack.c.l.b16 %v2468
      %v2523 = vunpack.c.l.b16 %v2469
      %v2524 = vunpack.c.l.b16 %v2470
      %v2525 = vunpack.c.l.b16 %v2471
      %v2526 = vunpack.c.l.b16 %v2472
      %v2527 = vunpack.c.l.b16 %v2473
      %v2528 = vunpack.c.l.b16 %v2474
      %v2529 = vunpack.c.l.b16 %v2475
      %v2530 = vunpack.c.l.b16 %v2476
      %v2531 = vunpack.c.l.b16 %v2477
      %v2532 = vunpack.c.l.b16 %v2478
      %v2533 = vunpack.c.l.b16 %v2479
      %v2534 = vpack.c.b16 %v2519, %v2518
      %v2535 = vpack.c.b16 %v2521, %v2520
      %v2536 = vpack.c.b16 %v2523, %v2522
      %v2537 = vpack.c.b16 %v2525, %v2524
      %v2538 = vpack.c.b16 %v2527, %v2526
      %v2539 = vpack.c.b16 %v2529, %v2528
      %v2540 = vpack.c.b16 %v2531, %v2530
      %v2541 = vpack.c.b16 %v2533, %v2532
      %2550 = vmatprep.subr.bf16.mxu0 0
      %2551 = vmatpush1.bf16.msra.mxu0 %v2534
      %2552 = vmatprep.subr.bf16.mxu0 0
      %2553 = vmatpush1.bf16.msra.mxu0 %v2535
      %2554 = vmatprep.subr.bf16.mxu0 0
      %2555 = vmatpush1.bf16.msra.mxu0 %v2536
      %2556 = vmatprep.subr.bf16.mxu0 0
      %2557 = vmatpush1.bf16.msra.mxu0 %v2537
      %2558 = vmatprep.subr.bf16.mxu0 0
      %2559 = vmatpush1.bf16.msra.mxu0 %v2538
      %2560 = vmatprep.subr.bf16.mxu0 0
      %2561 = vmatpush1.bf16.msra.mxu0 %v2539
      %2562 = vmatprep.subr.bf16.mxu0 0
      %2563 = vmatpush1.bf16.msra.mxu0 %v2540
      %2564 = vmatprep.subr.bf16.mxu0 0
      %2565 = vmatpush1.bf16.msra.mxu0 %v2541
      %2566 = vmatprep.subr.bf16.mxu0 0
      %2567 = vmatpush1.bf16.msra.mxu0 0
      %2568 = vmatprep.subr.bf16.mxu0 0
      %2569 = vmatpush1.bf16.msra.mxu0 0
      %2570 = vmatprep.subr.bf16.mxu0 0
      %2571 = vmatpush1.bf16.msra.mxu0 0
      %2572 = vmatprep.subr.bf16.mxu0 0
      %2573 = vmatpush1.bf16.msra.mxu0 0
      %2574 = vmatprep.subr.bf16.mxu0 0
      %2575 = vmatpush1.bf16.msra.mxu0 0
      %2576 = vmatprep.subr.bf16.mxu0 0
      %2577 = vmatpush1.bf16.msra.mxu0 0
      %2578 = vmatprep.subr.bf16.mxu0 0
      %2579 = vmatpush1.bf16.msra.mxu0 0
      %2580 = vmatprep.subr.bf16.mxu0 0
      %2581 = vmatpush1.bf16.msra.mxu0 0
      %2582 = vmatprep.mubr.bf16.mxu0 0
      %2583 = vmatmul.mubr.bf16.gmra.mrb[0].mxu0 %v2491
      %v2584 = vpop.f32.mrb[0].mxu0
      %v2585 = vadd.f32 0.0, %v2584
      %v2586 = vpop.f32.mrb[0].mxu0
      %v2587 = vpop.f32.mrb[0].mxu0
      %v2588 = vadd.f32 0.0, %v2587
      %v2589 = vpop.f32.mrb[0].mxu0
      %2590 = vmatprep.mubr.bf16.mxu0 0
      %2591 = vmatmul.mubr.bf16.gmra.mrb[0].mxu0 %v2499
      %v2592 = vpop.f32.mrb[0].mxu0
      %v2593 = vadd.f32 0.0, %v2592
      %v2594 = vpop.f32.mrb[0].mxu0
      %v2595 = vpop.f32.mrb[0].mxu0
      %v2596 = vadd.f32 0.0, %v2595
      %v2597 = vpop.f32.mrb[0].mxu0
      %2598 = vdwg.mxu0
      %v2615 = vunpack.c.l.b16 %v2446
      %v2616 = vunpack.c.l.b16 %v2447
      %v2617 = vunpack.c.l.b16 %v2448
      %v2618 = vunpack.c.l.b16 %v2449
      %v2619 = vunpack.c.l.b16 %v2450
      %v2620 = vunpack.c.l.b16 %v2451
      %v2621 = vunpack.c.l.b16 %v2452
      %v2622 = vunpack.c.l.b16 %v2453
      %v2623 = vunpack.c.l.b16 %v2454
      %v2624 = vunpack.c.l.b16 %v2455
      %v2625 = vunpack.c.l.b16 %v2456
      %v2626 = vunpack.c.l.b16 %v2457
      %v2627 = vunpack.c.l.b16 %v2458
      %v2628 = vunpack.c.l.b16 %v2459
      %v2629 = vunpack.c.l.b16 %v2460
      %v2630 = vunpack.c.l.b16 %v2461
      %v2631 = vpack.c.b16 %v2616, %v2615
      %v2632 = vpack.c.b16 %v2618, %v2617
      %v2633 = vpack.c.b16 %v2620, %v2619
      %v2634 = vpack.c.b16 %v2622, %v2621
      %v2635 = vpack.c.b16 %v2624, %v2623
      %v2636 = vpack.c.b16 %v2626, %v2625
      %v2637 = vpack.c.b16 %v2628, %v2627
      %v2638 = vpack.c.b16 %v2630, %v2629
      %2647 = vmatprep.subr.bf16.mxu0 0
      %2648 = vmatpush1.bf16.msra.mxu0 %v2631
      %2649 = vmatprep.subr.bf16.mxu0 0
      %2650 = vmatpush1.bf16.msra.mxu0 %v2632
      %2651 = vmatprep.subr.bf16.mxu0 0
      %2652 = vmatpush1.bf16.msra.mxu0 %v2633
      %2653 = vmatprep.subr.bf16.mxu0 0
      %2654 = vmatpush1.bf16.msra.mxu0 %v2634
      %2655 = vmatprep.subr.bf16.mxu0 0
      %2656 = vmatpush1.bf16.msra.mxu0 %v2635
      %2657 = vmatprep.subr.bf16.mxu0 0
      %2658 = vmatpush1.bf16.msra.mxu0 %v2636
      %2659 = vmatprep.subr.bf16.mxu0 0
      %2660 = vmatpush1.bf16.msra.mxu0 %v2637
      %2661 = vmatprep.subr.bf16.mxu0 0
      %2662 = vmatpush1.bf16.msra.mxu0 %v2638
      %2663 = vmatprep.subr.bf16.mxu0 0
      %2664 = vmatpush1.bf16.msra.mxu0 0
      %2665 = vmatprep.subr.bf16.mxu0 0
      %2666 = vmatpush1.bf16.msra.mxu0 0
      %2667 = vmatprep.subr.bf16.mxu0 0
      %2668 = vmatpush1.bf16.msra.mxu0 0
      %2669 = vmatprep.subr.bf16.mxu0 0
      %2670 = vmatpush1.bf16.msra.mxu0 0
      %2671 = vmatprep.subr.bf16.mxu0 0
      %2672 = vmatpush1.bf16.msra.mxu0 0
      %2673 = vmatprep.subr.bf16.mxu0 0
      %2674 = vmatpush1.bf16.msra.mxu0 0
      %2675 = vmatprep.subr.bf16.mxu0 0
      %2676 = vmatpush1.bf16.msra.mxu0 0
      %2677 = vmatprep.subr.bf16.mxu0 0
      %2678 = vmatpush1.bf16.msra.mxu0 0
      %2679 = vmatprep.mubr.bf16.mxu0 0
      %2680 = vmatmul.mubr.bf16.gmra.mrb[0].mxu0 %v2444
      %v2681 = vpop.f32.mrb[0].mxu0
      %v2682 = vadd.f32 %v2585, %v2681
      %v2683 = vpop.f32.mrb[0].mxu0
      %v2684 = vpop.f32.mrb[0].mxu0
      %v2685 = vadd.f32 %v2588, %v2684
      %v2686 = vpop.f32.mrb[0].mxu0
      %2687 = vmatprep.mubr.bf16.mxu0 0
      %2688 = vmatmul.mubr.bf16.gmra.mrb[0].mxu0 %v2445
      %v2689 = vpop.f32.mrb[0].mxu0
      %v2690 = vadd.f32 %v2593, %v2689
      %v2691 = vpop.f32.mrb[0].mxu0
      %v2692 = vpop.f32.mrb[0].mxu0
      %v2693 = vadd.f32 %v2596, %v2692
      %v2694 = vpop.f32.mrb[0].mxu0
      %2695 = vdwg.mxu0
      %s2696 = scalar_lea.vmem %s4, 128
      %v2697 = vld [vmem:[%s2696] sm:$0xf]
      %v2698 = vld [vmem:[%s2696 + $0x4] sm:$0xf]
      %v2699 = vld [vmem:[%s2696 + $0x8] sm:$0xf]
      %v2700 = vld [vmem:[%s2696 + $0xc] sm:$0xf]
      %v2701 = vld [vmem:[%s2696 + $0x10] sm:$0xf]
      %v2702 = vld [vmem:[%s2696 + $0x14] sm:$0xf]
      %v2703 = vld [vmem:[%s2696 + $0x18] sm:$0xf]
      %v2704 = vld [vmem:[%s2696 + $0x1c] sm:$0xf]
      %v2705 = vld [vmem:[%s2696 + $0x20] sm:$0xf]
      %v2706 = vld [vmem:[%s2696 + $0x24] sm:$0xf]
      %v2707 = vld [vmem:[%s2696 + $0x28] sm:$0xf]
      %v2708 = vld [vmem:[%s2696 + $0x2c] sm:$0xf]
      %v2709 = vld [vmem:[%s2696 + $0x30] sm:$0xf]
      %v2710 = vld [vmem:[%s2696 + $0x34] sm:$0xf]
      %v2711 = vld [vmem:[%s2696 + $0x38] sm:$0xf]
      %v2712 = vld [vmem:[%s2696 + $0x3c] sm:$0xf]
      %vm2716 = vcmask 1044480
      %v2717 = vrot.slane %v2444, 3
      %v2718 = vrot.slane %v2445, 3
      %v2719 = vsel %vm2716, %v2717, %v2718
      %v2720 = vrot.slane %v2462, 3
      %v2721 = vsel %vm2716, %v2718, %v2720
      %v2740 = vunpack.c.l.b16 %v2697
      %v2741 = vunpack.c.l.b16 %v2698
      %v2742 = vunpack.c.l.b16 %v2699
      %v2743 = vunpack.c.l.b16 %v2700
      %v2744 = vunpack.c.l.b16 %v2701
      %v2745 = vunpack.c.l.b16 %v2702
      %v2746 = vunpack.c.l.b16 %v2703
      %v2747 = vunpack.c.l.b16 %v2704
      %v2748 = vunpack.c.l.b16 %v2705
      %v2749 = vunpack.c.l.b16 %v2706
      %v2750 = vunpack.c.l.b16 %v2707
      %v2751 = vunpack.c.l.b16 %v2708
      %v2752 = vunpack.c.l.b16 %v2709
      %v2753 = vunpack.c.l.b16 %v2710
      %v2754 = vunpack.c.l.b16 %v2711
      %v2755 = vunpack.c.l.b16 %v2712
      %v2756 = vpack.c.b16 %v2741, %v2740
      %v2757 = vpack.c.b16 %v2743, %v2742
      %v2758 = vpack.c.b16 %v2745, %v2744
      %v2759 = vpack.c.b16 %v2747, %v2746
      %v2760 = vpack.c.b16 %v2749, %v2748
      %v2761 = vpack.c.b16 %v2751, %v2750
      %v2762 = vpack.c.b16 %v2753, %v2752
      %v2763 = vpack.c.b16 %v2755, %v2754
      %2772 = vmatprep.subr.bf16.mxu0 0
      %2773 = vmatpush1.bf16.msra.mxu0 %v2756
      %2774 = vmatprep.subr.bf16.mxu0 0
      %2775 = vmatpush1.bf16.msra.mxu0 %v2757
      %2776 = vmatprep.subr.bf16.mxu0 0
      %2777 = vmatpush1.bf16.msra.mxu0 %v2758
      %2778 = vmatprep.subr.bf16.mxu0 0
      %2779 = vmatpush1.bf16.msra.mxu0 %v2759
      %2780 = vmatprep.subr.bf16.mxu0 0
      %2781 = vmatpush1.bf16.msra.mxu0 %v2760
      %2782 = vmatprep.subr.bf16.mxu0 0
      %2783 = vmatpush1.bf16.msra.mxu0 %v2761
      %2784 = vmatprep.subr.bf16.mxu0 0
      %2785 = vmatpush1.bf16.msra.mxu0 %v2762
      %2786 = vmatprep.subr.bf16.mxu0 0
      %2787 = vmatpush1.bf16.msra.mxu0 %v2763
      %2788 = vmatprep.subr.bf16.mxu0 0
      %2789 = vmatpush1.bf16.msra.mxu0 0
      %2790 = vmatprep.subr.bf16.mxu0 0
      %2791 = vmatpush1.bf16.msra.mxu0 0
      %2792 = vmatprep.subr.bf16.mxu0 0
      %2793 = vmatpush1.bf16.msra.mxu0 0
      %2794 = vmatprep.subr.bf16.mxu0 0
      %2795 = vmatpush1.bf16.msra.mxu0 0
      %2796 = vmatprep.subr.bf16.mxu0 0
      %2797 = vmatpush1.bf16.msra.mxu0 0
      %2798 = vmatprep.subr.bf16.mxu0 0
      %2799 = vmatpush1.bf16.msra.mxu0 0
      %2800 = vmatprep.subr.bf16.mxu0 0
      %2801 = vmatpush1.bf16.msra.mxu0 0
      %2802 = vmatprep.subr.bf16.mxu0 0
      %2803 = vmatpush1.bf16.msra.mxu0 0
      %2804 = vmatprep.mubr.bf16.mxu0 0
      %2805 = vmatmul.mubr.bf16.gmra.mrb[0].mxu0 %v2719
      %v2806 = vpop.f32.mrb[0].mxu0
      %v2807 = vadd.f32 0.0, %v2806
      %v2808 = vpop.f32.mrb[0].mxu0
      %v2809 = vpop.f32.mrb[0].mxu0
      %v2810 = vadd.f32 0.0, %v2809
      %v2811 = vpop.f32.mrb[0].mxu0
      %2812 = vmatprep.mubr.bf16.mxu0 0
      %2813 = vmatmul.mubr.bf16.gmra.mrb[0].mxu0 %v2721
      %v2814 = vpop.f32.mrb[0].mxu0
      %v2815 = vadd.f32 0.0, %v2814
      %v2816 = vpop.f32.mrb[0].mxu0
      %v2817 = vpop.f32.mrb[0].mxu0
      %v2818 = vadd.f32 0.0, %v2817
      %v2819 = vpop.f32.mrb[0].mxu0
      %2820 = vdwg.mxu0
      %v2821 = vadd.f32 %v2682, %v2807
      %v2822 = vadd.f32 %v2685, %v2810
      %v2823 = vadd.f32 %v2690, %v2815
      %v2824 = vadd.f32 %v2693, %v2818
      %s2825 = scalar_lea.vmem %s4, 192
      %v2826 = vld [vmem:[%s2825] sm:$0xf]
      %v2827 = vld [vmem:[%s2825 + $0x4] sm:$0xf]
      %v2828 = vld [vmem:[%s2825 + $0x8] sm:$0xf]
      %v2829 = vld [vmem:[%s2825 + $0xc] sm:$0xf]
      %v2830 = vld [vmem:[%s2825 + $0x10] sm:$0xf]
      %v2831 = vld [vmem:[%s2825 + $0x14] sm:$0xf]
      %v2832 = vld [vmem:[%s2825 + $0x18] sm:$0xf]
      %v2833 = vld [vmem:[%s2825 + $0x1c] sm:$0xf]
      %v2834 = vld [vmem:[%s2825 + $0x20] sm:$0xf]
      %v2835 = vld [vmem:[%s2825 + $0x24] sm:$0xf]
      %v2836 = vld [vmem:[%s2825 + $0x28] sm:$0xf]
      %v2837 = vld [vmem:[%s2825 + $0x2c] sm:$0xf]
      %v2838 = vld [vmem:[%s2825 + $0x30] sm:$0xf]
      %v2839 = vld [vmem:[%s2825 + $0x34] sm:$0xf]
      %v2840 = vld [vmem:[%s2825 + $0x38] sm:$0xf]
      %v2841 = vld [vmem:[%s2825 + $0x3c] sm:$0xf]
      %vm2842 = vsmask.f32 4352
      %v2843 = vrot.slane %v2481, 3
      %v2844 = vrot.slane %v2483, 4
      %v2845 = vor.u32 %v2843, %v2844
      %v2846 = vrot.slane %v2492, 3
      %v2847 = vrot.slane %v2488, 4
      %v2848 = vor.u32 %v2846, %v2847
      %v2849 = vsel %vm2842, %v2845, %v2848
      %v2850 = vshrl.u32 %v2462, 16
      %v2852 = vrot.slane %v2850, 3
      %v2853 = vrot.slane %v2496, 4
      %v2854 = vor.u32 %v2852, %v2853
      %v2855 = vsel %vm2842, %v2848, %v2854
      %v2874 = vunpack.c.l.b16 %v2826
      %v2875 = vunpack.c.l.b16 %v2827
      %v2876 = vunpack.c.l.b16 %v2828
      %v2877 = vunpack.c.l.b16 %v2829
      %v2878 = vunpack.c.l.b16 %v2830
      %v2879 = vunpack.c.l.b16 %v2831
      %v2880 = vunpack.c.l.b16 %v2832
      %v2881 = vunpack.c.l.b16 %v2833
      %v2882 = vunpack.c.l.b16 %v2834
      %v2883 = vunpack.c.l.b16 %v2835
      %v2884 = vunpack.c.l.b16 %v2836
      %v2885 = vunpack.c.l.b16 %v2837
      %v2886 = vunpack.c.l.b16 %v2838
      %v2887 = vunpack.c.l.b16 %v2839
      %v2888 = vunpack.c.l.b16 %v2840
      %v2889 = vunpack.c.l.b16 %v2841
      %v2890 = vpack.c.b16 %v2875, %v2874
      %v2891 = vpack.c.b16 %v2877, %v2876
      %v2892 = vpack.c.b16 %v2879, %v2878
      %v2893 = vpack.c.b16 %v2881, %v2880
      %v2894 = vpack.c.b16 %v2883, %v2882
      %v2895 = vpack.c.b16 %v2885, %v2884
      %v2896 = vpack.c.b16 %v2887, %v2886
      %v2897 = vpack.c.b16 %v2889, %v2888
      %2906 = vmatprep.subr.bf16.mxu0 0
      %2907 = vmatpush1.bf16.msra.mxu0 %v2890
      %2908 = vmatprep.subr.bf16.mxu0 0
      %2909 = vmatpush1.bf16.msra.mxu0 %v2891
      %2910 = vmatprep.subr.bf16.mxu0 0
      %2911 = vmatpush1.bf16.msra.mxu0 %v2892
      %2912 = vmatprep.subr.bf16.mxu0 0
      %2913 = vmatpush1.bf16.msra.mxu0 %v2893
      %2914 = vmatprep.subr.bf16.mxu0 0
      %2915 = vmatpush1.bf16.msra.mxu0 %v2894
      %2916 = vmatprep.subr.bf16.mxu0 0
      %2917 = vmatpush1.bf16.msra.mxu0 %v2895
      %2918 = vmatprep.subr.bf16.mxu0 0
      %2919 = vmatpush1.bf16.msra.mxu0 %v2896
      %2920 = vmatprep.subr.bf16.mxu0 0
      %2921 = vmatpush1.bf16.msra.mxu0 %v2897
      %2922 = vmatprep.subr.bf16.mxu0 0
      %2923 = vmatpush1.bf16.msra.mxu0 0
      %2924 = vmatprep.subr.bf16.mxu0 0
      %2925 = vmatpush1.bf16.msra.mxu0 0
      %2926 = vmatprep.subr.bf16.mxu0 0
      %2927 = vmatpush1.bf16.msra.mxu0 0
      %2928 = vmatprep.subr.bf16.mxu0 0
      %2929 = vmatpush1.bf16.msra.mxu0 0
      %2930 = vmatprep.subr.bf16.mxu0 0
      %2931 = vmatpush1.bf16.msra.mxu0 0
      %2932 = vmatprep.subr.bf16.mxu0 0
      %2933 = vmatpush1.bf16.msra.mxu0 0
      %2934 = vmatprep.subr.bf16.mxu0 0
      %2935 = vmatpush1.bf16.msra.mxu0 0
      %2936 = vmatprep.subr.bf16.mxu0 0
      %2937 = vmatpush1.bf16.msra.mxu0 0
      %2938 = vmatprep.mubr.bf16.mxu0 0
      %2939 = vmatmul.mubr.bf16.gmra.mrb[0].mxu0 %v2849
      %v2940 = vpop.f32.mrb[0].mxu0
      %v2941 = vadd.f32 0.0, %v2940
      %v2942 = vpop.f32.mrb[0].mxu0
      %v2943 = vpop.f32.mrb[0].mxu0
      %v2944 = vadd.f32 0.0, %v2943
      %v2945 = vpop.f32.mrb[0].mxu0
      %2946 = vmatprep.mubr.bf16.mxu0 0
      %2947 = vmatmul.mubr.bf16.gmra.mrb[0].mxu0 %v2855
      %v2948 = vpop.f32.mrb[0].mxu0
      %v2949 = vadd.f32 0.0, %v2948
      %v2950 = vpop.f32.mrb[0].mxu0
      %v2951 = vpop.f32.mrb[0].mxu0
      %v2952 = vadd.f32 0.0, %v2951
      %v2953 = vpop.f32.mrb[0].mxu0
      %2954 = vdwg.mxu0
      %v2955 = vadd.f32 %v2821, %v2941
      %v2956 = vadd.f32 %v2822, %v2944
      %v2957 = vadd.f32 %v2823, %v2949
      %v2958 = vadd.f32 %v2824, %v2952
      %v2959 = vld [vmem:[%s5] sm:$0x1]
      %v2961 = vlaneseq
      %v2962 = vshrl.u32 %v2961, 7
      %v2963 = vsub.s32 0, %v2962
      %v2964 = vrot.slane %v2959, %v2963
      %v2966 = vadd.f32 %v2955, %v2964
      %v2967 = vadd.f32 %v2956, %v2964
      %v2968 = vadd.f32 %v2957, %v2964
      %v2969 = vadd.f32 %v2958, %v2964
      %v2970 = vmax.f32 %v2966, 0.0
      %v2971 = vmax.f32 %v2967, 0.0
      %v2972 = vmax.f32 %v2968, 0.0
      %v2973 = vmax.f32 %v2969, 0.0
      %v2974 = vld [vmem:[%s6] sm:$0xf]
      %v2975 = vld [vmem:[%s6 + $0x4] sm:$0xf]
      %v2976 = vld [vmem:[%s6 + $0x8] sm:$0xf]
      %v2977 = vld [vmem:[%s6 + $0xc] sm:$0xf]
      %v2978 = vld [vmem:[%s6 + $0x10] sm:$0xf]
      %v2979 = vld [vmem:[%s6 + $0x14] sm:$0xf]
      %v2980 = vld [vmem:[%s6 + $0x18] sm:$0xf]
      %v2981 = vld [vmem:[%s6 + $0x1c] sm:$0xf]
      %v2982 = vpack.c.bf16 %v2971, %v2970
      %v2983 = vpack.c.bf16 %v2973, %v2972
      %v2992 = vunpack.c.l.b16 %v2974
      %v2993 = vunpack.c.l.b16 %v2975
      %v2994 = vunpack.c.l.b16 %v2976
      %v2995 = vunpack.c.l.b16 %v2977
      %v2996 = vunpack.c.l.b16 %v2978
      %v2997 = vunpack.c.l.b16 %v2979
      %v2998 = vunpack.c.l.b16 %v2980
      %v2999 = vunpack.c.l.b16 %v2981
      %v3000 = vpack.c.b16 %v2993, %v2992
      %v3001 = vpack.c.b16 %v2995, %v2994
      %v3002 = vpack.c.b16 %v2997, %v2996
      %v3003 = vpack.c.b16 %v2999, %v2998
      %v3005 = vsel %vm2426, %v3000, 0
      %v3008 = vsel %vm2426, %v3001, 0
      %v3011 = vsel %vm2426, %v3002, 0
      %v3014 = vsel %vm2426, %v3003, 0
      %3016 = vmatprep.subr.bf16.mxu0 0
      %3017 = vmatpush1.bf16.msra.mxu0 %v2982
      %3018 = vmatprep.subr.bf16.mxu0 0
      %3019 = vmatpush1.bf16.msra.mxu0 %v2983
      %3020 = vmatprep.subr.bf16.mxu0 0
      %3021 = vmatpush1.bf16.msra.mxu0 0
      %3022 = vmatprep.subr.bf16.mxu0 0
      %3023 = vmatpush1.bf16.msra.mxu0 0
      %3024 = vmatprep.subr.bf16.mxu0 0
      %3025 = vmatpush1.bf16.msra.mxu0 0
      %3026 = vmatprep.subr.bf16.mxu0 0
      %3027 = vmatpush1.bf16.msra.mxu0 0
      %3028 = vmatprep.subr.bf16.mxu0 0
      %3029 = vmatpush1.bf16.msra.mxu0 0
      %3030 = vmatprep.subr.bf16.mxu0 0
      %3031 = vmatpush1.bf16.msra.mxu0 0
      %3032 = vmatprep.subr.bf16.mxu0 0
      %3033 = vmatpush1.bf16.msra.mxu0 0
      %3034 = vmatprep.subr.bf16.mxu0 0
      %3035 = vmatpush1.bf16.msra.mxu0 0
      %3036 = vmatprep.subr.bf16.mxu0 0
      %3037 = vmatpush1.bf16.msra.mxu0 0
      %3038 = vmatprep.subr.bf16.mxu0 0
      %3039 = vmatpush1.bf16.msra.mxu0 0
      %3040 = vmatprep.subr.bf16.mxu0 0
      %3041 = vmatpush1.bf16.msra.mxu0 0
      %3042 = vmatprep.subr.bf16.mxu0 0
      %3043 = vmatpush1.bf16.msra.mxu0 0
      %3044 = vmatprep.subr.bf16.mxu0 0
      %3045 = vmatpush1.bf16.msra.mxu0 0
      %3046 = vmatprep.subr.bf16.mxu0 0
      %3047 = vmatpush1.bf16.msra.mxu0 0
      %3048 = vmatprep.mubr.bf16.mxu0 0
      %3049 = vmatmul.mubr.bf16.gmra.mrb[0].mxu0 %v3005
      %v3050 = vpop.f32.mrb[0].mxu0
      %v3051 = vadd.f32 0.0, %v3050
      %v3052 = vpop.f32.mrb[0].mxu0
      %v3053 = vpop.f32.mrb[0].mxu0
      %v3054 = vadd.f32 0.0, %v3053
      %v3055 = vpop.f32.mrb[0].mxu0
      %3056 = vmatprep.mubr.bf16.mxu0 0
      %3057 = vmatmul.mubr.bf16.gmra.mrb[0].mxu0 %v3008
      %v3058 = vpop.f32.mrb[0].mxu0
      %v3059 = vadd.f32 0.0, %v3058
      %v3060 = vpop.f32.mrb[0].mxu0
      %v3061 = vpop.f32.mrb[0].mxu0
      %v3062 = vadd.f32 0.0, %v3061
      %v3063 = vpop.f32.mrb[0].mxu0
      %3064 = vmatprep.mubr.bf16.mxu0 0
      %3065 = vmatmul.mubr.bf16.gmra.mrb[0].mxu0 %v3011
      %v3066 = vpop.f32.mrb[0].mxu0
      %v3067 = vadd.f32 0.0, %v3066
      %v3068 = vpop.f32.mrb[0].mxu0
      %v3069 = vpop.f32.mrb[0].mxu0
      %v3070 = vadd.f32 0.0, %v3069
      %v3071 = vpop.f32.mrb[0].mxu0
      %3072 = vmatprep.mubr.bf16.mxu0 0
      %3073 = vmatmul.mubr.bf16.gmra.mrb[0].mxu0 %v3014
      %v3074 = vpop.f32.mrb[0].mxu0
      %v3075 = vadd.f32 0.0, %v3074
      %v3076 = vpop.f32.mrb[0].mxu0
      %v3077 = vpop.f32.mrb[0].mxu0
      %v3078 = vadd.f32 0.0, %v3077
      %v3079 = vpop.f32.mrb[0].mxu0
      %3080 = vdwg.mxu0
      %v3081 = vpack.c.bf16 %v3054, %v3051
      %v3082 = vpack.c.bf16 %v3062, %v3059
      %v3083 = vpack.c.bf16 %v3070, %v3067
      %v3084 = vld [vmem:[%s7] sm:$0xf]
      %v3085 = vld [vmem:[%s7 + $0x4] sm:$0xf]
      %v3086 = vld [vmem:[%s7 + $0x8] sm:$0xf]
      %v3087 = vld [vmem:[%s7 + $0xc] sm:$0xf]
      %v3088 = vld [vmem:[%s7 + $0x10] sm:$0xf]
      %v3089 = vld [vmem:[%s7 + $0x14] sm:$0xf]
      %v3090 = vld [vmem:[%s7 + $0x18] sm:$0xf]
      %v3091 = vld [vmem:[%s7 + $0x1c] sm:$0xf]
      %v3092 = vpack.c.bf16 %v3075, %v3075
      %s3093 = scalar_lea.vmem %s7, 32
      %v3094 = vld [vmem:[%s3093] sm:$0xf]
      %v3095 = vld [vmem:[%s3093 + $0x4] sm:$0xf]
      %v3096 = vld [vmem:[%s3093 + $0x8] sm:$0xf]
      %v3097 = vld [vmem:[%s3093 + $0xc] sm:$0xf]
      %v3098 = vld [vmem:[%s3093 + $0x10] sm:$0xf]
      %v3099 = vld [vmem:[%s3093 + $0x14] sm:$0xf]
      %v3100 = vld [vmem:[%s3093 + $0x18] sm:$0xf]
      %v3101 = vld [vmem:[%s3093 + $0x1c] sm:$0xf]
      %v3103 = vshrl.u32 %v3081, 16
      %v3105 = vshll.u32 %v3081, 16
      %v3107 = vrot.slane %v3105, 1
      %v3108 = vor.u32 %v3103, %v3107
      %v3110 = vshll.u32 %v3082, 16
      %v3112 = vrot.slane %v3110, 1
      %v3113 = vsel %vm581, %v3108, %v3112
      %v3114 = vshrl.u32 %v3082, 16
      %v3116 = vor.u32 %v3114, %v3112
      %v3118 = vshll.u32 %v3083, 16
      %v3120 = vrot.slane %v3118, 1
      %v3121 = vsel %vm581, %v3116, %v3120
      %v3122 = vshrl.u32 %v3083, 16
      %v3124 = vor.u32 %v3122, %v3120
      %v3126 = vshll.u32 %v3092, 16
      %v3128 = vrot.slane %v3126, 1
      %v3129 = vsel %vm581, %v3124, %v3128
      %v3138 = vunpack.c.l.b16 %v3094
      %v3139 = vunpack.c.l.b16 %v3095
      %v3140 = vunpack.c.l.b16 %v3096
      %v3141 = vunpack.c.l.b16 %v3097
      %v3142 = vunpack.c.l.b16 %v3098
      %v3143 = vunpack.c.l.b16 %v3099
      %v3144 = vunpack.c.l.b16 %v3100
      %v3145 = vunpack.c.l.b16 %v3101
      %v3146 = vpack.c.b16 %v3139, %v3138
      %v3147 = vpack.c.b16 %v3141, %v3140
      %v3148 = vpack.c.b16 %v3143, %v3142
      %v3149 = vpack.c.b16 %v3145, %v3144
      %v3155 = vsel %vm2432, %v3113, 0
      %v3158 = vsel %vm2432, %v3121, 0
      %v3161 = vsel %vm2432, %v3129, 0
      %3163 = vmatprep.subr.bf16.mxu0 0
      %3164 = vmatpush1.bf16.msra.mxu0 %v3146
      %3165 = vmatprep.subr.bf16.mxu0 0
      %3166 = vmatpush1.bf16.msra.mxu0 %v3147
      %3167 = vmatprep.subr.bf16.mxu0 0
      %3168 = vmatpush1.bf16.msra.mxu0 %v3148
      %3169 = vmatprep.subr.bf16.mxu0 0
      %3170 = vmatpush1.bf16.msra.mxu0 %v3149
      %3171 = vmatprep.subr.bf16.mxu0 0
      %3172 = vmatpush1.bf16.msra.mxu0 0
      %3173 = vmatprep.subr.bf16.mxu0 0
      %3174 = vmatpush1.bf16.msra.mxu0 0
      %3175 = vmatprep.subr.bf16.mxu0 0
      %3176 = vmatpush1.bf16.msra.mxu0 0
      %3177 = vmatprep.subr.bf16.mxu0 0
      %3178 = vmatpush1.bf16.msra.mxu0 0
      %3179 = vmatprep.subr.bf16.mxu0 0
      %3180 = vmatpush1.bf16.msra.mxu0 0
      %3181 = vmatprep.subr.bf16.mxu0 0
      %3182 = vmatpush1.bf16.msra.mxu0 0
      %3183 = vmatprep.subr.bf16.mxu0 0
      %3184 = vmatpush1.bf16.msra.mxu0 0
      %3185 = vmatprep.subr.bf16.mxu0 0
      %3186 = vmatpush1.bf16.msra.mxu0 0
      %3187 = vmatprep.subr.bf16.mxu0 0
      %3188 = vmatpush1.bf16.msra.mxu0 0
      %3189 = vmatprep.subr.bf16.mxu0 0
      %3190 = vmatpush1.bf16.msra.mxu0 0
      %3191 = vmatprep.subr.bf16.mxu0 0
      %3192 = vmatpush1.bf16.msra.mxu0 0
      %3193 = vmatprep.subr.bf16.mxu0 0
      %3194 = vmatpush1.bf16.msra.mxu0 0
      %3195 = vmatprep.mubr.bf16.mxu0 0
      %3196 = vmatmul.mubr.bf16.gmra.mrb[0].mxu0 %v3155
      %v3197 = vpop.f32.mrb[0].mxu0
      %v3198 = vadd.f32 0.0, %v3197
      %v3199 = vpop.f32.mrb[0].mxu0
      %v3200 = vpop.f32.mrb[0].mxu0
      %v3201 = vadd.f32 0.0, %v3200
      %v3202 = vpop.f32.mrb[0].mxu0
      %3203 = vmatprep.mubr.bf16.mxu0 0
      %3204 = vmatmul.mubr.bf16.gmra.mrb[0].mxu0 %v3158
      %v3205 = vpop.f32.mrb[0].mxu0
      %v3206 = vadd.f32 0.0, %v3205
      %v3207 = vpop.f32.mrb[0].mxu0
      %v3208 = vpop.f32.mrb[0].mxu0
      %v3209 = vadd.f32 0.0, %v3208
      %v3210 = vpop.f32.mrb[0].mxu0
      %3211 = vmatprep.mubr.bf16.mxu0 0
      %3212 = vmatmul.mubr.bf16.gmra.mrb[0].mxu0 %v3161
      %v3213 = vpop.f32.mrb[0].mxu0
      %v3214 = vadd.f32 0.0, %v3213
      %v3215 = vpop.f32.mrb[0].mxu0
      %v3216 = vpop.f32.mrb[0].mxu0
      %v3217 = vadd.f32 0.0, %v3216
      %v3218 = vpop.f32.mrb[0].mxu0
      %3219 = vdwg.mxu0
      %v3228 = vunpack.c.l.b16 %v3084
      %v3229 = vunpack.c.l.b16 %v3085
      %v3230 = vunpack.c.l.b16 %v3086
      %v3231 = vunpack.c.l.b16 %v3087
      %v3232 = vunpack.c.l.b16 %v3088
      %v3233 = vunpack.c.l.b16 %v3089
      %v3234 = vunpack.c.l.b16 %v3090
      %v3235 = vunpack.c.l.b16 %v3091
      %v3236 = vpack.c.b16 %v3229, %v3228
      %v3237 = vpack.c.b16 %v3231, %v3230
      %v3238 = vpack.c.b16 %v3233, %v3232
      %v3239 = vpack.c.b16 %v3235, %v3234
      %v3244 = vsel %vm2432, %v3081, 0
      %v3246 = vsel %vm2432, %v3082, 0
      %v3248 = vsel %vm2432, %v3083, 0
      %3250 = vmatprep.subr.bf16.mxu0 0
      %3251 = vmatpush1.bf16.msra.mxu0 %v3236
      %3252 = vmatprep.subr.bf16.mxu0 0
      %3253 = vmatpush1.bf16.msra.mxu0 %v3237
      %3254 = vmatprep.subr.bf16.mxu0 0
      %3255 = vmatpush1.bf16.msra.mxu0 %v3238
      %3256 = vmatprep.subr.bf16.mxu0 0
      %3257 = vmatpush1.bf16.msra.mxu0 %v3239
      %3258 = vmatprep.subr.bf16.mxu0 0
      %3259 = vmatpush1.bf16.msra.mxu0 0
      %3260 = vmatprep.subr.bf16.mxu0 0
      %3261 = vmatpush1.bf16.msra.mxu0 0
      %3262 = vmatprep.subr.bf16.mxu0 0
      %3263 = vmatpush1.bf16.msra.mxu0 0
      %3264 = vmatprep.subr.bf16.mxu0 0
      %3265 = vmatpush1.bf16.msra.mxu0 0
      %3266 = vmatprep.subr.bf16.mxu0 0
      %3267 = vmatpush1.bf16.msra.mxu0 0
      %3268 = vmatprep.subr.bf16.mxu0 0
      %3269 = vmatpush1.bf16.msra.mxu0 0
      %3270 = vmatprep.subr.bf16.mxu0 0
      %3271 = vmatpush1.bf16.msra.mxu0 0
      %3272 = vmatprep.subr.bf16.mxu0 0
      %3273 = vmatpush1.bf16.msra.mxu0 0
      %3274 = vmatprep.subr.bf16.mxu0 0
      %3275 = vmatpush1.bf16.msra.mxu0 0
      %3276 = vmatprep.subr.bf16.mxu0 0
      %3277 = vmatpush1.bf16.msra.mxu0 0
      %3278 = vmatprep.subr.bf16.mxu0 0
      %3279 = vmatpush1.bf16.msra.mxu0 0
      %3280 = vmatprep.subr.bf16.mxu0 0
      %3281 = vmatpush1.bf16.msra.mxu0 0
      %3282 = vmatprep.mubr.bf16.mxu0 0
      %3283 = vmatmul.mubr.bf16.gmra.mrb[0].mxu0 %v3244
      %v3284 = vpop.f32.mrb[0].mxu0
      %v3285 = vadd.f32 %v3198, %v3284
      %v3286 = vpop.f32.mrb[0].mxu0
      %v3287 = vpop.f32.mrb[0].mxu0
      %v3288 = vadd.f32 %v3201, %v3287
      %v3289 = vpop.f32.mrb[0].mxu0
      %3290 = vmatprep.mubr.bf16.mxu0 0
      %3291 = vmatmul.mubr.bf16.gmra.mrb[0].mxu0 %v3246
      %v3292 = vpop.f32.mrb[0].mxu0
      %v3293 = vadd.f32 %v3206, %v3292
      %v3294 = vpop.f32.mrb[0].mxu0
      %v3295 = vpop.f32.mrb[0].mxu0
      %v3296 = vadd.f32 %v3209, %v3295
      %v3297 = vpop.f32.mrb[0].mxu0
      %3298 = vmatprep.mubr.bf16.mxu0 0
      %3299 = vmatmul.mubr.bf16.gmra.mrb[0].mxu0 %v3248
      %v3300 = vpop.f32.mrb[0].mxu0
      %v3301 = vadd.f32 %v3214, %v3300
      %v3302 = vpop.f32.mrb[0].mxu0
      %v3303 = vpop.f32.mrb[0].mxu0
      %v3304 = vadd.f32 %v3217, %v3303
      %v3305 = vpop.f32.mrb[0].mxu0
      %3306 = vdwg.mxu0
      %s3307 = scalar_lea.vmem %s7, 64
      %v3308 = vld [vmem:[%s3307] sm:$0xf]
      %v3309 = vld [vmem:[%s3307 + $0x4] sm:$0xf]
      %v3310 = vld [vmem:[%s3307 + $0x8] sm:$0xf]
      %v3311 = vld [vmem:[%s3307 + $0xc] sm:$0xf]
      %v3312 = vld [vmem:[%s3307 + $0x10] sm:$0xf]
      %v3313 = vld [vmem:[%s3307 + $0x14] sm:$0xf]
      %v3314 = vld [vmem:[%s3307 + $0x18] sm:$0xf]
      %v3315 = vld [vmem:[%s3307 + $0x1c] sm:$0xf]
      %vm3320 = vcmask 1046528
      %v3321 = vrot.slane %v3081, 1
      %v3322 = vrot.slane %v3082, 1
      %v3323 = vsel %vm3320, %v3321, %v3322
      %v3324 = vrot.slane %v3083, 1
      %v3325 = vsel %vm3320, %v3322, %v3324
      %v3326 = vrot.slane %v3092, 1
      %v3327 = vsel %vm3320, %v3324, %v3326
      %v3336 = vunpack.c.l.b16 %v3308
      %v3337 = vunpack.c.l.b16 %v3309
      %v3338 = vunpack.c.l.b16 %v3310
      %v3339 = vunpack.c.l.b16 %v3311
      %v3340 = vunpack.c.l.b16 %v3312
      %v3341 = vunpack.c.l.b16 %v3313
      %v3342 = vunpack.c.l.b16 %v3314
      %v3343 = vunpack.c.l.b16 %v3315
      %v3344 = vpack.c.b16 %v3337, %v3336
      %v3345 = vpack.c.b16 %v3339, %v3338
      %v3346 = vpack.c.b16 %v3341, %v3340
      %v3347 = vpack.c.b16 %v3343, %v3342
      %v3353 = vsel %vm2432, %v3323, 0
      %v3356 = vsel %vm2432, %v3325, 0
      %v3359 = vsel %vm2432, %v3327, 0
      %3361 = vmatprep.subr.bf16.mxu0 0
      %3362 = vmatpush1.bf16.msra.mxu0 %v3344
      %3363 = vmatprep.subr.bf16.mxu0 0
      %3364 = vmatpush1.bf16.msra.mxu0 %v3345
      %3365 = vmatprep.subr.bf16.mxu0 0
      %3366 = vmatpush1.bf16.msra.mxu0 %v3346
      %3367 = vmatprep.subr.bf16.mxu0 0
      %3368 = vmatpush1.bf16.msra.mxu0 %v3347
      %3369 = vmatprep.subr.bf16.mxu0 0
      %3370 = vmatpush1.bf16.msra.mxu0 0
      %3371 = vmatprep.subr.bf16.mxu0 0
      %3372 = vmatpush1.bf16.msra.mxu0 0
      %3373 = vmatprep.subr.bf16.mxu0 0
      %3374 = vmatpush1.bf16.msra.mxu0 0
      %3375 = vmatprep.subr.bf16.mxu0 0
      %3376 = vmatpush1.bf16.msra.mxu0 0
      %3377 = vmatprep.subr.bf16.mxu0 0
      %3378 = vmatpush1.bf16.msra.mxu0 0
      %3379 = vmatprep.subr.bf16.mxu0 0
      %3380 = vmatpush1.bf16.msra.mxu0 0
      %3381 = vmatprep.subr.bf16.mxu0 0
      %3382 = vmatpush1.bf16.msra.mxu0 0
      %3383 = vmatprep.subr.bf16.mxu0 0
      %3384 = vmatpush1.bf16.msra.mxu0 0
      %3385 = vmatprep.subr.bf16.mxu0 0
      %3386 = vmatpush1.bf16.msra.mxu0 0
      %3387 = vmatprep.subr.bf16.mxu0 0
      %3388 = vmatpush1.bf16.msra.mxu0 0
      %3389 = vmatprep.subr.bf16.mxu0 0
      %3390 = vmatpush1.bf16.msra.mxu0 0
      %3391 = vmatprep.subr.bf16.mxu0 0
      %3392 = vmatpush1.bf16.msra.mxu0 0
      %3393 = vmatprep.mubr.bf16.mxu0 0
      %3394 = vmatmul.mubr.bf16.gmra.mrb[0].mxu0 %v3353
      %v3395 = vpop.f32.mrb[0].mxu0
      %v3396 = vadd.f32 0.0, %v3395
      %v3397 = vpop.f32.mrb[0].mxu0
      %v3398 = vpop.f32.mrb[0].mxu0
      %v3399 = vadd.f32 0.0, %v3398
      %v3400 = vpop.f32.mrb[0].mxu0
      %3401 = vmatprep.mubr.bf16.mxu0 0
      %3402 = vmatmul.mubr.bf16.gmra.mrb[0].mxu0 %v3356
      %v3403 = vpop.f32.mrb[0].mxu0
      %v3404 = vadd.f32 0.0, %v3403
      %v3405 = vpop.f32.mrb[0].mxu0
      %v3406 = vpop.f32.mrb[0].mxu0
      %v3407 = vadd.f32 0.0, %v3406
      %v3408 = vpop.f32.mrb[0].mxu0
      %3409 = vmatprep.mubr.bf16.mxu0 0
      %3410 = vmatmul.mubr.bf16.gmra.mrb[0].mxu0 %v3359
      %v3411 = vpop.f32.mrb[0].mxu0
      %v3412 = vadd.f32 0.0, %v3411
      %v3413 = vpop.f32.mrb[0].mxu0
      %v3414 = vpop.f32.mrb[0].mxu0
      %v3415 = vadd.f32 0.0, %v3414
      %v3416 = vpop.f32.mrb[0].mxu0
      %3417 = vdwg.mxu0
      %v3418 = vadd.f32 %v3285, %v3396
      %v3419 = vadd.f32 %v3288, %v3399
      %v3420 = vadd.f32 %v3293, %v3404
      %v3421 = vadd.f32 %v3296, %v3407
      %v3422 = vadd.f32 %v3301, %v3412
      %v3423 = vadd.f32 %v3304, %v3415
      %s3424 = scalar_lea.vmem %s7, 96
      %v3425 = vld [vmem:[%s3424] sm:$0xf]
      %v3426 = vld [vmem:[%s3424 + $0x4] sm:$0xf]
      %v3427 = vld [vmem:[%s3424 + $0x8] sm:$0xf]
      %v3428 = vld [vmem:[%s3424 + $0xc] sm:$0xf]
      %v3429 = vld [vmem:[%s3424 + $0x10] sm:$0xf]
      %v3430 = vld [vmem:[%s3424 + $0x14] sm:$0xf]
      %v3431 = vld [vmem:[%s3424 + $0x18] sm:$0xf]
      %v3432 = vld [vmem:[%s3424 + $0x1c] sm:$0xf]
      %v3433 = vrot.slane %v3103, 3
      %v3434 = vrot.slane %v3105, 4
      %v3435 = vor.u32 %v3433, %v3434
      %v3436 = vrot.slane %v3114, 3
      %v3437 = vrot.slane %v3110, 4
      %v3438 = vor.u32 %v3436, %v3437
      %v3439 = vsel %vm2842, %v3435, %v3438
      %v3440 = vrot.slane %v3122, 3
      %v3441 = vrot.slane %v3118, 4
      %v3442 = vor.u32 %v3440, %v3441
      %v3443 = vsel %vm2842, %v3438, %v3442
      %v3444 = vshrl.u32 %v3092, 16
      %v3446 = vrot.slane %v3444, 3
      %v3447 = vrot.slane %v3126, 4
      %v3448 = vor.u32 %v3446, %v3447
      %v3449 = vsel %vm2842, %v3442, %v3448
      %v3458 = vunpack.c.l.b16 %v3425
      %v3459 = vunpack.c.l.b16 %v3426
      %v3460 = vunpack.c.l.b16 %v3427
      %v3461 = vunpack.c.l.b16 %v3428
      %v3462 = vunpack.c.l.b16 %v3429
      %v3463 = vunpack.c.l.b16 %v3430
      %v3464 = vunpack.c.l.b16 %v3431
      %v3465 = vunpack.c.l.b16 %v3432
      %v3466 = vpack.c.b16 %v3459, %v3458
      %v3467 = vpack.c.b16 %v3461, %v3460
      %v3468 = vpack.c.b16 %v3463, %v3462
      %v3469 = vpack.c.b16 %v3465, %v3464
      %v3475 = vsel %vm2432, %v3439, 0
      %v3478 = vsel %vm2432, %v3443, 0
      %v3481 = vsel %vm2432, %v3449, 0
      %3483 = vmatprep.subr.bf16.mxu0 0
      %3484 = vmatpush1.bf16.msra.mxu0 %v3466
      %3485 = vmatprep.subr.bf16.mxu0 0
      %3486 = vmatpush1.bf16.msra.mxu0 %v3467
      %3487 = vmatprep.subr.bf16.mxu0 0
      %3488 = vmatpush1.bf16.msra.mxu0 %v3468
      %3489 = vmatprep.subr.bf16.mxu0 0
      %3490 = vmatpush1.bf16.msra.mxu0 %v3469
      %3491 = vmatprep.subr.bf16.mxu0 0
      %3492 = vmatpush1.bf16.msra.mxu0 0
      %3493 = vmatprep.subr.bf16.mxu0 0
      %3494 = vmatpush1.bf16.msra.mxu0 0
      %3495 = vmatprep.subr.bf16.mxu0 0
      %3496 = vmatpush1.bf16.msra.mxu0 0
      %3497 = vmatprep.subr.bf16.mxu0 0
      %3498 = vmatpush1.bf16.msra.mxu0 0
      %3499 = vmatprep.subr.bf16.mxu0 0
      %3500 = vmatpush1.bf16.msra.mxu0 0
      %3501 = vmatprep.subr.bf16.mxu0 0
      %3502 = vmatpush1.bf16.msra.mxu0 0
      %3503 = vmatprep.subr.bf16.mxu0 0
      %3504 = vmatpush1.bf16.msra.mxu0 0
      %3505 = vmatprep.subr.bf16.mxu0 0
      %3506 = vmatpush1.bf16.msra.mxu0 0
      %3507 = vmatprep.subr.bf16.mxu0 0
      %3508 = vmatpush1.bf16.msra.mxu0 0
      %3509 = vmatprep.subr.bf16.mxu0 0
      %3510 = vmatpush1.bf16.msra.mxu0 0
      %3511 = vmatprep.subr.bf16.mxu0 0
      %3512 = vmatpush1.bf16.msra.mxu0 0
      %3513 = vmatprep.subr.bf16.mxu0 0
      %3514 = vmatpush1.bf16.msra.mxu0 0
      %3515 = vmatprep.mubr.bf16.mxu0 0
      %3516 = vmatmul.mubr.bf16.gmra.mrb[0].mxu0 %v3475
      %v3517 = vpop.f32.mrb[0].mxu0
      %v3518 = vadd.f32 0.0, %v3517
      %v3519 = vpop.f32.mrb[0].mxu0
      %v3520 = vpop.f32.mrb[0].mxu0
      %v3521 = vadd.f32 0.0, %v3520
      %v3522 = vpop.f32.mrb[0].mxu0
      %3523 = vmatprep.mubr.bf16.mxu0 0
      %3524 = vmatmul.mubr.bf16.gmra.mrb[0].mxu0 %v3478
      %v3525 = vpop.f32.mrb[0].mxu0
      %v3526 = vadd.f32 0.0, %v3525
      %v3527 = vpop.f32.mrb[0].mxu0
      %v3528 = vpop.f32.mrb[0].mxu0
      %v3529 = vadd.f32 0.0, %v3528
      %v3530 = vpop.f32.mrb[0].mxu0
      %3531 = vmatprep.mubr.bf16.mxu0 0
      %3532 = vmatmul.mubr.bf16.gmra.mrb[0].mxu0 %v3481
      %v3533 = vpop.f32.mrb[0].mxu0
      %v3534 = vadd.f32 0.0, %v3533
      %v3535 = vpop.f32.mrb[0].mxu0
      %v3536 = vpop.f32.mrb[0].mxu0
      %v3537 = vadd.f32 0.0, %v3536
      %v3538 = vpop.f32.mrb[0].mxu0
      %3539 = vdwg.mxu0
      %v3540 = vadd.f32 %v3418, %v3518
      %v3541 = vadd.f32 %v3419, %v3521
      %v3542 = vadd.f32 %v3420, %v3526
      %v3543 = vadd.f32 %v3421, %v3529
      %v3544 = vadd.f32 %v3422, %v3534
      %v3545 = vadd.f32 %v3423, %v3537
      %v3546 = vpack.c.bf16 %v3059, %v3054
      %v3547 = vpack.c.bf16 %v3067, %v3062
      %v3548 = vpack.c.bf16 %v3075, %v3070
      %s3549 = scalar_lea.vmem %s7, 128
      %v3550 = vld [vmem:[%s3549] sm:$0xf]
      %v3551 = vld [vmem:[%s3549 + $0x4] sm:$0xf]
      %v3552 = vld [vmem:[%s3549 + $0x8] sm:$0xf]
      %v3553 = vld [vmem:[%s3549 + $0xc] sm:$0xf]
      %v3554 = vld [vmem:[%s3549 + $0x10] sm:$0xf]
      %v3555 = vld [vmem:[%s3549 + $0x14] sm:$0xf]
      %v3556 = vld [vmem:[%s3549 + $0x18] sm:$0xf]
      %v3557 = vld [vmem:[%s3549 + $0x1c] sm:$0xf]
      %v3566 = vunpack.c.l.b16 %v3550
      %v3567 = vunpack.c.l.b16 %v3551
      %v3568 = vunpack.c.l.b16 %v3552
      %v3569 = vunpack.c.l.b16 %v3553
      %v3570 = vunpack.c.l.b16 %v3554
      %v3571 = vunpack.c.l.b16 %v3555
      %v3572 = vunpack.c.l.b16 %v3556
      %v3573 = vunpack.c.l.b16 %v3557
      %v3574 = vpack.c.b16 %v3567, %v3566
      %v3575 = vpack.c.b16 %v3569, %v3568
      %v3576 = vpack.c.b16 %v3571, %v3570
      %v3577 = vpack.c.b16 %v3573, %v3572
      %v3583 = vsel %vm2432, %v3546, 0
      %v3586 = vsel %vm2432, %v3547, 0
      %v3589 = vsel %vm2432, %v3548, 0
      %3591 = vmatprep.subr.bf16.mxu0 0
      %3592 = vmatpush1.bf16.msra.mxu0 %v3574
      %3593 = vmatprep.subr.bf16.mxu0 0
      %3594 = vmatpush1.bf16.msra.mxu0 %v3575
      %3595 = vmatprep.subr.bf16.mxu0 0
      %3596 = vmatpush1.bf16.msra.mxu0 %v3576
      %3597 = vmatprep.subr.bf16.mxu0 0
      %3598 = vmatpush1.bf16.msra.mxu0 %v3577
      %3599 = vmatprep.subr.bf16.mxu0 0
      %3600 = vmatpush1.bf16.msra.mxu0 0
      %3601 = vmatprep.subr.bf16.mxu0 0
      %3602 = vmatpush1.bf16.msra.mxu0 0
      %3603 = vmatprep.subr.bf16.mxu0 0
      %3604 = vmatpush1.bf16.msra.mxu0 0
      %3605 = vmatprep.subr.bf16.mxu0 0
      %3606 = vmatpush1.bf16.msra.mxu0 0
      %3607 = vmatprep.subr.bf16.mxu0 0
      %3608 = vmatpush1.bf16.msra.mxu0 0
      %3609 = vmatprep.subr.bf16.mxu0 0
      %3610 = vmatpush1.bf16.msra.mxu0 0
      %3611 = vmatprep.subr.bf16.mxu0 0
      %3612 = vmatpush1.bf16.msra.mxu0 0
      %3613 = vmatprep.subr.bf16.mxu0 0
      %3614 = vmatpush1.bf16.msra.mxu0 0
      %3615 = vmatprep.subr.bf16.mxu0 0
      %3616 = vmatpush1.bf16.msra.mxu0 0
      %3617 = vmatprep.subr.bf16.mxu0 0
      %3618 = vmatpush1.bf16.msra.mxu0 0
      %3619 = vmatprep.subr.bf16.mxu0 0
      %3620 = vmatpush1.bf16.msra.mxu0 0
      %3621 = vmatprep.subr.bf16.mxu0 0
      %3622 = vmatpush1.bf16.msra.mxu0 0
      %3623 = vmatprep.mubr.bf16.mxu0 0
      %3624 = vmatmul.mubr.bf16.gmra.mrb[0].mxu0 %v3583
      %v3625 = vpop.f32.mrb[0].mxu0
      %v3626 = vadd.f32 0.0, %v3625
      %v3627 = vpop.f32.mrb[0].mxu0
      %v3628 = vpop.f32.mrb[0].mxu0
      %v3629 = vadd.f32 0.0, %v3628
      %v3630 = vpop.f32.mrb[0].mxu0
      %3631 = vmatprep.mubr.bf16.mxu0 0
      %3632 = vmatmul.mubr.bf16.gmra.mrb[0].mxu0 %v3586
      %v3633 = vpop.f32.mrb[0].mxu0
      %v3634 = vadd.f32 0.0, %v3633
      %v3635 = vpop.f32.mrb[0].mxu0
      %v3636 = vpop.f32.mrb[0].mxu0
      %v3637 = vadd.f32 0.0, %v3636
      %v3638 = vpop.f32.mrb[0].mxu0
      %3639 = vmatprep.mubr.bf16.mxu0 0
      %3640 = vmatmul.mubr.bf16.gmra.mrb[0].mxu0 %v3589
      %v3641 = vpop.f32.mrb[0].mxu0
      %v3642 = vadd.f32 0.0, %v3641
      %v3643 = vpop.f32.mrb[0].mxu0
      %v3644 = vpop.f32.mrb[0].mxu0
      %v3645 = vadd.f32 0.0, %v3644
      %v3646 = vpop.f32.mrb[0].mxu0
      %3647 = vdwg.mxu0
      %v3648 = vadd.f32 %v3540, %v3626
      %v3649 = vadd.f32 %v3541, %v3629
      %v3650 = vadd.f32 %v3542, %v3634
      %v3651 = vadd.f32 %v3543, %v3637
      %v3652 = vadd.f32 %v3544, %v3642
      %v3653 = vadd.f32 %v3545, %v3645
      %v3654 = vpack.c.bf16 %v3078, %v3078
      %s3655 = scalar_lea.vmem %s7, 160
      %v3656 = vld [vmem:[%s3655] sm:$0xf]
      %v3657 = vld [vmem:[%s3655 + $0x4] sm:$0xf]
      %v3658 = vld [vmem:[%s3655 + $0x8] sm:$0xf]
      %v3659 = vld [vmem:[%s3655 + $0xc] sm:$0xf]
      %v3660 = vld [vmem:[%s3655 + $0x10] sm:$0xf]
      %v3661 = vld [vmem:[%s3655 + $0x14] sm:$0xf]
      %v3662 = vld [vmem:[%s3655 + $0x18] sm:$0xf]
      %v3663 = vld [vmem:[%s3655 + $0x1c] sm:$0xf]
      %v3664 = vshrl.u32 %v3546, 16
      %v3666 = vshll.u32 %v3546, 16
      %v3668 = vrot.slane %v3666, 1
      %v3669 = vor.u32 %v3664, %v3668
      %v3670 = vshll.u32 %v3547, 16
      %v3672 = vrot.slane %v3670, 1
      %v3673 = vsel %vm581, %v3669, %v3672
      %v3674 = vshrl.u32 %v3547, 16
      %v3676 = vor.u32 %v3674, %v3672
      %v3677 = vshll.u32 %v3548, 16
      %v3679 = vrot.slane %v3677, 1
      %v3680 = vsel %vm581, %v3676, %v3679
      %v3681 = vshrl.u32 %v3548, 16
      %v3683 = vor.u32 %v3681, %v3679
      %v3685 = vshll.u32 %v3654, 16
      %v3687 = vrot.slane %v3685, 1
      %v3688 = vsel %vm581, %v3683, %v3687
      %v3697 = vunpack.c.l.b16 %v3656
      %v3698 = vunpack.c.l.b16 %v3657
      %v3699 = vunpack.c.l.b16 %v3658
      %v3700 = vunpack.c.l.b16 %v3659
      %v3701 = vunpack.c.l.b16 %v3660
      %v3702 = vunpack.c.l.b16 %v3661
      %v3703 = vunpack.c.l.b16 %v3662
      %v3704 = vunpack.c.l.b16 %v3663
      %v3705 = vpack.c.b16 %v3698, %v3697
      %v3706 = vpack.c.b16 %v3700, %v3699
      %v3707 = vpack.c.b16 %v3702, %v3701
      %v3708 = vpack.c.b16 %v3704, %v3703
      %v3714 = vsel %vm2432, %v3673, 0
      %v3717 = vsel %vm2432, %v3680, 0
      %v3720 = vsel %vm2432, %v3688, 0
      %3722 = vmatprep.subr.bf16.mxu0 0
      %3723 = vmatpush1.bf16.msra.mxu0 %v3705
      %3724 = vmatprep.subr.bf16.mxu0 0
      %3725 = vmatpush1.bf16.msra.mxu0 %v3706
      %3726 = vmatprep.subr.bf16.mxu0 0
      %3727 = vmatpush1.bf16.msra.mxu0 %v3707
      %3728 = vmatprep.subr.bf16.mxu0 0
      %3729 = vmatpush1.bf16.msra.mxu0 %v3708
      %3730 = vmatprep.subr.bf16.mxu0 0
      %3731 = vmatpush1.bf16.msra.mxu0 0
      %3732 = vmatprep.subr.bf16.mxu0 0
      %3733 = vmatpush1.bf16.msra.mxu0 0
      %3734 = vmatprep.subr.bf16.mxu0 0
      %3735 = vmatpush1.bf16.msra.mxu0 0
      %3736 = vmatprep.subr.bf16.mxu0 0
      %3737 = vmatpush1.bf16.msra.mxu0 0
      %3738 = vmatprep.subr.bf16.mxu0 0
      %3739 = vmatpush1.bf16.msra.mxu0 0
      %3740 = vmatprep.subr.bf16.mxu0 0
      %3741 = vmatpush1.bf16.msra.mxu0 0
      %3742 = vmatprep.subr.bf16.mxu0 0
      %3743 = vmatpush1.bf16.msra.mxu0 0
      %3744 = vmatprep.subr.bf16.mxu0 0
      %3745 = vmatpush1.bf16.msra.mxu0 0
      %3746 = vmatprep.subr.bf16.mxu0 0
      %3747 = vmatpush1.bf16.msra.mxu0 0
      %3748 = vmatprep.subr.bf16.mxu0 0
      %3749 = vmatpush1.bf16.msra.mxu0 0
      %3750 = vmatprep.subr.bf16.mxu0 0
      %3751 = vmatpush1.bf16.msra.mxu0 0
      %3752 = vmatprep.subr.bf16.mxu0 0
      %3753 = vmatpush1.bf16.msra.mxu0 0
      %3754 = vmatprep.mubr.bf16.mxu0 0
      %3755 = vmatmul.mubr.bf16.gmra.mrb[0].mxu0 %v3714
      %v3756 = vpop.f32.mrb[0].mxu0
      %v3757 = vadd.f32 0.0, %v3756
      %v3758 = vpop.f32.mrb[0].mxu0
      %v3759 = vpop.f32.mrb[0].mxu0
      %v3760 = vadd.f32 0.0, %v3759
      %v3761 = vpop.f32.mrb[0].mxu0
      %3762 = vmatprep.mubr.bf16.mxu0 0
      %3763 = vmatmul.mubr.bf16.gmra.mrb[0].mxu0 %v3717
      %v3764 = vpop.f32.mrb[0].mxu0
      %v3765 = vadd.f32 0.0, %v3764
      %v3766 = vpop.f32.mrb[0].mxu0
      %v3767 = vpop.f32.mrb[0].mxu0
      %v3768 = vadd.f32 0.0, %v3767
      %v3769 = vpop.f32.mrb[0].mxu0
      %3770 = vmatprep.mubr.bf16.mxu0 0
      %3771 = vmatmul.mubr.bf16.gmra.mrb[0].mxu0 %v3720
      %v3772 = vpop.f32.mrb[0].mxu0
      %v3773 = vadd.f32 0.0, %v3772
      %v3774 = vpop.f32.mrb[0].mxu0
      %v3775 = vpop.f32.mrb[0].mxu0
      %v3776 = vadd.f32 0.0, %v3775
      %v3777 = vpop.f32.mrb[0].mxu0
      %3778 = vdwg.mxu0
      %v3779 = vadd.f32 %v3648, %v3757
      %v3780 = vadd.f32 %v3649, %v3760
      %v3781 = vadd.f32 %v3650, %v3765
      %v3782 = vadd.f32 %v3651, %v3768
      %v3783 = vadd.f32 %v3652, %v3773
      %v3784 = vadd.f32 %v3653, %v3776
      %s3785 = scalar_lea.vmem %s7, 192
      %v3786 = vld [vmem:[%s3785] sm:$0xf]
      %v3787 = vld [vmem:[%s3785 + $0x4] sm:$0xf]
      %v3788 = vld [vmem:[%s3785 + $0x8] sm:$0xf]
      %v3789 = vld [vmem:[%s3785 + $0xc] sm:$0xf]
      %v3790 = vld [vmem:[%s3785 + $0x10] sm:$0xf]
      %v3791 = vld [vmem:[%s3785 + $0x14] sm:$0xf]
      %v3792 = vld [vmem:[%s3785 + $0x18] sm:$0xf]
      %v3793 = vld [vmem:[%s3785 + $0x1c] sm:$0xf]
      %v3798 = vrot.slane %v3546, 3
      %v3799 = vrot.slane %v3547, 3
      %v3800 = vsel %vm2716, %v3798, %v3799
      %v3801 = vrot.slane %v3548, 3
      %v3802 = vsel %vm2716, %v3799, %v3801
      %v3803 = vrot.slane %v3654, 3
      %v3804 = vsel %vm2716, %v3801, %v3803
      %v3813 = vunpack.c.l.b16 %v3786
      %v3814 = vunpack.c.l.b16 %v3787
      %v3815 = vunpack.c.l.b16 %v3788
      %v3816 = vunpack.c.l.b16 %v3789
      %v3817 = vunpack.c.l.b16 %v3790
      %v3818 = vunpack.c.l.b16 %v3791
      %v3819 = vunpack.c.l.b16 %v3792
      %v3820 = vunpack.c.l.b16 %v3793
      %v3821 = vpack.c.b16 %v3814, %v3813
      %v3822 = vpack.c.b16 %v3816, %v3815
      %v3823 = vpack.c.b16 %v3818, %v3817
      %v3824 = vpack.c.b16 %v3820, %v3819
      %v3830 = vsel %vm2432, %v3800, 0
      %v3833 = vsel %vm2432, %v3802, 0
      %v3836 = vsel %vm2432, %v3804, 0
      %3838 = vmatprep.subr.bf16.mxu0 0
      %3839 = vmatpush1.bf16.msra.mxu0 %v3821
      %3840 = vmatprep.subr.bf16.mxu0 0
      %3841 = vmatpush1.bf16.msra.mxu0 %v3822
      %3842 = vmatprep.subr.bf16.mxu0 0
      %3843 = vmatpush1.bf16.msra.mxu0 %v3823
      %3844 = vmatprep.subr.bf16.mxu0 0
      %3845 = vmatpush1.bf16.msra.mxu0 %v3824
      %3846 = vmatprep.subr.bf16.mxu0 0
      %3847 = vmatpush1.bf16.msra.mxu0 0
      %3848 = vmatprep.subr.bf16.mxu0 0
      %3849 = vmatpush1.bf16.msra.mxu0 0
      %3850 = vmatprep.subr.bf16.mxu0 0
      %3851 = vmatpush1.bf16.msra.mxu0 0
      %3852 = vmatprep.subr.bf16.mxu0 0
      %3853 = vmatpush1.bf16.msra.mxu0 0
      %3854 = vmatprep.subr.bf16.mxu0 0
      %3855 = vmatpush1.bf16.msra.mxu0 0
      %3856 = vmatprep.subr.bf16.mxu0 0
      %3857 = vmatpush1.bf16.msra.mxu0 0
      %3858 = vmatprep.subr.bf16.mxu0 0
      %3859 = vmatpush1.bf16.msra.mxu0 0
      %3860 = vmatprep.subr.bf16.mxu0 0
      %3861 = vmatpush1.bf16.msra.mxu0 0
      %3862 = vmatprep.subr.bf16.mxu0 0
      %3863 = vmatpush1.bf16.msra.mxu0 0
      %3864 = vmatprep.subr.bf16.mxu0 0
      %3865 = vmatpush1.bf16.msra.mxu0 0
      %3866 = vmatprep.subr.bf16.mxu0 0
      %3867 = vmatpush1.bf16.msra.mxu0 0
      %3868 = vmatprep.subr.bf16.mxu0 0
      %3869 = vmatpush1.bf16.msra.mxu0 0
      %3870 = vmatprep.mubr.bf16.mxu0 0
      %3871 = vmatmul.mubr.bf16.gmra.mrb[0].mxu0 %v3830
      %v3872 = vpop.f32.mrb[0].mxu0
      %v3873 = vadd.f32 0.0, %v3872
      %v3874 = vpop.f32.mrb[0].mxu0
      %v3875 = vpop.f32.mrb[0].mxu0
      %v3876 = vadd.f32 0.0, %v3875
      %v3877 = vpop.f32.mrb[0].mxu0
      %3878 = vmatprep.mubr.bf16.mxu0 0
      %3879 = vmatmul.mubr.bf16.gmra.mrb[0].mxu0 %v3833
      %v3880 = vpop.f32.mrb[0].mxu0
      %v3881 = vadd.f32 0.0, %v3880
      %v3882 = vpop.f32.mrb[0].mxu0
      %v3883 = vpop.f32.mrb[0].mxu0
      %v3884 = vadd.f32 0.0, %v3883
      %v3885 = vpop.f32.mrb[0].mxu0
      %3886 = vmatprep.mubr.bf16.mxu0 0
      %3887 = vmatmul.mubr.bf16.gmra.mrb[0].mxu0 %v3836
      %v3888 = vpop.f32.mrb[0].mxu0
      %v3889 = vadd.f32 0.0, %v3888
      %v3890 = vpop.f32.mrb[0].mxu0
      %v3891 = vpop.f32.mrb[0].mxu0
      %v3892 = vadd.f32 0.0, %v3891
      %v3893 = vpop.f32.mrb[0].mxu0
      %3894 = vdwg.mxu0
      %v3895 = vadd.f32 %v3779, %v3873
      %v3896 = vadd.f32 %v3780, %v3876
      %v3897 = vadd.f32 %v3781, %v3881
      %v3898 = vadd.f32 %v3782, %v3884
      %v3899 = vadd.f32 %v3783, %v3889
      %v3900 = vadd.f32 %v3784, %v3892
      %s3901 = scalar_lea.vmem %s7, 224
      %v3902 = vld [vmem:[%s3901] sm:$0xf]
      %v3903 = vld [vmem:[%s3901 + $0x4] sm:$0xf]
      %v3904 = vld [vmem:[%s3901 + $0x8] sm:$0xf]
      %v3905 = vld [vmem:[%s3901 + $0xc] sm:$0xf]
      %v3906 = vld [vmem:[%s3901 + $0x10] sm:$0xf]
      %v3907 = vld [vmem:[%s3901 + $0x14] sm:$0xf]
      %v3908 = vld [vmem:[%s3901 + $0x18] sm:$0xf]
      %v3909 = vld [vmem:[%s3901 + $0x1c] sm:$0xf]
      %v3910 = vrot.slane %v3664, 3
      %v3911 = vrot.slane %v3666, 4
      %v3912 = vor.u32 %v3910, %v3911
      %v3913 = vrot.slane %v3674, 3
      %v3914 = vrot.slane %v3670, 4
      %v3915 = vor.u32 %v3913, %v3914
      %v3916 = vsel %vm2842, %v3912, %v3915
      %v3917 = vrot.slane %v3681, 3
      %v3918 = vrot.slane %v3677, 4
      %v3919 = vor.u32 %v3917, %v3918
      %v3920 = vsel %vm2842, %v3915, %v3919
      %v3921 = vshrl.u32 %v3654, 16
      %v3923 = vrot.slane %v3921, 3
      %v3924 = vrot.slane %v3685, 4
      %v3925 = vor.u32 %v3923, %v3924
      %v3926 = vsel %vm2842, %v3919, %v3925
      %v3935 = vunpack.c.l.b16 %v3902
      %v3936 = vunpack.c.l.b16 %v3903
      %v3937 = vunpack.c.l.b16 %v3904
      %v3938 = vunpack.c.l.b16 %v3905
      %v3939 = vunpack.c.l.b16 %v3906
      %v3940 = vunpack.c.l.b16 %v3907
      %v3941 = vunpack.c.l.b16 %v3908
      %v3942 = vunpack.c.l.b16 %v3909
      %v3943 = vpack.c.b16 %v3936, %v3935
      %v3944 = vpack.c.b16 %v3938, %v3937
      %v3945 = vpack.c.b16 %v3940, %v3939
      %v3946 = vpack.c.b16 %v3942, %v3941
      %v3952 = vsel %vm2432, %v3916, 0
      %v3955 = vsel %vm2432, %v3920, 0
      %v3958 = vsel %vm2432, %v3926, 0
      %3960 = vmatprep.subr.bf16.mxu0 0
      %3961 = vmatpush1.bf16.msra.mxu0 %v3943
      %3962 = vmatprep.subr.bf16.mxu0 0
      %3963 = vmatpush1.bf16.msra.mxu0 %v3944
      %3964 = vmatprep.subr.bf16.mxu0 0
      %3965 = vmatpush1.bf16.msra.mxu0 %v3945
      %3966 = vmatprep.subr.bf16.mxu0 0
      %3967 = vmatpush1.bf16.msra.mxu0 %v3946
      %3968 = vmatprep.subr.bf16.mxu0 0
      %3969 = vmatpush1.bf16.msra.mxu0 0
      %3970 = vmatprep.subr.bf16.mxu0 0
      %3971 = vmatpush1.bf16.msra.mxu0 0
      %3972 = vmatprep.subr.bf16.mxu0 0
      %3973 = vmatpush1.bf16.msra.mxu0 0
      %3974 = vmatprep.subr.bf16.mxu0 0
      %3975 = vmatpush1.bf16.msra.mxu0 0
      %3976 = vmatprep.subr.bf16.mxu0 0
      %3977 = vmatpush1.bf16.msra.mxu0 0
      %3978 = vmatprep.subr.bf16.mxu0 0
      %3979 = vmatpush1.bf16.msra.mxu0 0
      %3980 = vmatprep.subr.bf16.mxu0 0
      %3981 = vmatpush1.bf16.msra.mxu0 0
      %3982 = vmatprep.subr.bf16.mxu0 0
      %3983 = vmatpush1.bf16.msra.mxu0 0
      %3984 = vmatprep.subr.bf16.mxu0 0
      %3985 = vmatpush1.bf16.msra.mxu0 0
      %3986 = vmatprep.subr.bf16.mxu0 0
      %3987 = vmatpush1.bf16.msra.mxu0 0
      %3988 = vmatprep.subr.bf16.mxu0 0
      %3989 = vmatpush1.bf16.msra.mxu0 0
      %3990 = vmatprep.subr.bf16.mxu0 0
      %3991 = vmatpush1.bf16.msra.mxu0 0
      %3992 = vmatprep.mubr.bf16.mxu0 0
      %3993 = vmatmul.mubr.bf16.gmra.mrb[0].mxu0 %v3952
      %v3994 = vpop.f32.mrb[0].mxu0
      %v3995 = vadd.f32 0.0, %v3994
      %v3996 = vpop.f32.mrb[0].mxu0
      %v3997 = vpop.f32.mrb[0].mxu0
      %v3998 = vadd.f32 0.0, %v3997
      %v3999 = vpop.f32.mrb[0].mxu0
      %4000 = vmatprep.mubr.bf16.mxu0 0
      %4001 = vmatmul.mubr.bf16.gmra.mrb[0].mxu0 %v3955
      %v4002 = vpop.f32.mrb[0].mxu0
      %v4003 = vadd.f32 0.0, %v4002
      %v4004 = vpop.f32.mrb[0].mxu0
      %v4005 = vpop.f32.mrb[0].mxu0
      %v4006 = vadd.f32 0.0, %v4005
      %v4007 = vpop.f32.mrb[0].mxu0
      %4008 = vmatprep.mubr.bf16.mxu0 0
      %4009 = vmatmul.mubr.bf16.gmra.mrb[0].mxu0 %v3958
      %v4010 = vpop.f32.mrb[0].mxu0
      %v4011 = vadd.f32 0.0, %v4010
      %v4012 = vpop.f32.mrb[0].mxu0
      %v4013 = vpop.f32.mrb[0].mxu0
      %v4014 = vadd.f32 0.0, %v4013
      %v4015 = vpop.f32.mrb[0].mxu0
      %4016 = vdwg.mxu0
      %v4017 = vadd.f32 %v3895, %v3995
      %v4018 = vadd.f32 %v3896, %v3998
      %v4019 = vadd.f32 %v3897, %v4003
      %v4020 = vadd.f32 %v3898, %v4006
      %v4021 = vadd.f32 %v3899, %v4011
      %v4022 = vadd.f32 %v3900, %v4014
      %v4023 = vpack.c.bf16 %v3078, %v3075
      %s4024 = scalar_lea.vmem %s7, 256
      %v4025 = vld [vmem:[%s4024] sm:$0xf]
      %v4026 = vld [vmem:[%s4024 + $0x4] sm:$0xf]
      %v4027 = vld [vmem:[%s4024 + $0x8] sm:$0xf]
      %v4028 = vld [vmem:[%s4024 + $0xc] sm:$0xf]
      %v4029 = vld [vmem:[%s4024 + $0x10] sm:$0xf]
      %v4030 = vld [vmem:[%s4024 + $0x14] sm:$0xf]
      %v4031 = vld [vmem:[%s4024 + $0x18] sm:$0xf]
      %v4032 = vld [vmem:[%s4024 + $0x1c] sm:$0xf]
      %v4041 = vunpack.c.l.b16 %v4025
      %v4042 = vunpack.c.l.b16 %v4026
      %v4043 = vunpack.c.l.b16 %v4027
      %v4044 = vunpack.c.l.b16 %v4028
      %v4045 = vunpack.c.l.b16 %v4029
      %v4046 = vunpack.c.l.b16 %v4030
      %v4047 = vunpack.c.l.b16 %v4031
      %v4048 = vunpack.c.l.b16 %v4032
      %v4049 = vpack.c.b16 %v4042, %v4041
      %v4050 = vpack.c.b16 %v4044, %v4043
      %v4051 = vpack.c.b16 %v4046, %v4045
      %v4052 = vpack.c.b16 %v4048, %v4047
      %v4058 = vsel %vm2432, %v4023, 0
      %4060 = vmatprep.subr.bf16.mxu0 0
      %4061 = vmatpush1.bf16.msra.mxu0 %v4049
      %4062 = vmatprep.subr.bf16.mxu0 0
      %4063 = vmatpush1.bf16.msra.mxu0 %v4050
      %4064 = vmatprep.subr.bf16.mxu0 0
      %4065 = vmatpush1.bf16.msra.mxu0 %v4051
      %4066 = vmatprep.subr.bf16.mxu0 0
      %4067 = vmatpush1.bf16.msra.mxu0 %v4052
      %4068 = vmatprep.subr.bf16.mxu0 0
      %4069 = vmatpush1.bf16.msra.mxu0 0
      %4070 = vmatprep.subr.bf16.mxu0 0
      %4071 = vmatpush1.bf16.msra.mxu0 0
      %4072 = vmatprep.subr.bf16.mxu0 0
      %4073 = vmatpush1.bf16.msra.mxu0 0
      %4074 = vmatprep.subr.bf16.mxu0 0
      %4075 = vmatpush1.bf16.msra.mxu0 0
      %4076 = vmatprep.subr.bf16.mxu0 0
      %4077 = vmatpush1.bf16.msra.mxu0 0
      %4078 = vmatprep.subr.bf16.mxu0 0
      %4079 = vmatpush1.bf16.msra.mxu0 0
      %4080 = vmatprep.subr.bf16.mxu0 0
      %4081 = vmatpush1.bf16.msra.mxu0 0
      %4082 = vmatprep.subr.bf16.mxu0 0
      %4083 = vmatpush1.bf16.msra.mxu0 0
      %4084 = vmatprep.subr.bf16.mxu0 0
      %4085 = vmatpush1.bf16.msra.mxu0 0
      %4086 = vmatprep.subr.bf16.mxu0 0
      %4087 = vmatpush1.bf16.msra.mxu0 0
      %4088 = vmatprep.subr.bf16.mxu0 0
      %4089 = vmatpush1.bf16.msra.mxu0 0
      %4090 = vmatprep.subr.bf16.mxu0 0
      %4091 = vmatpush1.bf16.msra.mxu0 0
      %4092 = vmatprep.mubr.bf16.mxu0 0
      %4093 = vmatmul.mubr.bf16.gmra.mrb[0].mxu0 %v3246
      %v4094 = vpop.f32.mrb[0].mxu0
      %v4095 = vadd.f32 0.0, %v4094
      %v4096 = vpop.f32.mrb[0].mxu0
      %v4097 = vpop.f32.mrb[0].mxu0
      %v4098 = vadd.f32 0.0, %v4097
      %v4099 = vpop.f32.mrb[0].mxu0
      %4100 = vmatprep.mubr.bf16.mxu0 0
      %4101 = vmatmul.mubr.bf16.gmra.mrb[0].mxu0 %v3248
      %v4102 = vpop.f32.mrb[0].mxu0
      %v4103 = vadd.f32 0.0, %v4102
      %v4104 = vpop.f32.mrb[0].mxu0
      %v4105 = vpop.f32.mrb[0].mxu0
      %v4106 = vadd.f32 0.0, %v4105
      %v4107 = vpop.f32.mrb[0].mxu0
      %4108 = vmatprep.mubr.bf16.mxu0 0
      %4109 = vmatmul.mubr.bf16.gmra.mrb[0].mxu0 %v4058
      %v4110 = vpop.f32.mrb[0].mxu0
      %v4111 = vadd.f32 0.0, %v4110
      %v4112 = vpop.f32.mrb[0].mxu0
      %v4113 = vpop.f32.mrb[0].mxu0
      %v4114 = vadd.f32 0.0, %v4113
      %v4115 = vpop.f32.mrb[0].mxu0
      %4116 = vdwg.mxu0
      %v4117 = vadd.f32 %v4017, %v4095
      %v4118 = vadd.f32 %v4018, %v4098
      %v4119 = vadd.f32 %v4019, %v4103
      %v4120 = vadd.f32 %v4020, %v4106
      %v4121 = vadd.f32 %v4021, %v4111
      %v4122 = vadd.f32 %v4022, %v4114
      %v4123 = vld [vmem:[%s8] sm:$0x1]
      %v4125 = vlaneseq
      %v4126 = vshrl.u32 %v4125, 7
      %v4127 = vsub.s32 0, %v4126
      %v4128 = vrot.slane %v4123, %v4127
      %v4130 = vadd.f32 %v4117, %v4128
      %v4131 = vadd.f32 %v4118, %v4128
      %v4132 = vadd.f32 %v4119, %v4128
      %v4133 = vadd.f32 %v4120, %v4128
      %v4134 = vadd.f32 %v4121, %v4128
      %v4135 = vadd.f32 %v4122, %v4128
      %v4136 = vmax.f32 %v4130, 0.0
      %v4137 = vmax.f32 %v4131, 0.0
      %v4138 = vmax.f32 %v4132, 0.0
      %v4139 = vmax.f32 %v4133, 0.0
      %v4140 = vmax.f32 %v4134, 0.0
      %v4141 = vmax.f32 %v4135, 0.0
      %4143 = vrot.lane.b32.xlu0 %v4137, 64
      %v4144 = vpop.permute.xlu0 %4143
      %4147 = vrot.lane.b32.xlu0 %v4139, 64
      %v4148 = vpop.permute.xlu0 %4147
      %4151 = vrot.lane.b32.xlu0 %v4141, 64
      %v4152 = vpop.permute.xlu0 %4151
      %v4154 = vsel %vm2432, %v4136, %v4144
      %v4155 = vsel %vm2432, %v4138, %v4148
      %v4156 = vsel %vm2432, %v4140, %v4152
      %v4160 = vrot.slane %v4154, 1
      %v4161 = vrot.slane %v4155, 1
      %v4162 = vrot.slane %v4156, 1
      %v4166 = vrot.slane %v4154, 2
      %v4167 = vrot.slane %v4155, 2
      %v4168 = vrot.slane %v4156, 2
      %v4172 = vrot.slane %v4154, 3
      %v4173 = vrot.slane %v4155, 3
      %v4174 = vrot.slane %v4156, 3
      %v4178 = vrot.slane %v4154, 4
      %v4179 = vrot.slane %v4155, 4
      %v4180 = vrot.slane %v4156, 4
      %v4184 = vrot.slane %v4154, 5
      %v4185 = vrot.slane %v4155, 5
      %v4186 = vrot.slane %v4156, 5
      %v4190 = vrot.slane %v4154, 6
      %v4191 = vrot.slane %v4155, 6
      %v4192 = vrot.slane %v4156, 6
      %v4196 = vrot.slane %v4154, 7
      %v4197 = vrot.slane %v4155, 7
      %v4198 = vrot.slane %v4156, 7
      %v4202 = vpack.c.bf16 %v4154, %v4154
      %v4203 = vpack.c.bf16 %v4155, %v4155
      %v4204 = vpack.c.bf16 %v4156, %v4156
      %v4205 = vpack.c.bf16 %v4160, %v4160
      %v4206 = vpack.c.bf16 %v4161, %v4161
      %v4207 = vpack.c.bf16 %v4162, %v4162
      %v4208 = vpack.c.bf16 %v4166, %v4166
      %v4209 = vpack.c.bf16 %v4167, %v4167
      %v4210 = vpack.c.bf16 %v4168, %v4168
      %v4211 = vpack.c.bf16 %v4172, %v4172
      %v4212 = vpack.c.bf16 %v4173, %v4173
      %v4213 = vpack.c.bf16 %v4174, %v4174
      %v4214 = vpack.c.bf16 %v4178, %v4178
      %v4215 = vpack.c.bf16 %v4179, %v4179
      %v4216 = vpack.c.bf16 %v4180, %v4180
      %v4217 = vpack.c.bf16 %v4184, %v4184
      %v4218 = vpack.c.bf16 %v4185, %v4185
      %v4219 = vpack.c.bf16 %v4186, %v4186
      %v4220 = vpack.c.bf16 %v4190, %v4190
      %v4221 = vpack.c.bf16 %v4191, %v4191
      %v4222 = vpack.c.bf16 %v4192, %v4192
      %v4223 = vpack.c.bf16 %v4196, %v4196
      %v4224 = vpack.c.bf16 %v4197, %v4197
      %v4225 = vpack.c.bf16 %v4198, %v4198
      %v4226 = vld [vmem:[%s9] sm:$0xff]
      %v4227 = vld [vmem:[%s9 + $0x8] sm:$0xff]
      %v4228 = vld [vmem:[%s9 + $0x10] sm:$0xff]
      %v4229 = vld [vmem:[%s9 + $0x18] sm:$0xff]
      %v4230 = vld [vmem:[%s9 + $0x20] sm:$0xff]
      %v4231 = vld [vmem:[%s9 + $0x28] sm:$0xff]
      %v4232 = vld [vmem:[%s9 + $0x30] sm:$0xff]
      %v4233 = vld [vmem:[%s9 + $0x38] sm:$0xff]
      %v4234 = vld [vmem:[%s9 + $0x40] sm:$0xff]
      %v4235 = vld [vmem:[%s9 + $0x48] sm:$0xff]
      %v4236 = vld [vmem:[%s9 + $0x50] sm:$0xff]
      %v4237 = vld [vmem:[%s9 + $0x58] sm:$0xff]
      %v4238 = vld [vmem:[%s9 + $0x60] sm:$0xff]
      %v4239 = vld [vmem:[%s9 + $0x68] sm:$0xff]
      %v4240 = vld [vmem:[%s9 + $0x70] sm:$0xff]
      %v4241 = vld [vmem:[%s9 + $0x78] sm:$0xff]
      %v4242 = vld [vmem:[%s9 + $0x80] sm:$0xff]
      %v4243 = vld [vmem:[%s9 + $0x88] sm:$0xff]
      %v4244 = vld [vmem:[%s9 + $0x90] sm:$0xff]
      %v4245 = vld [vmem:[%s9 + $0x98] sm:$0xff]
      %v4246 = vld [vmem:[%s9 + $0xa0] sm:$0xff]
      %v4247 = vld [vmem:[%s9 + $0xa8] sm:$0xff]
      %v4248 = vld [vmem:[%s9 + $0xb0] sm:$0xff]
      %v4249 = vld [vmem:[%s9 + $0xb8] sm:$0xff]
      %v4250 = vld [vmem:[%s9 + $0xc0] sm:$0xff]
      %v4251 = vld [vmem:[%s9 + $0xc8] sm:$0xff]
      %v4252 = vld [vmem:[%s9 + $0xd0] sm:$0xff]
      %v4253 = vld [vmem:[%s9 + $0xd8] sm:$0xff]
      %v4254 = vld [vmem:[%s9 + $0xe0] sm:$0xff]
      %v4255 = vld [vmem:[%s9 + $0xe8] sm:$0xff]
      %v4256 = vld [vmem:[%s9 + $0xf0] sm:$0xff]
      %v4257 = vld [vmem:[%s9 + $0xf8] sm:$0xff]
      %v4258 = vld [vmem:[%s9 + $0x100] sm:$0xff]
      %v4259 = vld [vmem:[%s9 + $0x108] sm:$0xff]
      %v4260 = vld [vmem:[%s9 + $0x110] sm:$0xff]
      %v4261 = vld [vmem:[%s9 + $0x118] sm:$0xff]
      %v4262 = vld [vmem:[%s9 + $0x120] sm:$0xff]
      %v4263 = vld [vmem:[%s9 + $0x128] sm:$0xff]
      %v4264 = vld [vmem:[%s9 + $0x130] sm:$0xff]
      %v4265 = vld [vmem:[%s9 + $0x138] sm:$0xff]
      %v4266 = vld [vmem:[%s9 + $0x140] sm:$0xff]
      %v4267 = vld [vmem:[%s9 + $0x148] sm:$0xff]
      %v4268 = vld [vmem:[%s9 + $0x150] sm:$0xff]
      %v4269 = vld [vmem:[%s9 + $0x158] sm:$0xff]
      %v4270 = vld [vmem:[%s9 + $0x160] sm:$0xff]
      %v4271 = vld [vmem:[%s9 + $0x168] sm:$0xff]
      %v4272 = vld [vmem:[%s9 + $0x170] sm:$0xff]
      %v4273 = vld [vmem:[%s9 + $0x178] sm:$0xff]
      %v4274 = vld [vmem:[%s9 + $0x180] sm:$0xff]
      %v4275 = vld [vmem:[%s9 + $0x188] sm:$0xff]
      %v4276 = vld [vmem:[%s9 + $0x190] sm:$0xff]
      %v4277 = vld [vmem:[%s9 + $0x198] sm:$0xff]
      %v4278 = vld [vmem:[%s9 + $0x1a0] sm:$0xff]
      %v4279 = vld [vmem:[%s9 + $0x1a8] sm:$0xff]
      %v4280 = vld [vmem:[%s9 + $0x1b0] sm:$0xff]
      %v4281 = vld [vmem:[%s9 + $0x1b8] sm:$0xff]
      %v4282 = vld [vmem:[%s9 + $0x1c0] sm:$0xff]
      %v4283 = vld [vmem:[%s9 + $0x1c8] sm:$0xff]
      %v4284 = vld [vmem:[%s9 + $0x1d0] sm:$0xff]
      %v4285 = vld [vmem:[%s9 + $0x1d8] sm:$0xff]
      %v4286 = vld [vmem:[%s9 + $0x1e0] sm:$0xff]
      %v4287 = vld [vmem:[%s9 + $0x1e8] sm:$0xff]
      %v4288 = vld [vmem:[%s9 + $0x1f0] sm:$0xff]
      %v4289 = vld [vmem:[%s9 + $0x1f8] sm:$0xff]
      %v4290 = vld [vmem:[%s9 + $0x200] sm:$0xff]
      %v4291 = vld [vmem:[%s9 + $0x208] sm:$0xff]
      %v4292 = vld [vmem:[%s9 + $0x210] sm:$0xff]
      %v4293 = vld [vmem:[%s9 + $0x218] sm:$0xff]
      %v4294 = vld [vmem:[%s9 + $0x220] sm:$0xff]
      %v4295 = vld [vmem:[%s9 + $0x228] sm:$0xff]
      %v4296 = vld [vmem:[%s9 + $0x230] sm:$0xff]
      %v4297 = vld [vmem:[%s9 + $0x238] sm:$0xff]
      %v4298 = vld [vmem:[%s9 + $0x240] sm:$0xff]
      %v4299 = vld [vmem:[%s9 + $0x248] sm:$0xff]
      %v4300 = vld [vmem:[%s9 + $0x250] sm:$0xff]
      %v4301 = vld [vmem:[%s9 + $0x258] sm:$0xff]
      %v4302 = vld [vmem:[%s9 + $0x260] sm:$0xff]
      %v4303 = vld [vmem:[%s9 + $0x268] sm:$0xff]
      %v4304 = vld [vmem:[%s9 + $0x270] sm:$0xff]
      %v4305 = vld [vmem:[%s9 + $0x278] sm:$0xff]
      %v4306 = vld [vmem:[%s9 + $0x280] sm:$0xff]
      %v4307 = vld [vmem:[%s9 + $0x288] sm:$0xff]
      %v4308 = vld [vmem:[%s9 + $0x290] sm:$0xff]
      %v4309 = vld [vmem:[%s9 + $0x298] sm:$0xff]
      %v4310 = vld [vmem:[%s9 + $0x2a0] sm:$0xff]
      %v4311 = vld [vmem:[%s9 + $0x2a8] sm:$0xff]
      %v4312 = vld [vmem:[%s9 + $0x2b0] sm:$0xff]
      %v4313 = vld [vmem:[%s9 + $0x2b8] sm:$0xff]
      %v4314 = vld [vmem:[%s9 + $0x2c0] sm:$0xff]
      %v4315 = vld [vmem:[%s9 + $0x2c8] sm:$0xff]
      %v4316 = vld [vmem:[%s9 + $0x2d0] sm:$0xff]
      %v4317 = vld [vmem:[%s9 + $0x2d8] sm:$0xff]
      %v4318 = vld [vmem:[%s9 + $0x2e0] sm:$0xff]
      %v4319 = vld [vmem:[%s9 + $0x2e8] sm:$0xff]
      %v4320 = vld [vmem:[%s9 + $0x2f0] sm:$0xff]
      %v4321 = vld [vmem:[%s9 + $0x2f8] sm:$0xff]
      %v4322 = vld [vmem:[%s9 + $0x300] sm:$0xff]
      %v4323 = vld [vmem:[%s9 + $0x308] sm:$0xff]
      %v4324 = vld [vmem:[%s9 + $0x310] sm:$0xff]
      %v4325 = vld [vmem:[%s9 + $0x318] sm:$0xff]
      %v4326 = vld [vmem:[%s9 + $0x320] sm:$0xff]
      %v4327 = vld [vmem:[%s9 + $0x328] sm:$0xff]
      %v4328 = vld [vmem:[%s9 + $0x330] sm:$0xff]
      %v4329 = vld [vmem:[%s9 + $0x338] sm:$0xff]
      %v4330 = vld [vmem:[%s9 + $0x340] sm:$0xff]
      %v4331 = vld [vmem:[%s9 + $0x348] sm:$0xff]
      %v4332 = vld [vmem:[%s9 + $0x350] sm:$0xff]
      %v4333 = vld [vmem:[%s9 + $0x358] sm:$0xff]
      %v4334 = vld [vmem:[%s9 + $0x360] sm:$0xff]
      %v4335 = vld [vmem:[%s9 + $0x368] sm:$0xff]
      %v4336 = vld [vmem:[%s9 + $0x370] sm:$0xff]
      %v4337 = vld [vmem:[%s9 + $0x378] sm:$0xff]
      %v4338 = vld [vmem:[%s9 + $0x380] sm:$0xff]
      %v4339 = vld [vmem:[%s9 + $0x388] sm:$0xff]
      %v4340 = vld [vmem:[%s9 + $0x390] sm:$0xff]
      %v4341 = vld [vmem:[%s9 + $0x398] sm:$0xff]
      %v4342 = vld [vmem:[%s9 + $0x3a0] sm:$0xff]
      %v4343 = vld [vmem:[%s9 + $0x3a8] sm:$0xff]
      %v4344 = vld [vmem:[%s9 + $0x3b0] sm:$0xff]
      %v4345 = vld [vmem:[%s9 + $0x3b8] sm:$0xff]
      %v4346 = vld [vmem:[%s9 + $0x3c0] sm:$0xff]
      %v4347 = vld [vmem:[%s9 + $0x3c8] sm:$0xff]
      %v4348 = vld [vmem:[%s9 + $0x3d0] sm:$0xff]
      %v4349 = vld [vmem:[%s9 + $0x3d8] sm:$0xff]
      %v4350 = vld [vmem:[%s9 + $0x3e0] sm:$0xff]
      %v4351 = vld [vmem:[%s9 + $0x3e8] sm:$0xff]
      %v4352 = vld [vmem:[%s9 + $0x3f0] sm:$0xff]
      %v4353 = vld [vmem:[%s9 + $0x3f8] sm:$0xff]
      %v4354 = vld [vmem:[%s9 + $0x400] sm:$0xff]
      %v4355 = vld [vmem:[%s9 + $0x408] sm:$0xff]
      %v4356 = vld [vmem:[%s9 + $0x410] sm:$0xff]
      %v4357 = vld [vmem:[%s9 + $0x418] sm:$0xff]
      %v4358 = vld [vmem:[%s9 + $0x420] sm:$0xff]
      %v4359 = vld [vmem:[%s9 + $0x428] sm:$0xff]
      %v4360 = vld [vmem:[%s9 + $0x430] sm:$0xff]
      %v4361 = vld [vmem:[%s9 + $0x438] sm:$0xff]
      %v4362 = vld [vmem:[%s9 + $0x440] sm:$0xff]
      %v4363 = vld [vmem:[%s9 + $0x448] sm:$0xff]
      %v4364 = vld [vmem:[%s9 + $0x450] sm:$0xff]
      %v4365 = vld [vmem:[%s9 + $0x458] sm:$0xff]
      %v4366 = vld [vmem:[%s9 + $0x460] sm:$0xff]
      %v4367 = vld [vmem:[%s9 + $0x468] sm:$0xff]
      %v4368 = vld [vmem:[%s9 + $0x470] sm:$0xff]
      %v4369 = vld [vmem:[%s9 + $0x478] sm:$0xff]
      %v4370 = vld [vmem:[%s9 + $0x480] sm:$0xff]
      %v4371 = vld [vmem:[%s9 + $0x488] sm:$0xff]
      %v4372 = vld [vmem:[%s9 + $0x490] sm:$0xff]
      %v4373 = vld [vmem:[%s9 + $0x498] sm:$0xff]
      %v4374 = vld [vmem:[%s9 + $0x4a0] sm:$0xff]
      %v4375 = vld [vmem:[%s9 + $0x4a8] sm:$0xff]
      %v4376 = vld [vmem:[%s9 + $0x4b0] sm:$0xff]
      %v4377 = vld [vmem:[%s9 + $0x4b8] sm:$0xff]
      %v4378 = vld [vmem:[%s9 + $0x4c0] sm:$0xff]
      %v4379 = vld [vmem:[%s9 + $0x4c8] sm:$0xff]
      %v4380 = vld [vmem:[%s9 + $0x4d0] sm:$0xff]
      %v4381 = vld [vmem:[%s9 + $0x4d8] sm:$0xff]
      %v4382 = vld [vmem:[%s9 + $0x4e0] sm:$0xff]
      %v4383 = vld [vmem:[%s9 + $0x4e8] sm:$0xff]
      %v4384 = vld [vmem:[%s9 + $0x4f0] sm:$0xff]
      %v4385 = vld [vmem:[%s9 + $0x4f8] sm:$0xff]
      %v4386 = vld [vmem:[%s9 + $0x500] sm:$0xff]
      %v4387 = vld [vmem:[%s9 + $0x508] sm:$0xff]
      %v4388 = vld [vmem:[%s9 + $0x510] sm:$0xff]
      %v4389 = vld [vmem:[%s9 + $0x518] sm:$0xff]
      %v4390 = vld [vmem:[%s9 + $0x520] sm:$0xff]
      %v4391 = vld [vmem:[%s9 + $0x528] sm:$0xff]
      %v4392 = vld [vmem:[%s9 + $0x530] sm:$0xff]
      %v4393 = vld [vmem:[%s9 + $0x538] sm:$0xff]
      %v4394 = vld [vmem:[%s9 + $0x540] sm:$0xff]
      %v4395 = vld [vmem:[%s9 + $0x548] sm:$0xff]
      %v4396 = vld [vmem:[%s9 + $0x550] sm:$0xff]
      %v4397 = vld [vmem:[%s9 + $0x558] sm:$0xff]
      %v4398 = vld [vmem:[%s9 + $0x560] sm:$0xff]
      %v4399 = vld [vmem:[%s9 + $0x568] sm:$0xff]
      %v4400 = vld [vmem:[%s9 + $0x570] sm:$0xff]
      %v4401 = vld [vmem:[%s9 + $0x578] sm:$0xff]
      %v4402 = vld [vmem:[%s9 + $0x580] sm:$0xff]
      %v4403 = vld [vmem:[%s9 + $0x588] sm:$0xff]
      %v4404 = vld [vmem:[%s9 + $0x590] sm:$0xff]
      %v4405 = vld [vmem:[%s9 + $0x598] sm:$0xff]
      %v4406 = vld [vmem:[%s9 + $0x5a0] sm:$0xff]
      %v4407 = vld [vmem:[%s9 + $0x5a8] sm:$0xff]
      %v4408 = vld [vmem:[%s9 + $0x5b0] sm:$0xff]
      %v4409 = vld [vmem:[%s9 + $0x5b8] sm:$0xff]
      %v4410 = vld [vmem:[%s9 + $0x5c0] sm:$0xff]
      %v4411 = vld [vmem:[%s9 + $0x5c8] sm:$0xff]
      %v4412 = vld [vmem:[%s9 + $0x5d0] sm:$0xff]
      %v4413 = vld [vmem:[%s9 + $0x5d8] sm:$0xff]
      %v4414 = vld [vmem:[%s9 + $0x5e0] sm:$0xff]
      %v4415 = vld [vmem:[%s9 + $0x5e8] sm:$0xff]
      %v4416 = vld [vmem:[%s9 + $0x5f0] sm:$0xff]
      %v4417 = vld [vmem:[%s9 + $0x5f8] sm:$0xff]
      %v4418 = vld [vmem:[%s9 + $0x600] sm:$0xff]
      %v4419 = vld [vmem:[%s9 + $0x608] sm:$0xff]
      %v4420 = vld [vmem:[%s9 + $0x610] sm:$0xff]
      %v4421 = vld [vmem:[%s9 + $0x618] sm:$0xff]
      %v4422 = vld [vmem:[%s9 + $0x620] sm:$0xff]
      %v4423 = vld [vmem:[%s9 + $0x628] sm:$0xff]
      %v4424 = vld [vmem:[%s9 + $0x630] sm:$0xff]
      %v4425 = vld [vmem:[%s9 + $0x638] sm:$0xff]
      %v4426 = vld [vmem:[%s9 + $0x640] sm:$0xff]
      %v4427 = vld [vmem:[%s9 + $0x648] sm:$0xff]
      %v4428 = vld [vmem:[%s9 + $0x650] sm:$0xff]
      %v4429 = vld [vmem:[%s9 + $0x658] sm:$0xff]
      %v4430 = vld [vmem:[%s9 + $0x660] sm:$0xff]
      %v4431 = vld [vmem:[%s9 + $0x668] sm:$0xff]
      %v4432 = vld [vmem:[%s9 + $0x670] sm:$0xff]
      %v4433 = vld [vmem:[%s9 + $0x678] sm:$0xff]
      %v4434 = vld [vmem:[%s9 + $0x680] sm:$0xff]
      %v4435 = vld [vmem:[%s9 + $0x688] sm:$0xff]
      %v4436 = vld [vmem:[%s9 + $0x690] sm:$0xff]
      %v4437 = vld [vmem:[%s9 + $0x698] sm:$0xff]
      %v4438 = vld [vmem:[%s9 + $0x6a0] sm:$0xff]
      %v4439 = vld [vmem:[%s9 + $0x6a8] sm:$0xff]
      %v4440 = vld [vmem:[%s9 + $0x6b0] sm:$0xff]
      %v4441 = vld [vmem:[%s9 + $0x6b8] sm:$0xff]
      %v4442 = vld [vmem:[%s9 + $0x6c0] sm:$0xff]
      %v4443 = vld [vmem:[%s9 + $0x6c8] sm:$0xff]
      %v4444 = vld [vmem:[%s9 + $0x6d0] sm:$0xff]
      %v4445 = vld [vmem:[%s9 + $0x6d8] sm:$0xff]
      %v4446 = vld [vmem:[%s9 + $0x6e0] sm:$0xff]
      %v4447 = vld [vmem:[%s9 + $0x6e8] sm:$0xff]
      %v4448 = vld [vmem:[%s9 + $0x6f0] sm:$0xff]
      %v4449 = vld [vmem:[%s9 + $0x6f8] sm:$0xff]
      %v4450 = vld [vmem:[%s9 + $0x700] sm:$0xff]
      %v4451 = vld [vmem:[%s9 + $0x708] sm:$0xff]
      %v4452 = vld [vmem:[%s9 + $0x710] sm:$0xff]
      %v4453 = vld [vmem:[%s9 + $0x718] sm:$0xff]
      %v4454 = vld [vmem:[%s9 + $0x720] sm:$0xff]
      %v4455 = vld [vmem:[%s9 + $0x728] sm:$0xff]
      %v4456 = vld [vmem:[%s9 + $0x730] sm:$0xff]
      %v4457 = vld [vmem:[%s9 + $0x738] sm:$0xff]
      %v4458 = vld [vmem:[%s9 + $0x740] sm:$0xff]
      %v4459 = vld [vmem:[%s9 + $0x748] sm:$0xff]
      %v4460 = vld [vmem:[%s9 + $0x750] sm:$0xff]
      %v4461 = vld [vmem:[%s9 + $0x758] sm:$0xff]
      %v4462 = vld [vmem:[%s9 + $0x760] sm:$0xff]
      %v4463 = vld [vmem:[%s9 + $0x768] sm:$0xff]
      %v4464 = vld [vmem:[%s9 + $0x770] sm:$0xff]
      %v4465 = vld [vmem:[%s9 + $0x778] sm:$0xff]
      %v4466 = vld [vmem:[%s9 + $0x780] sm:$0xff]
      %v4467 = vld [vmem:[%s9 + $0x788] sm:$0xff]
      %v4468 = vld [vmem:[%s9 + $0x790] sm:$0xff]
      %v4469 = vld [vmem:[%s9 + $0x798] sm:$0xff]
      %v4470 = vld [vmem:[%s9 + $0x7a0] sm:$0xff]
      %v4471 = vld [vmem:[%s9 + $0x7a8] sm:$0xff]
      %v4472 = vld [vmem:[%s9 + $0x7b0] sm:$0xff]
      %v4473 = vld [vmem:[%s9 + $0x7b8] sm:$0xff]
      %v4474 = vld [vmem:[%s9 + $0x7c0] sm:$0xff]
      %v4475 = vld [vmem:[%s9 + $0x7c8] sm:$0xff]
      %v4476 = vld [vmem:[%s9 + $0x7d0] sm:$0xff]
      %v4477 = vld [vmem:[%s9 + $0x7d8] sm:$0xff]
      %v4478 = vld [vmem:[%s9 + $0x7e0] sm:$0xff]
      %v4479 = vld [vmem:[%s9 + $0x7e8] sm:$0xff]
      %v4480 = vld [vmem:[%s9 + $0x7f0] sm:$0xff]
      %v4481 = vld [vmem:[%s9 + $0x7f8] sm:$0xff]
      %v4482 = vld [vmem:[%s9 + $0x800] sm:$0xff]
      %v4483 = vld [vmem:[%s9 + $0x808] sm:$0xff]
      %v4484 = vld [vmem:[%s9 + $0x810] sm:$0xff]
      %v4485 = vld [vmem:[%s9 + $0x818] sm:$0xff]
      %v4486 = vld [vmem:[%s9 + $0x820] sm:$0xff]
      %v4487 = vld [vmem:[%s9 + $0x828] sm:$0xff]
      %v4488 = vld [vmem:[%s9 + $0x830] sm:$0xff]
      %v4489 = vld [vmem:[%s9 + $0x838] sm:$0xff]
      %v4490 = vld [vmem:[%s9 + $0x840] sm:$0xff]
      %v4491 = vld [vmem:[%s9 + $0x848] sm:$0xff]
      %v4492 = vld [vmem:[%s9 + $0x850] sm:$0xff]
      %v4493 = vld [vmem:[%s9 + $0x858] sm:$0xff]
      %v4494 = vld [vmem:[%s9 + $0x860] sm:$0xff]
      %v4495 = vld [vmem:[%s9 + $0x868] sm:$0xff]
      %v4496 = vld [vmem:[%s9 + $0x870] sm:$0xff]
      %v4497 = vld [vmem:[%s9 + $0x878] sm:$0xff]
      %v4498 = vld [vmem:[%s9 + $0x880] sm:$0xff]
      %v4499 = vld [vmem:[%s9 + $0x888] sm:$0xff]
      %v4500 = vld [vmem:[%s9 + $0x890] sm:$0xff]
      %v4501 = vld [vmem:[%s9 + $0x898] sm:$0xff]
      %v4502 = vld [vmem:[%s9 + $0x8a0] sm:$0xff]
      %v4503 = vld [vmem:[%s9 + $0x8a8] sm:$0xff]
      %v4504 = vld [vmem:[%s9 + $0x8b0] sm:$0xff]
      %v4505 = vld [vmem:[%s9 + $0x8b8] sm:$0xff]
      %v4506 = vld [vmem:[%s9 + $0x8c0] sm:$0xff]
      %v4507 = vld [vmem:[%s9 + $0x8c8] sm:$0xff]
      %v4508 = vld [vmem:[%s9 + $0x8d0] sm:$0xff]
      %v4509 = vld [vmem:[%s9 + $0x8d8] sm:$0xff]
      %v4510 = vld [vmem:[%s9 + $0x8e0] sm:$0xff]
      %v4511 = vld [vmem:[%s9 + $0x8e8] sm:$0xff]
      %v4512 = vld [vmem:[%s9 + $0x8f0] sm:$0xff]
      %v4513 = vld [vmem:[%s9 + $0x8f8] sm:$0xff]
      %v4514 = vld [vmem:[%s9 + $0x900] sm:$0xff]
      %v4515 = vld [vmem:[%s9 + $0x908] sm:$0xff]
      %v4516 = vld [vmem:[%s9 + $0x910] sm:$0xff]
      %v4517 = vld [vmem:[%s9 + $0x918] sm:$0xff]
      %v4518 = vld [vmem:[%s9 + $0x920] sm:$0xff]
      %v4519 = vld [vmem:[%s9 + $0x928] sm:$0xff]
      %v4520 = vld [vmem:[%s9 + $0x930] sm:$0xff]
      %v4521 = vld [vmem:[%s9 + $0x938] sm:$0xff]
      %v4522 = vld [vmem:[%s9 + $0x940] sm:$0xff]
      %v4523 = vld [vmem:[%s9 + $0x948] sm:$0xff]
      %v4524 = vld [vmem:[%s9 + $0x950] sm:$0xff]
      %v4525 = vld [vmem:[%s9 + $0x958] sm:$0xff]
      %v4526 = vld [vmem:[%s9 + $0x960] sm:$0xff]
      %v4527 = vld [vmem:[%s9 + $0x968] sm:$0xff]
      %v4528 = vld [vmem:[%s9 + $0x970] sm:$0xff]
      %v4529 = vld [vmem:[%s9 + $0x978] sm:$0xff]
      %v4530 = vld [vmem:[%s9 + $0x980] sm:$0xff]
      %v4531 = vld [vmem:[%s9 + $0x988] sm:$0xff]
      %v4532 = vld [vmem:[%s9 + $0x990] sm:$0xff]
      %v4533 = vld [vmem:[%s9 + $0x998] sm:$0xff]
      %v4534 = vld [vmem:[%s9 + $0x9a0] sm:$0xff]
      %v4535 = vld [vmem:[%s9 + $0x9a8] sm:$0xff]
      %v4536 = vld [vmem:[%s9 + $0x9b0] sm:$0xff]
      %v4537 = vld [vmem:[%s9 + $0x9b8] sm:$0xff]
      %v4538 = vld [vmem:[%s9 + $0x9c0] sm:$0xff]
      %v4539 = vld [vmem:[%s9 + $0x9c8] sm:$0xff]
      %v4540 = vld [vmem:[%s9 + $0x9d0] sm:$0xff]
      %v4541 = vld [vmem:[%s9 + $0x9d8] sm:$0xff]
      %v4542 = vld [vmem:[%s9 + $0x9e0] sm:$0xff]
      %v4543 = vld [vmem:[%s9 + $0x9e8] sm:$0xff]
      %v4544 = vld [vmem:[%s9 + $0x9f0] sm:$0xff]
      %v4545 = vld [vmem:[%s9 + $0x9f8] sm:$0xff]
      %v4546 = vld [vmem:[%s9 + $0xa00] sm:$0xff]
      %v4547 = vld [vmem:[%s9 + $0xa08] sm:$0xff]
      %v4548 = vld [vmem:[%s9 + $0xa10] sm:$0xff]
      %v4549 = vld [vmem:[%s9 + $0xa18] sm:$0xff]
      %v4550 = vld [vmem:[%s9 + $0xa20] sm:$0xff]
      %v4551 = vld [vmem:[%s9 + $0xa28] sm:$0xff]
      %v4552 = vld [vmem:[%s9 + $0xa30] sm:$0xff]
      %v4553 = vld [vmem:[%s9 + $0xa38] sm:$0xff]
      %v4554 = vld [vmem:[%s9 + $0xa40] sm:$0xff]
      %v4555 = vld [vmem:[%s9 + $0xa48] sm:$0xff]
      %v4556 = vld [vmem:[%s9 + $0xa50] sm:$0xff]
      %v4557 = vld [vmem:[%s9 + $0xa58] sm:$0xff]
      %v4558 = vld [vmem:[%s9 + $0xa60] sm:$0xff]
      %v4559 = vld [vmem:[%s9 + $0xa68] sm:$0xff]
      %v4560 = vld [vmem:[%s9 + $0xa70] sm:$0xff]
      %v4561 = vld [vmem:[%s9 + $0xa78] sm:$0xff]
      %v4562 = vld [vmem:[%s9 + $0xa80] sm:$0xff]
      %v4563 = vld [vmem:[%s9 + $0xa88] sm:$0xff]
      %v4564 = vld [vmem:[%s9 + $0xa90] sm:$0xff]
      %v4565 = vld [vmem:[%s9 + $0xa98] sm:$0xff]
      %v4566 = vld [vmem:[%s9 + $0xaa0] sm:$0xff]
      %v4567 = vld [vmem:[%s9 + $0xaa8] sm:$0xff]
      %v4568 = vld [vmem:[%s9 + $0xab0] sm:$0xff]
      %v4569 = vld [vmem:[%s9 + $0xab8] sm:$0xff]
      %v4570 = vld [vmem:[%s9 + $0xac0] sm:$0xff]
      %v4571 = vld [vmem:[%s9 + $0xac8] sm:$0xff]
      %v4572 = vld [vmem:[%s9 + $0xad0] sm:$0xff]
      %v4573 = vld [vmem:[%s9 + $0xad8] sm:$0xff]
      %v4574 = vld [vmem:[%s9 + $0xae0] sm:$0xff]
      %v4575 = vld [vmem:[%s9 + $0xae8] sm:$0xff]
      %v4576 = vld [vmem:[%s9 + $0xaf0] sm:$0xff]
      %v4577 = vld [vmem:[%s9 + $0xaf8] sm:$0xff]
      %v4578 = vld [vmem:[%s9 + $0xb00] sm:$0xff]
      %v4579 = vld [vmem:[%s9 + $0xb08] sm:$0xff]
      %v4580 = vld [vmem:[%s9 + $0xb10] sm:$0xff]
      %v4581 = vld [vmem:[%s9 + $0xb18] sm:$0xff]
      %v4582 = vld [vmem:[%s9 + $0xb20] sm:$0xff]
      %v4583 = vld [vmem:[%s9 + $0xb28] sm:$0xff]
      %v4584 = vld [vmem:[%s9 + $0xb30] sm:$0xff]
      %v4585 = vld [vmem:[%s9 + $0xb38] sm:$0xff]
      %v4586 = vld [vmem:[%s9 + $0xb40] sm:$0xff]
      %v4587 = vld [vmem:[%s9 + $0xb48] sm:$0xff]
      %v4588 = vld [vmem:[%s9 + $0xb50] sm:$0xff]
      %v4589 = vld [vmem:[%s9 + $0xb58] sm:$0xff]
      %v4590 = vld [vmem:[%s9 + $0xb60] sm:$0xff]
      %v4591 = vld [vmem:[%s9 + $0xb68] sm:$0xff]
      %v4592 = vld [vmem:[%s9 + $0xb70] sm:$0xff]
      %v4593 = vld [vmem:[%s9 + $0xb78] sm:$0xff]
      %v4594 = vld [vmem:[%s9 + $0xb80] sm:$0xff]
      %v4595 = vld [vmem:[%s9 + $0xb88] sm:$0xff]
      %v4596 = vld [vmem:[%s9 + $0xb90] sm:$0xff]
      %v4597 = vld [vmem:[%s9 + $0xb98] sm:$0xff]
      %v4598 = vld [vmem:[%s9 + $0xba0] sm:$0xff]
      %v4599 = vld [vmem:[%s9 + $0xba8] sm:$0xff]
      %v4600 = vld [vmem:[%s9 + $0xbb0] sm:$0xff]
      %v4601 = vld [vmem:[%s9 + $0xbb8] sm:$0xff]
      %v4602 = vld [vmem:[%s9 + $0xbc0] sm:$0xff]
      %v4603 = vld [vmem:[%s9 + $0xbc8] sm:$0xff]
      %v4604 = vld [vmem:[%s9 + $0xbd0] sm:$0xff]
      %v4605 = vld [vmem:[%s9 + $0xbd8] sm:$0xff]
      %v4606 = vld [vmem:[%s9 + $0xbe0] sm:$0xff]
      %v4607 = vld [vmem:[%s9 + $0xbe8] sm:$0xff]
      %v4608 = vld [vmem:[%s9 + $0xbf0] sm:$0xff]
      %v4609 = vld [vmem:[%s9 + $0xbf8] sm:$0xff]
      %v4610 = vld [vmem:[%s10] sm:$0x3]
      %v4995 = vunpack.c.l.b16 %v4226
      %v4996 = vunpack.c.h.b16 %v4226
      %v4997 = vunpack.c.l.b16 %v4227
      %v4998 = vunpack.c.h.b16 %v4227
      %v4999 = vunpack.c.l.b16 %v4228
      %v5000 = vunpack.c.h.b16 %v4228
      %v5001 = vunpack.c.l.b16 %v4229
      %v5002 = vunpack.c.h.b16 %v4229
      %v5003 = vunpack.c.l.b16 %v4230
      %v5004 = vunpack.c.h.b16 %v4230
      %v5005 = vunpack.c.l.b16 %v4231
      %v5006 = vunpack.c.h.b16 %v4231
      %v5007 = vunpack.c.l.b16 %v4232
      %v5008 = vunpack.c.h.b16 %v4232
      %v5009 = vunpack.c.l.b16 %v4233
      %v5010 = vunpack.c.h.b16 %v4233
      %v5011 = vunpack.c.l.b16 %v4234
      %v5012 = vunpack.c.h.b16 %v4234
      %v5013 = vunpack.c.l.b16 %v4235
      %v5014 = vunpack.c.h.b16 %v4235
      %v5015 = vunpack.c.l.b16 %v4236
      %v5016 = vunpack.c.h.b16 %v4236
      %v5017 = vunpack.c.l.b16 %v4237
      %v5018 = vunpack.c.h.b16 %v4237
      %v5019 = vunpack.c.l.b16 %v4238
      %v5020 = vunpack.c.h.b16 %v4238
      %v5021 = vunpack.c.l.b16 %v4239
      %v5022 = vunpack.c.h.b16 %v4239
      %v5023 = vunpack.c.l.b16 %v4240
      %v5024 = vunpack.c.h.b16 %v4240
      %v5025 = vunpack.c.l.b16 %v4241
      %v5026 = vunpack.c.h.b16 %v4241
      %v5027 = vunpack.c.l.b16 %v4242
      %v5028 = vunpack.c.h.b16 %v4242
      %v5029 = vunpack.c.l.b16 %v4243
      %v5030 = vunpack.c.h.b16 %v4243
      %v5031 = vunpack.c.l.b16 %v4244
      %v5032 = vunpack.c.h.b16 %v4244
      %v5033 = vunpack.c.l.b16 %v4245
      %v5034 = vunpack.c.h.b16 %v4245
      %v5035 = vunpack.c.l.b16 %v4246
      %v5036 = vunpack.c.h.b16 %v4246
      %v5037 = vunpack.c.l.b16 %v4247
      %v5038 = vunpack.c.h.b16 %v4247
      %v5039 = vunpack.c.l.b16 %v4248
      %v5040 = vunpack.c.h.b16 %v4248
      %v5041 = vunpack.c.l.b16 %v4249
      %v5042 = vunpack.c.h.b16 %v4249
      %v5043 = vunpack.c.l.b16 %v4250
      %v5044 = vunpack.c.h.b16 %v4250
      %v5045 = vunpack.c.l.b16 %v4251
      %v5046 = vunpack.c.h.b16 %v4251
      %v5047 = vunpack.c.l.b16 %v4252
      %v5048 = vunpack.c.h.b16 %v4252
      %v5049 = vunpack.c.l.b16 %v4253
      %v5050 = vunpack.c.h.b16 %v4253
      %v5051 = vunpack.c.l.b16 %v4254
      %v5052 = vunpack.c.h.b16 %v4254
      %v5053 = vunpack.c.l.b16 %v4255
      %v5054 = vunpack.c.h.b16 %v4255
      %v5055 = vunpack.c.l.b16 %v4256
      %v5056 = vunpack.c.h.b16 %v4256
      %v5057 = vunpack.c.l.b16 %v4257
      %v5058 = vunpack.c.h.b16 %v4257
      %v5059 = vunpack.c.l.b16 %v4258
      %v5060 = vunpack.c.h.b16 %v4258
      %v5061 = vunpack.c.l.b16 %v4259
      %v5062 = vunpack.c.h.b16 %v4259
      %v5063 = vunpack.c.l.b16 %v4260
      %v5064 = vunpack.c.h.b16 %v4260
      %v5065 = vunpack.c.l.b16 %v4261
      %v5066 = vunpack.c.h.b16 %v4261
      %v5067 = vunpack.c.l.b16 %v4262
      %v5068 = vunpack.c.h.b16 %v4262
      %v5069 = vunpack.c.l.b16 %v4263
      %v5070 = vunpack.c.h.b16 %v4263
      %v5071 = vunpack.c.l.b16 %v4264
      %v5072 = vunpack.c.h.b16 %v4264
      %v5073 = vunpack.c.l.b16 %v4265
      %v5074 = vunpack.c.h.b16 %v4265
      %v5075 = vunpack.c.l.b16 %v4266
      %v5076 = vunpack.c.h.b16 %v4266
      %v5077 = vunpack.c.l.b16 %v4267
      %v5078 = vunpack.c.h.b16 %v4267
      %v5079 = vunpack.c.l.b16 %v4268
      %v5080 = vunpack.c.h.b16 %v4268
      %v5081 = vunpack.c.l.b16 %v4269
      %v5082 = vunpack.c.h.b16 %v4269
      %v5083 = vunpack.c.l.b16 %v4270
      %v5084 = vunpack.c.h.b16 %v4270
      %v5085 = vunpack.c.l.b16 %v4271
      %v5086 = vunpack.c.h.b16 %v4271
      %v5087 = vunpack.c.l.b16 %v4272
      %v5088 = vunpack.c.h.b16 %v4272
      %v5089 = vunpack.c.l.b16 %v4273
      %v5090 = vunpack.c.h.b16 %v4273
      %v5091 = vunpack.c.l.b16 %v4274
      %v5092 = vunpack.c.h.b16 %v4274
      %v5093 = vunpack.c.l.b16 %v4275
      %v5094 = vunpack.c.h.b16 %v4275
      %v5095 = vunpack.c.l.b16 %v4276
      %v5096 = vunpack.c.h.b16 %v4276
      %v5097 = vunpack.c.l.b16 %v4277
      %v5098 = vunpack.c.h.b16 %v4277
      %v5099 = vunpack.c.l.b16 %v4278
      %v5100 = vunpack.c.h.b16 %v4278
      %v5101 = vunpack.c.l.b16 %v4279
      %v5102 = vunpack.c.h.b16 %v4279
      %v5103 = vunpack.c.l.b16 %v4280
      %v5104 = vunpack.c.h.b16 %v4280
      %v5105 = vunpack.c.l.b16 %v4281
      %v5106 = vunpack.c.h.b16 %v4281
      %v5107 = vunpack.c.l.b16 %v4282
      %v5108 = vunpack.c.h.b16 %v4282
      %v5109 = vunpack.c.l.b16 %v4283
      %v5110 = vunpack.c.h.b16 %v4283
      %v5111 = vunpack.c.l.b16 %v4284
      %v5112 = vunpack.c.h.b16 %v4284
      %v5113 = vunpack.c.l.b16 %v4285
      %v5114 = vunpack.c.h.b16 %v4285
      %v5115 = vunpack.c.l.b16 %v4286
      %v5116 = vunpack.c.h.b16 %v4286
      %v5117 = vunpack.c.l.b16 %v4287
      %v5118 = vunpack.c.h.b16 %v4287
      %v5119 = vunpack.c.l.b16 %v4288
      %v5120 = vunpack.c.h.b16 %v4288
      %v5121 = vunpack.c.l.b16 %v4289
      %v5122 = vunpack.c.h.b16 %v4289
      %v5123 = vunpack.c.l.b16 %v4290
      %v5124 = vunpack.c.h.b16 %v4290
      %v5125 = vunpack.c.l.b16 %v4291
      %v5126 = vunpack.c.h.b16 %v4291
      %v5127 = vunpack.c.l.b16 %v4292
      %v5128 = vunpack.c.h.b16 %v4292
      %v5129 = vunpack.c.l.b16 %v4293
      %v5130 = vunpack.c.h.b16 %v4293
      %v5131 = vunpack.c.l.b16 %v4294
      %v5132 = vunpack.c.h.b16 %v4294
      %v5133 = vunpack.c.l.b16 %v4295
      %v5134 = vunpack.c.h.b16 %v4295
      %v5135 = vunpack.c.l.b16 %v4296
      %v5136 = vunpack.c.h.b16 %v4296
      %v5137 = vunpack.c.l.b16 %v4297
      %v5138 = vunpack.c.h.b16 %v4297
      %v5139 = vunpack.c.l.b16 %v4298
      %v5140 = vunpack.c.h.b16 %v4298
      %v5141 = vunpack.c.l.b16 %v4299
      %v5142 = vunpack.c.h.b16 %v4299
      %v5143 = vunpack.c.l.b16 %v4300
      %v5144 = vunpack.c.h.b16 %v4300
      %v5145 = vunpack.c.l.b16 %v4301
      %v5146 = vunpack.c.h.b16 %v4301
      %v5147 = vunpack.c.l.b16 %v4302
      %v5148 = vunpack.c.h.b16 %v4302
      %v5149 = vunpack.c.l.b16 %v4303
      %v5150 = vunpack.c.h.b16 %v4303
      %v5151 = vunpack.c.l.b16 %v4304
      %v5152 = vunpack.c.h.b16 %v4304
      %v5153 = vunpack.c.l.b16 %v4305
      %v5154 = vunpack.c.h.b16 %v4305
      %v5155 = vunpack.c.l.b16 %v4306
      %v5156 = vunpack.c.h.b16 %v4306
      %v5157 = vunpack.c.l.b16 %v4307
      %v5158 = vunpack.c.h.b16 %v4307
      %v5159 = vunpack.c.l.b16 %v4308
      %v5160 = vunpack.c.h.b16 %v4308
      %v5161 = vunpack.c.l.b16 %v4309
      %v5162 = vunpack.c.h.b16 %v4309
      %v5163 = vunpack.c.l.b16 %v4310
      %v5164 = vunpack.c.h.b16 %v4310
      %v5165 = vunpack.c.l.b16 %v4311
      %v5166 = vunpack.c.h.b16 %v4311
      %v5167 = vunpack.c.l.b16 %v4312
      %v5168 = vunpack.c.h.b16 %v4312
      %v5169 = vunpack.c.l.b16 %v4313
      %v5170 = vunpack.c.h.b16 %v4313
      %v5171 = vunpack.c.l.b16 %v4314
      %v5172 = vunpack.c.h.b16 %v4314
      %v5173 = vunpack.c.l.b16 %v4315
      %v5174 = vunpack.c.h.b16 %v4315
      %v5175 = vunpack.c.l.b16 %v4316
      %v5176 = vunpack.c.h.b16 %v4316
      %v5177 = vunpack.c.l.b16 %v4317
      %v5178 = vunpack.c.h.b16 %v4317
      %v5179 = vunpack.c.l.b16 %v4318
      %v5180 = vunpack.c.h.b16 %v4318
      %v5181 = vunpack.c.l.b16 %v4319
      %v5182 = vunpack.c.h.b16 %v4319
      %v5183 = vunpack.c.l.b16 %v4320
      %v5184 = vunpack.c.h.b16 %v4320
      %v5185 = vunpack.c.l.b16 %v4321
      %v5186 = vunpack.c.h.b16 %v4321
      %v5187 = vunpack.c.l.b16 %v4322
      %v5188 = vunpack.c.h.b16 %v4322
      %v5189 = vunpack.c.l.b16 %v4323
      %v5190 = vunpack.c.h.b16 %v4323
      %v5191 = vunpack.c.l.b16 %v4324
      %v5192 = vunpack.c.h.b16 %v4324
      %v5193 = vunpack.c.l.b16 %v4325
      %v5194 = vunpack.c.h.b16 %v4325
      %v5195 = vunpack.c.l.b16 %v4326
      %v5196 = vunpack.c.h.b16 %v4326
      %v5197 = vunpack.c.l.b16 %v4327
      %v5198 = vunpack.c.h.b16 %v4327
      %v5199 = vunpack.c.l.b16 %v4328
      %v5200 = vunpack.c.h.b16 %v4328
      %v5201 = vunpack.c.l.b16 %v4329
      %v5202 = vunpack.c.h.b16 %v4329
      %v5203 = vunpack.c.l.b16 %v4330
      %v5204 = vunpack.c.h.b16 %v4330
      %v5205 = vunpack.c.l.b16 %v4331
      %v5206 = vunpack.c.h.b16 %v4331
      %v5207 = vunpack.c.l.b16 %v4332
      %v5208 = vunpack.c.h.b16 %v4332
      %v5209 = vunpack.c.l.b16 %v4333
      %v5210 = vunpack.c.h.b16 %v4333
      %v5211 = vunpack.c.l.b16 %v4334
      %v5212 = vunpack.c.h.b16 %v4334
      %v5213 = vunpack.c.l.b16 %v4335
      %v5214 = vunpack.c.h.b16 %v4335
      %v5215 = vunpack.c.l.b16 %v4336
      %v5216 = vunpack.c.h.b16 %v4336
      %v5217 = vunpack.c.l.b16 %v4337
      %v5218 = vunpack.c.h.b16 %v4337
      %v5219 = vunpack.c.l.b16 %v4338
      %v5220 = vunpack.c.h.b16 %v4338
      %v5221 = vunpack.c.l.b16 %v4339
      %v5222 = vunpack.c.h.b16 %v4339
      %v5223 = vunpack.c.l.b16 %v4340
      %v5224 = vunpack.c.h.b16 %v4340
      %v5225 = vunpack.c.l.b16 %v4341
      %v5226 = vunpack.c.h.b16 %v4341
      %v5227 = vunpack.c.l.b16 %v4342
      %v5228 = vunpack.c.h.b16 %v4342
      %v5229 = vunpack.c.l.b16 %v4343
      %v5230 = vunpack.c.h.b16 %v4343
      %v5231 = vunpack.c.l.b16 %v4344
      %v5232 = vunpack.c.h.b16 %v4344
      %v5233 = vunpack.c.l.b16 %v4345
      %v5234 = vunpack.c.h.b16 %v4345
      %v5235 = vunpack.c.l.b16 %v4346
      %v5236 = vunpack.c.h.b16 %v4346
      %v5237 = vunpack.c.l.b16 %v4347
      %v5238 = vunpack.c.h.b16 %v4347
      %v5239 = vunpack.c.l.b16 %v4348
      %v5240 = vunpack.c.h.b16 %v4348
      %v5241 = vunpack.c.l.b16 %v4349
      %v5242 = vunpack.c.h.b16 %v4349
      %v5243 = vunpack.c.l.b16 %v4350
      %v5244 = vunpack.c.h.b16 %v4350
      %v5245 = vunpack.c.l.b16 %v4351
      %v5246 = vunpack.c.h.b16 %v4351
      %v5247 = vunpack.c.l.b16 %v4352
      %v5248 = vunpack.c.h.b16 %v4352
      %v5249 = vunpack.c.l.b16 %v4353
      %v5250 = vunpack.c.h.b16 %v4353
      %v5251 = vunpack.c.l.b16 %v4354
      %v5252 = vunpack.c.h.b16 %v4354
      %v5253 = vunpack.c.l.b16 %v4355
      %v5254 = vunpack.c.h.b16 %v4355
      %v5255 = vunpack.c.l.b16 %v4356
      %v5256 = vunpack.c.h.b16 %v4356
      %v5257 = vunpack.c.l.b16 %v4357
      %v5258 = vunpack.c.h.b16 %v4357
      %v5259 = vunpack.c.l.b16 %v4358
      %v5260 = vunpack.c.h.b16 %v4358
      %v5261 = vunpack.c.l.b16 %v4359
      %v5262 = vunpack.c.h.b16 %v4359
      %v5263 = vunpack.c.l.b16 %v4360
      %v5264 = vunpack.c.h.b16 %v4360
      %v5265 = vunpack.c.l.b16 %v4361
      %v5266 = vunpack.c.h.b16 %v4361
      %v5267 = vunpack.c.l.b16 %v4362
      %v5268 = vunpack.c.h.b16 %v4362
      %v5269 = vunpack.c.l.b16 %v4363
      %v5270 = vunpack.c.h.b16 %v4363
      %v5271 = vunpack.c.l.b16 %v4364
      %v5272 = vunpack.c.h.b16 %v4364
      %v5273 = vunpack.c.l.b16 %v4365
      %v5274 = vunpack.c.h.b16 %v4365
      %v5275 = vunpack.c.l.b16 %v4366
      %v5276 = vunpack.c.h.b16 %v4366
      %v5277 = vunpack.c.l.b16 %v4367
      %v5278 = vunpack.c.h.b16 %v4367
      %v5279 = vunpack.c.l.b16 %v4368
      %v5280 = vunpack.c.h.b16 %v4368
      %v5281 = vunpack.c.l.b16 %v4369
      %v5282 = vunpack.c.h.b16 %v4369
      %v5283 = vunpack.c.l.b16 %v4370
      %v5284 = vunpack.c.h.b16 %v4370
      %v5285 = vunpack.c.l.b16 %v4371
      %v5286 = vunpack.c.h.b16 %v4371
      %v5287 = vunpack.c.l.b16 %v4372
      %v5288 = vunpack.c.h.b16 %v4372
      %v5289 = vunpack.c.l.b16 %v4373
      %v5290 = vunpack.c.h.b16 %v4373
      %v5291 = vunpack.c.l.b16 %v4374
      %v5292 = vunpack.c.h.b16 %v4374
      %v5293 = vunpack.c.l.b16 %v4375
      %v5294 = vunpack.c.h.b16 %v4375
      %v5295 = vunpack.c.l.b16 %v4376
      %v5296 = vunpack.c.h.b16 %v4376
      %v5297 = vunpack.c.l.b16 %v4377
      %v5298 = vunpack.c.h.b16 %v4377
      %v5299 = vunpack.c.l.b16 %v4378
      %v5300 = vunpack.c.h.b16 %v4378
      %v5301 = vunpack.c.l.b16 %v4379
      %v5302 = vunpack.c.h.b16 %v4379
      %v5303 = vunpack.c.l.b16 %v4380
      %v5304 = vunpack.c.h.b16 %v4380
      %v5305 = vunpack.c.l.b16 %v4381
      %v5306 = vunpack.c.h.b16 %v4381
      %v5307 = vunpack.c.l.b16 %v4382
      %v5308 = vunpack.c.h.b16 %v4382
      %v5309 = vunpack.c.l.b16 %v4383
      %v5310 = vunpack.c.h.b16 %v4383
      %v5311 = vunpack.c.l.b16 %v4384
      %v5312 = vunpack.c.h.b16 %v4384
      %v5313 = vunpack.c.l.b16 %v4385
      %v5314 = vunpack.c.h.b16 %v4385
      %v5315 = vunpack.c.l.b16 %v4386
      %v5316 = vunpack.c.h.b16 %v4386
      %v5317 = vunpack.c.l.b16 %v4387
      %v5318 = vunpack.c.h.b16 %v4387
      %v5319 = vunpack.c.l.b16 %v4388
      %v5320 = vunpack.c.h.b16 %v4388
      %v5321 = vunpack.c.l.b16 %v4389
      %v5322 = vunpack.c.h.b16 %v4389
      %v5323 = vunpack.c.l.b16 %v4390
      %v5324 = vunpack.c.h.b16 %v4390
      %v5325 = vunpack.c.l.b16 %v4391
      %v5326 = vunpack.c.h.b16 %v4391
      %v5327 = vunpack.c.l.b16 %v4392
      %v5328 = vunpack.c.h.b16 %v4392
      %v5329 = vunpack.c.l.b16 %v4393
      %v5330 = vunpack.c.h.b16 %v4393
      %v5331 = vunpack.c.l.b16 %v4394
      %v5332 = vunpack.c.h.b16 %v4394
      %v5333 = vunpack.c.l.b16 %v4395
      %v5334 = vunpack.c.h.b16 %v4395
      %v5335 = vunpack.c.l.b16 %v4396
      %v5336 = vunpack.c.h.b16 %v4396
      %v5337 = vunpack.c.l.b16 %v4397
      %v5338 = vunpack.c.h.b16 %v4397
      %v5339 = vunpack.c.l.b16 %v4398
      %v5340 = vunpack.c.h.b16 %v4398
      %v5341 = vunpack.c.l.b16 %v4399
      %v5342 = vunpack.c.h.b16 %v4399
      %v5343 = vunpack.c.l.b16 %v4400
      %v5344 = vunpack.c.h.b16 %v4400
      %v5345 = vunpack.c.l.b16 %v4401
      %v5346 = vunpack.c.h.b16 %v4401
      %v5347 = vunpack.c.l.b16 %v4402
      %v5348 = vunpack.c.h.b16 %v4402
      %v5349 = vunpack.c.l.b16 %v4403
      %v5350 = vunpack.c.h.b16 %v4403
      %v5351 = vunpack.c.l.b16 %v4404
      %v5352 = vunpack.c.h.b16 %v4404
      %v5353 = vunpack.c.l.b16 %v4405
      %v5354 = vunpack.c.h.b16 %v4405
      %v5355 = vunpack.c.l.b16 %v4406
      %v5356 = vunpack.c.h.b16 %v4406
      %v5357 = vunpack.c.l.b16 %v4407
      %v5358 = vunpack.c.h.b16 %v4407
      %v5359 = vunpack.c.l.b16 %v4408
      %v5360 = vunpack.c.h.b16 %v4408
      %v5361 = vunpack.c.l.b16 %v4409
      %v5362 = vunpack.c.h.b16 %v4409
      %v5363 = vunpack.c.l.b16 %v4410
      %v5364 = vunpack.c.h.b16 %v4410
      %v5365 = vunpack.c.l.b16 %v4411
      %v5366 = vunpack.c.h.b16 %v4411
      %v5367 = vunpack.c.l.b16 %v4412
      %v5368 = vunpack.c.h.b16 %v4412
      %v5369 = vunpack.c.l.b16 %v4413
      %v5370 = vunpack.c.h.b16 %v4413
      %v5371 = vunpack.c.l.b16 %v4414
      %v5372 = vunpack.c.h.b16 %v4414
      %v5373 = vunpack.c.l.b16 %v4415
      %v5374 = vunpack.c.h.b16 %v4415
      %v5375 = vunpack.c.l.b16 %v4416
      %v5376 = vunpack.c.h.b16 %v4416
      %v5377 = vunpack.c.l.b16 %v4417
      %v5378 = vunpack.c.h.b16 %v4417
      %v5379 = vunpack.c.l.b16 %v4418
      %v5380 = vunpack.c.h.b16 %v4418
      %v5381 = vunpack.c.l.b16 %v4419
      %v5382 = vunpack.c.h.b16 %v4419
      %v5383 = vunpack.c.l.b16 %v4420
      %v5384 = vunpack.c.h.b16 %v4420
      %v5385 = vunpack.c.l.b16 %v4421
      %v5386 = vunpack.c.h.b16 %v4421
      %v5387 = vunpack.c.l.b16 %v4422
      %v5388 = vunpack.c.h.b16 %v4422
      %v5389 = vunpack.c.l.b16 %v4423
      %v5390 = vunpack.c.h.b16 %v4423
      %v5391 = vunpack.c.l.b16 %v4424
      %v5392 = vunpack.c.h.b16 %v4424
      %v5393 = vunpack.c.l.b16 %v4425
      %v5394 = vunpack.c.h.b16 %v4425
      %v5395 = vunpack.c.l.b16 %v4426
      %v5396 = vunpack.c.h.b16 %v4426
      %v5397 = vunpack.c.l.b16 %v4427
      %v5398 = vunpack.c.h.b16 %v4427
      %v5399 = vunpack.c.l.b16 %v4428
      %v5400 = vunpack.c.h.b16 %v4428
      %v5401 = vunpack.c.l.b16 %v4429
      %v5402 = vunpack.c.h.b16 %v4429
      %v5403 = vunpack.c.l.b16 %v4430
      %v5404 = vunpack.c.h.b16 %v4430
      %v5405 = vunpack.c.l.b16 %v4431
      %v5406 = vunpack.c.h.b16 %v4431
      %v5407 = vunpack.c.l.b16 %v4432
      %v5408 = vunpack.c.h.b16 %v4432
      %v5409 = vunpack.c.l.b16 %v4433
      %v5410 = vunpack.c.h.b16 %v4433
      %v5411 = vunpack.c.l.b16 %v4434
      %v5412 = vunpack.c.h.b16 %v4434
      %v5413 = vunpack.c.l.b16 %v4435
      %v5414 = vunpack.c.h.b16 %v4435
      %v5415 = vunpack.c.l.b16 %v4436
      %v5416 = vunpack.c.h.b16 %v4436
      %v5417 = vunpack.c.l.b16 %v4437
      %v5418 = vunpack.c.h.b16 %v4437
      %v5419 = vunpack.c.l.b16 %v4438
      %v5420 = vunpack.c.h.b16 %v4438
      %v5421 = vunpack.c.l.b16 %v4439
      %v5422 = vunpack.c.h.b16 %v4439
      %v5423 = vunpack.c.l.b16 %v4440
      %v5424 = vunpack.c.h.b16 %v4440
      %v5425 = vunpack.c.l.b16 %v4441
      %v5426 = vunpack.c.h.b16 %v4441
      %v5427 = vunpack.c.l.b16 %v4442
      %v5428 = vunpack.c.h.b16 %v4442
      %v5429 = vunpack.c.l.b16 %v4443
      %v5430 = vunpack.c.h.b16 %v4443
      %v5431 = vunpack.c.l.b16 %v4444
      %v5432 = vunpack.c.h.b16 %v4444
      %v5433 = vunpack.c.l.b16 %v4445
      %v5434 = vunpack.c.h.b16 %v4445
      %v5435 = vunpack.c.l.b16 %v4446
      %v5436 = vunpack.c.h.b16 %v4446
      %v5437 = vunpack.c.l.b16 %v4447
      %v5438 = vunpack.c.h.b16 %v4447
      %v5439 = vunpack.c.l.b16 %v4448
      %v5440 = vunpack.c.h.b16 %v4448
      %v5441 = vunpack.c.l.b16 %v4449
      %v5442 = vunpack.c.h.b16 %v4449
      %v5443 = vunpack.c.l.b16 %v4450
      %v5444 = vunpack.c.h.b16 %v4450
      %v5445 = vunpack.c.l.b16 %v4451
      %v5446 = vunpack.c.h.b16 %v4451
      %v5447 = vunpack.c.l.b16 %v4452
      %v5448 = vunpack.c.h.b16 %v4452
      %v5449 = vunpack.c.l.b16 %v4453
      %v5450 = vunpack.c.h.b16 %v4453
      %v5451 = vunpack.c.l.b16 %v4454
      %v5452 = vunpack.c.h.b16 %v4454
      %v5453 = vunpack.c.l.b16 %v4455
      %v5454 = vunpack.c.h.b16 %v4455
      %v5455 = vunpack.c.l.b16 %v4456
      %v5456 = vunpack.c.h.b16 %v4456
      %v5457 = vunpack.c.l.b16 %v4457
      %v5458 = vunpack.c.h.b16 %v4457
      %v5459 = vunpack.c.l.b16 %v4458
      %v5460 = vunpack.c.h.b16 %v4458
      %v5461 = vunpack.c.l.b16 %v4459
      %v5462 = vunpack.c.h.b16 %v4459
      %v5463 = vunpack.c.l.b16 %v4460
      %v5464 = vunpack.c.h.b16 %v4460
      %v5465 = vunpack.c.l.b16 %v4461
      %v5466 = vunpack.c.h.b16 %v4461
      %v5467 = vunpack.c.l.b16 %v4462
      %v5468 = vunpack.c.h.b16 %v4462
      %v5469 = vunpack.c.l.b16 %v4463
      %v5470 = vunpack.c.h.b16 %v4463
      %v5471 = vunpack.c.l.b16 %v4464
      %v5472 = vunpack.c.h.b16 %v4464
      %v5473 = vunpack.c.l.b16 %v4465
      %v5474 = vunpack.c.h.b16 %v4465
      %v5475 = vunpack.c.l.b16 %v4466
      %v5476 = vunpack.c.h.b16 %v4466
      %v5477 = vunpack.c.l.b16 %v4467
      %v5478 = vunpack.c.h.b16 %v4467
      %v5479 = vunpack.c.l.b16 %v4468
      %v5480 = vunpack.c.h.b16 %v4468
      %v5481 = vunpack.c.l.b16 %v4469
      %v5482 = vunpack.c.h.b16 %v4469
      %v5483 = vunpack.c.l.b16 %v4470
      %v5484 = vunpack.c.h.b16 %v4470
      %v5485 = vunpack.c.l.b16 %v4471
      %v5486 = vunpack.c.h.b16 %v4471
      %v5487 = vunpack.c.l.b16 %v4472
      %v5488 = vunpack.c.h.b16 %v4472
      %v5489 = vunpack.c.l.b16 %v4473
      %v5490 = vunpack.c.h.b16 %v4473
      %v5491 = vunpack.c.l.b16 %v4474
      %v5492 = vunpack.c.h.b16 %v4474
      %v5493 = vunpack.c.l.b16 %v4475
      %v5494 = vunpack.c.h.b16 %v4475
      %v5495 = vunpack.c.l.b16 %v4476
      %v5496 = vunpack.c.h.b16 %v4476
      %v5497 = vunpack.c.l.b16 %v4477
      %v5498 = vunpack.c.h.b16 %v4477
      %v5499 = vunpack.c.l.b16 %v4478
      %v5500 = vunpack.c.h.b16 %v4478
      %v5501 = vunpack.c.l.b16 %v4479
      %v5502 = vunpack.c.h.b16 %v4479
      %v5503 = vunpack.c.l.b16 %v4480
      %v5504 = vunpack.c.h.b16 %v4480
      %v5505 = vunpack.c.l.b16 %v4481
      %v5506 = vunpack.c.h.b16 %v4481
      %v5507 = vunpack.c.l.b16 %v4482
      %v5508 = vunpack.c.h.b16 %v4482
      %v5509 = vunpack.c.l.b16 %v4483
      %v5510 = vunpack.c.h.b16 %v4483
      %v5511 = vunpack.c.l.b16 %v4484
      %v5512 = vunpack.c.h.b16 %v4484
      %v5513 = vunpack.c.l.b16 %v4485
      %v5514 = vunpack.c.h.b16 %v4485
      %v5515 = vunpack.c.l.b16 %v4486
      %v5516 = vunpack.c.h.b16 %v4486
      %v5517 = vunpack.c.l.b16 %v4487
      %v5518 = vunpack.c.h.b16 %v4487
      %v5519 = vunpack.c.l.b16 %v4488
      %v5520 = vunpack.c.h.b16 %v4488
      %v5521 = vunpack.c.l.b16 %v4489
      %v5522 = vunpack.c.h.b16 %v4489
      %v5523 = vunpack.c.l.b16 %v4490
      %v5524 = vunpack.c.h.b16 %v4490
      %v5525 = vunpack.c.l.b16 %v4491
      %v5526 = vunpack.c.h.b16 %v4491
      %v5527 = vunpack.c.l.b16 %v4492
      %v5528 = vunpack.c.h.b16 %v4492
      %v5529 = vunpack.c.l.b16 %v4493
      %v5530 = vunpack.c.h.b16 %v4493
      %v5531 = vunpack.c.l.b16 %v4494
      %v5532 = vunpack.c.h.b16 %v4494
      %v5533 = vunpack.c.l.b16 %v4495
      %v5534 = vunpack.c.h.b16 %v4495
      %v5535 = vunpack.c.l.b16 %v4496
      %v5536 = vunpack.c.h.b16 %v4496
      %v5537 = vunpack.c.l.b16 %v4497
      %v5538 = vunpack.c.h.b16 %v4497
      %v5539 = vunpack.c.l.b16 %v4498
      %v5540 = vunpack.c.h.b16 %v4498
      %v5541 = vunpack.c.l.b16 %v4499
      %v5542 = vunpack.c.h.b16 %v4499
      %v5543 = vunpack.c.l.b16 %v4500
      %v5544 = vunpack.c.h.b16 %v4500
      %v5545 = vunpack.c.l.b16 %v4501
      %v5546 = vunpack.c.h.b16 %v4501
      %v5547 = vunpack.c.l.b16 %v4502
      %v5548 = vunpack.c.h.b16 %v4502
      %v5549 = vunpack.c.l.b16 %v4503
      %v5550 = vunpack.c.h.b16 %v4503
      %v5551 = vunpack.c.l.b16 %v4504
      %v5552 = vunpack.c.h.b16 %v4504
      %v5553 = vunpack.c.l.b16 %v4505
      %v5554 = vunpack.c.h.b16 %v4505
      %v5555 = vunpack.c.l.b16 %v4506
      %v5556 = vunpack.c.h.b16 %v4506
      %v5557 = vunpack.c.l.b16 %v4507
      %v5558 = vunpack.c.h.b16 %v4507
      %v5559 = vunpack.c.l.b16 %v4508
      %v5560 = vunpack.c.h.b16 %v4508
      %v5561 = vunpack.c.l.b16 %v4509
      %v5562 = vunpack.c.h.b16 %v4509
      %v5563 = vunpack.c.l.b16 %v4510
      %v5564 = vunpack.c.h.b16 %v4510
      %v5565 = vunpack.c.l.b16 %v4511
      %v5566 = vunpack.c.h.b16 %v4511
      %v5567 = vunpack.c.l.b16 %v4512
      %v5568 = vunpack.c.h.b16 %v4512
      %v5569 = vunpack.c.l.b16 %v4513
      %v5570 = vunpack.c.h.b16 %v4513
      %v5571 = vunpack.c.l.b16 %v4514
      %v5572 = vunpack.c.h.b16 %v4514
      %v5573 = vunpack.c.l.b16 %v4515
      %v5574 = vunpack.c.h.b16 %v4515
      %v5575 = vunpack.c.l.b16 %v4516
      %v5576 = vunpack.c.h.b16 %v4516
      %v5577 = vunpack.c.l.b16 %v4517
      %v5578 = vunpack.c.h.b16 %v4517
      %v5579 = vunpack.c.l.b16 %v4518
      %v5580 = vunpack.c.h.b16 %v4518
      %v5581 = vunpack.c.l.b16 %v4519
      %v5582 = vunpack.c.h.b16 %v4519
      %v5583 = vunpack.c.l.b16 %v4520
      %v5584 = vunpack.c.h.b16 %v4520
      %v5585 = vunpack.c.l.b16 %v4521
      %v5586 = vunpack.c.h.b16 %v4521
      %v5587 = vunpack.c.l.b16 %v4522
      %v5588 = vunpack.c.h.b16 %v4522
      %v5589 = vunpack.c.l.b16 %v4523
      %v5590 = vunpack.c.h.b16 %v4523
      %v5591 = vunpack.c.l.b16 %v4524
      %v5592 = vunpack.c.h.b16 %v4524
      %v5593 = vunpack.c.l.b16 %v4525
      %v5594 = vunpack.c.h.b16 %v4525
      %v5595 = vunpack.c.l.b16 %v4526
      %v5596 = vunpack.c.h.b16 %v4526
      %v5597 = vunpack.c.l.b16 %v4527
      %v5598 = vunpack.c.h.b16 %v4527
      %v5599 = vunpack.c.l.b16 %v4528
      %v5600 = vunpack.c.h.b16 %v4528
      %v5601 = vunpack.c.l.b16 %v4529
      %v5602 = vunpack.c.h.b16 %v4529
      %v5603 = vunpack.c.l.b16 %v4530
      %v5604 = vunpack.c.h.b16 %v4530
      %v5605 = vunpack.c.l.b16 %v4531
      %v5606 = vunpack.c.h.b16 %v4531
      %v5607 = vunpack.c.l.b16 %v4532
      %v5608 = vunpack.c.h.b16 %v4532
      %v5609 = vunpack.c.l.b16 %v4533
      %v5610 = vunpack.c.h.b16 %v4533
      %v5611 = vunpack.c.l.b16 %v4534
      %v5612 = vunpack.c.h.b16 %v4534
      %v5613 = vunpack.c.l.b16 %v4535
      %v5614 = vunpack.c.h.b16 %v4535
      %v5615 = vunpack.c.l.b16 %v4536
      %v5616 = vunpack.c.h.b16 %v4536
      %v5617 = vunpack.c.l.b16 %v4537
      %v5618 = vunpack.c.h.b16 %v4537
      %v5619 = vunpack.c.l.b16 %v4538
      %v5620 = vunpack.c.h.b16 %v4538
      %v5621 = vunpack.c.l.b16 %v4539
      %v5622 = vunpack.c.h.b16 %v4539
      %v5623 = vunpack.c.l.b16 %v4540
      %v5624 = vunpack.c.h.b16 %v4540
      %v5625 = vunpack.c.l.b16 %v4541
      %v5626 = vunpack.c.h.b16 %v4541
      %v5627 = vunpack.c.l.b16 %v4542
      %v5628 = vunpack.c.h.b16 %v4542
      %v5629 = vunpack.c.l.b16 %v4543
      %v5630 = vunpack.c.h.b16 %v4543
      %v5631 = vunpack.c.l.b16 %v4544
      %v5632 = vunpack.c.h.b16 %v4544
      %v5633 = vunpack.c.l.b16 %v4545
      %v5634 = vunpack.c.h.b16 %v4545
      %v5635 = vunpack.c.l.b16 %v4546
      %v5636 = vunpack.c.h.b16 %v4546
      %v5637 = vunpack.c.l.b16 %v4547
      %v5638 = vunpack.c.h.b16 %v4547
      %v5639 = vunpack.c.l.b16 %v4548
      %v5640 = vunpack.c.h.b16 %v4548
      %v5641 = vunpack.c.l.b16 %v4549
      %v5642 = vunpack.c.h.b16 %v4549
      %v5643 = vunpack.c.l.b16 %v4550
      %v5644 = vunpack.c.h.b16 %v4550
      %v5645 = vunpack.c.l.b16 %v4551
      %v5646 = vunpack.c.h.b16 %v4551
      %v5647 = vunpack.c.l.b16 %v4552
      %v5648 = vunpack.c.h.b16 %v4552
      %v5649 = vunpack.c.l.b16 %v4553
      %v5650 = vunpack.c.h.b16 %v4553
      %v5651 = vunpack.c.l.b16 %v4554
      %v5652 = vunpack.c.h.b16 %v4554
      %v5653 = vunpack.c.l.b16 %v4555
      %v5654 = vunpack.c.h.b16 %v4555
      %v5655 = vunpack.c.l.b16 %v4556
      %v5656 = vunpack.c.h.b16 %v4556
      %v5657 = vunpack.c.l.b16 %v4557
      %v5658 = vunpack.c.h.b16 %v4557
      %v5659 = vunpack.c.l.b16 %v4558
      %v5660 = vunpack.c.h.b16 %v4558
      %v5661 = vunpack.c.l.b16 %v4559
      %v5662 = vunpack.c.h.b16 %v4559
      %v5663 = vunpack.c.l.b16 %v4560
      %v5664 = vunpack.c.h.b16 %v4560
      %v5665 = vunpack.c.l.b16 %v4561
      %v5666 = vunpack.c.h.b16 %v4561
      %v5667 = vunpack.c.l.b16 %v4562
      %v5668 = vunpack.c.h.b16 %v4562
      %v5669 = vunpack.c.l.b16 %v4563
      %v5670 = vunpack.c.h.b16 %v4563
      %v5671 = vunpack.c.l.b16 %v4564
      %v5672 = vunpack.c.h.b16 %v4564
      %v5673 = vunpack.c.l.b16 %v4565
      %v5674 = vunpack.c.h.b16 %v4565
      %v5675 = vunpack.c.l.b16 %v4566
      %v5676 = vunpack.c.h.b16 %v4566
      %v5677 = vunpack.c.l.b16 %v4567
      %v5678 = vunpack.c.h.b16 %v4567
      %v5679 = vunpack.c.l.b16 %v4568
      %v5680 = vunpack.c.h.b16 %v4568
      %v5681 = vunpack.c.l.b16 %v4569
      %v5682 = vunpack.c.h.b16 %v4569
      %v5683 = vunpack.c.l.b16 %v4570
      %v5684 = vunpack.c.h.b16 %v4570
      %v5685 = vunpack.c.l.b16 %v4571
      %v5686 = vunpack.c.h.b16 %v4571
      %v5687 = vunpack.c.l.b16 %v4572
      %v5688 = vunpack.c.h.b16 %v4572
      %v5689 = vunpack.c.l.b16 %v4573
      %v5690 = vunpack.c.h.b16 %v4573
      %v5691 = vunpack.c.l.b16 %v4574
      %v5692 = vunpack.c.h.b16 %v4574
      %v5693 = vunpack.c.l.b16 %v4575
      %v5694 = vunpack.c.h.b16 %v4575
      %v5695 = vunpack.c.l.b16 %v4576
      %v5696 = vunpack.c.h.b16 %v4576
      %v5697 = vunpack.c.l.b16 %v4577
      %v5698 = vunpack.c.h.b16 %v4577
      %v5699 = vunpack.c.l.b16 %v4578
      %v5700 = vunpack.c.h.b16 %v4578
      %v5701 = vunpack.c.l.b16 %v4579
      %v5702 = vunpack.c.h.b16 %v4579
      %v5703 = vunpack.c.l.b16 %v4580
      %v5704 = vunpack.c.h.b16 %v4580
      %v5705 = vunpack.c.l.b16 %v4581
      %v5706 = vunpack.c.h.b16 %v4581
      %v5707 = vunpack.c.l.b16 %v4582
      %v5708 = vunpack.c.h.b16 %v4582
      %v5709 = vunpack.c.l.b16 %v4583
      %v5710 = vunpack.c.h.b16 %v4583
      %v5711 = vunpack.c.l.b16 %v4584
      %v5712 = vunpack.c.h.b16 %v4584
      %v5713 = vunpack.c.l.b16 %v4585
      %v5714 = vunpack.c.h.b16 %v4585
      %v5715 = vunpack.c.l.b16 %v4586
      %v5716 = vunpack.c.h.b16 %v4586
      %v5717 = vunpack.c.l.b16 %v4587
      %v5718 = vunpack.c.h.b16 %v4587
      %v5719 = vunpack.c.l.b16 %v4588
      %v5720 = vunpack.c.h.b16 %v4588
      %v5721 = vunpack.c.l.b16 %v4589
      %v5722 = vunpack.c.h.b16 %v4589
      %v5723 = vunpack.c.l.b16 %v4590
      %v5724 = vunpack.c.h.b16 %v4590
      %v5725 = vunpack.c.l.b16 %v4591
      %v5726 = vunpack.c.h.b16 %v4591
      %v5727 = vunpack.c.l.b16 %v4592
      %v5728 = vunpack.c.h.b16 %v4592
      %v5729 = vunpack.c.l.b16 %v4593
      %v5730 = vunpack.c.h.b16 %v4593
      %v5731 = vunpack.c.l.b16 %v4594
      %v5732 = vunpack.c.h.b16 %v4594
      %v5733 = vunpack.c.l.b16 %v4595
      %v5734 = vunpack.c.h.b16 %v4595
      %v5735 = vunpack.c.l.b16 %v4596
      %v5736 = vunpack.c.h.b16 %v4596
      %v5737 = vunpack.c.l.b16 %v4597
      %v5738 = vunpack.c.h.b16 %v4597
      %v5739 = vunpack.c.l.b16 %v4598
      %v5740 = vunpack.c.h.b16 %v4598
      %v5741 = vunpack.c.l.b16 %v4599
      %v5742 = vunpack.c.h.b16 %v4599
      %v5743 = vunpack.c.l.b16 %v4600
      %v5744 = vunpack.c.h.b16 %v4600
      %v5745 = vunpack.c.l.b16 %v4601
      %v5746 = vunpack.c.h.b16 %v4601
      %v5747 = vunpack.c.l.b16 %v4602
      %v5748 = vunpack.c.h.b16 %v4602
      %v5749 = vunpack.c.l.b16 %v4603
      %v5750 = vunpack.c.h.b16 %v4603
      %v5751 = vunpack.c.l.b16 %v4604
      %v5752 = vunpack.c.h.b16 %v4604
      %v5753 = vunpack.c.l.b16 %v4605
      %v5754 = vunpack.c.h.b16 %v4605
      %v5755 = vunpack.c.l.b16 %v4606
      %v5756 = vunpack.c.h.b16 %v4606
      %v5757 = vunpack.c.l.b16 %v4607
      %v5758 = vunpack.c.h.b16 %v4607
      %v5759 = vunpack.c.l.b16 %v4608
      %v5760 = vunpack.c.h.b16 %v4608
      %v5761 = vunpack.c.l.b16 %v4609
      %v5762 = vunpack.c.h.b16 %v4609
      %v5763 = vpack.c.b16 %v4997, %v4995
      %v5764 = vpack.c.b16 %v4998, %v4996
      %v5765 = vpack.c.b16 %v5001, %v4999
      %v5766 = vpack.c.b16 %v5002, %v5000
      %v5767 = vpack.c.b16 %v5005, %v5003
      %v5768 = vpack.c.b16 %v5006, %v5004
      %v5769 = vpack.c.b16 %v5009, %v5007
      %v5770 = vpack.c.b16 %v5010, %v5008
      %v5771 = vpack.c.b16 %v5013, %v5011
      %v5772 = vpack.c.b16 %v5014, %v5012
      %v5773 = vpack.c.b16 %v5017, %v5015
      %v5774 = vpack.c.b16 %v5018, %v5016
      %v5775 = vpack.c.b16 %v5021, %v5019
      %v5776 = vpack.c.b16 %v5022, %v5020
      %v5777 = vpack.c.b16 %v5025, %v5023
      %v5778 = vpack.c.b16 %v5026, %v5024
      %v5779 = vpack.c.b16 %v5029, %v5027
      %v5780 = vpack.c.b16 %v5030, %v5028
      %v5781 = vpack.c.b16 %v5033, %v5031
      %v5782 = vpack.c.b16 %v5034, %v5032
      %v5783 = vpack.c.b16 %v5037, %v5035
      %v5784 = vpack.c.b16 %v5038, %v5036
      %v5785 = vpack.c.b16 %v5041, %v5039
      %v5786 = vpack.c.b16 %v5042, %v5040
      %v5787 = vpack.c.b16 %v5045, %v5043
      %v5788 = vpack.c.b16 %v5046, %v5044
      %v5789 = vpack.c.b16 %v5049, %v5047
      %v5790 = vpack.c.b16 %v5050, %v5048
      %v5791 = vpack.c.b16 %v5053, %v5051
      %v5792 = vpack.c.b16 %v5054, %v5052
      %v5793 = vpack.c.b16 %v5057, %v5055
      %v5794 = vpack.c.b16 %v5058, %v5056
      %v5795 = vpack.c.b16 %v5061, %v5059
      %v5796 = vpack.c.b16 %v5062, %v5060
      %v5797 = vpack.c.b16 %v5065, %v5063
      %v5798 = vpack.c.b16 %v5066, %v5064
      %v5799 = vpack.c.b16 %v5069, %v5067
      %v5800 = vpack.c.b16 %v5070, %v5068
      %v5801 = vpack.c.b16 %v5073, %v5071
      %v5802 = vpack.c.b16 %v5074, %v5072
      %v5803 = vpack.c.b16 %v5077, %v5075
      %v5804 = vpack.c.b16 %v5078, %v5076
      %v5805 = vpack.c.b16 %v5081, %v5079
      %v5806 = vpack.c.b16 %v5082, %v5080
      %v5807 = vpack.c.b16 %v5085, %v5083
      %v5808 = vpack.c.b16 %v5086, %v5084
      %v5809 = vpack.c.b16 %v5089, %v5087
      %v5810 = vpack.c.b16 %v5090, %v5088
      %v5811 = vpack.c.b16 %v5093, %v5091
      %v5812 = vpack.c.b16 %v5094, %v5092
      %v5813 = vpack.c.b16 %v5097, %v5095
      %v5814 = vpack.c.b16 %v5098, %v5096
      %v5815 = vpack.c.b16 %v5101, %v5099
      %v5816 = vpack.c.b16 %v5102, %v5100
      %v5817 = vpack.c.b16 %v5105, %v5103
      %v5818 = vpack.c.b16 %v5106, %v5104
      %v5819 = vpack.c.b16 %v5109, %v5107
      %v5820 = vpack.c.b16 %v5110, %v5108
      %v5821 = vpack.c.b16 %v5113, %v5111
      %v5822 = vpack.c.b16 %v5114, %v5112
      %v5823 = vpack.c.b16 %v5117, %v5115
      %v5824 = vpack.c.b16 %v5118, %v5116
      %v5825 = vpack.c.b16 %v5121, %v5119
      %v5826 = vpack.c.b16 %v5122, %v5120
      %v5827 = vpack.c.b16 %v5125, %v5123
      %v5828 = vpack.c.b16 %v5126, %v5124
      %v5829 = vpack.c.b16 %v5129, %v5127
      %v5830 = vpack.c.b16 %v5130, %v5128
      %v5831 = vpack.c.b16 %v5133, %v5131
      %v5832 = vpack.c.b16 %v5134, %v5132
      %v5833 = vpack.c.b16 %v5137, %v5135
      %v5834 = vpack.c.b16 %v5138, %v5136
      %v5835 = vpack.c.b16 %v5141, %v5139
      %v5836 = vpack.c.b16 %v5142, %v5140
      %v5837 = vpack.c.b16 %v5145, %v5143
      %v5838 = vpack.c.b16 %v5146, %v5144
      %v5839 = vpack.c.b16 %v5149, %v5147
      %v5840 = vpack.c.b16 %v5150, %v5148
      %v5841 = vpack.c.b16 %v5153, %v5151
      %v5842 = vpack.c.b16 %v5154, %v5152
      %v5843 = vpack.c.b16 %v5157, %v5155
      %v5844 = vpack.c.b16 %v5158, %v5156
      %v5845 = vpack.c.b16 %v5161, %v5159
      %v5846 = vpack.c.b16 %v5162, %v5160
      %v5847 = vpack.c.b16 %v5165, %v5163
      %v5848 = vpack.c.b16 %v5166, %v5164
      %v5849 = vpack.c.b16 %v5169, %v5167
      %v5850 = vpack.c.b16 %v5170, %v5168
      %v5851 = vpack.c.b16 %v5173, %v5171
      %v5852 = vpack.c.b16 %v5174, %v5172
      %v5853 = vpack.c.b16 %v5177, %v5175
      %v5854 = vpack.c.b16 %v5178, %v5176
      %v5855 = vpack.c.b16 %v5181, %v5179
      %v5856 = vpack.c.b16 %v5182, %v5180
      %v5857 = vpack.c.b16 %v5185, %v5183
      %v5858 = vpack.c.b16 %v5186, %v5184
      %v5859 = vpack.c.b16 %v5189, %v5187
      %v5860 = vpack.c.b16 %v5190, %v5188
      %v5861 = vpack.c.b16 %v5193, %v5191
      %v5862 = vpack.c.b16 %v5194, %v5192
      %v5863 = vpack.c.b16 %v5197, %v5195
      %v5864 = vpack.c.b16 %v5198, %v5196
      %v5865 = vpack.c.b16 %v5201, %v5199
      %v5866 = vpack.c.b16 %v5202, %v5200
      %v5867 = vpack.c.b16 %v5205, %v5203
      %v5868 = vpack.c.b16 %v5206, %v5204
      %v5869 = vpack.c.b16 %v5209, %v5207
      %v5870 = vpack.c.b16 %v5210, %v5208
      %v5871 = vpack.c.b16 %v5213, %v5211
      %v5872 = vpack.c.b16 %v5214, %v5212
      %v5873 = vpack.c.b16 %v5217, %v5215
      %v5874 = vpack.c.b16 %v5218, %v5216
      %v5875 = vpack.c.b16 %v5221, %v5219
      %v5876 = vpack.c.b16 %v5222, %v5220
      %v5877 = vpack.c.b16 %v5225, %v5223
      %v5878 = vpack.c.b16 %v5226, %v5224
      %v5879 = vpack.c.b16 %v5229, %v5227
      %v5880 = vpack.c.b16 %v5230, %v5228
      %v5881 = vpack.c.b16 %v5233, %v5231
      %v5882 = vpack.c.b16 %v5234, %v5232
      %v5883 = vpack.c.b16 %v5237, %v5235
      %v5884 = vpack.c.b16 %v5238, %v5236
      %v5885 = vpack.c.b16 %v5241, %v5239
      %v5886 = vpack.c.b16 %v5242, %v5240
      %v5887 = vpack.c.b16 %v5245, %v5243
      %v5888 = vpack.c.b16 %v5246, %v5244
      %v5889 = vpack.c.b16 %v5249, %v5247
      %v5890 = vpack.c.b16 %v5250, %v5248
      %v5891 = vpack.c.b16 %v5253, %v5251
      %v5892 = vpack.c.b16 %v5254, %v5252
      %v5893 = vpack.c.b16 %v5257, %v5255
      %v5894 = vpack.c.b16 %v5258, %v5256
      %v5895 = vpack.c.b16 %v5261, %v5259
      %v5896 = vpack.c.b16 %v5262, %v5260
      %v5897 = vpack.c.b16 %v5265, %v5263
      %v5898 = vpack.c.b16 %v5266, %v5264
      %v5899 = vpack.c.b16 %v5269, %v5267
      %v5900 = vpack.c.b16 %v5270, %v5268
      %v5901 = vpack.c.b16 %v5273, %v5271
      %v5902 = vpack.c.b16 %v5274, %v5272
      %v5903 = vpack.c.b16 %v5277, %v5275
      %v5904 = vpack.c.b16 %v5278, %v5276
      %v5905 = vpack.c.b16 %v5281, %v5279
      %v5906 = vpack.c.b16 %v5282, %v5280
      %v5907 = vpack.c.b16 %v5285, %v5283
      %v5908 = vpack.c.b16 %v5286, %v5284
      %v5909 = vpack.c.b16 %v5289, %v5287
      %v5910 = vpack.c.b16 %v5290, %v5288
      %v5911 = vpack.c.b16 %v5293, %v5291
      %v5912 = vpack.c.b16 %v5294, %v5292
      %v5913 = vpack.c.b16 %v5297, %v5295
      %v5914 = vpack.c.b16 %v5298, %v5296
      %v5915 = vpack.c.b16 %v5301, %v5299
      %v5916 = vpack.c.b16 %v5302, %v5300
      %v5917 = vpack.c.b16 %v5305, %v5303
      %v5918 = vpack.c.b16 %v5306, %v5304
      %v5919 = vpack.c.b16 %v5309, %v5307
      %v5920 = vpack.c.b16 %v5310, %v5308
      %v5921 = vpack.c.b16 %v5313, %v5311
      %v5922 = vpack.c.b16 %v5314, %v5312
      %v5923 = vpack.c.b16 %v5317, %v5315
      %v5924 = vpack.c.b16 %v5318, %v5316
      %v5925 = vpack.c.b16 %v5321, %v5319
      %v5926 = vpack.c.b16 %v5322, %v5320
      %v5927 = vpack.c.b16 %v5325, %v5323
      %v5928 = vpack.c.b16 %v5326, %v5324
      %v5929 = vpack.c.b16 %v5329, %v5327
      %v5930 = vpack.c.b16 %v5330, %v5328
      %v5931 = vpack.c.b16 %v5333, %v5331
      %v5932 = vpack.c.b16 %v5334, %v5332
      %v5933 = vpack.c.b16 %v5337, %v5335
      %v5934 = vpack.c.b16 %v5338, %v5336
      %v5935 = vpack.c.b16 %v5341, %v5339
      %v5936 = vpack.c.b16 %v5342, %v5340
      %v5937 = vpack.c.b16 %v5345, %v5343
      %v5938 = vpack.c.b16 %v5346, %v5344
      %v5939 = vpack.c.b16 %v5349, %v5347
      %v5940 = vpack.c.b16 %v5350, %v5348
      %v5941 = vpack.c.b16 %v5353, %v5351
      %v5942 = vpack.c.b16 %v5354, %v5352
      %v5943 = vpack.c.b16 %v5357, %v5355
      %v5944 = vpack.c.b16 %v5358, %v5356
      %v5945 = vpack.c.b16 %v5361, %v5359
      %v5946 = vpack.c.b16 %v5362, %v5360
      %v5947 = vpack.c.b16 %v5365, %v5363
      %v5948 = vpack.c.b16 %v5366, %v5364
      %v5949 = vpack.c.b16 %v5369, %v5367
      %v5950 = vpack.c.b16 %v5370, %v5368
      %v5951 = vpack.c.b16 %v5373, %v5371
      %v5952 = vpack.c.b16 %v5374, %v5372
      %v5953 = vpack.c.b16 %v5377, %v5375
      %v5954 = vpack.c.b16 %v5378, %v5376
      %v5955 = vpack.c.b16 %v5381, %v5379
      %v5956 = vpack.c.b16 %v5382, %v5380
      %v5957 = vpack.c.b16 %v5385, %v5383
      %v5958 = vpack.c.b16 %v5386, %v5384
      %v5959 = vpack.c.b16 %v5389, %v5387
      %v5960 = vpack.c.b16 %v5390, %v5388
      %v5961 = vpack.c.b16 %v5393, %v5391
      %v5962 = vpack.c.b16 %v5394, %v5392
      %v5963 = vpack.c.b16 %v5397, %v5395
      %v5964 = vpack.c.b16 %v5398, %v5396
      %v5965 = vpack.c.b16 %v5401, %v5399
      %v5966 = vpack.c.b16 %v5402, %v5400
      %v5967 = vpack.c.b16 %v5405, %v5403
      %v5968 = vpack.c.b16 %v5406, %v5404
      %v5969 = vpack.c.b16 %v5409, %v5407
      %v5970 = vpack.c.b16 %v5410, %v5408
      %v5971 = vpack.c.b16 %v5413, %v5411
      %v5972 = vpack.c.b16 %v5414, %v5412
      %v5973 = vpack.c.b16 %v5417, %v5415
      %v5974 = vpack.c.b16 %v5418, %v5416
      %v5975 = vpack.c.b16 %v5421, %v5419
      %v5976 = vpack.c.b16 %v5422, %v5420
      %v5977 = vpack.c.b16 %v5425, %v5423
      %v5978 = vpack.c.b16 %v5426, %v5424
      %v5979 = vpack.c.b16 %v5429, %v5427
      %v5980 = vpack.c.b16 %v5430, %v5428
      %v5981 = vpack.c.b16 %v5433, %v5431
      %v5982 = vpack.c.b16 %v5434, %v5432
      %v5983 = vpack.c.b16 %v5437, %v5435
      %v5984 = vpack.c.b16 %v5438, %v5436
      %v5985 = vpack.c.b16 %v5441, %v5439
      %v5986 = vpack.c.b16 %v5442, %v5440
      %v5987 = vpack.c.b16 %v5445, %v5443
      %v5988 = vpack.c.b16 %v5446, %v5444
      %v5989 = vpack.c.b16 %v5449, %v5447
      %v5990 = vpack.c.b16 %v5450, %v5448
      %v5991 = vpack.c.b16 %v5453, %v5451
      %v5992 = vpack.c.b16 %v5454, %v5452
      %v5993 = vpack.c.b16 %v5457, %v5455
      %v5994 = vpack.c.b16 %v5458, %v5456
      %v5995 = vpack.c.b16 %v5461, %v5459
      %v5996 = vpack.c.b16 %v5462, %v5460
      %v5997 = vpack.c.b16 %v5465, %v5463
      %v5998 = vpack.c.b16 %v5466, %v5464
      %v5999 = vpack.c.b16 %v5469, %v5467
      %v6000 = vpack.c.b16 %v5470, %v5468
      %v6001 = vpack.c.b16 %v5473, %v5471
      %v6002 = vpack.c.b16 %v5474, %v5472
      %v6003 = vpack.c.b16 %v5477, %v5475
      %v6004 = vpack.c.b16 %v5478, %v5476
      %v6005 = vpack.c.b16 %v5481, %v5479
      %v6006 = vpack.c.b16 %v5482, %v5480
      %v6007 = vpack.c.b16 %v5485, %v5483
      %v6008 = vpack.c.b16 %v5486, %v5484
      %v6009 = vpack.c.b16 %v5489, %v5487
      %v6010 = vpack.c.b16 %v5490, %v5488
      %v6011 = vpack.c.b16 %v5493, %v5491
      %v6012 = vpack.c.b16 %v5494, %v5492
      %v6013 = vpack.c.b16 %v5497, %v5495
      %v6014 = vpack.c.b16 %v5498, %v5496
      %v6015 = vpack.c.b16 %v5501, %v5499
      %v6016 = vpack.c.b16 %v5502, %v5500
      %v6017 = vpack.c.b16 %v5505, %v5503
      %v6018 = vpack.c.b16 %v5506, %v5504
      %v6019 = vpack.c.b16 %v5509, %v5507
      %v6020 = vpack.c.b16 %v5510, %v5508
      %v6021 = vpack.c.b16 %v5513, %v5511
      %v6022 = vpack.c.b16 %v5514, %v5512
      %v6023 = vpack.c.b16 %v5517, %v5515
      %v6024 = vpack.c.b16 %v5518, %v5516
      %v6025 = vpack.c.b16 %v5521, %v5519
      %v6026 = vpack.c.b16 %v5522, %v5520
      %v6027 = vpack.c.b16 %v5525, %v5523
      %v6028 = vpack.c.b16 %v5526, %v5524
      %v6029 = vpack.c.b16 %v5529, %v5527
      %v6030 = vpack.c.b16 %v5530, %v5528
      %v6031 = vpack.c.b16 %v5533, %v5531
      %v6032 = vpack.c.b16 %v5534, %v5532
      %v6033 = vpack.c.b16 %v5537, %v5535
      %v6034 = vpack.c.b16 %v5538, %v5536
      %v6035 = vpack.c.b16 %v5541, %v5539
      %v6036 = vpack.c.b16 %v5542, %v5540
      %v6037 = vpack.c.b16 %v5545, %v5543
      %v6038 = vpack.c.b16 %v5546, %v5544
      %v6039 = vpack.c.b16 %v5549, %v5547
      %v6040 = vpack.c.b16 %v5550, %v5548
      %v6041 = vpack.c.b16 %v5553, %v5551
      %v6042 = vpack.c.b16 %v5554, %v5552
      %v6043 = vpack.c.b16 %v5557, %v5555
      %v6044 = vpack.c.b16 %v5558, %v5556
      %v6045 = vpack.c.b16 %v5561, %v5559
      %v6046 = vpack.c.b16 %v5562, %v5560
      %v6047 = vpack.c.b16 %v5565, %v5563
      %v6048 = vpack.c.b16 %v5566, %v5564
      %v6049 = vpack.c.b16 %v5569, %v5567
      %v6050 = vpack.c.b16 %v5570, %v5568
      %v6051 = vpack.c.b16 %v5573, %v5571
      %v6052 = vpack.c.b16 %v5574, %v5572
      %v6053 = vpack.c.b16 %v5577, %v5575
      %v6054 = vpack.c.b16 %v5578, %v5576
      %v6055 = vpack.c.b16 %v5581, %v5579
      %v6056 = vpack.c.b16 %v5582, %v5580
      %v6057 = vpack.c.b16 %v5585, %v5583
      %v6058 = vpack.c.b16 %v5586, %v5584
      %v6059 = vpack.c.b16 %v5589, %v5587
      %v6060 = vpack.c.b16 %v5590, %v5588
      %v6061 = vpack.c.b16 %v5593, %v5591
      %v6062 = vpack.c.b16 %v5594, %v5592
      %v6063 = vpack.c.b16 %v5597, %v5595
      %v6064 = vpack.c.b16 %v5598, %v5596
      %v6065 = vpack.c.b16 %v5601, %v5599
      %v6066 = vpack.c.b16 %v5602, %v5600
      %v6067 = vpack.c.b16 %v5605, %v5603
      %v6068 = vpack.c.b16 %v5606, %v5604
      %v6069 = vpack.c.b16 %v5609, %v5607
      %v6070 = vpack.c.b16 %v5610, %v5608
      %v6071 = vpack.c.b16 %v5613, %v5611
      %v6072 = vpack.c.b16 %v5614, %v5612
      %v6073 = vpack.c.b16 %v5617, %v5615
      %v6074 = vpack.c.b16 %v5618, %v5616
      %v6075 = vpack.c.b16 %v5621, %v5619
      %v6076 = vpack.c.b16 %v5622, %v5620
      %v6077 = vpack.c.b16 %v5625, %v5623
      %v6078 = vpack.c.b16 %v5626, %v5624
      %v6079 = vpack.c.b16 %v5629, %v5627
      %v6080 = vpack.c.b16 %v5630, %v5628
      %v6081 = vpack.c.b16 %v5633, %v5631
      %v6082 = vpack.c.b16 %v5634, %v5632
      %v6083 = vpack.c.b16 %v5637, %v5635
      %v6084 = vpack.c.b16 %v5638, %v5636
      %v6085 = vpack.c.b16 %v5641, %v5639
      %v6086 = vpack.c.b16 %v5642, %v5640
      %v6087 = vpack.c.b16 %v5645, %v5643
      %v6088 = vpack.c.b16 %v5646, %v5644
      %v6089 = vpack.c.b16 %v5649, %v5647
      %v6090 = vpack.c.b16 %v5650, %v5648
      %v6091 = vpack.c.b16 %v5653, %v5651
      %v6092 = vpack.c.b16 %v5654, %v5652
      %v6093 = vpack.c.b16 %v5657, %v5655
      %v6094 = vpack.c.b16 %v5658, %v5656
      %v6095 = vpack.c.b16 %v5661, %v5659
      %v6096 = vpack.c.b16 %v5662, %v5660
      %v6097 = vpack.c.b16 %v5665, %v5663
      %v6098 = vpack.c.b16 %v5666, %v5664
      %v6099 = vpack.c.b16 %v5669, %v5667
      %v6100 = vpack.c.b16 %v5670, %v5668
      %v6101 = vpack.c.b16 %v5673, %v5671
      %v6102 = vpack.c.b16 %v5674, %v5672
      %v6103 = vpack.c.b16 %v5677, %v5675
      %v6104 = vpack.c.b16 %v5678, %v5676
      %v6105 = vpack.c.b16 %v5681, %v5679
      %v6106 = vpack.c.b16 %v5682, %v5680
      %v6107 = vpack.c.b16 %v5685, %v5683
      %v6108 = vpack.c.b16 %v5686, %v5684
      %v6109 = vpack.c.b16 %v5689, %v5687
      %v6110 = vpack.c.b16 %v5690, %v5688
      %v6111 = vpack.c.b16 %v5693, %v5691
      %v6112 = vpack.c.b16 %v5694, %v5692
      %v6113 = vpack.c.b16 %v5697, %v5695
      %v6114 = vpack.c.b16 %v5698, %v5696
      %v6115 = vpack.c.b16 %v5701, %v5699
      %v6116 = vpack.c.b16 %v5702, %v5700
      %v6117 = vpack.c.b16 %v5705, %v5703
      %v6118 = vpack.c.b16 %v5706, %v5704
      %v6119 = vpack.c.b16 %v5709, %v5707
      %v6120 = vpack.c.b16 %v5710, %v5708
      %v6121 = vpack.c.b16 %v5713, %v5711
      %v6122 = vpack.c.b16 %v5714, %v5712
      %v6123 = vpack.c.b16 %v5717, %v5715
      %v6124 = vpack.c.b16 %v5718, %v5716
      %v6125 = vpack.c.b16 %v5721, %v5719
      %v6126 = vpack.c.b16 %v5722, %v5720
      %v6127 = vpack.c.b16 %v5725, %v5723
      %v6128 = vpack.c.b16 %v5726, %v5724
      %v6129 = vpack.c.b16 %v5729, %v5727
      %v6130 = vpack.c.b16 %v5730, %v5728
      %v6131 = vpack.c.b16 %v5733, %v5731
      %v6132 = vpack.c.b16 %v5734, %v5732
      %v6133 = vpack.c.b16 %v5737, %v5735
      %v6134 = vpack.c.b16 %v5738, %v5736
      %v6135 = vpack.c.b16 %v5741, %v5739
      %v6136 = vpack.c.b16 %v5742, %v5740
      %v6137 = vpack.c.b16 %v5745, %v5743
      %v6138 = vpack.c.b16 %v5746, %v5744
      %v6139 = vpack.c.b16 %v5749, %v5747
      %v6140 = vpack.c.b16 %v5750, %v5748
      %v6141 = vpack.c.b16 %v5753, %v5751
      %v6142 = vpack.c.b16 %v5754, %v5752
      %v6143 = vpack.c.b16 %v5757, %v5755
      %v6144 = vpack.c.b16 %v5758, %v5756
      %v6145 = vpack.c.b16 %v5761, %v5759
      %v6146 = vpack.c.b16 %v5762, %v5760
      %v6532 = vlaneseq
      %v6533 = vshrl.u32 %v6532, 7
      %v6534 = vsub.s32 0, %v6533
      %v6535 = vrot.slane %v4610, %v6534
      %v6536 = vlaneseq
      %v6537 = vshrl.u32 %v6536, 7
      %v6538 = vsub.s32 1, %v6537
      %v6539 = vrot.slane %v4610, %v6538
      %6542 = vmatprep.subr.bf16.mxu0 %v5764
      %6543 = vmatpush1.bf16.msra.mxu0 %v5763
      %6544 = vmatprep.subr.bf16.mxu0 %v5766
      %6545 = vmatpush1.bf16.msra.mxu0 %v5765
      %6546 = vmatprep.subr.bf16.mxu0 %v5768
      %6547 = vmatpush1.bf16.msra.mxu0 %v5767
      %6548 = vmatprep.subr.bf16.mxu0 %v5770
      %6549 = vmatpush1.bf16.msra.mxu0 %v5769
      %6550 = vmatprep.subr.bf16.mxu0 %v5772
      %6551 = vmatpush1.bf16.msra.mxu0 %v5771
      %6552 = vmatprep.subr.bf16.mxu0 %v5774
      %6553 = vmatpush1.bf16.msra.mxu0 %v5773
      %6554 = vmatprep.subr.bf16.mxu0 %v5776
      %6555 = vmatpush1.bf16.msra.mxu0 %v5775
      %6556 = vmatprep.subr.bf16.mxu0 %v5778
      %6557 = vmatpush1.bf16.msra.mxu0 %v5777
      %6558 = vmatprep.subr.bf16.mxu0 %v5780
      %6559 = vmatpush1.bf16.msra.mxu0 %v5779
      %6560 = vmatprep.subr.bf16.mxu0 %v5782
      %6561 = vmatpush1.bf16.msra.mxu0 %v5781
      %6562 = vmatprep.subr.bf16.mxu0 %v5784
      %6563 = vmatpush1.bf16.msra.mxu0 %v5783
      %6564 = vmatprep.subr.bf16.mxu0 %v5786
      %6565 = vmatpush1.bf16.msra.mxu0 %v5785
      %6566 = vmatprep.subr.bf16.mxu0 %v5788
      %6567 = vmatpush1.bf16.msra.mxu0 %v5787
      %6568 = vmatprep.subr.bf16.mxu0 %v5790
      %6569 = vmatpush1.bf16.msra.mxu0 %v5789
      %6570 = vmatprep.subr.bf16.mxu0 %v5792
      %6571 = vmatpush1.bf16.msra.mxu0 %v5791
      %6572 = vmatprep.subr.bf16.mxu0 %v5794
      %6573 = vmatpush1.bf16.msra.mxu0 %v5793
      %6574 = vmatprep.mubr.bf16.mxu0 %v4203
      %6575 = vmatmul.mubr.bf16.gmra.mrb[0].mxu0 %v4202
      %v6576 = vpop.f32.mrb[0].mxu0
      %v6577 = vadd.f32 %v6535, %v6576
      %v6578 = vpop.f32.mrb[0].mxu0
      %v6579 = vadd.f32 %v6539, %v6578
      %v6580 = vpop.f32.mrb[0].mxu0
      %v6581 = vpop.f32.mrb[0].mxu0
      %6582 = vdwg.mxu0
      %6583 = vmatprep.subr.bf16.mxu0 %v5796
      %6584 = vmatpush1.bf16.msra.mxu0 %v5795
      %6585 = vmatprep.subr.bf16.mxu0 %v5798
      %6586 = vmatpush1.bf16.msra.mxu0 %v5797
      %6587 = vmatprep.subr.bf16.mxu0 %v5800
      %6588 = vmatpush1.bf16.msra.mxu0 %v5799
      %6589 = vmatprep.subr.bf16.mxu0 %v5802
      %6590 = vmatpush1.bf16.msra.mxu0 %v5801
      %6591 = vmatprep.subr.bf16.mxu0 %v5804
      %6592 = vmatpush1.bf16.msra.mxu0 %v5803
      %6593 = vmatprep.subr.bf16.mxu0 %v5806
      %6594 = vmatpush1.bf16.msra.mxu0 %v5805
      %6595 = vmatprep.subr.bf16.mxu0 %v5808
      %6596 = vmatpush1.bf16.msra.mxu0 %v5807
      %6597 = vmatprep.subr.bf16.mxu0 %v5810
      %6598 = vmatpush1.bf16.msra.mxu0 %v5809
      %6599 = vmatprep.subr.bf16.mxu0 %v5812
      %6600 = vmatpush1.bf16.msra.mxu0 %v5811
      %6601 = vmatprep.subr.bf16.mxu0 %v5814
      %6602 = vmatpush1.bf16.msra.mxu0 %v5813
      %6603 = vmatprep.subr.bf16.mxu0 %v5816
      %6604 = vmatpush1.bf16.msra.mxu0 %v5815
      %6605 = vmatprep.subr.bf16.mxu0 %v5818
      %6606 = vmatpush1.bf16.msra.mxu0 %v5817
      %6607 = vmatprep.subr.bf16.mxu0 %v5820
      %6608 = vmatpush1.bf16.msra.mxu0 %v5819
      %6609 = vmatprep.subr.bf16.mxu0 %v5822
      %6610 = vmatpush1.bf16.msra.mxu0 %v5821
      %6611 = vmatprep.subr.bf16.mxu0 %v5824
      %6612 = vmatpush1.bf16.msra.mxu0 %v5823
      %6613 = vmatprep.subr.bf16.mxu0 %v5826
      %6614 = vmatpush1.bf16.msra.mxu0 %v5825
      %6615 = vmatprep.mubr.bf16.mxu0 %v4205
      %6616 = vmatmul.mubr.bf16.gmra.mrb[0].mxu0 %v4204
      %v6617 = vpop.f32.mrb[0].mxu0
      %v6618 = vadd.f32 %v6577, %v6617
      %v6619 = vpop.f32.mrb[0].mxu0
      %v6620 = vadd.f32 %v6579, %v6619
      %v6621 = vpop.f32.mrb[0].mxu0
      %v6622 = vpop.f32.mrb[0].mxu0
      %6623 = vdwg.mxu0
      %6624 = vmatprep.subr.bf16.mxu0 %v5828
      %6625 = vmatpush1.bf16.msra.mxu0 %v5827
      %6626 = vmatprep.subr.bf16.mxu0 %v5830
      %6627 = vmatpush1.bf16.msra.mxu0 %v5829
      %6628 = vmatprep.subr.bf16.mxu0 %v5832
      %6629 = vmatpush1.bf16.msra.mxu0 %v5831
      %6630 = vmatprep.subr.bf16.mxu0 %v5834
      %6631 = vmatpush1.bf16.msra.mxu0 %v5833
      %6632 = vmatprep.subr.bf16.mxu0 %v5836
      %6633 = vmatpush1.bf16.msra.mxu0 %v5835
      %6634 = vmatprep.subr.bf16.mxu0 %v5838
      %6635 = vmatpush1.bf16.msra.mxu0 %v5837
      %6636 = vmatprep.subr.bf16.mxu0 %v5840
      %6637 = vmatpush1.bf16.msra.mxu0 %v5839
      %6638 = vmatprep.subr.bf16.mxu0 %v5842
      %6639 = vmatpush1.bf16.msra.mxu0 %v5841
      %6640 = vmatprep.subr.bf16.mxu0 %v5844
      %6641 = vmatpush1.bf16.msra.mxu0 %v5843
      %6642 = vmatprep.subr.bf16.mxu0 %v5846
      %6643 = vmatpush1.bf16.msra.mxu0 %v5845
      %6644 = vmatprep.subr.bf16.mxu0 %v5848
      %6645 = vmatpush1.bf16.msra.mxu0 %v5847
      %6646 = vmatprep.subr.bf16.mxu0 %v5850
      %6647 = vmatpush1.bf16.msra.mxu0 %v5849
      %6648 = vmatprep.subr.bf16.mxu0 %v5852
      %6649 = vmatpush1.bf16.msra.mxu0 %v5851
      %6650 = vmatprep.subr.bf16.mxu0 %v5854
      %6651 = vmatpush1.bf16.msra.mxu0 %v5853
      %6652 = vmatprep.subr.bf16.mxu0 %v5856
      %6653 = vmatpush1.bf16.msra.mxu0 %v5855
      %6654 = vmatprep.subr.bf16.mxu0 %v5858
      %6655 = vmatpush1.bf16.msra.mxu0 %v5857
      %6656 = vmatprep.mubr.bf16.mxu0 %v4207
      %6657 = vmatmul.mubr.bf16.gmra.mrb[0].mxu0 %v4206
      %v6658 = vpop.f32.mrb[0].mxu0
      %v6659 = vadd.f32 %v6618, %v6658
      %v6660 = vpop.f32.mrb[0].mxu0
      %v6661 = vadd.f32 %v6620, %v6660
      %v6662 = vpop.f32.mrb[0].mxu0
      %v6663 = vpop.f32.mrb[0].mxu0
      %6664 = vdwg.mxu0
      %6665 = vmatprep.subr.bf16.mxu0 %v5860
      %6666 = vmatpush1.bf16.msra.mxu0 %v5859
      %6667 = vmatprep.subr.bf16.mxu0 %v5862
      %6668 = vmatpush1.bf16.msra.mxu0 %v5861
      %6669 = vmatprep.subr.bf16.mxu0 %v5864
      %6670 = vmatpush1.bf16.msra.mxu0 %v5863
      %6671 = vmatprep.subr.bf16.mxu0 %v5866
      %6672 = vmatpush1.bf16.msra.mxu0 %v5865
      %6673 = vmatprep.subr.bf16.mxu0 %v5868
      %6674 = vmatpush1.bf16.msra.mxu0 %v5867
      %6675 = vmatprep.subr.bf16.mxu0 %v5870
      %6676 = vmatpush1.bf16.msra.mxu0 %v5869
      %6677 = vmatprep.subr.bf16.mxu0 %v5872
      %6678 = vmatpush1.bf16.msra.mxu0 %v5871
      %6679 = vmatprep.subr.bf16.mxu0 %v5874
      %6680 = vmatpush1.bf16.msra.mxu0 %v5873
      %6681 = vmatprep.subr.bf16.mxu0 %v5876
      %6682 = vmatpush1.bf16.msra.mxu0 %v5875
      %6683 = vmatprep.subr.bf16.mxu0 %v5878
      %6684 = vmatpush1.bf16.msra.mxu0 %v5877
      %6685 = vmatprep.subr.bf16.mxu0 %v5880
      %6686 = vmatpush1.bf16.msra.mxu0 %v5879
      %6687 = vmatprep.subr.bf16.mxu0 %v5882
      %6688 = vmatpush1.bf16.msra.mxu0 %v5881
      %6689 = vmatprep.subr.bf16.mxu0 %v5884
      %6690 = vmatpush1.bf16.msra.mxu0 %v5883
      %6691 = vmatprep.subr.bf16.mxu0 %v5886
      %6692 = vmatpush1.bf16.msra.mxu0 %v5885
      %6693 = vmatprep.subr.bf16.mxu0 %v5888
      %6694 = vmatpush1.bf16.msra.mxu0 %v5887
      %6695 = vmatprep.subr.bf16.mxu0 %v5890
      %6696 = vmatpush1.bf16.msra.mxu0 %v5889
      %6697 = vmatprep.mubr.bf16.mxu0 %v4209
      %6698 = vmatmul.mubr.bf16.gmra.mrb[0].mxu0 %v4208
      %v6699 = vpop.f32.mrb[0].mxu0
      %v6700 = vadd.f32 %v6659, %v6699
      %v6701 = vpop.f32.mrb[0].mxu0
      %v6702 = vadd.f32 %v6661, %v6701
      %v6703 = vpop.f32.mrb[0].mxu0
      %v6704 = vpop.f32.mrb[0].mxu0
      %6705 = vdwg.mxu0
      %6706 = vmatprep.subr.bf16.mxu0 %v5892
      %6707 = vmatpush1.bf16.msra.mxu0 %v5891
      %6708 = vmatprep.subr.bf16.mxu0 %v5894
      %6709 = vmatpush1.bf16.msra.mxu0 %v5893
      %6710 = vmatprep.subr.bf16.mxu0 %v5896
      %6711 = vmatpush1.bf16.msra.mxu0 %v5895
      %6712 = vmatprep.subr.bf16.mxu0 %v5898
      %6713 = vmatpush1.bf16.msra.mxu0 %v5897
      %6714 = vmatprep.subr.bf16.mxu0 %v5900
      %6715 = vmatpush1.bf16.msra.mxu0 %v5899
      %6716 = vmatprep.subr.bf16.mxu0 %v5902
      %6717 = vmatpush1.bf16.msra.mxu0 %v5901
      %6718 = vmatprep.subr.bf16.mxu0 %v5904
      %6719 = vmatpush1.bf16.msra.mxu0 %v5903
      %6720 = vmatprep.subr.bf16.mxu0 %v5906
      %6721 = vmatpush1.bf16.msra.mxu0 %v5905
      %6722 = vmatprep.subr.bf16.mxu0 %v5908
      %6723 = vmatpush1.bf16.msra.mxu0 %v5907
      %6724 = vmatprep.subr.bf16.mxu0 %v5910
      %6725 = vmatpush1.bf16.msra.mxu0 %v5909
      %6726 = vmatprep.subr.bf16.mxu0 %v5912
      %6727 = vmatpush1.bf16.msra.mxu0 %v5911
      %6728 = vmatprep.subr.bf16.mxu0 %v5914
      %6729 = vmatpush1.bf16.msra.mxu0 %v5913
      %6730 = vmatprep.subr.bf16.mxu0 %v5916
      %6731 = vmatpush1.bf16.msra.mxu0 %v5915
      %6732 = vmatprep.subr.bf16.mxu0 %v5918
      %6733 = vmatpush1.bf16.msra.mxu0 %v5917
      %6734 = vmatprep.subr.bf16.mxu0 %v5920
      %6735 = vmatpush1.bf16.msra.mxu0 %v5919
      %6736 = vmatprep.subr.bf16.mxu0 %v5922
      %6737 = vmatpush1.bf16.msra.mxu0 %v5921
      %6738 = vmatprep.mubr.bf16.mxu0 %v4211
      %6739 = vmatmul.mubr.bf16.gmra.mrb[0].mxu0 %v4210
      %v6740 = vpop.f32.mrb[0].mxu0
      %v6741 = vadd.f32 %v6700, %v6740
      %v6742 = vpop.f32.mrb[0].mxu0
      %v6743 = vadd.f32 %v6702, %v6742
      %v6744 = vpop.f32.mrb[0].mxu0
      %v6745 = vpop.f32.mrb[0].mxu0
      %6746 = vdwg.mxu0
      %6747 = vmatprep.subr.bf16.mxu0 %v5924
      %6748 = vmatpush1.bf16.msra.mxu0 %v5923
      %6749 = vmatprep.subr.bf16.mxu0 %v5926
      %6750 = vmatpush1.bf16.msra.mxu0 %v5925
      %6751 = vmatprep.subr.bf16.mxu0 %v5928
      %6752 = vmatpush1.bf16.msra.mxu0 %v5927
      %6753 = vmatprep.subr.bf16.mxu0 %v5930
      %6754 = vmatpush1.bf16.msra.mxu0 %v5929
      %6755 = vmatprep.subr.bf16.mxu0 %v5932
      %6756 = vmatpush1.bf16.msra.mxu0 %v5931
      %6757 = vmatprep.subr.bf16.mxu0 %v5934
      %6758 = vmatpush1.bf16.msra.mxu0 %v5933
      %6759 = vmatprep.subr.bf16.mxu0 %v5936
      %6760 = vmatpush1.bf16.msra.mxu0 %v5935
      %6761 = vmatprep.subr.bf16.mxu0 %v5938
      %6762 = vmatpush1.bf16.msra.mxu0 %v5937
      %6763 = vmatprep.subr.bf16.mxu0 %v5940
      %6764 = vmatpush1.bf16.msra.mxu0 %v5939
      %6765 = vmatprep.subr.bf16.mxu0 %v5942
      %6766 = vmatpush1.bf16.msra.mxu0 %v5941
      %6767 = vmatprep.subr.bf16.mxu0 %v5944
      %6768 = vmatpush1.bf16.msra.mxu0 %v5943
      %6769 = vmatprep.subr.bf16.mxu0 %v5946
      %6770 = vmatpush1.bf16.msra.mxu0 %v5945
      %6771 = vmatprep.subr.bf16.mxu0 %v5948
      %6772 = vmatpush1.bf16.msra.mxu0 %v5947
      %6773 = vmatprep.subr.bf16.mxu0 %v5950
      %6774 = vmatpush1.bf16.msra.mxu0 %v5949
      %6775 = vmatprep.subr.bf16.mxu0 %v5952
      %6776 = vmatpush1.bf16.msra.mxu0 %v5951
      %6777 = vmatprep.subr.bf16.mxu0 %v5954
      %6778 = vmatpush1.bf16.msra.mxu0 %v5953
      %6779 = vmatprep.mubr.bf16.mxu0 %v4213
      %6780 = vmatmul.mubr.bf16.gmra.mrb[0].mxu0 %v4212
      %v6781 = vpop.f32.mrb[0].mxu0
      %v6782 = vadd.f32 %v6741, %v6781
      %v6783 = vpop.f32.mrb[0].mxu0
      %v6784 = vadd.f32 %v6743, %v6783
      %v6785 = vpop.f32.mrb[0].mxu0
      %v6786 = vpop.f32.mrb[0].mxu0
      %6787 = vdwg.mxu0
      %6788 = vmatprep.subr.bf16.mxu0 %v5956
      %6789 = vmatpush1.bf16.msra.mxu0 %v5955
      %6790 = vmatprep.subr.bf16.mxu0 %v5958
      %6791 = vmatpush1.bf16.msra.mxu0 %v5957
      %6792 = vmatprep.subr.bf16.mxu0 %v5960
      %6793 = vmatpush1.bf16.msra.mxu0 %v5959
      %6794 = vmatprep.subr.bf16.mxu0 %v5962
      %6795 = vmatpush1.bf16.msra.mxu0 %v5961
      %6796 = vmatprep.subr.bf16.mxu0 %v5964
      %6797 = vmatpush1.bf16.msra.mxu0 %v5963
      %6798 = vmatprep.subr.bf16.mxu0 %v5966
      %6799 = vmatpush1.bf16.msra.mxu0 %v5965
      %6800 = vmatprep.subr.bf16.mxu0 %v5968
      %6801 = vmatpush1.bf16.msra.mxu0 %v5967
      %6802 = vmatprep.subr.bf16.mxu0 %v5970
      %6803 = vmatpush1.bf16.msra.mxu0 %v5969
      %6804 = vmatprep.subr.bf16.mxu0 %v5972
      %6805 = vmatpush1.bf16.msra.mxu0 %v5971
      %6806 = vmatprep.subr.bf16.mxu0 %v5974
      %6807 = vmatpush1.bf16.msra.mxu0 %v5973
      %6808 = vmatprep.subr.bf16.mxu0 %v5976
      %6809 = vmatpush1.bf16.msra.mxu0 %v5975
      %6810 = vmatprep.subr.bf16.mxu0 %v5978
      %6811 = vmatpush1.bf16.msra.mxu0 %v5977
      %6812 = vmatprep.subr.bf16.mxu0 %v5980
      %6813 = vmatpush1.bf16.msra.mxu0 %v5979
      %6814 = vmatprep.subr.bf16.mxu0 %v5982
      %6815 = vmatpush1.bf16.msra.mxu0 %v5981
      %6816 = vmatprep.subr.bf16.mxu0 %v5984
      %6817 = vmatpush1.bf16.msra.mxu0 %v5983
      %6818 = vmatprep.subr.bf16.mxu0 %v5986
      %6819 = vmatpush1.bf16.msra.mxu0 %v5985
      %6820 = vmatprep.mubr.bf16.mxu0 %v4215
      %6821 = vmatmul.mubr.bf16.gmra.mrb[0].mxu0 %v4214
      %v6822 = vpop.f32.mrb[0].mxu0
      %v6823 = vadd.f32 %v6782, %v6822
      %v6824 = vpop.f32.mrb[0].mxu0
      %v6825 = vadd.f32 %v6784, %v6824
      %v6826 = vpop.f32.mrb[0].mxu0
      %v6827 = vpop.f32.mrb[0].mxu0
      %6828 = vdwg.mxu0
      %6829 = vmatprep.subr.bf16.mxu0 %v5988
      %6830 = vmatpush1.bf16.msra.mxu0 %v5987
      %6831 = vmatprep.subr.bf16.mxu0 %v5990
      %6832 = vmatpush1.bf16.msra.mxu0 %v5989
      %6833 = vmatprep.subr.bf16.mxu0 %v5992
      %6834 = vmatpush1.bf16.msra.mxu0 %v5991
      %6835 = vmatprep.subr.bf16.mxu0 %v5994
      %6836 = vmatpush1.bf16.msra.mxu0 %v5993
      %6837 = vmatprep.subr.bf16.mxu0 %v5996
      %6838 = vmatpush1.bf16.msra.mxu0 %v5995
      %6839 = vmatprep.subr.bf16.mxu0 %v5998
      %6840 = vmatpush1.bf16.msra.mxu0 %v5997
      %6841 = vmatprep.subr.bf16.mxu0 %v6000
      %6842 = vmatpush1.bf16.msra.mxu0 %v5999
      %6843 = vmatprep.subr.bf16.mxu0 %v6002
      %6844 = vmatpush1.bf16.msra.mxu0 %v6001
      %6845 = vmatprep.subr.bf16.mxu0 %v6004
      %6846 = vmatpush1.bf16.msra.mxu0 %v6003
      %6847 = vmatprep.subr.bf16.mxu0 %v6006
      %6848 = vmatpush1.bf16.msra.mxu0 %v6005
      %6849 = vmatprep.subr.bf16.mxu0 %v6008
      %6850 = vmatpush1.bf16.msra.mxu0 %v6007
      %6851 = vmatprep.subr.bf16.mxu0 %v6010
      %6852 = vmatpush1.bf16.msra.mxu0 %v6009
      %6853 = vmatprep.subr.bf16.mxu0 %v6012
      %6854 = vmatpush1.bf16.msra.mxu0 %v6011
      %6855 = vmatprep.subr.bf16.mxu0 %v6014
      %6856 = vmatpush1.bf16.msra.mxu0 %v6013
      %6857 = vmatprep.subr.bf16.mxu0 %v6016
      %6858 = vmatpush1.bf16.msra.mxu0 %v6015
      %6859 = vmatprep.subr.bf16.mxu0 %v6018
      %6860 = vmatpush1.bf16.msra.mxu0 %v6017
      %6861 = vmatprep.mubr.bf16.mxu0 %v4217
      %6862 = vmatmul.mubr.bf16.gmra.mrb[0].mxu0 %v4216
      %v6863 = vpop.f32.mrb[0].mxu0
      %v6864 = vadd.f32 %v6823, %v6863
      %v6865 = vpop.f32.mrb[0].mxu0
      %v6866 = vadd.f32 %v6825, %v6865
      %v6867 = vpop.f32.mrb[0].mxu0
      %v6868 = vpop.f32.mrb[0].mxu0
      %6869 = vdwg.mxu0
      %6870 = vmatprep.subr.bf16.mxu0 %v6020
      %6871 = vmatpush1.bf16.msra.mxu0 %v6019
      %6872 = vmatprep.subr.bf16.mxu0 %v6022
      %6873 = vmatpush1.bf16.msra.mxu0 %v6021
      %6874 = vmatprep.subr.bf16.mxu0 %v6024
      %6875 = vmatpush1.bf16.msra.mxu0 %v6023
      %6876 = vmatprep.subr.bf16.mxu0 %v6026
      %6877 = vmatpush1.bf16.msra.mxu0 %v6025
      %6878 = vmatprep.subr.bf16.mxu0 %v6028
      %6879 = vmatpush1.bf16.msra.mxu0 %v6027
      %6880 = vmatprep.subr.bf16.mxu0 %v6030
      %6881 = vmatpush1.bf16.msra.mxu0 %v6029
      %6882 = vmatprep.subr.bf16.mxu0 %v6032
      %6883 = vmatpush1.bf16.msra.mxu0 %v6031
      %6884 = vmatprep.subr.bf16.mxu0 %v6034
      %6885 = vmatpush1.bf16.msra.mxu0 %v6033
      %6886 = vmatprep.subr.bf16.mxu0 %v6036
      %6887 = vmatpush1.bf16.msra.mxu0 %v6035
      %6888 = vmatprep.subr.bf16.mxu0 %v6038
      %6889 = vmatpush1.bf16.msra.mxu0 %v6037
      %6890 = vmatprep.subr.bf16.mxu0 %v6040
      %6891 = vmatpush1.bf16.msra.mxu0 %v6039
      %6892 = vmatprep.subr.bf16.mxu0 %v6042
      %6893 = vmatpush1.bf16.msra.mxu0 %v6041
      %6894 = vmatprep.subr.bf16.mxu0 %v6044
      %6895 = vmatpush1.bf16.msra.mxu0 %v6043
      %6896 = vmatprep.subr.bf16.mxu0 %v6046
      %6897 = vmatpush1.bf16.msra.mxu0 %v6045
      %6898 = vmatprep.subr.bf16.mxu0 %v6048
      %6899 = vmatpush1.bf16.msra.mxu0 %v6047
      %6900 = vmatprep.subr.bf16.mxu0 %v6050
      %6901 = vmatpush1.bf16.msra.mxu0 %v6049
      %6902 = vmatprep.mubr.bf16.mxu0 %v4219
      %6903 = vmatmul.mubr.bf16.gmra.mrb[0].mxu0 %v4218
      %v6904 = vpop.f32.mrb[0].mxu0
      %v6905 = vadd.f32 %v6864, %v6904
      %v6906 = vpop.f32.mrb[0].mxu0
      %v6907 = vadd.f32 %v6866, %v6906
      %v6908 = vpop.f32.mrb[0].mxu0
      %v6909 = vpop.f32.mrb[0].mxu0
      %6910 = vdwg.mxu0
      %6911 = vmatprep.subr.bf16.mxu0 %v6052
      %6912 = vmatpush1.bf16.msra.mxu0 %v6051
      %6913 = vmatprep.subr.bf16.mxu0 %v6054
      %6914 = vmatpush1.bf16.msra.mxu0 %v6053
      %6915 = vmatprep.subr.bf16.mxu0 %v6056
      %6916 = vmatpush1.bf16.msra.mxu0 %v6055
      %6917 = vmatprep.subr.bf16.mxu0 %v6058
      %6918 = vmatpush1.bf16.msra.mxu0 %v6057
      %6919 = vmatprep.subr.bf16.mxu0 %v6060
      %6920 = vmatpush1.bf16.msra.mxu0 %v6059
      %6921 = vmatprep.subr.bf16.mxu0 %v6062
      %6922 = vmatpush1.bf16.msra.mxu0 %v6061
      %6923 = vmatprep.subr.bf16.mxu0 %v6064
      %6924 = vmatpush1.bf16.msra.mxu0 %v6063
      %6925 = vmatprep.subr.bf16.mxu0 %v6066
      %6926 = vmatpush1.bf16.msra.mxu0 %v6065
      %6927 = vmatprep.subr.bf16.mxu0 %v6068
      %6928 = vmatpush1.bf16.msra.mxu0 %v6067
      %6929 = vmatprep.subr.bf16.mxu0 %v6070
      %6930 = vmatpush1.bf16.msra.mxu0 %v6069
      %6931 = vmatprep.subr.bf16.mxu0 %v6072
      %6932 = vmatpush1.bf16.msra.mxu0 %v6071
      %6933 = vmatprep.subr.bf16.mxu0 %v6074
      %6934 = vmatpush1.bf16.msra.mxu0 %v6073
      %6935 = vmatprep.subr.bf16.mxu0 %v6076
      %6936 = vmatpush1.bf16.msra.mxu0 %v6075
      %6937 = vmatprep.subr.bf16.mxu0 %v6078
      %6938 = vmatpush1.bf16.msra.mxu0 %v6077
      %6939 = vmatprep.subr.bf16.mxu0 %v6080
      %6940 = vmatpush1.bf16.msra.mxu0 %v6079
      %6941 = vmatprep.subr.bf16.mxu0 %v6082
      %6942 = vmatpush1.bf16.msra.mxu0 %v6081
      %6943 = vmatprep.mubr.bf16.mxu0 %v4221
      %6944 = vmatmul.mubr.bf16.gmra.mrb[0].mxu0 %v4220
      %v6945 = vpop.f32.mrb[0].mxu0
      %v6946 = vadd.f32 %v6905, %v6945
      %v6947 = vpop.f32.mrb[0].mxu0
      %v6948 = vadd.f32 %v6907, %v6947
      %v6949 = vpop.f32.mrb[0].mxu0
      %v6950 = vpop.f32.mrb[0].mxu0
      %6951 = vdwg.mxu0
      %6952 = vmatprep.subr.bf16.mxu0 %v6084
      %6953 = vmatpush1.bf16.msra.mxu0 %v6083
      %6954 = vmatprep.subr.bf16.mxu0 %v6086
      %6955 = vmatpush1.bf16.msra.mxu0 %v6085
      %6956 = vmatprep.subr.bf16.mxu0 %v6088
      %6957 = vmatpush1.bf16.msra.mxu0 %v6087
      %6958 = vmatprep.subr.bf16.mxu0 %v6090
      %6959 = vmatpush1.bf16.msra.mxu0 %v6089
      %6960 = vmatprep.subr.bf16.mxu0 %v6092
      %6961 = vmatpush1.bf16.msra.mxu0 %v6091
      %6962 = vmatprep.subr.bf16.mxu0 %v6094
      %6963 = vmatpush1.bf16.msra.mxu0 %v6093
      %6964 = vmatprep.subr.bf16.mxu0 %v6096
      %6965 = vmatpush1.bf16.msra.mxu0 %v6095
      %6966 = vmatprep.subr.bf16.mxu0 %v6098
      %6967 = vmatpush1.bf16.msra.mxu0 %v6097
      %6968 = vmatprep.subr.bf16.mxu0 %v6100
      %6969 = vmatpush1.bf16.msra.mxu0 %v6099
      %6970 = vmatprep.subr.bf16.mxu0 %v6102
      %6971 = vmatpush1.bf16.msra.mxu0 %v6101
      %6972 = vmatprep.subr.bf16.mxu0 %v6104
      %6973 = vmatpush1.bf16.msra.mxu0 %v6103
      %6974 = vmatprep.subr.bf16.mxu0 %v6106
      %6975 = vmatpush1.bf16.msra.mxu0 %v6105
      %6976 = vmatprep.subr.bf16.mxu0 %v6108
      %6977 = vmatpush1.bf16.msra.mxu0 %v6107
      %6978 = vmatprep.subr.bf16.mxu0 %v6110
      %6979 = vmatpush1.bf16.msra.mxu0 %v6109
      %6980 = vmatprep.subr.bf16.mxu0 %v6112
      %6981 = vmatpush1.bf16.msra.mxu0 %v6111
      %6982 = vmatprep.subr.bf16.mxu0 %v6114
      %6983 = vmatpush1.bf16.msra.mxu0 %v6113
      %6984 = vmatprep.mubr.bf16.mxu0 %v4223
      %6985 = vmatmul.mubr.bf16.gmra.mrb[0].mxu0 %v4222
      %v6986 = vpop.f32.mrb[0].mxu0
      %v6987 = vadd.f32 %v6946, %v6986
      %v6988 = vpop.f32.mrb[0].mxu0
      %v6989 = vadd.f32 %v6948, %v6988
      %v6990 = vpop.f32.mrb[0].mxu0
      %v6991 = vpop.f32.mrb[0].mxu0
      %6992 = vdwg.mxu0
      %6993 = vmatprep.subr.bf16.mxu0 %v6116
      %6994 = vmatpush1.bf16.msra.mxu0 %v6115
      %6995 = vmatprep.subr.bf16.mxu0 %v6118
      %6996 = vmatpush1.bf16.msra.mxu0 %v6117
      %6997 = vmatprep.subr.bf16.mxu0 %v6120
      %6998 = vmatpush1.bf16.msra.mxu0 %v6119
      %6999 = vmatprep.subr.bf16.mxu0 %v6122
      %7000 = vmatpush1.bf16.msra.mxu0 %v6121
      %7001 = vmatprep.subr.bf16.mxu0 %v6124
      %7002 = vmatpush1.bf16.msra.mxu0 %v6123
      %7003 = vmatprep.subr.bf16.mxu0 %v6126
      %7004 = vmatpush1.bf16.msra.mxu0 %v6125
      %7005 = vmatprep.subr.bf16.mxu0 %v6128
      %7006 = vmatpush1.bf16.msra.mxu0 %v6127
      %7007 = vmatprep.subr.bf16.mxu0 %v6130
      %7008 = vmatpush1.bf16.msra.mxu0 %v6129
      %7009 = vmatprep.subr.bf16.mxu0 %v6132
      %7010 = vmatpush1.bf16.msra.mxu0 %v6131
      %7011 = vmatprep.subr.bf16.mxu0 %v6134
      %7012 = vmatpush1.bf16.msra.mxu0 %v6133
      %7013 = vmatprep.subr.bf16.mxu0 %v6136
      %7014 = vmatpush1.bf16.msra.mxu0 %v6135
      %7015 = vmatprep.subr.bf16.mxu0 %v6138
      %7016 = vmatpush1.bf16.msra.mxu0 %v6137
      %7017 = vmatprep.subr.bf16.mxu0 %v6140
      %7018 = vmatpush1.bf16.msra.mxu0 %v6139
      %7019 = vmatprep.subr.bf16.mxu0 %v6142
      %7020 = vmatpush1.bf16.msra.mxu0 %v6141
      %7021 = vmatprep.subr.bf16.mxu0 %v6144
      %7022 = vmatpush1.bf16.msra.mxu0 %v6143
      %7023 = vmatprep.subr.bf16.mxu0 %v6146
      %7024 = vmatpush1.bf16.msra.mxu0 %v6145
      %7025 = vmatprep.mubr.bf16.mxu0 %v4225
      %7026 = vmatmul.mubr.bf16.gmra.mrb[0].mxu0 %v4224
      %v7027 = vpop.f32.mrb[0].mxu0
      %v7028 = vadd.f32 %v6987, %v7027
      %v7029 = vpop.f32.mrb[0].mxu0
      %v7030 = vadd.f32 %v6989, %v7029
      %v7031 = vpop.f32.mrb[0].mxu0
      %v7032 = vpop.f32.mrb[0].mxu0
      %7033 = vdwg.mxu0
      %v7034 = vmax.f32 %v7028, 0.0
      %v7035 = vmax.f32 %v7030, 0.0
      %v7036 = vpack.c.bf16 %v7034, %v7034
      %v7037 = vpack.c.bf16 %v7035, %v7035
      %v7038 = vld [vmem:[%s11] sm:$0xf]
      %v7039 = vld [vmem:[%s11 + $0x4] sm:$0xf]
      %v7040 = vld [vmem:[%s11 + $0x8] sm:$0xf]
      %v7041 = vld [vmem:[%s11 + $0xc] sm:$0xf]
      %v7042 = vld [vmem:[%s11 + $0x10] sm:$0xf]
      %v7043 = vld [vmem:[%s11 + $0x14] sm:$0xf]
      %v7044 = vld [vmem:[%s11 + $0x18] sm:$0xf]
      %v7045 = vld [vmem:[%s11 + $0x1c] sm:$0xf]
      %v7046 = vld [vmem:[%s11 + $0x20] sm:$0xf]
      %v7047 = vld [vmem:[%s11 + $0x24] sm:$0xf]
      %v7048 = vld [vmem:[%s11 + $0x28] sm:$0xf]
      %v7049 = vld [vmem:[%s11 + $0x2c] sm:$0xf]
      %v7050 = vld [vmem:[%s11 + $0x30] sm:$0xf]
      %v7051 = vld [vmem:[%s11 + $0x34] sm:$0xf]
      %v7052 = vld [vmem:[%s11 + $0x38] sm:$0xf]
      %v7053 = vld [vmem:[%s11 + $0x3c] sm:$0xf]
      %v7054 = vld [vmem:[%s11 + $0x40] sm:$0xf]
      %v7055 = vld [vmem:[%s11 + $0x44] sm:$0xf]
      %v7056 = vld [vmem:[%s11 + $0x48] sm:$0xf]
      %v7057 = vld [vmem:[%s11 + $0x4c] sm:$0xf]
      %v7058 = vld [vmem:[%s11 + $0x50] sm:$0xf]
      %v7059 = vld [vmem:[%s11 + $0x54] sm:$0xf]
      %v7060 = vld [vmem:[%s11 + $0x58] sm:$0xf]
      %v7061 = vld [vmem:[%s11 + $0x5c] sm:$0xf]
      %v7062 = vld [vmem:[%s11 + $0x60] sm:$0xf]
      %v7063 = vld [vmem:[%s11 + $0x64] sm:$0xf]
      %v7064 = vld [vmem:[%s11 + $0x68] sm:$0xf]
      %v7065 = vld [vmem:[%s11 + $0x6c] sm:$0xf]
      %v7066 = vld [vmem:[%s11 + $0x70] sm:$0xf]
      %v7067 = vld [vmem:[%s11 + $0x74] sm:$0xf]
      %v7068 = vld [vmem:[%s11 + $0x78] sm:$0xf]
      %v7069 = vld [vmem:[%s11 + $0x7c] sm:$0xf]
      %v7070 = vld [vmem:[%s12] sm:$0x1]
      %v7103 = vunpack.c.l.b16 %v7038
      %v7104 = vunpack.c.l.b16 %v7039
      %v7105 = vunpack.c.l.b16 %v7040
      %v7106 = vunpack.c.l.b16 %v7041
      %v7107 = vunpack.c.l.b16 %v7042
      %v7108 = vunpack.c.l.b16 %v7043
      %v7109 = vunpack.c.l.b16 %v7044
      %v7110 = vunpack.c.l.b16 %v7045
      %v7111 = vunpack.c.l.b16 %v7046
      %v7112 = vunpack.c.l.b16 %v7047
      %v7113 = vunpack.c.l.b16 %v7048
      %v7114 = vunpack.c.l.b16 %v7049
      %v7115 = vunpack.c.l.b16 %v7050
      %v7116 = vunpack.c.l.b16 %v7051
      %v7117 = vunpack.c.l.b16 %v7052
      %v7118 = vunpack.c.l.b16 %v7053
      %v7119 = vunpack.c.l.b16 %v7054
      %v7120 = vunpack.c.l.b16 %v7055
      %v7121 = vunpack.c.l.b16 %v7056
      %v7122 = vunpack.c.l.b16 %v7057
      %v7123 = vunpack.c.l.b16 %v7058
      %v7124 = vunpack.c.l.b16 %v7059
      %v7125 = vunpack.c.l.b16 %v7060
      %v7126 = vunpack.c.l.b16 %v7061
      %v7127 = vunpack.c.l.b16 %v7062
      %v7128 = vunpack.c.l.b16 %v7063
      %v7129 = vunpack.c.l.b16 %v7064
      %v7130 = vunpack.c.l.b16 %v7065
      %v7131 = vunpack.c.l.b16 %v7066
      %v7132 = vunpack.c.l.b16 %v7067
      %v7133 = vunpack.c.l.b16 %v7068
      %v7134 = vunpack.c.l.b16 %v7069
      %v7135 = vpack.c.b16 %v7104, %v7103
      %v7136 = vpack.c.b16 %v7106, %v7105
      %v7137 = vpack.c.b16 %v7108, %v7107
      %v7138 = vpack.c.b16 %v7110, %v7109
      %v7139 = vpack.c.b16 %v7112, %v7111
      %v7140 = vpack.c.b16 %v7114, %v7113
      %v7141 = vpack.c.b16 %v7116, %v7115
      %v7142 = vpack.c.b16 %v7118, %v7117
      %v7143 = vpack.c.b16 %v7120, %v7119
      %v7144 = vpack.c.b16 %v7122, %v7121
      %v7145 = vpack.c.b16 %v7124, %v7123
      %v7146 = vpack.c.b16 %v7126, %v7125
      %v7147 = vpack.c.b16 %v7128, %v7127
      %v7148 = vpack.c.b16 %v7130, %v7129
      %v7149 = vpack.c.b16 %v7132, %v7131
      %v7150 = vpack.c.b16 %v7134, %v7133
      %7167 = vmatprep.subr.bf16.mxu0 0
      %7168 = vmatpush1.bf16.msra.mxu0 %v7135
      %7169 = vmatprep.subr.bf16.mxu0 0
      %7170 = vmatpush1.bf16.msra.mxu0 %v7136
      %7171 = vmatprep.subr.bf16.mxu0 0
      %7172 = vmatpush1.bf16.msra.mxu0 %v7137
      %7173 = vmatprep.subr.bf16.mxu0 0
      %7174 = vmatpush1.bf16.msra.mxu0 %v7138
      %7175 = vmatprep.subr.bf16.mxu0 0
      %7176 = vmatpush1.bf16.msra.mxu0 %v7139
      %7177 = vmatprep.subr.bf16.mxu0 0
      %7178 = vmatpush1.bf16.msra.mxu0 %v7140
      %7179 = vmatprep.subr.bf16.mxu0 0
      %7180 = vmatpush1.bf16.msra.mxu0 %v7141
      %7181 = vmatprep.subr.bf16.mxu0 0
      %7182 = vmatpush1.bf16.msra.mxu0 %v7142
      %7183 = vmatprep.subr.bf16.mxu0 0
      %7184 = vmatpush1.bf16.msra.mxu0 %v7143
      %7185 = vmatprep.subr.bf16.mxu0 0
      %7186 = vmatpush1.bf16.msra.mxu0 %v7144
      %7187 = vmatprep.subr.bf16.mxu0 0
      %7188 = vmatpush1.bf16.msra.mxu0 %v7145
      %7189 = vmatprep.subr.bf16.mxu0 0
      %7190 = vmatpush1.bf16.msra.mxu0 %v7146
      %7191 = vmatprep.subr.bf16.mxu0 0
      %7192 = vmatpush1.bf16.msra.mxu0 %v7147
      %7193 = vmatprep.subr.bf16.mxu0 0
      %7194 = vmatpush1.bf16.msra.mxu0 %v7148
      %7195 = vmatprep.subr.bf16.mxu0 0
      %7196 = vmatpush1.bf16.msra.mxu0 %v7149
      %7197 = vmatprep.subr.bf16.mxu0 0
      %7198 = vmatpush1.bf16.msra.mxu0 %v7150
      %7199 = vmatprep.mubr.bf16.mxu0 %v7037
      %7200 = vmatmul.mubr.bf16.gmra.mrb[0].mxu0 %v7036
      %v7201 = vpop.f32.mrb[0].mxu0
      %v7202 = vadd.f32 %v7070, %v7201
      %v7203 = vpop.f32.mrb[0].mxu0
      %v7204 = vpop.f32.mrb[0].mxu0
      %v7205 = vpop.f32.mrb[0].mxu0
      %7206 = vdwg.mxu0
      %v7210 = vcombine.low %v7034, %v7035
      %v7212 = vunpack.c.l.s4 1966171168
      %v7213 = vunpack.c.0.s8 %v7212
      %v7214 = vlaneseq
      %v7215 = vshrl.u32 %v7214, 7
      %v7216 = vsub.s32 %v7213, %v7215
      %v7217 = vrot.slane %v7210, %v7216
      %v7219 = vunpack.c.l.s4 1966171168
      %v7220 = vunpack.c.0.s8 %v7219
      %v7221 = vlaneseq
      %v7222 = vshrl.u32 %v7221, 7
      %v7223 = vsub.s32 %v7220, %v7222
      %v7224 = vrot.slane %v7202, %v7223
      %v7225 = vcombine.low %v7217, %v7224
      %v7227 = vunpack.c.l.s4 1966171168
      %v7228 = vunpack.c.0.s8 %v7227
      %v7229 = vlaneseq
      %v7230 = vshrl.u32 %v7229, 7
      %v7231 = vsub.s32 %v7228, %v7230
      %v7232 = vrot.slane %v7225, %v7231
      %v7234 = vlaneseq
      %vm7235 = vcmp.ge.s32.totalorder %v7234, 0
      %vm7236 = vcmp.lt.s32.totalorder %v7234, 384
      %vm7237 = vmand %vm7235, %vm7236
      %7238 = vst.msk [vmem:[%s438] sm:$0x7] %vm7237, %v7232
      %p7239 = scmp.lt.s32.totalorder %s24, 1
      %s7240 = scalar_select %p7239, %s24, 1
      %s7241 = smul.addr %s7240, 3
      %s7242 = scalar_lea.vmem %s13, %s7241
      // Predicated region
      $region73: #{net_forward.1} parent=71 // pred_check
        %p7243 = pneg %p320
      $region74: #{net_forward.1} parent=71 // pred_check_branch
        %7245 = sbr.rel (%p7243) target = $region76
      $region75: #{net_forward.1} parent=71 // pred_region
        _
      $region76: #{net_forward.1} parent=71 // pred_fallthru
        _
    $region72: #{net_forward.1} parent=5 // pred_fallthru
      _
    %p7246 = scmp.le.s32.totalorder 2, %s19
    // Predicated region
    $region77: #{net_forward.1} parent=5 // pred_check
      %p7247 = pneg %p7246
    $region78: #{net_forward.1} parent=5 // pred_check_branch
      %7249 = sbr.rel (%p7247) target = $region80
    $region79: #{net_forward.1} parent=5 // pred_region
      %s7250 = ssub.s32 %s19, 2
      // Predicated region
      $region81: #{net_forward.1} parent=79 // pred_check
        %p7251 = pneg %p326
      $region82: #{net_forward.1} parent=79 // pred_check_branch
        %7253 = sbr.rel (%p7251) target = $region84
      $region83: #{net_forward.1} parent=79 // pred_region
        %p7254 = scmp.lt.s32.totalorder %s25, 1
        %s7255 = scalar_select %p7254, %s25, 1
        %s7256 = smul.addr %s7255, 3
        %s7257 = scalar_lea.vmem %s13, %s7256
      $region84: #{net_forward.1} parent=79 // pred_fallthru
        _
    $region80: #{net_forward.1} parent=5 // pred_fallthru
      _
  $region6: #{net_forward.1} parent=0 // loop_footer
    %s23 = sadd.s32 1, %s19
  $region7: #{net_forward.1} parent=0 // loop_footer_branch
    %18 = sbr.rel target = $region3
  $region8: #{net_forward.1} parent=0 // loop_exit
    _

</llo_original>
